<compile_context>
chip_gen: v5e
topology: v5e:2x2
jax: 0.10.0
libtpu: 0.0.40
codegen_flags: <defaults>
</compile_context>

<pallas_src>
import numpy as np
import jax
import jax.numpy as jnp
from jax.experimental import pallas as pl
from jax.experimental.pallas import tpu as pltpu

# ---------------------------------------------------------------------------
# Static model dimensions (from the PyTorch spec)
# ---------------------------------------------------------------------------
C_IN, C1, C2 = 3, 16, 32           # channels: input, conv1 out, conv2 out
H1 = W1 = 16                       # conv1 spatial size
H2 = W2 = 8                        # conv2 spatial size (after pool1)
H3 = W3 = 4                        # spatial size after pool2
IMG1 = H1 * W1                     # 256 positions / image at conv1
IMG2 = H2 * W2                     # 64 positions / image at conv2
POOL2_S = H3 * W3                  # 16 pooled positions feeding the FC
F_IN = C2 * POOL2_S                # 512
F_OUT = 84
MARGIN1 = 24                       # >= W1 + 1 = 17, multiple of 8
MARGIN2 = 16                       # >= W2 + 1 = 9,  multiple of 8


# ---------------------------------------------------------------------------
# Fused Pallas kernel: conv1 -> pool1 -> conv2 -> pool2 -> fc, all in VMEM
# ---------------------------------------------------------------------------
def _fused_forward_kernel(x_ref, w1_ref, b1_ref, p1m_ref, w2_ref, b2_ref,
                          p2m_ref, wfc_ref, bfc_ref, o_ref):
    f32 = jnp.float32
    bsz = o_ref.shape[0]           # images in this grid step (static)
    l1 = bsz * IMG1                # dense flat rows at conv1 resolution
    l2 = bsz * IMG2                # dense flat rows at conv2 resolution

    # ---- conv1: 3x3 / pad 1 as ONE K=27 matmul over shifted+masked views --
    x = x_ref[...]                                         # (l1, 3)
    zpad1 = jnp.zeros((MARGIN1, C_IN), f32)
    xe = jnp.concatenate([zpad1, x, zpad1], axis=0)        # margin for shifts
    r1 = jax.lax.broadcasted_iota(jnp.int32, (l1, 1), 0)   # row = b*256+i*16+j
    j1 = r1 & (W1 - 1)
    i1 = (r1 >> 4) & (H1 - 1)
    cols = []
    for di in range(3):
        for dj in range(3):
            off = (di - 1) * W1 + (dj - 1)
            v = xe[MARGIN1 + off:MARGIN1 + off + l1, :]    # (l1, 3)
            ok = ((i1 + (di - 1) >= 0) & (i1 + (di - 1) < H1)
                  & (j1 + (dj - 1) >= 0) & (j1 + (dj - 1) < W1))
            cols.append(jnp.where(ok, v, 0.0))             # zero-padding mask
    a1 = jnp.concatenate(cols, axis=1)                     # (l1, 27)
    y1 = jnp.dot(a1, w1_ref[...], preferred_element_type=f32) + b1_ref[...]

    # ---- avgpool1 2x2: batch-independent (64,256) matrix, once per image ---
    p1m = p1m_ref[...]                                     # (64, 256)
    p1_blocks = [jnp.dot(p1m, y1[b * IMG1:(b + 1) * IMG1, :],
                         preferred_element_type=f32) for b in range(bsz)]
    zpad2 = jnp.zeros((MARGIN2, C1), f32)
    p1e = jnp.concatenate([zpad2] + p1_blocks + [zpad2], axis=0)

    # ---- conv2: 3x3 / pad 1 as ONE K=144 matmul ----------------------------
    r2 = jax.lax.broadcasted_iota(jnp.int32, (l2, 1), 0)   # row = b*64+i*8+j
    j2 = r2 & (W2 - 1)
    i2 = (r2 >> 3) & (H2 - 1)
    cols2 = []
    for di in range(3):
        for dj in range(3):
            off = (di - 1) * W2 + (dj - 1)
            v = p1e[MARGIN2 + off:MARGIN2 + off + l2, :]   # (l2, 16)
            ok = ((i2 + (di - 1) >= 0) & (i2 + (di - 1) < H2)
                  & (j2 + (dj - 1) >= 0) & (j2 + (dj - 1) < W2))
            cols2.append(jnp.where(ok, v, 0.0))
    a2 = jnp.concatenate(cols2, axis=1)                    # (l2, 144)
    y2 = jnp.dot(a2, w2_ref[...], preferred_element_type=f32) + b2_ref[...]

    # ---- avgpool2 2x2 per image + flatten to (bsz, 512) features ----------
    p2m = p2m_ref[...]                                     # (16, 64)
    feat_rows = []
    for b in range(bsz):
        p2b = jnp.dot(p2m, y2[b * IMG2:(b + 1) * IMG2, :],
                      preferred_element_type=f32)          # (16, 32)
        feat_rows.append(jnp.concatenate(
            [p2b[s:s + 1, :] for s in range(POOL2_S)], axis=1))   # (1, 512)
    feat = jnp.concatenate(feat_rows, axis=0)              # (bsz, 512)

    # ---- fc: ONE K=512 matmul (weights pre-permuted to the feat order) ----
    o_ref[...] = (jnp.dot(feat, wfc_ref[...], preferred_element_type=f32)
                  + bfc_ref[...])


# ---------------------------------------------------------------------------
# Batch-independent avg-pool matrices (built once, tiny: 64KB + 4KB)
# ---------------------------------------------------------------------------
def _avgpool_matrix(h, w):
    ho, wo = h // 2, w // 2
    m = np.zeros((ho * wo, h * w), np.float32)
    for io in range(ho):
        for jo in range(wo):
            for u in range(2):
                for v in range(2):
                    m[io * wo + jo, (2 * io + u) * w + (2 * jo + v)] = 0.25
    return jnp.asarray(m)


_POOL1_MAT = _avgpool_matrix(H1, W1)   # (64, 256)
_POOL2_MAT = _avgpool_matrix(H2, W2)   # (16, 64)


# ---------------------------------------------------------------------------
# Wrapper
# ---------------------------------------------------------------------------
@jax.jit
def _forward_impl(packed, x, p1m, p2m):
    n = x.shape[0]
    # Batch block per grid step: 8 images when possible (amortizes per-step
    # overhead, shards across v7x's two TensorCores), otherwise one block.
    bsz = 8 if n % 8 == 0 else n
    # Single relayout left to XLA: NCHW -> (positions, channels) flat rows.
    xflat = jnp.transpose(x, (0, 2, 3, 1)).reshape(n * IMG1, C_IN)

    return pl.pallas_call(
        _fused_forward_kernel,
        out_shape=jax.ShapeDtypeStruct((n, F_OUT), jnp.float32),
        grid=(n // bsz,),
        in_specs=[
            pl.BlockSpec((bsz * IMG1, C_IN), lambda i: (i, 0)),
            pl.BlockSpec((9 * C_IN, C1), lambda i: (0, 0)),
            pl.BlockSpec((1, C1), lambda i: (0, 0)),
            pl.BlockSpec((IMG2, IMG1), lambda i: (0, 0)),      # pool1 (64,256)
            pl.BlockSpec((9 * C1, C2), lambda i: (0, 0)),
            pl.BlockSpec((1, C2), lambda i: (0, 0)),
            pl.BlockSpec((POOL2_S, IMG2), lambda i: (0, 0)),   # pool2 (16,64)
            pl.BlockSpec((F_IN, F_OUT), lambda i: (0, 0)),
            pl.BlockSpec((1, F_OUT), lambda i: (0, 0)),
        ],
        out_specs=pl.BlockSpec((bsz, F_OUT), lambda i: (i, 0)),
        compiler_params=pltpu.CompilerParams(
            dimension_semantics=("parallel",)),
    )(xflat, packed["w1"], packed["b1"], p1m, packed["w2"], packed["b2"],
      p2m, packed["wfc"], packed["bfc"])


def model_forward(packed, x):
    return _forward_impl(packed, x, _POOL1_MAT, _POOL2_MAT)


# ---------------------------------------------------------------------------
# Parameters (raw = PyTorch layout, packed = pre-transposed for the kernel)
# ---------------------------------------------------------------------------
def init_params(key):
    def uniform(k, shape, fan_in):
        bound = 1.0 / np.sqrt(fan_in)
        return jax.random.uniform(k, shape, jnp.float32, -bound, bound)

    ks = jax.random.split(key, 6)
    raw = {
        "conv1_w": uniform(ks[0], (C1, C_IN, 3, 3), C_IN * 9),
        "conv1_b": uniform(ks[1], (C1,), C_IN * 9),
        "conv2_w": uniform(ks[2], (C2, C1, 3, 3), C1 * 9),
        "conv2_b": uniform(ks[3], (C2,), C1 * 9),
        "fc_w": uniform(ks[4], (F_OUT, F_IN), F_IN),
        "fc_b": uniform(ks[5], (F_OUT,), F_IN),
    }
    packed = {
        # conv weights as ((tap, c_in), c_out): row = (di*3+dj)*C_in + ci
        "w1": jnp.transpose(raw["conv1_w"], (2, 3, 1, 0)).reshape(9 * C_IN, C1),
        "b1": raw["conv1_b"].reshape(1, C1),
        "w2": jnp.transpose(raw["conv2_w"], (2, 3, 1, 0)).reshape(9 * C1, C2),
        "b2": raw["conv2_b"].reshape(1, C2),
        # fc weight permuted from torch feature order f=c*16+s to the kernel's
        # feature order g=s*32+c, so the FC is a single plain matmul.
        "wfc": jnp.transpose(raw["fc_w"].reshape(F_OUT, C2, POOL2_S),
                             (2, 1, 0)).reshape(F_IN, F_OUT),
        "bfc": raw["fc_b"].reshape(1, F_OUT),
    }
    return raw, packed


# ---------------------------------------------------------------------------
# Pure-JAX reference (mirrors the PyTorch forward) for a numeric sanity check
# ---------------------------------------------------------------------------
def _reference_forward(raw, x):
    hi = jax.lax.Precision.HIGHEST
    dn = ("NCHW", "OIHW", "NCHW")
    y1 = jax.lax.conv_general_dilated(x, raw["conv1_w"], (1, 1),
                                      ((1, 1), (1, 1)),
                                      dimension_numbers=dn, precision=hi)
    y1 = y1 + raw["conv1_b"][None, :, None, None]
    p1 = y1.reshape(y1.shape[0], C1, H2, 2, W2, 2).mean(axis=(3, 5))
    y2 = jax.lax.conv_general_dilated(p1, raw["conv2_w"], (1, 1),
                                      ((1, 1), (1, 1)),
                                      dimension_numbers=dn, precision=hi)
    y2 = y2 + raw["conv2_b"][None, :, None, None]
    p2 = y2.reshape(y2.shape[0], C2, H3, 2, W3, 2).mean(axis=(3, 5))
    flat = p2.reshape(p2.shape[0], -1)
    return jnp.dot(flat, raw["fc_w"].T, precision=hi) + raw["fc_b"]


if __name__ == "__main__":
    key = jax.random.PRNGKey(0)
    kx, kp = jax.random.split(key)
    x = jax.random.normal(kx, (2, C_IN, H1, W1), dtype=jnp.float32)
    raw, packed = init_params(kp)

    out = model_forward(packed, x)
    jax.block_until_ready(out)
    assert out.shape == (2, F_OUT), out.shape

    ref = _reference_forward(raw, x)
    np.testing.assert_allclose(np.asarray(out), np.asarray(ref),
                               rtol=2e-3, atol=2e-3)
    print("KERNEL_OK")
</pallas_src>

<mosaic_0001>
module attributes {stable_mosaic.version = 11 : i64} {
  func.func @_fused_forward_kernel(%arg0: i32, %arg1: memref<512x3xf32, #tpu.memory_space<vmem>>, %arg2: memref<27x16xf32, #tpu.memory_space<vmem>>, %arg3: memref<1x16xf32, #tpu.memory_space<vmem>>, %arg4: memref<64x256xf32, #tpu.memory_space<vmem>>, %arg5: memref<144x32xf32, #tpu.memory_space<vmem>>, %arg6: memref<1x32xf32, #tpu.memory_space<vmem>>, %arg7: memref<16x64xf32, #tpu.memory_space<vmem>>, %arg8: memref<512x84xf32, #tpu.memory_space<vmem>>, %arg9: memref<1x84xf32, #tpu.memory_space<vmem>>, %arg10: memref<2x84xf32, #tpu.memory_space<vmem>>) attributes {dimension_semantics = [#tpu.dimension_semantics<parallel>], iteration_bounds = array<i64: 1>, scalar_prefetch = 0 : i64, scratch_operands = 0 : i64, tpu.core_type = #tpu.core_type<tc>, window_params = [{transform_indices = @transform_0, window_bounds = array<i64: 512, 3>}, {pipeline_mode = #tpu.pipeline_mode<synchronous>, transform_indices = @transform_1, window_bounds = array<i64: 27, 16>}, {pipeline_mode = #tpu.pipeline_mode<synchronous>, transform_indices = @transform_2, window_bounds = array<i64: 1, 16>}, {pipeline_mode = #tpu.pipeline_mode<synchronous>, transform_indices = @transform_3, window_bounds = array<i64: 64, 256>}, {pipeline_mode = #tpu.pipeline_mode<synchronous>, transform_indices = @transform_4, window_bounds = array<i64: 144, 32>}, {pipeline_mode = #tpu.pipeline_mode<synchronous>, transform_indices = @transform_5, window_bounds = array<i64: 1, 32>}, {pipeline_mode = #tpu.pipeline_mode<synchronous>, transform_indices = @transform_6, window_bounds = array<i64: 16, 64>}, {pipeline_mode = #tpu.pipeline_mode<synchronous>, transform_indices = @transform_7, window_bounds = array<i64: 512, 84>}, {pipeline_mode = #tpu.pipeline_mode<synchronous>, transform_indices = @transform_8, window_bounds = array<i64: 1, 84>}, {transform_indices = @transform_9, window_bounds = array<i64: 2, 84>}]} {
    %c0 = arith.constant 0 : index
    %c0_0 = arith.constant 0 : index
    %0 = vector.load %arg1[%c0, %c0_0] : memref<512x3xf32, #tpu.memory_space<vmem>>, vector<512x3xf32>
    %cst = arith.constant 0.000000e+00 : f32
    %1 = vector.broadcast %cst : f32 to vector<24x3xf32>
    %2 = tpu.concatenate %1, %0, %1 in 0 : vector<24x3xf32>, vector<512x3xf32>, vector<24x3xf32> -> vector<560x3xf32>
    %3 = tpu.iota {dimensions = array<i32: 0>} : vector<512x1xi32>
    %c15_i32 = arith.constant 15 : i32
    %4 = vector.broadcast %c15_i32 : i32 to vector<512x1xi32>
    %5 = arith.andi %3, %4 : vector<512x1xi32>
    %c4_i32 = arith.constant 4 : i32
    %6 = vector.broadcast %c4_i32 : i32 to vector<512x1xi32>
    %7 = arith.shrsi %3, %6 : vector<512x1xi32>
    %c15_i32_1 = arith.constant 15 : i32
    %8 = vector.broadcast %c15_i32_1 : i32 to vector<512x1xi32>
    %9 = arith.andi %7, %8 : vector<512x1xi32>
    %10 = vector.extract_strided_slice %2 {offsets = [7, 0], sizes = [512, 3], strides = [1, 1]} : vector<560x3xf32> to vector<512x3xf32>
    %c-1_i32 = arith.constant -1 : i32
    %11 = vector.broadcast %c-1_i32 : i32 to vector<512x1xi32>
    %12 = arith.addi %9, %11 : vector<512x1xi32>
    %c0_i32 = arith.constant 0 : i32
    %13 = vector.broadcast %c0_i32 : i32 to vector<512x1xi32>
    %14 = arith.cmpi sge, %12, %13 : vector<512x1xi32>
    %c-1_i32_2 = arith.constant -1 : i32
    %15 = vector.broadcast %c-1_i32_2 : i32 to vector<512x1xi32>
    %16 = arith.addi %9, %15 : vector<512x1xi32>
    %c16_i32 = arith.constant 16 : i32
    %17 = vector.broadcast %c16_i32 : i32 to vector<512x1xi32>
    %18 = arith.cmpi slt, %16, %17 : vector<512x1xi32>
    %19 = arith.andi %14, %18 : vector<512x1xi1>
    %c-1_i32_3 = arith.constant -1 : i32
    %20 = vector.broadcast %c-1_i32_3 : i32 to vector<512x1xi32>
    %21 = arith.addi %5, %20 : vector<512x1xi32>
    %c0_i32_4 = arith.constant 0 : i32
    %22 = vector.broadcast %c0_i32_4 : i32 to vector<512x1xi32>
    %23 = arith.cmpi sge, %21, %22 : vector<512x1xi32>
    %24 = arith.andi %19, %23 : vector<512x1xi1>
    %c-1_i32_5 = arith.constant -1 : i32
    %25 = vector.broadcast %c-1_i32_5 : i32 to vector<512x1xi32>
    %26 = arith.addi %5, %25 : vector<512x1xi32>
    %c16_i32_6 = arith.constant 16 : i32
    %27 = vector.broadcast %c16_i32_6 : i32 to vector<512x1xi32>
    %28 = arith.cmpi slt, %26, %27 : vector<512x1xi32>
    %29 = arith.andi %24, %28 : vector<512x1xi1>
    %cst_7 = arith.constant 0.000000e+00 : f32
    %30 = vector.shape_cast %29 : vector<512x1xi1> to vector<512x1xi1>
    %31 = vector.broadcast %30 : vector<512x1xi1> to vector<512x3xi1>
    %32 = vector.broadcast %cst_7 : f32 to vector<512x3xf32>
    %33 = arith.select %31, %10, %32 : vector<512x3xi1>, vector<512x3xf32>
    %34 = vector.extract_strided_slice %2 {offsets = [8, 0], sizes = [512, 3], strides = [1, 1]} : vector<560x3xf32> to vector<512x3xf32>
    %c-1_i32_8 = arith.constant -1 : i32
    %35 = vector.broadcast %c-1_i32_8 : i32 to vector<512x1xi32>
    %36 = arith.addi %9, %35 : vector<512x1xi32>
    %c0_i32_9 = arith.constant 0 : i32
    %37 = vector.broadcast %c0_i32_9 : i32 to vector<512x1xi32>
    %38 = arith.cmpi sge, %36, %37 : vector<512x1xi32>
    %c-1_i32_10 = arith.constant -1 : i32
    %39 = vector.broadcast %c-1_i32_10 : i32 to vector<512x1xi32>
    %40 = arith.addi %9, %39 : vector<512x1xi32>
    %c16_i32_11 = arith.constant 16 : i32
    %41 = vector.broadcast %c16_i32_11 : i32 to vector<512x1xi32>
    %42 = arith.cmpi slt, %40, %41 : vector<512x1xi32>
    %43 = arith.andi %38, %42 : vector<512x1xi1>
    %c0_i32_12 = arith.constant 0 : i32
    %44 = vector.broadcast %c0_i32_12 : i32 to vector<512x1xi32>
    %45 = arith.addi %5, %44 : vector<512x1xi32>
    %c0_i32_13 = arith.constant 0 : i32
    %46 = vector.broadcast %c0_i32_13 : i32 to vector<512x1xi32>
    %47 = arith.cmpi sge, %45, %46 : vector<512x1xi32>
    %48 = arith.andi %43, %47 : vector<512x1xi1>
    %c0_i32_14 = arith.constant 0 : i32
    %49 = vector.broadcast %c0_i32_14 : i32 to vector<512x1xi32>
    %50 = arith.addi %5, %49 : vector<512x1xi32>
    %c16_i32_15 = arith.constant 16 : i32
    %51 = vector.broadcast %c16_i32_15 : i32 to vector<512x1xi32>
    %52 = arith.cmpi slt, %50, %51 : vector<512x1xi32>
    %53 = arith.andi %48, %52 : vector<512x1xi1>
    %cst_16 = arith.constant 0.000000e+00 : f32
    %54 = vector.shape_cast %53 : vector<512x1xi1> to vector<512x1xi1>
    %55 = vector.broadcast %54 : vector<512x1xi1> to vector<512x3xi1>
    %56 = vector.broadcast %cst_16 : f32 to vector<512x3xf32>
    %57 = arith.select %55, %34, %56 : vector<512x3xi1>, vector<512x3xf32>
    %58 = vector.extract_strided_slice %2 {offsets = [9, 0], sizes = [512, 3], strides = [1, 1]} : vector<560x3xf32> to vector<512x3xf32>
    %c-1_i32_17 = arith.constant -1 : i32
    %59 = vector.broadcast %c-1_i32_17 : i32 to vector<512x1xi32>
    %60 = arith.addi %9, %59 : vector<512x1xi32>
    %c0_i32_18 = arith.constant 0 : i32
    %61 = vector.broadcast %c0_i32_18 : i32 to vector<512x1xi32>
    %62 = arith.cmpi sge, %60, %61 : vector<512x1xi32>
    %c-1_i32_19 = arith.constant -1 : i32
    %63 = vector.broadcast %c-1_i32_19 : i32 to vector<512x1xi32>
    %64 = arith.addi %9, %63 : vector<512x1xi32>
    %c16_i32_20 = arith.constant 16 : i32
    %65 = vector.broadcast %c16_i32_20 : i32 to vector<512x1xi32>
    %66 = arith.cmpi slt, %64, %65 : vector<512x1xi32>
    %67 = arith.andi %62, %66 : vector<512x1xi1>
    %c1_i32 = arith.constant 1 : i32
    %68 = vector.broadcast %c1_i32 : i32 to vector<512x1xi32>
    %69 = arith.addi %5, %68 : vector<512x1xi32>
    %c0_i32_21 = arith.constant 0 : i32
    %70 = vector.broadcast %c0_i32_21 : i32 to vector<512x1xi32>
    %71 = arith.cmpi sge, %69, %70 : vector<512x1xi32>
    %72 = arith.andi %67, %71 : vector<512x1xi1>
    %c1_i32_22 = arith.constant 1 : i32
    %73 = vector.broadcast %c1_i32_22 : i32 to vector<512x1xi32>
    %74 = arith.addi %5, %73 : vector<512x1xi32>
    %c16_i32_23 = arith.constant 16 : i32
    %75 = vector.broadcast %c16_i32_23 : i32 to vector<512x1xi32>
    %76 = arith.cmpi slt, %74, %75 : vector<512x1xi32>
    %77 = arith.andi %72, %76 : vector<512x1xi1>
    %cst_24 = arith.constant 0.000000e+00 : f32
    %78 = vector.shape_cast %77 : vector<512x1xi1> to vector<512x1xi1>
    %79 = vector.broadcast %78 : vector<512x1xi1> to vector<512x3xi1>
    %80 = vector.broadcast %cst_24 : f32 to vector<512x3xf32>
    %81 = arith.select %79, %58, %80 : vector<512x3xi1>, vector<512x3xf32>
    %82 = vector.extract_strided_slice %2 {offsets = [23, 0], sizes = [512, 3], strides = [1, 1]} : vector<560x3xf32> to vector<512x3xf32>
    %c0_i32_25 = arith.constant 0 : i32
    %83 = vector.broadcast %c0_i32_25 : i32 to vector<512x1xi32>
    %84 = arith.addi %9, %83 : vector<512x1xi32>
    %c0_i32_26 = arith.constant 0 : i32
    %85 = vector.broadcast %c0_i32_26 : i32 to vector<512x1xi32>
    %86 = arith.cmpi sge, %84, %85 : vector<512x1xi32>
    %c0_i32_27 = arith.constant 0 : i32
    %87 = vector.broadcast %c0_i32_27 : i32 to vector<512x1xi32>
    %88 = arith.addi %9, %87 : vector<512x1xi32>
    %c16_i32_28 = arith.constant 16 : i32
    %89 = vector.broadcast %c16_i32_28 : i32 to vector<512x1xi32>
    %90 = arith.cmpi slt, %88, %89 : vector<512x1xi32>
    %91 = arith.andi %86, %90 : vector<512x1xi1>
    %c-1_i32_29 = arith.constant -1 : i32
    %92 = vector.broadcast %c-1_i32_29 : i32 to vector<512x1xi32>
    %93 = arith.addi %5, %92 : vector<512x1xi32>
    %c0_i32_30 = arith.constant 0 : i32
    %94 = vector.broadcast %c0_i32_30 : i32 to vector<512x1xi32>
    %95 = arith.cmpi sge, %93, %94 : vector<512x1xi32>
    %96 = arith.andi %91, %95 : vector<512x1xi1>
    %c-1_i32_31 = arith.constant -1 : i32
    %97 = vector.broadcast %c-1_i32_31 : i32 to vector<512x1xi32>
    %98 = arith.addi %5, %97 : vector<512x1xi32>
    %c16_i32_32 = arith.constant 16 : i32
    %99 = vector.broadcast %c16_i32_32 : i32 to vector<512x1xi32>
    %100 = arith.cmpi slt, %98, %99 : vector<512x1xi32>
    %101 = arith.andi %96, %100 : vector<512x1xi1>
    %cst_33 = arith.constant 0.000000e+00 : f32
    %102 = vector.shape_cast %101 : vector<512x1xi1> to vector<512x1xi1>
    %103 = vector.broadcast %102 : vector<512x1xi1> to vector<512x3xi1>
    %104 = vector.broadcast %cst_33 : f32 to vector<512x3xf32>
    %105 = arith.select %103, %82, %104 : vector<512x3xi1>, vector<512x3xf32>
    %106 = vector.extract_strided_slice %2 {offsets = [24, 0], sizes = [512, 3], strides = [1, 1]} : vector<560x3xf32> to vector<512x3xf32>
    %c0_i32_34 = arith.constant 0 : i32
    %107 = vector.broadcast %c0_i32_34 : i32 to vector<512x1xi32>
    %108 = arith.addi %9, %107 : vector<512x1xi32>
    %c0_i32_35 = arith.constant 0 : i32
    %109 = vector.broadcast %c0_i32_35 : i32 to vector<512x1xi32>
    %110 = arith.cmpi sge, %108, %109 : vector<512x1xi32>
    %c0_i32_36 = arith.constant 0 : i32
    %111 = vector.broadcast %c0_i32_36 : i32 to vector<512x1xi32>
    %112 = arith.addi %9, %111 : vector<512x1xi32>
    %c16_i32_37 = arith.constant 16 : i32
    %113 = vector.broadcast %c16_i32_37 : i32 to vector<512x1xi32>
    %114 = arith.cmpi slt, %112, %113 : vector<512x1xi32>
    %115 = arith.andi %110, %114 : vector<512x1xi1>
    %c0_i32_38 = arith.constant 0 : i32
    %116 = vector.broadcast %c0_i32_38 : i32 to vector<512x1xi32>
    %117 = arith.addi %5, %116 : vector<512x1xi32>
    %c0_i32_39 = arith.constant 0 : i32
    %118 = vector.broadcast %c0_i32_39 : i32 to vector<512x1xi32>
    %119 = arith.cmpi sge, %117, %118 : vector<512x1xi32>
    %120 = arith.andi %115, %119 : vector<512x1xi1>
    %c0_i32_40 = arith.constant 0 : i32
    %121 = vector.broadcast %c0_i32_40 : i32 to vector<512x1xi32>
    %122 = arith.addi %5, %121 : vector<512x1xi32>
    %c16_i32_41 = arith.constant 16 : i32
    %123 = vector.broadcast %c16_i32_41 : i32 to vector<512x1xi32>
    %124 = arith.cmpi slt, %122, %123 : vector<512x1xi32>
    %125 = arith.andi %120, %124 : vector<512x1xi1>
    %cst_42 = arith.constant 0.000000e+00 : f32
    %126 = vector.shape_cast %125 : vector<512x1xi1> to vector<512x1xi1>
    %127 = vector.broadcast %126 : vector<512x1xi1> to vector<512x3xi1>
    %128 = vector.broadcast %cst_42 : f32 to vector<512x3xf32>
    %129 = arith.select %127, %106, %128 : vector<512x3xi1>, vector<512x3xf32>
    %130 = vector.extract_strided_slice %2 {offsets = [25, 0], sizes = [512, 3], strides = [1, 1]} : vector<560x3xf32> to vector<512x3xf32>
    %c0_i32_43 = arith.constant 0 : i32
    %131 = vector.broadcast %c0_i32_43 : i32 to vector<512x1xi32>
    %132 = arith.addi %9, %131 : vector<512x1xi32>
    %c0_i32_44 = arith.constant 0 : i32
    %133 = vector.broadcast %c0_i32_44 : i32 to vector<512x1xi32>
    %134 = arith.cmpi sge, %132, %133 : vector<512x1xi32>
    %c0_i32_45 = arith.constant 0 : i32
    %135 = vector.broadcast %c0_i32_45 : i32 to vector<512x1xi32>
    %136 = arith.addi %9, %135 : vector<512x1xi32>
    %c16_i32_46 = arith.constant 16 : i32
    %137 = vector.broadcast %c16_i32_46 : i32 to vector<512x1xi32>
    %138 = arith.cmpi slt, %136, %137 : vector<512x1xi32>
    %139 = arith.andi %134, %138 : vector<512x1xi1>
    %c1_i32_47 = arith.constant 1 : i32
    %140 = vector.broadcast %c1_i32_47 : i32 to vector<512x1xi32>
    %141 = arith.addi %5, %140 : vector<512x1xi32>
    %c0_i32_48 = arith.constant 0 : i32
    %142 = vector.broadcast %c0_i32_48 : i32 to vector<512x1xi32>
    %143 = arith.cmpi sge, %141, %142 : vector<512x1xi32>
    %144 = arith.andi %139, %143 : vector<512x1xi1>
    %c1_i32_49 = arith.constant 1 : i32
    %145 = vector.broadcast %c1_i32_49 : i32 to vector<512x1xi32>
    %146 = arith.addi %5, %145 : vector<512x1xi32>
    %c16_i32_50 = arith.constant 16 : i32
    %147 = vector.broadcast %c16_i32_50 : i32 to vector<512x1xi32>
    %148 = arith.cmpi slt, %146, %147 : vector<512x1xi32>
    %149 = arith.andi %144, %148 : vector<512x1xi1>
    %cst_51 = arith.constant 0.000000e+00 : f32
    %150 = vector.shape_cast %149 : vector<512x1xi1> to vector<512x1xi1>
    %151 = vector.broadcast %150 : vector<512x1xi1> to vector<512x3xi1>
    %152 = vector.broadcast %cst_51 : f32 to vector<512x3xf32>
    %153 = arith.select %151, %130, %152 : vector<512x3xi1>, vector<512x3xf32>
    %154 = vector.extract_strided_slice %2 {offsets = [39, 0], sizes = [512, 3], strides = [1, 1]} : vector<560x3xf32> to vector<512x3xf32>
    %c1_i32_52 = arith.constant 1 : i32
    %155 = vector.broadcast %c1_i32_52 : i32 to vector<512x1xi32>
    %156 = arith.addi %9, %155 : vector<512x1xi32>
    %c0_i32_53 = arith.constant 0 : i32
    %157 = vector.broadcast %c0_i32_53 : i32 to vector<512x1xi32>
    %158 = arith.cmpi sge, %156, %157 : vector<512x1xi32>
    %c1_i32_54 = arith.constant 1 : i32
    %159 = vector.broadcast %c1_i32_54 : i32 to vector<512x1xi32>
    %160 = arith.addi %9, %159 : vector<512x1xi32>
    %c16_i32_55 = arith.constant 16 : i32
    %161 = vector.broadcast %c16_i32_55 : i32 to vector<512x1xi32>
    %162 = arith.cmpi slt, %160, %161 : vector<512x1xi32>
    %163 = arith.andi %158, %162 : vector<512x1xi1>
    %c-1_i32_56 = arith.constant -1 : i32
    %164 = vector.broadcast %c-1_i32_56 : i32 to vector<512x1xi32>
    %165 = arith.addi %5, %164 : vector<512x1xi32>
    %c0_i32_57 = arith.constant 0 : i32
    %166 = vector.broadcast %c0_i32_57 : i32 to vector<512x1xi32>
    %167 = arith.cmpi sge, %165, %166 : vector<512x1xi32>
    %168 = arith.andi %163, %167 : vector<512x1xi1>
    %c-1_i32_58 = arith.constant -1 : i32
    %169 = vector.broadcast %c-1_i32_58 : i32 to vector<512x1xi32>
    %170 = arith.addi %5, %169 : vector<512x1xi32>
    %c16_i32_59 = arith.constant 16 : i32
    %171 = vector.broadcast %c16_i32_59 : i32 to vector<512x1xi32>
    %172 = arith.cmpi slt, %170, %171 : vector<512x1xi32>
    %173 = arith.andi %168, %172 : vector<512x1xi1>
    %cst_60 = arith.constant 0.000000e+00 : f32
    %174 = vector.shape_cast %173 : vector<512x1xi1> to vector<512x1xi1>
    %175 = vector.broadcast %174 : vector<512x1xi1> to vector<512x3xi1>
    %176 = vector.broadcast %cst_60 : f32 to vector<512x3xf32>
    %177 = arith.select %175, %154, %176 : vector<512x3xi1>, vector<512x3xf32>
    %178 = vector.extract_strided_slice %2 {offsets = [40, 0], sizes = [512, 3], strides = [1, 1]} : vector<560x3xf32> to vector<512x3xf32>
    %c1_i32_61 = arith.constant 1 : i32
    %179 = vector.broadcast %c1_i32_61 : i32 to vector<512x1xi32>
    %180 = arith.addi %9, %179 : vector<512x1xi32>
    %c0_i32_62 = arith.constant 0 : i32
    %181 = vector.broadcast %c0_i32_62 : i32 to vector<512x1xi32>
    %182 = arith.cmpi sge, %180, %181 : vector<512x1xi32>
    %c1_i32_63 = arith.constant 1 : i32
    %183 = vector.broadcast %c1_i32_63 : i32 to vector<512x1xi32>
    %184 = arith.addi %9, %183 : vector<512x1xi32>
    %c16_i32_64 = arith.constant 16 : i32
    %185 = vector.broadcast %c16_i32_64 : i32 to vector<512x1xi32>
    %186 = arith.cmpi slt, %184, %185 : vector<512x1xi32>
    %187 = arith.andi %182, %186 : vector<512x1xi1>
    %c0_i32_65 = arith.constant 0 : i32
    %188 = vector.broadcast %c0_i32_65 : i32 to vector<512x1xi32>
    %189 = arith.addi %5, %188 : vector<512x1xi32>
    %c0_i32_66 = arith.constant 0 : i32
    %190 = vector.broadcast %c0_i32_66 : i32 to vector<512x1xi32>
    %191 = arith.cmpi sge, %189, %190 : vector<512x1xi32>
    %192 = arith.andi %187, %191 : vector<512x1xi1>
    %c0_i32_67 = arith.constant 0 : i32
    %193 = vector.broadcast %c0_i32_67 : i32 to vector<512x1xi32>
    %194 = arith.addi %5, %193 : vector<512x1xi32>
    %c16_i32_68 = arith.constant 16 : i32
    %195 = vector.broadcast %c16_i32_68 : i32 to vector<512x1xi32>
    %196 = arith.cmpi slt, %194, %195 : vector<512x1xi32>
    %197 = arith.andi %192, %196 : vector<512x1xi1>
    %cst_69 = arith.constant 0.000000e+00 : f32
    %198 = vector.shape_cast %197 : vector<512x1xi1> to vector<512x1xi1>
    %199 = vector.broadcast %198 : vector<512x1xi1> to vector<512x3xi1>
    %200 = vector.broadcast %cst_69 : f32 to vector<512x3xf32>
    %201 = arith.select %199, %178, %200 : vector<512x3xi1>, vector<512x3xf32>
    %202 = vector.extract_strided_slice %2 {offsets = [41, 0], sizes = [512, 3], strides = [1, 1]} : vector<560x3xf32> to vector<512x3xf32>
    %c1_i32_70 = arith.constant 1 : i32
    %203 = vector.broadcast %c1_i32_70 : i32 to vector<512x1xi32>
    %204 = arith.addi %9, %203 : vector<512x1xi32>
    %c0_i32_71 = arith.constant 0 : i32
    %205 = vector.broadcast %c0_i32_71 : i32 to vector<512x1xi32>
    %206 = arith.cmpi sge, %204, %205 : vector<512x1xi32>
    %c1_i32_72 = arith.constant 1 : i32
    %207 = vector.broadcast %c1_i32_72 : i32 to vector<512x1xi32>
    %208 = arith.addi %9, %207 : vector<512x1xi32>
    %c16_i32_73 = arith.constant 16 : i32
    %209 = vector.broadcast %c16_i32_73 : i32 to vector<512x1xi32>
    %210 = arith.cmpi slt, %208, %209 : vector<512x1xi32>
    %211 = arith.andi %206, %210 : vector<512x1xi1>
    %c1_i32_74 = arith.constant 1 : i32
    %212 = vector.broadcast %c1_i32_74 : i32 to vector<512x1xi32>
    %213 = arith.addi %5, %212 : vector<512x1xi32>
    %c0_i32_75 = arith.constant 0 : i32
    %214 = vector.broadcast %c0_i32_75 : i32 to vector<512x1xi32>
    %215 = arith.cmpi sge, %213, %214 : vector<512x1xi32>
    %216 = arith.andi %211, %215 : vector<512x1xi1>
    %c1_i32_76 = arith.constant 1 : i32
    %217 = vector.broadcast %c1_i32_76 : i32 to vector<512x1xi32>
    %218 = arith.addi %5, %217 : vector<512x1xi32>
    %c16_i32_77 = arith.constant 16 : i32
    %219 = vector.broadcast %c16_i32_77 : i32 to vector<512x1xi32>
    %220 = arith.cmpi slt, %218, %219 : vector<512x1xi32>
    %221 = arith.andi %216, %220 : vector<512x1xi1>
    %cst_78 = arith.constant 0.000000e+00 : f32
    %222 = vector.shape_cast %221 : vector<512x1xi1> to vector<512x1xi1>
    %223 = vector.broadcast %222 : vector<512x1xi1> to vector<512x3xi1>
    %224 = vector.broadcast %cst_78 : f32 to vector<512x3xf32>
    %225 = arith.select %223, %202, %224 : vector<512x3xi1>, vector<512x3xf32>
    %226 = tpu.concatenate %33, %57, %81, %105, %129, %153, %177, %201, %225 in 1 : vector<512x3xf32>, vector<512x3xf32>, vector<512x3xf32>, vector<512x3xf32>, vector<512x3xf32>, vector<512x3xf32>, vector<512x3xf32>, vector<512x3xf32>, vector<512x3xf32> -> vector<512x27xf32>
    %c0_79 = arith.constant 0 : index
    %c0_80 = arith.constant 0 : index
    %227 = vector.load %arg2[%c0_79, %c0_80] : memref<27x16xf32, #tpu.memory_space<vmem>>, vector<27x16xf32>
    %cst_81 = arith.constant dense<0.000000e+00> : vector<512x16xf32>
    %228 = tpu.matmul %226, %227, %cst_81 {dimension_numbers = #tpu.dot_dimension_numbers<[1], [0], [0], [1], [0, 0, 1, 1], [], []>} : vector<512x27xf32>, vector<27x16xf32>, vector<512x16xf32> -> vector<512x16xf32>
    %c0_82 = arith.constant 0 : index
    %c0_83 = arith.constant 0 : index
    %229 = vector.load %arg3[%c0_82, %c0_83] : memref<1x16xf32, #tpu.memory_space<vmem>>, vector<1x16xf32>
    %230 = vector.broadcast %229 : vector<1x16xf32> to vector<512x16xf32>
    %231 = arith.addf %228, %230 : vector<512x16xf32>
    %c0_84 = arith.constant 0 : index
    %c0_85 = arith.constant 0 : index
    %232 = vector.load %arg4[%c0_84, %c0_85] : memref<64x256xf32, #tpu.memory_space<vmem>>, vector<64x256xf32>
    %233 = vector.extract_strided_slice %231 {offsets = [0, 0], sizes = [256, 16], strides = [1, 1]} : vector<512x16xf32> to vector<256x16xf32>
    %cst_86 = arith.constant dense<0.000000e+00> : vector<64x16xf32>
    %234 = tpu.matmul %232, %233, %cst_86 {dimension_numbers = #tpu.dot_dimension_numbers<[1], [0], [0], [1], [0, 0, 1, 1], [], []>} : vector<64x256xf32>, vector<256x16xf32>, vector<64x16xf32> -> vector<64x16xf32>
    %235 = vector.extract_strided_slice %231 {offsets = [256, 0], sizes = [256, 16], strides = [1, 1]} : vector<512x16xf32> to vector<256x16xf32>
    %cst_87 = arith.constant dense<0.000000e+00> : vector<64x16xf32>
    %236 = tpu.matmul %232, %235, %cst_87 {dimension_numbers = #tpu.dot_dimension_numbers<[1], [0], [0], [1], [0, 0, 1, 1], [], []>} : vector<64x256xf32>, vector<256x16xf32>, vector<64x16xf32> -> vector<64x16xf32>
    %cst_88 = arith.constant 0.000000e+00 : f32
    %237 = vector.broadcast %cst_88 : f32 to vector<16x16xf32>
    %238 = tpu.concatenate %237, %234, %236, %237 in 0 : vector<16x16xf32>, vector<64x16xf32>, vector<64x16xf32>, vector<16x16xf32> -> vector<160x16xf32>
    %239 = tpu.iota {dimensions = array<i32: 0>} : vector<128x1xi32>
    %c7_i32 = arith.constant 7 : i32
    %240 = vector.broadcast %c7_i32 : i32 to vector<128x1xi32>
    %241 = arith.andi %239, %240 : vector<128x1xi32>
    %c3_i32 = arith.constant 3 : i32
    %242 = vector.broadcast %c3_i32 : i32 to vector<128x1xi32>
    %243 = arith.shrsi %239, %242 : vector<128x1xi32>
    %c7_i32_89 = arith.constant 7 : i32
    %244 = vector.broadcast %c7_i32_89 : i32 to vector<128x1xi32>
    %245 = arith.andi %243, %244 : vector<128x1xi32>
    %246 = vector.extract_strided_slice %238 {offsets = [7, 0], sizes = [128, 16], strides = [1, 1]} : vector<160x16xf32> to vector<128x16xf32>
    %c-1_i32_90 = arith.constant -1 : i32
    %247 = vector.broadcast %c-1_i32_90 : i32 to vector<128x1xi32>
    %248 = arith.addi %245, %247 : vector<128x1xi32>
    %c0_i32_91 = arith.constant 0 : i32
    %249 = vector.broadcast %c0_i32_91 : i32 to vector<128x1xi32>
    %250 = arith.cmpi sge, %248, %249 : vector<128x1xi32>
    %c-1_i32_92 = arith.constant -1 : i32
    %251 = vector.broadcast %c-1_i32_92 : i32 to vector<128x1xi32>
    %252 = arith.addi %245, %251 : vector<128x1xi32>
    %c8_i32 = arith.constant 8 : i32
    %253 = vector.broadcast %c8_i32 : i32 to vector<128x1xi32>
    %254 = arith.cmpi slt, %252, %253 : vector<128x1xi32>
    %255 = arith.andi %250, %254 : vector<128x1xi1>
    %c-1_i32_93 = arith.constant -1 : i32
    %256 = vector.broadcast %c-1_i32_93 : i32 to vector<128x1xi32>
    %257 = arith.addi %241, %256 : vector<128x1xi32>
    %c0_i32_94 = arith.constant 0 : i32
    %258 = vector.broadcast %c0_i32_94 : i32 to vector<128x1xi32>
    %259 = arith.cmpi sge, %257, %258 : vector<128x1xi32>
    %260 = arith.andi %255, %259 : vector<128x1xi1>
    %c-1_i32_95 = arith.constant -1 : i32
    %261 = vector.broadcast %c-1_i32_95 : i32 to vector<128x1xi32>
    %262 = arith.addi %241, %261 : vector<128x1xi32>
    %c8_i32_96 = arith.constant 8 : i32
    %263 = vector.broadcast %c8_i32_96 : i32 to vector<128x1xi32>
    %264 = arith.cmpi slt, %262, %263 : vector<128x1xi32>
    %265 = arith.andi %260, %264 : vector<128x1xi1>
    %cst_97 = arith.constant 0.000000e+00 : f32
    %266 = vector.shape_cast %265 : vector<128x1xi1> to vector<128x1xi1>
    %267 = vector.broadcast %266 : vector<128x1xi1> to vector<128x16xi1>
    %268 = vector.broadcast %cst_97 : f32 to vector<128x16xf32>
    %269 = arith.select %267, %246, %268 : vector<128x16xi1>, vector<128x16xf32>
    %270 = vector.extract_strided_slice %238 {offsets = [8, 0], sizes = [128, 16], strides = [1, 1]} : vector<160x16xf32> to vector<128x16xf32>
    %c-1_i32_98 = arith.constant -1 : i32
    %271 = vector.broadcast %c-1_i32_98 : i32 to vector<128x1xi32>
    %272 = arith.addi %245, %271 : vector<128x1xi32>
    %c0_i32_99 = arith.constant 0 : i32
    %273 = vector.broadcast %c0_i32_99 : i32 to vector<128x1xi32>
    %274 = arith.cmpi sge, %272, %273 : vector<128x1xi32>
    %c-1_i32_100 = arith.constant -1 : i32
    %275 = vector.broadcast %c-1_i32_100 : i32 to vector<128x1xi32>
    %276 = arith.addi %245, %275 : vector<128x1xi32>
    %c8_i32_101 = arith.constant 8 : i32
    %277 = vector.broadcast %c8_i32_101 : i32 to vector<128x1xi32>
    %278 = arith.cmpi slt, %276, %277 : vector<128x1xi32>
    %279 = arith.andi %274, %278 : vector<128x1xi1>
    %c0_i32_102 = arith.constant 0 : i32
    %280 = vector.broadcast %c0_i32_102 : i32 to vector<128x1xi32>
    %281 = arith.addi %241, %280 : vector<128x1xi32>
    %c0_i32_103 = arith.constant 0 : i32
    %282 = vector.broadcast %c0_i32_103 : i32 to vector<128x1xi32>
    %283 = arith.cmpi sge, %281, %282 : vector<128x1xi32>
    %284 = arith.andi %279, %283 : vector<128x1xi1>
    %c0_i32_104 = arith.constant 0 : i32
    %285 = vector.broadcast %c0_i32_104 : i32 to vector<128x1xi32>
    %286 = arith.addi %241, %285 : vector<128x1xi32>
    %c8_i32_105 = arith.constant 8 : i32
    %287 = vector.broadcast %c8_i32_105 : i32 to vector<128x1xi32>
    %288 = arith.cmpi slt, %286, %287 : vector<128x1xi32>
    %289 = arith.andi %284, %288 : vector<128x1xi1>
    %cst_106 = arith.constant 0.000000e+00 : f32
    %290 = vector.shape_cast %289 : vector<128x1xi1> to vector<128x1xi1>
    %291 = vector.broadcast %290 : vector<128x1xi1> to vector<128x16xi1>
    %292 = vector.broadcast %cst_106 : f32 to vector<128x16xf32>
    %293 = arith.select %291, %270, %292 : vector<128x16xi1>, vector<128x16xf32>
    %294 = vector.extract_strided_slice %238 {offsets = [9, 0], sizes = [128, 16], strides = [1, 1]} : vector<160x16xf32> to vector<128x16xf32>
    %c-1_i32_107 = arith.constant -1 : i32
    %295 = vector.broadcast %c-1_i32_107 : i32 to vector<128x1xi32>
    %296 = arith.addi %245, %295 : vector<128x1xi32>
    %c0_i32_108 = arith.constant 0 : i32
    %297 = vector.broadcast %c0_i32_108 : i32 to vector<128x1xi32>
    %298 = arith.cmpi sge, %296, %297 : vector<128x1xi32>
    %c-1_i32_109 = arith.constant -1 : i32
    %299 = vector.broadcast %c-1_i32_109 : i32 to vector<128x1xi32>
    %300 = arith.addi %245, %299 : vector<128x1xi32>
    %c8_i32_110 = arith.constant 8 : i32
    %301 = vector.broadcast %c8_i32_110 : i32 to vector<128x1xi32>
    %302 = arith.cmpi slt, %300, %301 : vector<128x1xi32>
    %303 = arith.andi %298, %302 : vector<128x1xi1>
    %c1_i32_111 = arith.constant 1 : i32
    %304 = vector.broadcast %c1_i32_111 : i32 to vector<128x1xi32>
    %305 = arith.addi %241, %304 : vector<128x1xi32>
    %c0_i32_112 = arith.constant 0 : i32
    %306 = vector.broadcast %c0_i32_112 : i32 to vector<128x1xi32>
    %307 = arith.cmpi sge, %305, %306 : vector<128x1xi32>
    %308 = arith.andi %303, %307 : vector<128x1xi1>
    %c1_i32_113 = arith.constant 1 : i32
    %309 = vector.broadcast %c1_i32_113 : i32 to vector<128x1xi32>
    %310 = arith.addi %241, %309 : vector<128x1xi32>
    %c8_i32_114 = arith.constant 8 : i32
    %311 = vector.broadcast %c8_i32_114 : i32 to vector<128x1xi32>
    %312 = arith.cmpi slt, %310, %311 : vector<128x1xi32>
    %313 = arith.andi %308, %312 : vector<128x1xi1>
    %cst_115 = arith.constant 0.000000e+00 : f32
    %314 = vector.shape_cast %313 : vector<128x1xi1> to vector<128x1xi1>
    %315 = vector.broadcast %314 : vector<128x1xi1> to vector<128x16xi1>
    %316 = vector.broadcast %cst_115 : f32 to vector<128x16xf32>
    %317 = arith.select %315, %294, %316 : vector<128x16xi1>, vector<128x16xf32>
    %318 = vector.extract_strided_slice %238 {offsets = [15, 0], sizes = [128, 16], strides = [1, 1]} : vector<160x16xf32> to vector<128x16xf32>
    %c0_i32_116 = arith.constant 0 : i32
    %319 = vector.broadcast %c0_i32_116 : i32 to vector<128x1xi32>
    %320 = arith.addi %245, %319 : vector<128x1xi32>
    %c0_i32_117 = arith.constant 0 : i32
    %321 = vector.broadcast %c0_i32_117 : i32 to vector<128x1xi32>
    %322 = arith.cmpi sge, %320, %321 : vector<128x1xi32>
    %c0_i32_118 = arith.constant 0 : i32
    %323 = vector.broadcast %c0_i32_118 : i32 to vector<128x1xi32>
    %324 = arith.addi %245, %323 : vector<128x1xi32>
    %c8_i32_119 = arith.constant 8 : i32
    %325 = vector.broadcast %c8_i32_119 : i32 to vector<128x1xi32>
    %326 = arith.cmpi slt, %324, %325 : vector<128x1xi32>
    %327 = arith.andi %322, %326 : vector<128x1xi1>
    %c-1_i32_120 = arith.constant -1 : i32
    %328 = vector.broadcast %c-1_i32_120 : i32 to vector<128x1xi32>
    %329 = arith.addi %241, %328 : vector<128x1xi32>
    %c0_i32_121 = arith.constant 0 : i32
    %330 = vector.broadcast %c0_i32_121 : i32 to vector<128x1xi32>
    %331 = arith.cmpi sge, %329, %330 : vector<128x1xi32>
    %332 = arith.andi %327, %331 : vector<128x1xi1>
    %c-1_i32_122 = arith.constant -1 : i32
    %333 = vector.broadcast %c-1_i32_122 : i32 to vector<128x1xi32>
    %334 = arith.addi %241, %333 : vector<128x1xi32>
    %c8_i32_123 = arith.constant 8 : i32
    %335 = vector.broadcast %c8_i32_123 : i32 to vector<128x1xi32>
    %336 = arith.cmpi slt, %334, %335 : vector<128x1xi32>
    %337 = arith.andi %332, %336 : vector<128x1xi1>
    %cst_124 = arith.constant 0.000000e+00 : f32
    %338 = vector.shape_cast %337 : vector<128x1xi1> to vector<128x1xi1>
    %339 = vector.broadcast %338 : vector<128x1xi1> to vector<128x16xi1>
    %340 = vector.broadcast %cst_124 : f32 to vector<128x16xf32>
    %341 = arith.select %339, %318, %340 : vector<128x16xi1>, vector<128x16xf32>
    %342 = vector.extract_strided_slice %238 {offsets = [16, 0], sizes = [128, 16], strides = [1, 1]} : vector<160x16xf32> to vector<128x16xf32>
    %c0_i32_125 = arith.constant 0 : i32
    %343 = vector.broadcast %c0_i32_125 : i32 to vector<128x1xi32>
    %344 = arith.addi %245, %343 : vector<128x1xi32>
    %c0_i32_126 = arith.constant 0 : i32
    %345 = vector.broadcast %c0_i32_126 : i32 to vector<128x1xi32>
    %346 = arith.cmpi sge, %344, %345 : vector<128x1xi32>
    %c0_i32_127 = arith.constant 0 : i32
    %347 = vector.broadcast %c0_i32_127 : i32 to vector<128x1xi32>
    %348 = arith.addi %245, %347 : vector<128x1xi32>
    %c8_i32_128 = arith.constant 8 : i32
    %349 = vector.broadcast %c8_i32_128 : i32 to vector<128x1xi32>
    %350 = arith.cmpi slt, %348, %349 : vector<128x1xi32>
    %351 = arith.andi %346, %350 : vector<128x1xi1>
    %c0_i32_129 = arith.constant 0 : i32
    %352 = vector.broadcast %c0_i32_129 : i32 to vector<128x1xi32>
    %353 = arith.addi %241, %352 : vector<128x1xi32>
    %c0_i32_130 = arith.constant 0 : i32
    %354 = vector.broadcast %c0_i32_130 : i32 to vector<128x1xi32>
    %355 = arith.cmpi sge, %353, %354 : vector<128x1xi32>
    %356 = arith.andi %351, %355 : vector<128x1xi1>
    %c0_i32_131 = arith.constant 0 : i32
    %357 = vector.broadcast %c0_i32_131 : i32 to vector<128x1xi32>
    %358 = arith.addi %241, %357 : vector<128x1xi32>
    %c8_i32_132 = arith.constant 8 : i32
    %359 = vector.broadcast %c8_i32_132 : i32 to vector<128x1xi32>
    %360 = arith.cmpi slt, %358, %359 : vector<128x1xi32>
    %361 = arith.andi %356, %360 : vector<128x1xi1>
    %cst_133 = arith.constant 0.000000e+00 : f32
    %362 = vector.shape_cast %361 : vector<128x1xi1> to vector<128x1xi1>
    %363 = vector.broadcast %362 : vector<128x1xi1> to vector<128x16xi1>
    %364 = vector.broadcast %cst_133 : f32 to vector<128x16xf32>
    %365 = arith.select %363, %342, %364 : vector<128x16xi1>, vector<128x16xf32>
    %366 = vector.extract_strided_slice %238 {offsets = [17, 0], sizes = [128, 16], strides = [1, 1]} : vector<160x16xf32> to vector<128x16xf32>
    %c0_i32_134 = arith.constant 0 : i32
    %367 = vector.broadcast %c0_i32_134 : i32 to vector<128x1xi32>
    %368 = arith.addi %245, %367 : vector<128x1xi32>
    %c0_i32_135 = arith.constant 0 : i32
    %369 = vector.broadcast %c0_i32_135 : i32 to vector<128x1xi32>
    %370 = arith.cmpi sge, %368, %369 : vector<128x1xi32>
    %c0_i32_136 = arith.constant 0 : i32
    %371 = vector.broadcast %c0_i32_136 : i32 to vector<128x1xi32>
    %372 = arith.addi %245, %371 : vector<128x1xi32>
    %c8_i32_137 = arith.constant 8 : i32
    %373 = vector.broadcast %c8_i32_137 : i32 to vector<128x1xi32>
    %374 = arith.cmpi slt, %372, %373 : vector<128x1xi32>
    %375 = arith.andi %370, %374 : vector<128x1xi1>
    %c1_i32_138 = arith.constant 1 : i32
    %376 = vector.broadcast %c1_i32_138 : i32 to vector<128x1xi32>
    %377 = arith.addi %241, %376 : vector<128x1xi32>
    %c0_i32_139 = arith.constant 0 : i32
    %378 = vector.broadcast %c0_i32_139 : i32 to vector<128x1xi32>
    %379 = arith.cmpi sge, %377, %378 : vector<128x1xi32>
    %380 = arith.andi %375, %379 : vector<128x1xi1>
    %c1_i32_140 = arith.constant 1 : i32
    %381 = vector.broadcast %c1_i32_140 : i32 to vector<128x1xi32>
    %382 = arith.addi %241, %381 : vector<128x1xi32>
    %c8_i32_141 = arith.constant 8 : i32
    %383 = vector.broadcast %c8_i32_141 : i32 to vector<128x1xi32>
    %384 = arith.cmpi slt, %382, %383 : vector<128x1xi32>
    %385 = arith.andi %380, %384 : vector<128x1xi1>
    %cst_142 = arith.constant 0.000000e+00 : f32
    %386 = vector.shape_cast %385 : vector<128x1xi1> to vector<128x1xi1>
    %387 = vector.broadcast %386 : vector<128x1xi1> to vector<128x16xi1>
    %388 = vector.broadcast %cst_142 : f32 to vector<128x16xf32>
    %389 = arith.select %387, %366, %388 : vector<128x16xi1>, vector<128x16xf32>
    %390 = vector.extract_strided_slice %238 {offsets = [23, 0], sizes = [128, 16], strides = [1, 1]} : vector<160x16xf32> to vector<128x16xf32>
    %c1_i32_143 = arith.constant 1 : i32
    %391 = vector.broadcast %c1_i32_143 : i32 to vector<128x1xi32>
    %392 = arith.addi %245, %391 : vector<128x1xi32>
    %c0_i32_144 = arith.constant 0 : i32
    %393 = vector.broadcast %c0_i32_144 : i32 to vector<128x1xi32>
    %394 = arith.cmpi sge, %392, %393 : vector<128x1xi32>
    %c1_i32_145 = arith.constant 1 : i32
    %395 = vector.broadcast %c1_i32_145 : i32 to vector<128x1xi32>
    %396 = arith.addi %245, %395 : vector<128x1xi32>
    %c8_i32_146 = arith.constant 8 : i32
    %397 = vector.broadcast %c8_i32_146 : i32 to vector<128x1xi32>
    %398 = arith.cmpi slt, %396, %397 : vector<128x1xi32>
    %399 = arith.andi %394, %398 : vector<128x1xi1>
    %c-1_i32_147 = arith.constant -1 : i32
    %400 = vector.broadcast %c-1_i32_147 : i32 to vector<128x1xi32>
    %401 = arith.addi %241, %400 : vector<128x1xi32>
    %c0_i32_148 = arith.constant 0 : i32
    %402 = vector.broadcast %c0_i32_148 : i32 to vector<128x1xi32>
    %403 = arith.cmpi sge, %401, %402 : vector<128x1xi32>
    %404 = arith.andi %399, %403 : vector<128x1xi1>
    %c-1_i32_149 = arith.constant -1 : i32
    %405 = vector.broadcast %c-1_i32_149 : i32 to vector<128x1xi32>
    %406 = arith.addi %241, %405 : vector<128x1xi32>
    %c8_i32_150 = arith.constant 8 : i32
    %407 = vector.broadcast %c8_i32_150 : i32 to vector<128x1xi32>
    %408 = arith.cmpi slt, %406, %407 : vector<128x1xi32>
    %409 = arith.andi %404, %408 : vector<128x1xi1>
    %cst_151 = arith.constant 0.000000e+00 : f32
    %410 = vector.shape_cast %409 : vector<128x1xi1> to vector<128x1xi1>
    %411 = vector.broadcast %410 : vector<128x1xi1> to vector<128x16xi1>
    %412 = vector.broadcast %cst_151 : f32 to vector<128x16xf32>
    %413 = arith.select %411, %390, %412 : vector<128x16xi1>, vector<128x16xf32>
    %414 = vector.extract_strided_slice %238 {offsets = [24, 0], sizes = [128, 16], strides = [1, 1]} : vector<160x16xf32> to vector<128x16xf32>
    %c1_i32_152 = arith.constant 1 : i32
    %415 = vector.broadcast %c1_i32_152 : i32 to vector<128x1xi32>
    %416 = arith.addi %245, %415 : vector<128x1xi32>
    %c0_i32_153 = arith.constant 0 : i32
    %417 = vector.broadcast %c0_i32_153 : i32 to vector<128x1xi32>
    %418 = arith.cmpi sge, %416, %417 : vector<128x1xi32>
    %c1_i32_154 = arith.constant 1 : i32
    %419 = vector.broadcast %c1_i32_154 : i32 to vector<128x1xi32>
    %420 = arith.addi %245, %419 : vector<128x1xi32>
    %c8_i32_155 = arith.constant 8 : i32
    %421 = vector.broadcast %c8_i32_155 : i32 to vector<128x1xi32>
    %422 = arith.cmpi slt, %420, %421 : vector<128x1xi32>
    %423 = arith.andi %418, %422 : vector<128x1xi1>
    %c0_i32_156 = arith.constant 0 : i32
    %424 = vector.broadcast %c0_i32_156 : i32 to vector<128x1xi32>
    %425 = arith.addi %241, %424 : vector<128x1xi32>
    %c0_i32_157 = arith.constant 0 : i32
    %426 = vector.broadcast %c0_i32_157 : i32 to vector<128x1xi32>
    %427 = arith.cmpi sge, %425, %426 : vector<128x1xi32>
    %428 = arith.andi %423, %427 : vector<128x1xi1>
    %c0_i32_158 = arith.constant 0 : i32
    %429 = vector.broadcast %c0_i32_158 : i32 to vector<128x1xi32>
    %430 = arith.addi %241, %429 : vector<128x1xi32>
    %c8_i32_159 = arith.constant 8 : i32
    %431 = vector.broadcast %c8_i32_159 : i32 to vector<128x1xi32>
    %432 = arith.cmpi slt, %430, %431 : vector<128x1xi32>
    %433 = arith.andi %428, %432 : vector<128x1xi1>
    %cst_160 = arith.constant 0.000000e+00 : f32
    %434 = vector.shape_cast %433 : vector<128x1xi1> to vector<128x1xi1>
    %435 = vector.broadcast %434 : vector<128x1xi1> to vector<128x16xi1>
    %436 = vector.broadcast %cst_160 : f32 to vector<128x16xf32>
    %437 = arith.select %435, %414, %436 : vector<128x16xi1>, vector<128x16xf32>
    %438 = vector.extract_strided_slice %238 {offsets = [25, 0], sizes = [128, 16], strides = [1, 1]} : vector<160x16xf32> to vector<128x16xf32>
    %c1_i32_161 = arith.constant 1 : i32
    %439 = vector.broadcast %c1_i32_161 : i32 to vector<128x1xi32>
    %440 = arith.addi %245, %439 : vector<128x1xi32>
    %c0_i32_162 = arith.constant 0 : i32
    %441 = vector.broadcast %c0_i32_162 : i32 to vector<128x1xi32>
    %442 = arith.cmpi sge, %440, %441 : vector<128x1xi32>
    %c1_i32_163 = arith.constant 1 : i32
    %443 = vector.broadcast %c1_i32_163 : i32 to vector<128x1xi32>
    %444 = arith.addi %245, %443 : vector<128x1xi32>
    %c8_i32_164 = arith.constant 8 : i32
    %445 = vector.broadcast %c8_i32_164 : i32 to vector<128x1xi32>
    %446 = arith.cmpi slt, %444, %445 : vector<128x1xi32>
    %447 = arith.andi %442, %446 : vector<128x1xi1>
    %c1_i32_165 = arith.constant 1 : i32
    %448 = vector.broadcast %c1_i32_165 : i32 to vector<128x1xi32>
    %449 = arith.addi %241, %448 : vector<128x1xi32>
    %c0_i32_166 = arith.constant 0 : i32
    %450 = vector.broadcast %c0_i32_166 : i32 to vector<128x1xi32>
    %451 = arith.cmpi sge, %449, %450 : vector<128x1xi32>
    %452 = arith.andi %447, %451 : vector<128x1xi1>
    %c1_i32_167 = arith.constant 1 : i32
    %453 = vector.broadcast %c1_i32_167 : i32 to vector<128x1xi32>
    %454 = arith.addi %241, %453 : vector<128x1xi32>
    %c8_i32_168 = arith.constant 8 : i32
    %455 = vector.broadcast %c8_i32_168 : i32 to vector<128x1xi32>
    %456 = arith.cmpi slt, %454, %455 : vector<128x1xi32>
    %457 = arith.andi %452, %456 : vector<128x1xi1>
    %cst_169 = arith.constant 0.000000e+00 : f32
    %458 = vector.shape_cast %457 : vector<128x1xi1> to vector<128x1xi1>
    %459 = vector.broadcast %458 : vector<128x1xi1> to vector<128x16xi1>
    %460 = vector.broadcast %cst_169 : f32 to vector<128x16xf32>
    %461 = arith.select %459, %438, %460 : vector<128x16xi1>, vector<128x16xf32>
    %462 = tpu.concatenate %269, %293, %317, %341, %365, %389, %413, %437, %461 in 1 : vector<128x16xf32>, vector<128x16xf32>, vector<128x16xf32>, vector<128x16xf32>, vector<128x16xf32>, vector<128x16xf32>, vector<128x16xf32>, vector<128x16xf32>, vector<128x16xf32> -> vector<128x144xf32>
    %c0_170 = arith.constant 0 : index
    %c0_171 = arith.constant 0 : index
    %463 = vector.load %arg5[%c0_170, %c0_171] : memref<144x32xf32, #tpu.memory_space<vmem>>, vector<144x32xf32>
    %cst_172 = arith.constant dense<0.000000e+00> : vector<128x32xf32>
    %464 = tpu.matmul %462, %463, %cst_172 {dimension_numbers = #tpu.dot_dimension_numbers<[1], [0], [0], [1], [0, 0, 1, 1], [], []>} : vector<128x144xf32>, vector<144x32xf32>, vector<128x32xf32> -> vector<128x32xf32>
    %c0_173 = arith.constant 0 : index
    %c0_174 = arith.constant 0 : index
    %465 = vector.load %arg6[%c0_173, %c0_174] : memref<1x32xf32, #tpu.memory_space<vmem>>, vector<1x32xf32>
    %466 = vector.broadcast %465 : vector<1x32xf32> to vector<128x32xf32>
    %467 = arith.addf %464, %466 : vector<128x32xf32>
    %c0_175 = arith.constant 0 : index
    %c0_176 = arith.constant 0 : index
    %468 = vector.load %arg7[%c0_175, %c0_176] : memref<16x64xf32, #tpu.memory_space<vmem>>, vector<16x64xf32>
    %469 = vector.extract_strided_slice %467 {offsets = [0, 0], sizes = [64, 32], strides = [1, 1]} : vector<128x32xf32> to vector<64x32xf32>
    %cst_177 = arith.constant dense<0.000000e+00> : vector<16x32xf32>
    %470 = tpu.matmul %468, %469, %cst_177 {dimension_numbers = #tpu.dot_dimension_numbers<[1], [0], [0], [1], [0, 0, 1, 1], [], []>} : vector<16x64xf32>, vector<64x32xf32>, vector<16x32xf32> -> vector<16x32xf32>
    %471 = vector.extract_strided_slice %470 {offsets = [0, 0], sizes = [1, 32], strides = [1, 1]} : vector<16x32xf32> to vector<1x32xf32>
    %472 = vector.extract_strided_slice %470 {offsets = [1, 0], sizes = [1, 32], strides = [1, 1]} : vector<16x32xf32> to vector<1x32xf32>
    %473 = vector.extract_strided_slice %470 {offsets = [2, 0], sizes = [1, 32], strides = [1, 1]} : vector<16x32xf32> to vector<1x32xf32>
    %474 = vector.extract_strided_slice %470 {offsets = [3, 0], sizes = [1, 32], strides = [1, 1]} : vector<16x32xf32> to vector<1x32xf32>
    %475 = vector.extract_strided_slice %470 {offsets = [4, 0], sizes = [1, 32], strides = [1, 1]} : vector<16x32xf32> to vector<1x32xf32>
    %476 = vector.extract_strided_slice %470 {offsets = [5, 0], sizes = [1, 32], strides = [1, 1]} : vector<16x32xf32> to vector<1x32xf32>
    %477 = vector.extract_strided_slice %470 {offsets = [6, 0], sizes = [1, 32], strides = [1, 1]} : vector<16x32xf32> to vector<1x32xf32>
    %478 = vector.extract_strided_slice %470 {offsets = [7, 0], sizes = [1, 32], strides = [1, 1]} : vector<16x32xf32> to vector<1x32xf32>
    %479 = vector.extract_strided_slice %470 {offsets = [8, 0], sizes = [1, 32], strides = [1, 1]} : vector<16x32xf32> to vector<1x32xf32>
    %480 = vector.extract_strided_slice %470 {offsets = [9, 0], sizes = [1, 32], strides = [1, 1]} : vector<16x32xf32> to vector<1x32xf32>
    %481 = vector.extract_strided_slice %470 {offsets = [10, 0], sizes = [1, 32], strides = [1, 1]} : vector<16x32xf32> to vector<1x32xf32>
    %482 = vector.extract_strided_slice %470 {offsets = [11, 0], sizes = [1, 32], strides = [1, 1]} : vector<16x32xf32> to vector<1x32xf32>
    %483 = vector.extract_strided_slice %470 {offsets = [12, 0], sizes = [1, 32], strides = [1, 1]} : vector<16x32xf32> to vector<1x32xf32>
    %484 = vector.extract_strided_slice %470 {offsets = [13, 0], sizes = [1, 32], strides = [1, 1]} : vector<16x32xf32> to vector<1x32xf32>
    %485 = vector.extract_strided_slice %470 {offsets = [14, 0], sizes = [1, 32], strides = [1, 1]} : vector<16x32xf32> to vector<1x32xf32>
    %486 = vector.extract_strided_slice %470 {offsets = [15, 0], sizes = [1, 32], strides = [1, 1]} : vector<16x32xf32> to vector<1x32xf32>
    %487 = tpu.concatenate %471, %472, %473, %474, %475, %476, %477, %478, %479, %480, %481, %482, %483, %484, %485, %486 in 1 : vector<1x32xf32>, vector<1x32xf32>, vector<1x32xf32>, vector<1x32xf32>, vector<1x32xf32>, vector<1x32xf32>, vector<1x32xf32>, vector<1x32xf32>, vector<1x32xf32>, vector<1x32xf32>, vector<1x32xf32>, vector<1x32xf32>, vector<1x32xf32>, vector<1x32xf32>, vector<1x32xf32>, vector<1x32xf32> -> vector<1x512xf32>
    %488 = vector.extract_strided_slice %467 {offsets = [64, 0], sizes = [64, 32], strides = [1, 1]} : vector<128x32xf32> to vector<64x32xf32>
    %cst_178 = arith.constant dense<0.000000e+00> : vector<16x32xf32>
    %489 = tpu.matmul %468, %488, %cst_178 {dimension_numbers = #tpu.dot_dimension_numbers<[1], [0], [0], [1], [0, 0, 1, 1], [], []>} : vector<16x64xf32>, vector<64x32xf32>, vector<16x32xf32> -> vector<16x32xf32>
    %490 = vector.extract_strided_slice %489 {offsets = [0, 0], sizes = [1, 32], strides = [1, 1]} : vector<16x32xf32> to vector<1x32xf32>
    %491 = vector.extract_strided_slice %489 {offsets = [1, 0], sizes = [1, 32], strides = [1, 1]} : vector<16x32xf32> to vector<1x32xf32>
    %492 = vector.extract_strided_slice %489 {offsets = [2, 0], sizes = [1, 32], strides = [1, 1]} : vector<16x32xf32> to vector<1x32xf32>
    %493 = vector.extract_strided_slice %489 {offsets = [3, 0], sizes = [1, 32], strides = [1, 1]} : vector<16x32xf32> to vector<1x32xf32>
    %494 = vector.extract_strided_slice %489 {offsets = [4, 0], sizes = [1, 32], strides = [1, 1]} : vector<16x32xf32> to vector<1x32xf32>
    %495 = vector.extract_strided_slice %489 {offsets = [5, 0], sizes = [1, 32], strides = [1, 1]} : vector<16x32xf32> to vector<1x32xf32>
    %496 = vector.extract_strided_slice %489 {offsets = [6, 0], sizes = [1, 32], strides = [1, 1]} : vector<16x32xf32> to vector<1x32xf32>
    %497 = vector.extract_strided_slice %489 {offsets = [7, 0], sizes = [1, 32], strides = [1, 1]} : vector<16x32xf32> to vector<1x32xf32>
    %498 = vector.extract_strided_slice %489 {offsets = [8, 0], sizes = [1, 32], strides = [1, 1]} : vector<16x32xf32> to vector<1x32xf32>
    %499 = vector.extract_strided_slice %489 {offsets = [9, 0], sizes = [1, 32], strides = [1, 1]} : vector<16x32xf32> to vector<1x32xf32>
    %500 = vector.extract_strided_slice %489 {offsets = [10, 0], sizes = [1, 32], strides = [1, 1]} : vector<16x32xf32> to vector<1x32xf32>
    %501 = vector.extract_strided_slice %489 {offsets = [11, 0], sizes = [1, 32], strides = [1, 1]} : vector<16x32xf32> to vector<1x32xf32>
    %502 = vector.extract_strided_slice %489 {offsets = [12, 0], sizes = [1, 32], strides = [1, 1]} : vector<16x32xf32> to vector<1x32xf32>
    %503 = vector.extract_strided_slice %489 {offsets = [13, 0], sizes = [1, 32], strides = [1, 1]} : vector<16x32xf32> to vector<1x32xf32>
    %504 = vector.extract_strided_slice %489 {offsets = [14, 0], sizes = [1, 32], strides = [1, 1]} : vector<16x32xf32> to vector<1x32xf32>
    %505 = vector.extract_strided_slice %489 {offsets = [15, 0], sizes = [1, 32], strides = [1, 1]} : vector<16x32xf32> to vector<1x32xf32>
    %506 = tpu.concatenate %490, %491, %492, %493, %494, %495, %496, %497, %498, %499, %500, %501, %502, %503, %504, %505 in 1 : vector<1x32xf32>, vector<1x32xf32>, vector<1x32xf32>, vector<1x32xf32>, vector<1x32xf32>, vector<1x32xf32>, vector<1x32xf32>, vector<1x32xf32>, vector<1x32xf32>, vector<1x32xf32>, vector<1x32xf32>, vector<1x32xf32>, vector<1x32xf32>, vector<1x32xf32>, vector<1x32xf32>, vector<1x32xf32> -> vector<1x512xf32>
    %507 = tpu.concatenate %487, %506 in 0 : vector<1x512xf32>, vector<1x512xf32> -> vector<2x512xf32>
    %c0_179 = arith.constant 0 : index
    %c0_180 = arith.constant 0 : index
    %508 = vector.load %arg8[%c0_179, %c0_180] : memref<512x84xf32, #tpu.memory_space<vmem>>, vector<512x84xf32>
    %cst_181 = arith.constant dense<0.000000e+00> : vector<2x84xf32>
    %509 = tpu.matmul %507, %508, %cst_181 {dimension_numbers = #tpu.dot_dimension_numbers<[1], [0], [0], [1], [0, 0, 1, 1], [], []>} : vector<2x512xf32>, vector<512x84xf32>, vector<2x84xf32> -> vector<2x84xf32>
    %c0_182 = arith.constant 0 : index
    %c0_183 = arith.constant 0 : index
    %510 = vector.load %arg9[%c0_182, %c0_183] : memref<1x84xf32, #tpu.memory_space<vmem>>, vector<1x84xf32>
    %511 = vector.broadcast %510 : vector<1x84xf32> to vector<2x84xf32>
    %512 = arith.addf %509, %511 : vector<2x84xf32>
    %c0_184 = arith.constant 0 : index
    %c0_185 = arith.constant 0 : index
    %513 = vector.load %arg10[%c0_184, %c0_185] : memref<2x84xf32, #tpu.memory_space<vmem>>, vector<2x84xf32>
    tpu.vector_store %arg10[%c0_184, %c0_185], %512 {strides = array<i32>} : memref<2x84xf32, #tpu.memory_space<vmem>>, vector<2x84xf32>,
    return
  }
  func.func @transform_0(%arg0: i32) -> (i32, i32) {
    %c0_i32 = arith.constant 0 : i32
    %c0_i32_0 = arith.constant 0 : i32
    return %arg0, %c0_i32 : i32, i32
  }
  func.func @transform_1(%arg0: i32) -> (i32, i32) {
    %c0_i32 = arith.constant 0 : i32
    %c0_i32_0 = arith.constant 0 : i32
    %c0_i32_1 = arith.constant 0 : i32
    return %c0_i32, %c0_i32_0 : i32, i32
  }
  func.func @transform_2(%arg0: i32) -> (i32, i32) {
    %c0_i32 = arith.constant 0 : i32
    %c0_i32_0 = arith.constant 0 : i32
    %c0_i32_1 = arith.constant 0 : i32
    return %c0_i32, %c0_i32_0 : i32, i32
  }
  func.func @transform_3(%arg0: i32) -> (i32, i32) {
    %c0_i32 = arith.constant 0 : i32
    %c0_i32_0 = arith.constant 0 : i32
    %c0_i32_1 = arith.constant 0 : i32
    return %c0_i32, %c0_i32_0 : i32, i32
  }
  func.func @transform_4(%arg0: i32) -> (i32, i32) {
    %c0_i32 = arith.constant 0 : i32
    %c0_i32_0 = arith.constant 0 : i32
    %c0_i32_1 = arith.constant 0 : i32
    return %c0_i32, %c0_i32_0 : i32, i32
  }
  func.func @transform_5(%arg0: i32) -> (i32, i32) {
    %c0_i32 = arith.constant 0 : i32
    %c0_i32_0 = arith.constant 0 : i32
    %c0_i32_1 = arith.constant 0 : i32
    return %c0_i32, %c0_i32_0 : i32, i32
  }
  func.func @transform_6(%arg0: i32) -> (i32, i32) {
    %c0_i32 = arith.constant 0 : i32
    %c0_i32_0 = arith.constant 0 : i32
    %c0_i32_1 = arith.constant 0 : i32
    return %c0_i32, %c0_i32_0 : i32, i32
  }
  func.func @transform_7(%arg0: i32) -> (i32, i32) {
    %c0_i32 = arith.constant 0 : i32
    %c0_i32_0 = arith.constant 0 : i32
    %c0_i32_1 = arith.constant 0 : i32
    return %c0_i32, %c0_i32_0 : i32, i32
  }
  func.func @transform_8(%arg0: i32) -> (i32, i32) {
    %c0_i32 = arith.constant 0 : i32
    %c0_i32_0 = arith.constant 0 : i32
    %c0_i32_1 = arith.constant 0 : i32
    return %c0_i32, %c0_i32_0 : i32, i32
  }
  func.func @transform_9(%arg0: i32) -> (i32, i32) {
    %c0_i32 = arith.constant 0 : i32
    %c0_i32_0 = arith.constant 0 : i32
    return %arg0, %c0_i32 : i32, i32
  }
}

</mosaic_0001>

<llo_original>
// kernel: _forward_impl.1
$region0: #{_forward_impl.1}
  #allocation0 [shape = 'u32[]', space=smem, size = 0x4, offset = 0x4, fixed_abs, tag = 'smem constant byte address 0x4 - core index']
  #allocation1 [shape = 'u32[72,128]{1,0:T(1,128)}', space=vmem, size = 0x9000, scoped, tag = 'internal scratch']
  %s0 = inlined_call_operand.vmem [shape: f32[512,3], index: 0, kind: input, shape index: {}]
  %s1 = inlined_call_operand.vmem [shape: f32[27,16], index: 1, kind: input, shape index: {}]
  %s2 = inlined_call_operand.vmem [shape: f32[1,16], index: 2, kind: input, shape index: {}]
  %s3 = inlined_call_operand.vmem [shape: f32[64,256], index: 3, kind: input, shape index: {}]
  %s4 = inlined_call_operand.vmem [shape: f32[144,32], index: 4, kind: input, shape index: {}]
  %s5 = inlined_call_operand.vmem [shape: f32[1,32], index: 5, kind: input, shape index: {}]
  %s6 = inlined_call_operand.vmem [shape: f32[16,64], index: 6, kind: input, shape index: {}]
  %s7 = inlined_call_operand.vmem [shape: f32[512,84], index: 7, kind: input, shape index: {}]
  %s8 = inlined_call_operand.vmem [shape: f32[1,84], index: 8, kind: input, shape index: {}]
  %s9 = inlined_call_operand.hbm [shape: f32[2,84], index: 9, kind: output, shape index: {}]
  %s10 = sld [smem:[#allocation0]]
  $region46: #{_forward_impl.1} parent=0
    _
  %s12 = ssub.s32 1, %s10
  %s13 = scalar_select 0, %s12, %s10
  $region1: #{_forward_impl.1} parent=0
    #allocation2 [shape = 'u8[1024]{0}', space=vmem, size = 0x400, scoped, tag = 'output window, operand 0, single buffered']
    #allocation3 [shape = 's32[1]{0}', space=sflag, size = 0x4, scoped, tag = 'scoped memory for _forward_impl.1']
    %14 = vsyncpa [#allocation3], 0
    // Predicated region
    $region2: #{_forward_impl.1} parent=1 // pred_check
      _
    $region3: #{_forward_impl.1} parent=1 // pred_check_branch
      %16 = sbr.rel (0) target = $region5
    $region4: #{_forward_impl.1} parent=1 // pred_region
      _
    $region5: #{_forward_impl.1} parent=1 // pred_fallthru
      _
    // Predicated region
    $region6: #{_forward_impl.1} parent=1 // pred_check
      _
    $region7: #{_forward_impl.1} parent=1 // pred_check_branch
      %18 = sbr.rel (0) target = $region9
    $region8: #{_forward_impl.1} parent=1 // pred_region
      _
    $region9: #{_forward_impl.1} parent=1 // pred_fallthru
      _
    // Predicated region
    $region10: #{_forward_impl.1} parent=1 // pred_check
      _
    $region11: #{_forward_impl.1} parent=1 // pred_check_branch
      %20 = sbr.rel (0) target = $region13
    $region12: #{_forward_impl.1} parent=1 // pred_region
      _
    $region13: #{_forward_impl.1} parent=1 // pred_fallthru
      _
    // Predicated region
    $region14: #{_forward_impl.1} parent=1 // pred_check
      _
    $region15: #{_forward_impl.1} parent=1 // pred_check_branch
      %22 = sbr.rel (0) target = $region17
    $region16: #{_forward_impl.1} parent=1 // pred_region
      _
    $region17: #{_forward_impl.1} parent=1 // pred_fallthru
      _
    // Predicated region
    $region18: #{_forward_impl.1} parent=1 // pred_check
      _
    $region19: #{_forward_impl.1} parent=1 // pred_check_branch
      %24 = sbr.rel (0) target = $region21
    $region20: #{_forward_impl.1} parent=1 // pred_region
      _
    $region21: #{_forward_impl.1} parent=1 // pred_fallthru
      _
    // Predicated region
    $region22: #{_forward_impl.1} parent=1 // pred_check
      _
    $region23: #{_forward_impl.1} parent=1 // pred_check_branch
      %26 = sbr.rel (0) target = $region25
    $region24: #{_forward_impl.1} parent=1 // pred_region
      _
    $region25: #{_forward_impl.1} parent=1 // pred_fallthru
      _
    // Predicated region
    $region26: #{_forward_impl.1} parent=1 // pred_check
      _
    $region27: #{_forward_impl.1} parent=1 // pred_check_branch
      %28 = sbr.rel (0) target = $region29
    $region28: #{_forward_impl.1} parent=1 // pred_region
      _
    $region29: #{_forward_impl.1} parent=1 // pred_fallthru
      _
    // Predicated region
    $region30: #{_forward_impl.1} parent=1 // pred_check
      _
    $region31: #{_forward_impl.1} parent=1 // pred_check_branch
      %30 = sbr.rel (0) target = $region33
    $region32: #{_forward_impl.1} parent=1 // pred_region
      _
    $region33: #{_forward_impl.1} parent=1 // pred_fallthru
      _
    // Predicated region
    $region34: #{_forward_impl.1} parent=1 // pred_check
      _
    $region35: #{_forward_impl.1} parent=1 // pred_check_branch
      %32 = sbr.rel (0) target = $region37
    $region36: #{_forward_impl.1} parent=1 // pred_region
      _
    $region37: #{_forward_impl.1} parent=1 // pred_fallthru
      _
    %v33 = vld [vmem:[%s0] sm:$0xff]
    %v34 = vld [vmem:[%s0 + $0x8] sm:$0xff]
    %v35 = vld [vmem:[%s0 + $0x10] sm:$0xff]
    %v36 = vld [vmem:[%s0 + $0x18] sm:$0xff]
    %v37 = vld [vmem:[%s0 + $0x20] sm:$0xff]
    %v38 = vld [vmem:[%s0 + $0x28] sm:$0xff]
    %v39 = vld [vmem:[%s0 + $0x30] sm:$0xff]
    %v40 = vld [vmem:[%s0 + $0x38] sm:$0xff]
    %v41 = vld [vmem:[%s0 + $0x40] sm:$0xff]
    %v42 = vld [vmem:[%s0 + $0x48] sm:$0xff]
    %v43 = vld [vmem:[%s0 + $0x50] sm:$0xff]
    %v44 = vld [vmem:[%s0 + $0x58] sm:$0xff]
    %v45 = vld [vmem:[%s0 + $0x60] sm:$0xff]
    %v46 = vld [vmem:[%s0 + $0x68] sm:$0xff]
    %v47 = vld [vmem:[%s0 + $0x70] sm:$0xff]
    %v48 = vld [vmem:[%s0 + $0x78] sm:$0xff]
    %v49 = vld [vmem:[%s0 + $0x80] sm:$0xff]
    %v50 = vld [vmem:[%s0 + $0x88] sm:$0xff]
    %v51 = vld [vmem:[%s0 + $0x90] sm:$0xff]
    %v52 = vld [vmem:[%s0 + $0x98] sm:$0xff]
    %v53 = vld [vmem:[%s0 + $0xa0] sm:$0xff]
    %v54 = vld [vmem:[%s0 + $0xa8] sm:$0xff]
    %v55 = vld [vmem:[%s0 + $0xb0] sm:$0xff]
    %v56 = vld [vmem:[%s0 + $0xb8] sm:$0xff]
    %v57 = vld [vmem:[%s0 + $0xc0] sm:$0xff]
    %v58 = vld [vmem:[%s0 + $0xc8] sm:$0xff]
    %v59 = vld [vmem:[%s0 + $0xd0] sm:$0xff]
    %v60 = vld [vmem:[%s0 + $0xd8] sm:$0xff]
    %v61 = vld [vmem:[%s0 + $0xe0] sm:$0xff]
    %v62 = vld [vmem:[%s0 + $0xe8] sm:$0xff]
    %v63 = vld [vmem:[%s0 + $0xf0] sm:$0xff]
    %v64 = vld [vmem:[%s0 + $0xf8] sm:$0xff]
    %v65 = vld [vmem:[%s0 + $0x100] sm:$0xff]
    %v66 = vld [vmem:[%s0 + $0x108] sm:$0xff]
    %v67 = vld [vmem:[%s0 + $0x110] sm:$0xff]
    %v68 = vld [vmem:[%s0 + $0x118] sm:$0xff]
    %v69 = vld [vmem:[%s0 + $0x120] sm:$0xff]
    %v70 = vld [vmem:[%s0 + $0x128] sm:$0xff]
    %v71 = vld [vmem:[%s0 + $0x130] sm:$0xff]
    %v72 = vld [vmem:[%s0 + $0x138] sm:$0xff]
    %v73 = vld [vmem:[%s0 + $0x140] sm:$0xff]
    %v74 = vld [vmem:[%s0 + $0x148] sm:$0xff]
    %v75 = vld [vmem:[%s0 + $0x150] sm:$0xff]
    %v76 = vld [vmem:[%s0 + $0x158] sm:$0xff]
    %v77 = vld [vmem:[%s0 + $0x160] sm:$0xff]
    %v78 = vld [vmem:[%s0 + $0x168] sm:$0xff]
    %v79 = vld [vmem:[%s0 + $0x170] sm:$0xff]
    %v80 = vld [vmem:[%s0 + $0x178] sm:$0xff]
    %v81 = vld [vmem:[%s0 + $0x180] sm:$0xff]
    %v82 = vld [vmem:[%s0 + $0x188] sm:$0xff]
    %v83 = vld [vmem:[%s0 + $0x190] sm:$0xff]
    %v84 = vld [vmem:[%s0 + $0x198] sm:$0xff]
    %v85 = vld [vmem:[%s0 + $0x1a0] sm:$0xff]
    %v86 = vld [vmem:[%s0 + $0x1a8] sm:$0xff]
    %v87 = vld [vmem:[%s0 + $0x1b0] sm:$0xff]
    %v88 = vld [vmem:[%s0 + $0x1b8] sm:$0xff]
    %v89 = vld [vmem:[%s0 + $0x1c0] sm:$0xff]
    %v90 = vld [vmem:[%s0 + $0x1c8] sm:$0xff]
    %v91 = vld [vmem:[%s0 + $0x1d0] sm:$0xff]
    %v92 = vld [vmem:[%s0 + $0x1d8] sm:$0xff]
    %v93 = vld [vmem:[%s0 + $0x1e0] sm:$0xff]
    %v94 = vld [vmem:[%s0 + $0x1e8] sm:$0xff]
    %v95 = vld [vmem:[%s0 + $0x1f0] sm:$0xff]
    %v96 = vld [vmem:[%s0 + $0x1f8] sm:$0xff]
    %v97 = vlaneseq
    %v98 = vshrl.u32 %v97, 7
    %v99 = vadd.s32 %v98, 8
    %v100 = vadd.s32 %v98, 16
    %v101 = vadd.s32 %v98, 24
    %v102 = vadd.s32 %v98, 32
    %v103 = vadd.s32 %v98, 40
    %v104 = vadd.s32 %v98, 48
    %v105 = vadd.s32 %v98, 56
    %v106 = vadd.s32 %v98, 64
    %v107 = vadd.s32 %v98, 72
    %v108 = vadd.s32 %v98, 80
    %v109 = vadd.s32 %v98, 88
    %v110 = vadd.s32 %v98, 96
    %v111 = vadd.s32 %v98, 104
    %v112 = vadd.s32 %v98, 112
    %v113 = vadd.s32 %v98, 120
    %v114 = vadd.s32 %v98, 128
    %v115 = vadd.s32 %v98, 136
    %v116 = vadd.s32 %v98, 144
    %v117 = vadd.s32 %v98, 152
    %v118 = vadd.s32 %v98, 160
    %v119 = vadd.s32 %v98, 168
    %v120 = vadd.s32 %v98, 176
    %v121 = vadd.s32 %v98, 184
    %v122 = vadd.s32 %v98, 192
    %v123 = vadd.s32 %v98, 200
    %v124 = vadd.s32 %v98, 208
    %v125 = vadd.s32 %v98, 216
    %v126 = vadd.s32 %v98, 224
    %v127 = vadd.s32 %v98, 232
    %v128 = vadd.s32 %v98, 240
    %v129 = vadd.s32 %v98, 248
    %v130 = vadd.s32 %v98, 256
    %v131 = vadd.s32 %v98, 264
    %v132 = vadd.s32 %v98, 272
    %v133 = vadd.s32 %v98, 280
    %v134 = vadd.s32 %v98, 288
    %v135 = vadd.s32 %v98, 296
    %v136 = vadd.s32 %v98, 304
    %v137 = vadd.s32 %v98, 312
    %v138 = vadd.s32 %v98, 320
    %v139 = vadd.s32 %v98, 328
    %v140 = vadd.s32 %v98, 336
    %v141 = vadd.s32 %v98, 344
    %v142 = vadd.s32 %v98, 352
    %v143 = vadd.s32 %v98, 360
    %v144 = vadd.s32 %v98, 368
    %v145 = vadd.s32 %v98, 376
    %v146 = vadd.s32 %v98, 384
    %v147 = vadd.s32 %v98, 392
    %v148 = vadd.s32 %v98, 400
    %v149 = vadd.s32 %v98, 408
    %v150 = vadd.s32 %v98, 416
    %v151 = vadd.s32 %v98, 424
    %v152 = vadd.s32 %v98, 432
    %v153 = vadd.s32 %v98, 440
    %v154 = vadd.s32 %v98, 448
    %v155 = vadd.s32 %v98, 456
    %v156 = vadd.s32 %v98, 464
    %v157 = vadd.s32 %v98, 472
    %v158 = vadd.s32 %v98, 480
    %v159 = vadd.s32 %v98, 488
    %v160 = vadd.s32 %v98, 496
    %v161 = vadd.s32 %v98, 504
    %v162 = vand.u32 %v98, 15
    %v163 = vand.u32 %v99, 15
    %v164 = vand.u32 %v100, 15
    %v165 = vand.u32 %v101, 15
    %v166 = vand.u32 %v102, 15
    %v167 = vand.u32 %v103, 15
    %v168 = vand.u32 %v104, 15
    %v169 = vand.u32 %v105, 15
    %v170 = vand.u32 %v106, 15
    %v171 = vand.u32 %v107, 15
    %v172 = vand.u32 %v108, 15
    %v173 = vand.u32 %v109, 15
    %v174 = vand.u32 %v110, 15
    %v175 = vand.u32 %v111, 15
    %v176 = vand.u32 %v112, 15
    %v177 = vand.u32 %v113, 15
    %v178 = vand.u32 %v114, 15
    %v179 = vand.u32 %v115, 15
    %v180 = vand.u32 %v116, 15
    %v181 = vand.u32 %v117, 15
    %v182 = vand.u32 %v118, 15
    %v183 = vand.u32 %v119, 15
    %v184 = vand.u32 %v120, 15
    %v185 = vand.u32 %v121, 15
    %v186 = vand.u32 %v122, 15
    %v187 = vand.u32 %v123, 15
    %v188 = vand.u32 %v124, 15
    %v189 = vand.u32 %v125, 15
    %v190 = vand.u32 %v126, 15
    %v191 = vand.u32 %v127, 15
    %v192 = vand.u32 %v128, 15
    %v193 = vand.u32 %v129, 15
    %v194 = vand.u32 %v130, 15
    %v195 = vand.u32 %v131, 15
    %v196 = vand.u32 %v132, 15
    %v197 = vand.u32 %v133, 15
    %v198 = vand.u32 %v134, 15
    %v199 = vand.u32 %v135, 15
    %v200 = vand.u32 %v136, 15
    %v201 = vand.u32 %v137, 15
    %v202 = vand.u32 %v138, 15
    %v203 = vand.u32 %v139, 15
    %v204 = vand.u32 %v140, 15
    %v205 = vand.u32 %v141, 15
    %v206 = vand.u32 %v142, 15
    %v207 = vand.u32 %v143, 15
    %v208 = vand.u32 %v144, 15
    %v209 = vand.u32 %v145, 15
    %v210 = vand.u32 %v146, 15
    %v211 = vand.u32 %v147, 15
    %v212 = vand.u32 %v148, 15
    %v213 = vand.u32 %v149, 15
    %v214 = vand.u32 %v150, 15
    %v215 = vand.u32 %v151, 15
    %v216 = vand.u32 %v152, 15
    %v217 = vand.u32 %v153, 15
    %v218 = vand.u32 %v154, 15
    %v219 = vand.u32 %v155, 15
    %v220 = vand.u32 %v156, 15
    %v221 = vand.u32 %v157, 15
    %v222 = vand.u32 %v158, 15
    %v223 = vand.u32 %v159, 15
    %v224 = vand.u32 %v160, 15
    %v225 = vand.u32 %v161, 15
    %v226 = vshra.s32 %v98, 4
    %v227 = vshra.s32 %v99, 4
    %v228 = vshra.s32 %v100, 4
    %v229 = vshra.s32 %v101, 4
    %v230 = vshra.s32 %v102, 4
    %v231 = vshra.s32 %v103, 4
    %v232 = vshra.s32 %v104, 4
    %v233 = vshra.s32 %v105, 4
    %v234 = vshra.s32 %v106, 4
    %v235 = vshra.s32 %v107, 4
    %v236 = vshra.s32 %v108, 4
    %v237 = vshra.s32 %v109, 4
    %v238 = vshra.s32 %v110, 4
    %v239 = vshra.s32 %v111, 4
    %v240 = vshra.s32 %v112, 4
    %v241 = vshra.s32 %v113, 4
    %v242 = vshra.s32 %v114, 4
    %v243 = vshra.s32 %v115, 4
    %v244 = vshra.s32 %v116, 4
    %v245 = vshra.s32 %v117, 4
    %v246 = vshra.s32 %v118, 4
    %v247 = vshra.s32 %v119, 4
    %v248 = vshra.s32 %v120, 4
    %v249 = vshra.s32 %v121, 4
    %v250 = vshra.s32 %v122, 4
    %v251 = vshra.s32 %v123, 4
    %v252 = vshra.s32 %v124, 4
    %v253 = vshra.s32 %v125, 4
    %v254 = vshra.s32 %v126, 4
    %v255 = vshra.s32 %v127, 4
    %v256 = vshra.s32 %v128, 4
    %v257 = vshra.s32 %v129, 4
    %v258 = vshra.s32 %v130, 4
    %v259 = vshra.s32 %v131, 4
    %v260 = vshra.s32 %v132, 4
    %v261 = vshra.s32 %v133, 4
    %v262 = vshra.s32 %v134, 4
    %v263 = vshra.s32 %v135, 4
    %v264 = vshra.s32 %v136, 4
    %v265 = vshra.s32 %v137, 4
    %v266 = vshra.s32 %v138, 4
    %v267 = vshra.s32 %v139, 4
    %v268 = vshra.s32 %v140, 4
    %v269 = vshra.s32 %v141, 4
    %v270 = vshra.s32 %v142, 4
    %v271 = vshra.s32 %v143, 4
    %v272 = vshra.s32 %v144, 4
    %v273 = vshra.s32 %v145, 4
    %v274 = vshra.s32 %v146, 4
    %v275 = vshra.s32 %v147, 4
    %v276 = vshra.s32 %v148, 4
    %v277 = vshra.s32 %v149, 4
    %v278 = vshra.s32 %v150, 4
    %v279 = vshra.s32 %v151, 4
    %v280 = vshra.s32 %v152, 4
    %v281 = vshra.s32 %v153, 4
    %v282 = vshra.s32 %v154, 4
    %v283 = vshra.s32 %v155, 4
    %v284 = vshra.s32 %v156, 4
    %v285 = vshra.s32 %v157, 4
    %v286 = vshra.s32 %v158, 4
    %v287 = vshra.s32 %v159, 4
    %v288 = vshra.s32 %v160, 4
    %v289 = vshra.s32 %v161, 4
    %v290 = vand.u32 %v226, 15
    %v291 = vand.u32 %v227, 15
    %v292 = vand.u32 %v228, 15
    %v293 = vand.u32 %v229, 15
    %v294 = vand.u32 %v230, 15
    %v295 = vand.u32 %v231, 15
    %v296 = vand.u32 %v232, 15
    %v297 = vand.u32 %v233, 15
    %v298 = vand.u32 %v234, 15
    %v299 = vand.u32 %v235, 15
    %v300 = vand.u32 %v236, 15
    %v301 = vand.u32 %v237, 15
    %v302 = vand.u32 %v238, 15
    %v303 = vand.u32 %v239, 15
    %v304 = vand.u32 %v240, 15
    %v305 = vand.u32 %v241, 15
    %v306 = vand.u32 %v242, 15
    %v307 = vand.u32 %v243, 15
    %v308 = vand.u32 %v244, 15
    %v309 = vand.u32 %v245, 15
    %v310 = vand.u32 %v246, 15
    %v311 = vand.u32 %v247, 15
    %v312 = vand.u32 %v248, 15
    %v313 = vand.u32 %v249, 15
    %v314 = vand.u32 %v250, 15
    %v315 = vand.u32 %v251, 15
    %v316 = vand.u32 %v252, 15
    %v317 = vand.u32 %v253, 15
    %v318 = vand.u32 %v254, 15
    %v319 = vand.u32 %v255, 15
    %v320 = vand.u32 %v256, 15
    %v321 = vand.u32 %v257, 15
    %v322 = vand.u32 %v258, 15
    %v323 = vand.u32 %v259, 15
    %v324 = vand.u32 %v260, 15
    %v325 = vand.u32 %v261, 15
    %v326 = vand.u32 %v262, 15
    %v327 = vand.u32 %v263, 15
    %v328 = vand.u32 %v264, 15
    %v329 = vand.u32 %v265, 15
    %v330 = vand.u32 %v266, 15
    %v331 = vand.u32 %v267, 15
    %v332 = vand.u32 %v268, 15
    %v333 = vand.u32 %v269, 15
    %v334 = vand.u32 %v270, 15
    %v335 = vand.u32 %v271, 15
    %v336 = vand.u32 %v272, 15
    %v337 = vand.u32 %v273, 15
    %v338 = vand.u32 %v274, 15
    %v339 = vand.u32 %v275, 15
    %v340 = vand.u32 %v276, 15
    %v341 = vand.u32 %v277, 15
    %v342 = vand.u32 %v278, 15
    %v343 = vand.u32 %v279, 15
    %v344 = vand.u32 %v280, 15
    %v345 = vand.u32 %v281, 15
    %v346 = vand.u32 %v282, 15
    %v347 = vand.u32 %v283, 15
    %v348 = vand.u32 %v284, 15
    %v349 = vand.u32 %v285, 15
    %v350 = vand.u32 %v286, 15
    %v351 = vand.u32 %v287, 15
    %v352 = vand.u32 %v288, 15
    %v353 = vand.u32 %v289, 15
    %v354 = vadd.s32 %v290, 4294967295
    %v355 = vadd.s32 %v291, 4294967295
    %v356 = vadd.s32 %v292, 4294967295
    %v357 = vadd.s32 %v293, 4294967295
    %v358 = vadd.s32 %v294, 4294967295
    %v359 = vadd.s32 %v295, 4294967295
    %v360 = vadd.s32 %v296, 4294967295
    %v361 = vadd.s32 %v297, 4294967295
    %v362 = vadd.s32 %v298, 4294967295
    %v363 = vadd.s32 %v299, 4294967295
    %v364 = vadd.s32 %v300, 4294967295
    %v365 = vadd.s32 %v301, 4294967295
    %v366 = vadd.s32 %v302, 4294967295
    %v367 = vadd.s32 %v303, 4294967295
    %v368 = vadd.s32 %v304, 4294967295
    %v369 = vadd.s32 %v305, 4294967295
    %v370 = vadd.s32 %v306, 4294967295
    %v371 = vadd.s32 %v307, 4294967295
    %v372 = vadd.s32 %v308, 4294967295
    %v373 = vadd.s32 %v309, 4294967295
    %v374 = vadd.s32 %v310, 4294967295
    %v375 = vadd.s32 %v311, 4294967295
    %v376 = vadd.s32 %v312, 4294967295
    %v377 = vadd.s32 %v313, 4294967295
    %v378 = vadd.s32 %v314, 4294967295
    %v379 = vadd.s32 %v315, 4294967295
    %v380 = vadd.s32 %v316, 4294967295
    %v381 = vadd.s32 %v317, 4294967295
    %v382 = vadd.s32 %v318, 4294967295
    %v383 = vadd.s32 %v319, 4294967295
    %v384 = vadd.s32 %v320, 4294967295
    %v385 = vadd.s32 %v321, 4294967295
    %v386 = vadd.s32 %v322, 4294967295
    %v387 = vadd.s32 %v323, 4294967295
    %v388 = vadd.s32 %v324, 4294967295
    %v389 = vadd.s32 %v325, 4294967295
    %v390 = vadd.s32 %v326, 4294967295
    %v391 = vadd.s32 %v327, 4294967295
    %v392 = vadd.s32 %v328, 4294967295
    %v393 = vadd.s32 %v329, 4294967295
    %v394 = vadd.s32 %v330, 4294967295
    %v395 = vadd.s32 %v331, 4294967295
    %v396 = vadd.s32 %v332, 4294967295
    %v397 = vadd.s32 %v333, 4294967295
    %v398 = vadd.s32 %v334, 4294967295
    %v399 = vadd.s32 %v335, 4294967295
    %v400 = vadd.s32 %v336, 4294967295
    %v401 = vadd.s32 %v337, 4294967295
    %v402 = vadd.s32 %v338, 4294967295
    %v403 = vadd.s32 %v339, 4294967295
    %v404 = vadd.s32 %v340, 4294967295
    %v405 = vadd.s32 %v341, 4294967295
    %v406 = vadd.s32 %v342, 4294967295
    %v407 = vadd.s32 %v343, 4294967295
    %v408 = vadd.s32 %v344, 4294967295
    %v409 = vadd.s32 %v345, 4294967295
    %v410 = vadd.s32 %v346, 4294967295
    %v411 = vadd.s32 %v347, 4294967295
    %v412 = vadd.s32 %v348, 4294967295
    %v413 = vadd.s32 %v349, 4294967295
    %v414 = vadd.s32 %v350, 4294967295
    %v415 = vadd.s32 %v351, 4294967295
    %v416 = vadd.s32 %v352, 4294967295
    %v417 = vadd.s32 %v353, 4294967295
    %vm418 = vcmp.ge.s32.totalorder %v354, 0
    %vm419 = vcmp.ge.s32.totalorder %v355, 0
    %vm420 = vcmp.ge.s32.totalorder %v356, 0
    %vm421 = vcmp.ge.s32.totalorder %v357, 0
    %vm422 = vcmp.ge.s32.totalorder %v358, 0
    %vm423 = vcmp.ge.s32.totalorder %v359, 0
    %vm424 = vcmp.ge.s32.totalorder %v360, 0
    %vm425 = vcmp.ge.s32.totalorder %v361, 0
    %vm426 = vcmp.ge.s32.totalorder %v362, 0
    %vm427 = vcmp.ge.s32.totalorder %v363, 0
    %vm428 = vcmp.ge.s32.totalorder %v364, 0
    %vm429 = vcmp.ge.s32.totalorder %v365, 0
    %vm430 = vcmp.ge.s32.totalorder %v366, 0
    %vm431 = vcmp.ge.s32.totalorder %v367, 0
    %vm432 = vcmp.ge.s32.totalorder %v368, 0
    %vm433 = vcmp.ge.s32.totalorder %v369, 0
    %vm434 = vcmp.ge.s32.totalorder %v370, 0
    %vm435 = vcmp.ge.s32.totalorder %v371, 0
    %vm436 = vcmp.ge.s32.totalorder %v372, 0
    %vm437 = vcmp.ge.s32.totalorder %v373, 0
    %vm438 = vcmp.ge.s32.totalorder %v374, 0
    %vm439 = vcmp.ge.s32.totalorder %v375, 0
    %vm440 = vcmp.ge.s32.totalorder %v376, 0
    %vm441 = vcmp.ge.s32.totalorder %v377, 0
    %vm442 = vcmp.ge.s32.totalorder %v378, 0
    %vm443 = vcmp.ge.s32.totalorder %v379, 0
    %vm444 = vcmp.ge.s32.totalorder %v380, 0
    %vm445 = vcmp.ge.s32.totalorder %v381, 0
    %vm446 = vcmp.ge.s32.totalorder %v382, 0
    %vm447 = vcmp.ge.s32.totalorder %v383, 0
    %vm448 = vcmp.ge.s32.totalorder %v384, 0
    %vm449 = vcmp.ge.s32.totalorder %v385, 0
    %vm450 = vcmp.ge.s32.totalorder %v386, 0
    %vm451 = vcmp.ge.s32.totalorder %v387, 0
    %vm452 = vcmp.ge.s32.totalorder %v388, 0
    %vm453 = vcmp.ge.s32.totalorder %v389, 0
    %vm454 = vcmp.ge.s32.totalorder %v390, 0
    %vm455 = vcmp.ge.s32.totalorder %v391, 0
    %vm456 = vcmp.ge.s32.totalorder %v392, 0
    %vm457 = vcmp.ge.s32.totalorder %v393, 0
    %vm458 = vcmp.ge.s32.totalorder %v394, 0
    %vm459 = vcmp.ge.s32.totalorder %v395, 0
    %vm460 = vcmp.ge.s32.totalorder %v396, 0
    %vm461 = vcmp.ge.s32.totalorder %v397, 0
    %vm462 = vcmp.ge.s32.totalorder %v398, 0
    %vm463 = vcmp.ge.s32.totalorder %v399, 0
    %vm464 = vcmp.ge.s32.totalorder %v400, 0
    %vm465 = vcmp.ge.s32.totalorder %v401, 0
    %vm466 = vcmp.ge.s32.totalorder %v402, 0
    %vm467 = vcmp.ge.s32.totalorder %v403, 0
    %vm468 = vcmp.ge.s32.totalorder %v404, 0
    %vm469 = vcmp.ge.s32.totalorder %v405, 0
    %vm470 = vcmp.ge.s32.totalorder %v406, 0
    %vm471 = vcmp.ge.s32.totalorder %v407, 0
    %vm472 = vcmp.ge.s32.totalorder %v408, 0
    %vm473 = vcmp.ge.s32.totalorder %v409, 0
    %vm474 = vcmp.ge.s32.totalorder %v410, 0
    %vm475 = vcmp.ge.s32.totalorder %v411, 0
    %vm476 = vcmp.ge.s32.totalorder %v412, 0
    %vm477 = vcmp.ge.s32.totalorder %v413, 0
    %vm478 = vcmp.ge.s32.totalorder %v414, 0
    %vm479 = vcmp.ge.s32.totalorder %v415, 0
    %vm480 = vcmp.ge.s32.totalorder %v416, 0
    %vm481 = vcmp.ge.s32.totalorder %v417, 0
    %vm482 = vcmp.lt.s32.totalorder %v354, 16
    %vm483 = vcmp.lt.s32.totalorder %v355, 16
    %vm484 = vcmp.lt.s32.totalorder %v356, 16
    %vm485 = vcmp.lt.s32.totalorder %v357, 16
    %vm486 = vcmp.lt.s32.totalorder %v358, 16
    %vm487 = vcmp.lt.s32.totalorder %v359, 16
    %vm488 = vcmp.lt.s32.totalorder %v360, 16
    %vm489 = vcmp.lt.s32.totalorder %v361, 16
    %vm490 = vcmp.lt.s32.totalorder %v362, 16
    %vm491 = vcmp.lt.s32.totalorder %v363, 16
    %vm492 = vcmp.lt.s32.totalorder %v364, 16
    %vm493 = vcmp.lt.s32.totalorder %v365, 16
    %vm494 = vcmp.lt.s32.totalorder %v366, 16
    %vm495 = vcmp.lt.s32.totalorder %v367, 16
    %vm496 = vcmp.lt.s32.totalorder %v368, 16
    %vm497 = vcmp.lt.s32.totalorder %v369, 16
    %vm498 = vcmp.lt.s32.totalorder %v370, 16
    %vm499 = vcmp.lt.s32.totalorder %v371, 16
    %vm500 = vcmp.lt.s32.totalorder %v372, 16
    %vm501 = vcmp.lt.s32.totalorder %v373, 16
    %vm502 = vcmp.lt.s32.totalorder %v374, 16
    %vm503 = vcmp.lt.s32.totalorder %v375, 16
    %vm504 = vcmp.lt.s32.totalorder %v376, 16
    %vm505 = vcmp.lt.s32.totalorder %v377, 16
    %vm506 = vcmp.lt.s32.totalorder %v378, 16
    %vm507 = vcmp.lt.s32.totalorder %v379, 16
    %vm508 = vcmp.lt.s32.totalorder %v380, 16
    %vm509 = vcmp.lt.s32.totalorder %v381, 16
    %vm510 = vcmp.lt.s32.totalorder %v382, 16
    %vm511 = vcmp.lt.s32.totalorder %v383, 16
    %vm512 = vcmp.lt.s32.totalorder %v384, 16
    %vm513 = vcmp.lt.s32.totalorder %v385, 16
    %vm514 = vcmp.lt.s32.totalorder %v386, 16
    %vm515 = vcmp.lt.s32.totalorder %v387, 16
    %vm516 = vcmp.lt.s32.totalorder %v388, 16
    %vm517 = vcmp.lt.s32.totalorder %v389, 16
    %vm518 = vcmp.lt.s32.totalorder %v390, 16
    %vm519 = vcmp.lt.s32.totalorder %v391, 16
    %vm520 = vcmp.lt.s32.totalorder %v392, 16
    %vm521 = vcmp.lt.s32.totalorder %v393, 16
    %vm522 = vcmp.lt.s32.totalorder %v394, 16
    %vm523 = vcmp.lt.s32.totalorder %v395, 16
    %vm524 = vcmp.lt.s32.totalorder %v396, 16
    %vm525 = vcmp.lt.s32.totalorder %v397, 16
    %vm526 = vcmp.lt.s32.totalorder %v398, 16
    %vm527 = vcmp.lt.s32.totalorder %v399, 16
    %vm528 = vcmp.lt.s32.totalorder %v400, 16
    %vm529 = vcmp.lt.s32.totalorder %v401, 16
    %vm530 = vcmp.lt.s32.totalorder %v402, 16
    %vm531 = vcmp.lt.s32.totalorder %v403, 16
    %vm532 = vcmp.lt.s32.totalorder %v404, 16
    %vm533 = vcmp.lt.s32.totalorder %v405, 16
    %vm534 = vcmp.lt.s32.totalorder %v406, 16
    %vm535 = vcmp.lt.s32.totalorder %v407, 16
    %vm536 = vcmp.lt.s32.totalorder %v408, 16
    %vm537 = vcmp.lt.s32.totalorder %v409, 16
    %vm538 = vcmp.lt.s32.totalorder %v410, 16
    %vm539 = vcmp.lt.s32.totalorder %v411, 16
    %vm540 = vcmp.lt.s32.totalorder %v412, 16
    %vm541 = vcmp.lt.s32.totalorder %v413, 16
    %vm542 = vcmp.lt.s32.totalorder %v414, 16
    %vm543 = vcmp.lt.s32.totalorder %v415, 16
    %vm544 = vcmp.lt.s32.totalorder %v416, 16
    %vm545 = vcmp.lt.s32.totalorder %v417, 16
    %vm546 = vmand %vm418, %vm482
    %vm547 = vmand %vm419, %vm483
    %vm548 = vmand %vm420, %vm484
    %vm549 = vmand %vm421, %vm485
    %vm550 = vmand %vm422, %vm486
    %vm551 = vmand %vm423, %vm487
    %vm552 = vmand %vm424, %vm488
    %vm553 = vmand %vm425, %vm489
    %vm554 = vmand %vm426, %vm490
    %vm555 = vmand %vm427, %vm491
    %vm556 = vmand %vm428, %vm492
    %vm557 = vmand %vm429, %vm493
    %vm558 = vmand %vm430, %vm494
    %vm559 = vmand %vm431, %vm495
    %vm560 = vmand %vm432, %vm496
    %vm561 = vmand %vm433, %vm497
    %vm562 = vmand %vm434, %vm498
    %vm563 = vmand %vm435, %vm499
    %vm564 = vmand %vm436, %vm500
    %vm565 = vmand %vm437, %vm501
    %vm566 = vmand %vm438, %vm502
    %vm567 = vmand %vm439, %vm503
    %vm568 = vmand %vm440, %vm504
    %vm569 = vmand %vm441, %vm505
    %vm570 = vmand %vm442, %vm506
    %vm571 = vmand %vm443, %vm507
    %vm572 = vmand %vm444, %vm508
    %vm573 = vmand %vm445, %vm509
    %vm574 = vmand %vm446, %vm510
    %vm575 = vmand %vm447, %vm511
    %vm576 = vmand %vm448, %vm512
    %vm577 = vmand %vm449, %vm513
    %vm578 = vmand %vm450, %vm514
    %vm579 = vmand %vm451, %vm515
    %vm580 = vmand %vm452, %vm516
    %vm581 = vmand %vm453, %vm517
    %vm582 = vmand %vm454, %vm518
    %vm583 = vmand %vm455, %vm519
    %vm584 = vmand %vm456, %vm520
    %vm585 = vmand %vm457, %vm521
    %vm586 = vmand %vm458, %vm522
    %vm587 = vmand %vm459, %vm523
    %vm588 = vmand %vm460, %vm524
    %vm589 = vmand %vm461, %vm525
    %vm590 = vmand %vm462, %vm526
    %vm591 = vmand %vm463, %vm527
    %vm592 = vmand %vm464, %vm528
    %vm593 = vmand %vm465, %vm529
    %vm594 = vmand %vm466, %vm530
    %vm595 = vmand %vm467, %vm531
    %vm596 = vmand %vm468, %vm532
    %vm597 = vmand %vm469, %vm533
    %vm598 = vmand %vm470, %vm534
    %vm599 = vmand %vm471, %vm535
    %vm600 = vmand %vm472, %vm536
    %vm601 = vmand %vm473, %vm537
    %vm602 = vmand %vm474, %vm538
    %vm603 = vmand %vm475, %vm539
    %vm604 = vmand %vm476, %vm540
    %vm605 = vmand %vm477, %vm541
    %vm606 = vmand %vm478, %vm542
    %vm607 = vmand %vm479, %vm543
    %vm608 = vmand %vm480, %vm544
    %vm609 = vmand %vm481, %vm545
    %v610 = vadd.s32 %v162, 4294967295
    %v611 = vadd.s32 %v163, 4294967295
    %v612 = vadd.s32 %v164, 4294967295
    %v613 = vadd.s32 %v165, 4294967295
    %v614 = vadd.s32 %v166, 4294967295
    %v615 = vadd.s32 %v167, 4294967295
    %v616 = vadd.s32 %v168, 4294967295
    %v617 = vadd.s32 %v169, 4294967295
    %v618 = vadd.s32 %v170, 4294967295
    %v619 = vadd.s32 %v171, 4294967295
    %v620 = vadd.s32 %v172, 4294967295
    %v621 = vadd.s32 %v173, 4294967295
    %v622 = vadd.s32 %v174, 4294967295
    %v623 = vadd.s32 %v175, 4294967295
    %v624 = vadd.s32 %v176, 4294967295
    %v625 = vadd.s32 %v177, 4294967295
    %v626 = vadd.s32 %v178, 4294967295
    %v627 = vadd.s32 %v179, 4294967295
    %v628 = vadd.s32 %v180, 4294967295
    %v629 = vadd.s32 %v181, 4294967295
    %v630 = vadd.s32 %v182, 4294967295
    %v631 = vadd.s32 %v183, 4294967295
    %v632 = vadd.s32 %v184, 4294967295
    %v633 = vadd.s32 %v185, 4294967295
    %v634 = vadd.s32 %v186, 4294967295
    %v635 = vadd.s32 %v187, 4294967295
    %v636 = vadd.s32 %v188, 4294967295
    %v637 = vadd.s32 %v189, 4294967295
    %v638 = vadd.s32 %v190, 4294967295
    %v639 = vadd.s32 %v191, 4294967295
    %v640 = vadd.s32 %v192, 4294967295
    %v641 = vadd.s32 %v193, 4294967295
    %v642 = vadd.s32 %v194, 4294967295
    %v643 = vadd.s32 %v195, 4294967295
    %v644 = vadd.s32 %v196, 4294967295
    %v645 = vadd.s32 %v197, 4294967295
    %v646 = vadd.s32 %v198, 4294967295
    %v647 = vadd.s32 %v199, 4294967295
    %v648 = vadd.s32 %v200, 4294967295
    %v649 = vadd.s32 %v201, 4294967295
    %v650 = vadd.s32 %v202, 4294967295
    %v651 = vadd.s32 %v203, 4294967295
    %v652 = vadd.s32 %v204, 4294967295
    %v653 = vadd.s32 %v205, 4294967295
    %v654 = vadd.s32 %v206, 4294967295
    %v655 = vadd.s32 %v207, 4294967295
    %v656 = vadd.s32 %v208, 4294967295
    %v657 = vadd.s32 %v209, 4294967295
    %v658 = vadd.s32 %v210, 4294967295
    %v659 = vadd.s32 %v211, 4294967295
    %v660 = vadd.s32 %v212, 4294967295
    %v661 = vadd.s32 %v213, 4294967295
    %v662 = vadd.s32 %v214, 4294967295
    %v663 = vadd.s32 %v215, 4294967295
    %v664 = vadd.s32 %v216, 4294967295
    %v665 = vadd.s32 %v217, 4294967295
    %v666 = vadd.s32 %v218, 4294967295
    %v667 = vadd.s32 %v219, 4294967295
    %v668 = vadd.s32 %v220, 4294967295
    %v669 = vadd.s32 %v221, 4294967295
    %v670 = vadd.s32 %v222, 4294967295
    %v671 = vadd.s32 %v223, 4294967295
    %v672 = vadd.s32 %v224, 4294967295
    %v673 = vadd.s32 %v225, 4294967295
    %vm674 = vcmp.ge.s32.totalorder %v610, 0
    %vm675 = vcmp.ge.s32.totalorder %v611, 0
    %vm676 = vcmp.ge.s32.totalorder %v612, 0
    %vm677 = vcmp.ge.s32.totalorder %v613, 0
    %vm678 = vcmp.ge.s32.totalorder %v614, 0
    %vm679 = vcmp.ge.s32.totalorder %v615, 0
    %vm680 = vcmp.ge.s32.totalorder %v616, 0
    %vm681 = vcmp.ge.s32.totalorder %v617, 0
    %vm682 = vcmp.ge.s32.totalorder %v618, 0
    %vm683 = vcmp.ge.s32.totalorder %v619, 0
    %vm684 = vcmp.ge.s32.totalorder %v620, 0
    %vm685 = vcmp.ge.s32.totalorder %v621, 0
    %vm686 = vcmp.ge.s32.totalorder %v622, 0
    %vm687 = vcmp.ge.s32.totalorder %v623, 0
    %vm688 = vcmp.ge.s32.totalorder %v624, 0
    %vm689 = vcmp.ge.s32.totalorder %v625, 0
    %vm690 = vcmp.ge.s32.totalorder %v626, 0
    %vm691 = vcmp.ge.s32.totalorder %v627, 0
    %vm692 = vcmp.ge.s32.totalorder %v628, 0
    %vm693 = vcmp.ge.s32.totalorder %v629, 0
    %vm694 = vcmp.ge.s32.totalorder %v630, 0
    %vm695 = vcmp.ge.s32.totalorder %v631, 0
    %vm696 = vcmp.ge.s32.totalorder %v632, 0
    %vm697 = vcmp.ge.s32.totalorder %v633, 0
    %vm698 = vcmp.ge.s32.totalorder %v634, 0
    %vm699 = vcmp.ge.s32.totalorder %v635, 0
    %vm700 = vcmp.ge.s32.totalorder %v636, 0
    %vm701 = vcmp.ge.s32.totalorder %v637, 0
    %vm702 = vcmp.ge.s32.totalorder %v638, 0
    %vm703 = vcmp.ge.s32.totalorder %v639, 0
    %vm704 = vcmp.ge.s32.totalorder %v640, 0
    %vm705 = vcmp.ge.s32.totalorder %v641, 0
    %vm706 = vcmp.ge.s32.totalorder %v642, 0
    %vm707 = vcmp.ge.s32.totalorder %v643, 0
    %vm708 = vcmp.ge.s32.totalorder %v644, 0
    %vm709 = vcmp.ge.s32.totalorder %v645, 0
    %vm710 = vcmp.ge.s32.totalorder %v646, 0
    %vm711 = vcmp.ge.s32.totalorder %v647, 0
    %vm712 = vcmp.ge.s32.totalorder %v648, 0
    %vm713 = vcmp.ge.s32.totalorder %v649, 0
    %vm714 = vcmp.ge.s32.totalorder %v650, 0
    %vm715 = vcmp.ge.s32.totalorder %v651, 0
    %vm716 = vcmp.ge.s32.totalorder %v652, 0
    %vm717 = vcmp.ge.s32.totalorder %v653, 0
    %vm718 = vcmp.ge.s32.totalorder %v654, 0
    %vm719 = vcmp.ge.s32.totalorder %v655, 0
    %vm720 = vcmp.ge.s32.totalorder %v656, 0
    %vm721 = vcmp.ge.s32.totalorder %v657, 0
    %vm722 = vcmp.ge.s32.totalorder %v658, 0
    %vm723 = vcmp.ge.s32.totalorder %v659, 0
    %vm724 = vcmp.ge.s32.totalorder %v660, 0
    %vm725 = vcmp.ge.s32.totalorder %v661, 0
    %vm726 = vcmp.ge.s32.totalorder %v662, 0
    %vm727 = vcmp.ge.s32.totalorder %v663, 0
    %vm728 = vcmp.ge.s32.totalorder %v664, 0
    %vm729 = vcmp.ge.s32.totalorder %v665, 0
    %vm730 = vcmp.ge.s32.totalorder %v666, 0
    %vm731 = vcmp.ge.s32.totalorder %v667, 0
    %vm732 = vcmp.ge.s32.totalorder %v668, 0
    %vm733 = vcmp.ge.s32.totalorder %v669, 0
    %vm734 = vcmp.ge.s32.totalorder %v670, 0
    %vm735 = vcmp.ge.s32.totalorder %v671, 0
    %vm736 = vcmp.ge.s32.totalorder %v672, 0
    %vm737 = vcmp.ge.s32.totalorder %v673, 0
    %vm738 = vmand %vm546, %vm674
    %vm739 = vmand %vm547, %vm675
    %vm740 = vmand %vm548, %vm676
    %vm741 = vmand %vm549, %vm677
    %vm742 = vmand %vm550, %vm678
    %vm743 = vmand %vm551, %vm679
    %vm744 = vmand %vm552, %vm680
    %vm745 = vmand %vm553, %vm681
    %vm746 = vmand %vm554, %vm682
    %vm747 = vmand %vm555, %vm683
    %vm748 = vmand %vm556, %vm684
    %vm749 = vmand %vm557, %vm685
    %vm750 = vmand %vm558, %vm686
    %vm751 = vmand %vm559, %vm687
    %vm752 = vmand %vm560, %vm688
    %vm753 = vmand %vm561, %vm689
    %vm754 = vmand %vm562, %vm690
    %vm755 = vmand %vm563, %vm691
    %vm756 = vmand %vm564, %vm692
    %vm757 = vmand %vm565, %vm693
    %vm758 = vmand %vm566, %vm694
    %vm759 = vmand %vm567, %vm695
    %vm760 = vmand %vm568, %vm696
    %vm761 = vmand %vm569, %vm697
    %vm762 = vmand %vm570, %vm698
    %vm763 = vmand %vm571, %vm699
    %vm764 = vmand %vm572, %vm700
    %vm765 = vmand %vm573, %vm701
    %vm766 = vmand %vm574, %vm702
    %vm767 = vmand %vm575, %vm703
    %vm768 = vmand %vm576, %vm704
    %vm769 = vmand %vm577, %vm705
    %vm770 = vmand %vm578, %vm706
    %vm771 = vmand %vm579, %vm707
    %vm772 = vmand %vm580, %vm708
    %vm773 = vmand %vm581, %vm709
    %vm774 = vmand %vm582, %vm710
    %vm775 = vmand %vm583, %vm711
    %vm776 = vmand %vm584, %vm712
    %vm777 = vmand %vm585, %vm713
    %vm778 = vmand %vm586, %vm714
    %vm779 = vmand %vm587, %vm715
    %vm780 = vmand %vm588, %vm716
    %vm781 = vmand %vm589, %vm717
    %vm782 = vmand %vm590, %vm718
    %vm783 = vmand %vm591, %vm719
    %vm784 = vmand %vm592, %vm720
    %vm785 = vmand %vm593, %vm721
    %vm786 = vmand %vm594, %vm722
    %vm787 = vmand %vm595, %vm723
    %vm788 = vmand %vm596, %vm724
    %vm789 = vmand %vm597, %vm725
    %vm790 = vmand %vm598, %vm726
    %vm791 = vmand %vm599, %vm727
    %vm792 = vmand %vm600, %vm728
    %vm793 = vmand %vm601, %vm729
    %vm794 = vmand %vm602, %vm730
    %vm795 = vmand %vm603, %vm731
    %vm796 = vmand %vm604, %vm732
    %vm797 = vmand %vm605, %vm733
    %vm798 = vmand %vm606, %vm734
    %vm799 = vmand %vm607, %vm735
    %vm800 = vmand %vm608, %vm736
    %vm801 = vmand %vm609, %vm737
    %vm802 = vcmp.lt.s32.totalorder %v610, 16
    %vm803 = vcmp.lt.s32.totalorder %v611, 16
    %vm804 = vcmp.lt.s32.totalorder %v612, 16
    %vm805 = vcmp.lt.s32.totalorder %v613, 16
    %vm806 = vcmp.lt.s32.totalorder %v614, 16
    %vm807 = vcmp.lt.s32.totalorder %v615, 16
    %vm808 = vcmp.lt.s32.totalorder %v616, 16
    %vm809 = vcmp.lt.s32.totalorder %v617, 16
    %vm810 = vcmp.lt.s32.totalorder %v618, 16
    %vm811 = vcmp.lt.s32.totalorder %v619, 16
    %vm812 = vcmp.lt.s32.totalorder %v620, 16
    %vm813 = vcmp.lt.s32.totalorder %v621, 16
    %vm814 = vcmp.lt.s32.totalorder %v622, 16
    %vm815 = vcmp.lt.s32.totalorder %v623, 16
    %vm816 = vcmp.lt.s32.totalorder %v624, 16
    %vm817 = vcmp.lt.s32.totalorder %v625, 16
    %vm818 = vcmp.lt.s32.totalorder %v626, 16
    %vm819 = vcmp.lt.s32.totalorder %v627, 16
    %vm820 = vcmp.lt.s32.totalorder %v628, 16
    %vm821 = vcmp.lt.s32.totalorder %v629, 16
    %vm822 = vcmp.lt.s32.totalorder %v630, 16
    %vm823 = vcmp.lt.s32.totalorder %v631, 16
    %vm824 = vcmp.lt.s32.totalorder %v632, 16
    %vm825 = vcmp.lt.s32.totalorder %v633, 16
    %vm826 = vcmp.lt.s32.totalorder %v634, 16
    %vm827 = vcmp.lt.s32.totalorder %v635, 16
    %vm828 = vcmp.lt.s32.totalorder %v636, 16
    %vm829 = vcmp.lt.s32.totalorder %v637, 16
    %vm830 = vcmp.lt.s32.totalorder %v638, 16
    %vm831 = vcmp.lt.s32.totalorder %v639, 16
    %vm832 = vcmp.lt.s32.totalorder %v640, 16
    %vm833 = vcmp.lt.s32.totalorder %v641, 16
    %vm834 = vcmp.lt.s32.totalorder %v642, 16
    %vm835 = vcmp.lt.s32.totalorder %v643, 16
    %vm836 = vcmp.lt.s32.totalorder %v644, 16
    %vm837 = vcmp.lt.s32.totalorder %v645, 16
    %vm838 = vcmp.lt.s32.totalorder %v646, 16
    %vm839 = vcmp.lt.s32.totalorder %v647, 16
    %vm840 = vcmp.lt.s32.totalorder %v648, 16
    %vm841 = vcmp.lt.s32.totalorder %v649, 16
    %vm842 = vcmp.lt.s32.totalorder %v650, 16
    %vm843 = vcmp.lt.s32.totalorder %v651, 16
    %vm844 = vcmp.lt.s32.totalorder %v652, 16
    %vm845 = vcmp.lt.s32.totalorder %v653, 16
    %vm846 = vcmp.lt.s32.totalorder %v654, 16
    %vm847 = vcmp.lt.s32.totalorder %v655, 16
    %vm848 = vcmp.lt.s32.totalorder %v656, 16
    %vm849 = vcmp.lt.s32.totalorder %v657, 16
    %vm850 = vcmp.lt.s32.totalorder %v658, 16
    %vm851 = vcmp.lt.s32.totalorder %v659, 16
    %vm852 = vcmp.lt.s32.totalorder %v660, 16
    %vm853 = vcmp.lt.s32.totalorder %v661, 16
    %vm854 = vcmp.lt.s32.totalorder %v662, 16
    %vm855 = vcmp.lt.s32.totalorder %v663, 16
    %vm856 = vcmp.lt.s32.totalorder %v664, 16
    %vm857 = vcmp.lt.s32.totalorder %v665, 16
    %vm858 = vcmp.lt.s32.totalorder %v666, 16
    %vm859 = vcmp.lt.s32.totalorder %v667, 16
    %vm860 = vcmp.lt.s32.totalorder %v668, 16
    %vm861 = vcmp.lt.s32.totalorder %v669, 16
    %vm862 = vcmp.lt.s32.totalorder %v670, 16
    %vm863 = vcmp.lt.s32.totalorder %v671, 16
    %vm864 = vcmp.lt.s32.totalorder %v672, 16
    %vm865 = vcmp.lt.s32.totalorder %v673, 16
    %vm866 = vmand %vm738, %vm802
    %vm867 = vmand %vm739, %vm803
    %vm868 = vmand %vm740, %vm804
    %vm869 = vmand %vm741, %vm805
    %vm870 = vmand %vm742, %vm806
    %vm871 = vmand %vm743, %vm807
    %vm872 = vmand %vm744, %vm808
    %vm873 = vmand %vm745, %vm809
    %vm874 = vmand %vm746, %vm810
    %vm875 = vmand %vm747, %vm811
    %vm876 = vmand %vm748, %vm812
    %vm877 = vmand %vm749, %vm813
    %vm878 = vmand %vm750, %vm814
    %vm879 = vmand %vm751, %vm815
    %vm880 = vmand %vm752, %vm816
    %vm881 = vmand %vm753, %vm817
    %vm882 = vmand %vm754, %vm818
    %vm883 = vmand %vm755, %vm819
    %vm884 = vmand %vm756, %vm820
    %vm885 = vmand %vm757, %vm821
    %vm886 = vmand %vm758, %vm822
    %vm887 = vmand %vm759, %vm823
    %vm888 = vmand %vm760, %vm824
    %vm889 = vmand %vm761, %vm825
    %vm890 = vmand %vm762, %vm826
    %vm891 = vmand %vm763, %vm827
    %vm892 = vmand %vm764, %vm828
    %vm893 = vmand %vm765, %vm829
    %vm894 = vmand %vm766, %vm830
    %vm895 = vmand %vm767, %vm831
    %vm896 = vmand %vm768, %vm832
    %vm897 = vmand %vm769, %vm833
    %vm898 = vmand %vm770, %vm834
    %vm899 = vmand %vm771, %vm835
    %vm900 = vmand %vm772, %vm836
    %vm901 = vmand %vm773, %vm837
    %vm902 = vmand %vm774, %vm838
    %vm903 = vmand %vm775, %vm839
    %vm904 = vmand %vm776, %vm840
    %vm905 = vmand %vm777, %vm841
    %vm906 = vmand %vm778, %vm842
    %vm907 = vmand %vm779, %vm843
    %vm908 = vmand %vm780, %vm844
    %vm909 = vmand %vm781, %vm845
    %vm910 = vmand %vm782, %vm846
    %vm911 = vmand %vm783, %vm847
    %vm912 = vmand %vm784, %vm848
    %vm913 = vmand %vm785, %vm849
    %vm914 = vmand %vm786, %vm850
    %vm915 = vmand %vm787, %vm851
    %vm916 = vmand %vm788, %vm852
    %vm917 = vmand %vm789, %vm853
    %vm918 = vmand %vm790, %vm854
    %vm919 = vmand %vm791, %vm855
    %vm920 = vmand %vm792, %vm856
    %vm921 = vmand %vm793, %vm857
    %vm922 = vmand %vm794, %vm858
    %vm923 = vmand %vm795, %vm859
    %vm924 = vmand %vm796, %vm860
    %vm925 = vmand %vm797, %vm861
    %vm926 = vmand %vm798, %vm862
    %vm927 = vmand %vm799, %vm863
    %vm928 = vmand %vm800, %vm864
    %vm929 = vmand %vm801, %vm865
    %v930 = vsel %vm866, 1, 0
    %v931 = vsel %vm867, 1, 0
    %v932 = vsel %vm868, 1, 0
    %v933 = vsel %vm869, 1, 0
    %v934 = vsel %vm870, 1, 0
    %v935 = vsel %vm871, 1, 0
    %v936 = vsel %vm872, 1, 0
    %v937 = vsel %vm873, 1, 0
    %v938 = vsel %vm874, 1, 0
    %v939 = vsel %vm875, 1, 0
    %v940 = vsel %vm876, 1, 0
    %v941 = vsel %vm877, 1, 0
    %v942 = vsel %vm878, 1, 0
    %v943 = vsel %vm879, 1, 0
    %v944 = vsel %vm880, 1, 0
    %v945 = vsel %vm881, 1, 0
    %v946 = vsel %vm882, 1, 0
    %v947 = vsel %vm883, 1, 0
    %v948 = vsel %vm884, 1, 0
    %v949 = vsel %vm885, 1, 0
    %v950 = vsel %vm886, 1, 0
    %v951 = vsel %vm887, 1, 0
    %v952 = vsel %vm888, 1, 0
    %v953 = vsel %vm889, 1, 0
    %v954 = vsel %vm890, 1, 0
    %v955 = vsel %vm891, 1, 0
    %v956 = vsel %vm892, 1, 0
    %v957 = vsel %vm893, 1, 0
    %v958 = vsel %vm894, 1, 0
    %v959 = vsel %vm895, 1, 0
    %v960 = vsel %vm896, 1, 0
    %v961 = vsel %vm897, 1, 0
    %v962 = vsel %vm898, 1, 0
    %v963 = vsel %vm899, 1, 0
    %v964 = vsel %vm900, 1, 0
    %v965 = vsel %vm901, 1, 0
    %v966 = vsel %vm902, 1, 0
    %v967 = vsel %vm903, 1, 0
    %v968 = vsel %vm904, 1, 0
    %v969 = vsel %vm905, 1, 0
    %v970 = vsel %vm906, 1, 0
    %v971 = vsel %vm907, 1, 0
    %v972 = vsel %vm908, 1, 0
    %v973 = vsel %vm909, 1, 0
    %v974 = vsel %vm910, 1, 0
    %v975 = vsel %vm911, 1, 0
    %v976 = vsel %vm912, 1, 0
    %v977 = vsel %vm913, 1, 0
    %v978 = vsel %vm914, 1, 0
    %v979 = vsel %vm915, 1, 0
    %v980 = vsel %vm916, 1, 0
    %v981 = vsel %vm917, 1, 0
    %v982 = vsel %vm918, 1, 0
    %v983 = vsel %vm919, 1, 0
    %v984 = vsel %vm920, 1, 0
    %v985 = vsel %vm921, 1, 0
    %v986 = vsel %vm922, 1, 0
    %v987 = vsel %vm923, 1, 0
    %v988 = vsel %vm924, 1, 0
    %v989 = vsel %vm925, 1, 0
    %v990 = vsel %vm926, 1, 0
    %v991 = vsel %vm927, 1, 0
    %v992 = vsel %vm928, 1, 0
    %v993 = vsel %vm929, 1, 0
    %vm994 = vcmp.eq.s32.totalorder %v930, 1
    %vm995 = vcmp.eq.s32.totalorder %v931, 1
    %vm996 = vcmp.eq.s32.totalorder %v932, 1
    %vm997 = vcmp.eq.s32.totalorder %v933, 1
    %vm998 = vcmp.eq.s32.totalorder %v934, 1
    %vm999 = vcmp.eq.s32.totalorder %v935, 1
    %vm1000 = vcmp.eq.s32.totalorder %v936, 1
    %vm1001 = vcmp.eq.s32.totalorder %v937, 1
    %vm1002 = vcmp.eq.s32.totalorder %v938, 1
    %vm1003 = vcmp.eq.s32.totalorder %v939, 1
    %vm1004 = vcmp.eq.s32.totalorder %v940, 1
    %vm1005 = vcmp.eq.s32.totalorder %v941, 1
    %vm1006 = vcmp.eq.s32.totalorder %v942, 1
    %vm1007 = vcmp.eq.s32.totalorder %v943, 1
    %vm1008 = vcmp.eq.s32.totalorder %v944, 1
    %vm1009 = vcmp.eq.s32.totalorder %v945, 1
    %vm1010 = vcmp.eq.s32.totalorder %v946, 1
    %vm1011 = vcmp.eq.s32.totalorder %v947, 1
    %vm1012 = vcmp.eq.s32.totalorder %v948, 1
    %vm1013 = vcmp.eq.s32.totalorder %v949, 1
    %vm1014 = vcmp.eq.s32.totalorder %v950, 1
    %vm1015 = vcmp.eq.s32.totalorder %v951, 1
    %vm1016 = vcmp.eq.s32.totalorder %v952, 1
    %vm1017 = vcmp.eq.s32.totalorder %v953, 1
    %vm1018 = vcmp.eq.s32.totalorder %v954, 1
    %vm1019 = vcmp.eq.s32.totalorder %v955, 1
    %vm1020 = vcmp.eq.s32.totalorder %v956, 1
    %vm1021 = vcmp.eq.s32.totalorder %v957, 1
    %vm1022 = vcmp.eq.s32.totalorder %v958, 1
    %vm1023 = vcmp.eq.s32.totalorder %v959, 1
    %vm1024 = vcmp.eq.s32.totalorder %v960, 1
    %vm1025 = vcmp.eq.s32.totalorder %v961, 1
    %vm1026 = vcmp.eq.s32.totalorder %v962, 1
    %vm1027 = vcmp.eq.s32.totalorder %v963, 1
    %vm1028 = vcmp.eq.s32.totalorder %v964, 1
    %vm1029 = vcmp.eq.s32.totalorder %v965, 1
    %vm1030 = vcmp.eq.s32.totalorder %v966, 1
    %vm1031 = vcmp.eq.s32.totalorder %v967, 1
    %vm1032 = vcmp.eq.s32.totalorder %v968, 1
    %vm1033 = vcmp.eq.s32.totalorder %v969, 1
    %vm1034 = vcmp.eq.s32.totalorder %v970, 1
    %vm1035 = vcmp.eq.s32.totalorder %v971, 1
    %vm1036 = vcmp.eq.s32.totalorder %v972, 1
    %vm1037 = vcmp.eq.s32.totalorder %v973, 1
    %vm1038 = vcmp.eq.s32.totalorder %v974, 1
    %vm1039 = vcmp.eq.s32.totalorder %v975, 1
    %vm1040 = vcmp.eq.s32.totalorder %v976, 1
    %vm1041 = vcmp.eq.s32.totalorder %v977, 1
    %vm1042 = vcmp.eq.s32.totalorder %v978, 1
    %vm1043 = vcmp.eq.s32.totalorder %v979, 1
    %vm1044 = vcmp.eq.s32.totalorder %v980, 1
    %vm1045 = vcmp.eq.s32.totalorder %v981, 1
    %vm1046 = vcmp.eq.s32.totalorder %v982, 1
    %vm1047 = vcmp.eq.s32.totalorder %v983, 1
    %vm1048 = vcmp.eq.s32.totalorder %v984, 1
    %vm1049 = vcmp.eq.s32.totalorder %v985, 1
    %vm1050 = vcmp.eq.s32.totalorder %v986, 1
    %vm1051 = vcmp.eq.s32.totalorder %v987, 1
    %vm1052 = vcmp.eq.s32.totalorder %v988, 1
    %vm1053 = vcmp.eq.s32.totalorder %v989, 1
    %vm1054 = vcmp.eq.s32.totalorder %v990, 1
    %vm1055 = vcmp.eq.s32.totalorder %v991, 1
    %vm1056 = vcmp.eq.s32.totalorder %v992, 1
    %vm1057 = vcmp.eq.s32.totalorder %v993, 1
    %vm1121 = vcmask 1040384
    %v1122 = vrot.slane 0.0, 7
    %v1123 = vsel %vm1121, %v1122, %v1122
    %v1124 = vrot.slane %v33, 7
    %v1125 = vsel %vm1121, %v1122, %v1124
    %v1126 = vrot.slane %v34, 7
    %v1127 = vsel %vm1121, %v1124, %v1126
    %v1128 = vrot.slane %v35, 7
    %v1129 = vsel %vm1121, %v1126, %v1128
    %v1130 = vrot.slane %v36, 7
    %v1131 = vsel %vm1121, %v1128, %v1130
    %v1132 = vrot.slane %v37, 7
    %v1133 = vsel %vm1121, %v1130, %v1132
    %v1134 = vrot.slane %v38, 7
    %v1135 = vsel %vm1121, %v1132, %v1134
    %v1136 = vrot.slane %v39, 7
    %v1137 = vsel %vm1121, %v1134, %v1136
    %v1138 = vrot.slane %v40, 7
    %v1139 = vsel %vm1121, %v1136, %v1138
    %v1140 = vrot.slane %v41, 7
    %v1141 = vsel %vm1121, %v1138, %v1140
    %v1142 = vrot.slane %v42, 7
    %v1143 = vsel %vm1121, %v1140, %v1142
    %v1144 = vrot.slane %v43, 7
    %v1145 = vsel %vm1121, %v1142, %v1144
    %v1146 = vrot.slane %v44, 7
    %v1147 = vsel %vm1121, %v1144, %v1146
    %v1148 = vrot.slane %v45, 7
    %v1149 = vsel %vm1121, %v1146, %v1148
    %v1150 = vrot.slane %v46, 7
    %v1151 = vsel %vm1121, %v1148, %v1150
    %v1152 = vrot.slane %v47, 7
    %v1153 = vsel %vm1121, %v1150, %v1152
    %v1154 = vrot.slane %v48, 7
    %v1155 = vsel %vm1121, %v1152, %v1154
    %v1156 = vrot.slane %v49, 7
    %v1157 = vsel %vm1121, %v1154, %v1156
    %v1158 = vrot.slane %v50, 7
    %v1159 = vsel %vm1121, %v1156, %v1158
    %v1160 = vrot.slane %v51, 7
    %v1161 = vsel %vm1121, %v1158, %v1160
    %v1162 = vrot.slane %v52, 7
    %v1163 = vsel %vm1121, %v1160, %v1162
    %v1164 = vrot.slane %v53, 7
    %v1165 = vsel %vm1121, %v1162, %v1164
    %v1166 = vrot.slane %v54, 7
    %v1167 = vsel %vm1121, %v1164, %v1166
    %v1168 = vrot.slane %v55, 7
    %v1169 = vsel %vm1121, %v1166, %v1168
    %v1170 = vrot.slane %v56, 7
    %v1171 = vsel %vm1121, %v1168, %v1170
    %v1172 = vrot.slane %v57, 7
    %v1173 = vsel %vm1121, %v1170, %v1172
    %v1174 = vrot.slane %v58, 7
    %v1175 = vsel %vm1121, %v1172, %v1174
    %v1176 = vrot.slane %v59, 7
    %v1177 = vsel %vm1121, %v1174, %v1176
    %v1178 = vrot.slane %v60, 7
    %v1179 = vsel %vm1121, %v1176, %v1178
    %v1180 = vrot.slane %v61, 7
    %v1181 = vsel %vm1121, %v1178, %v1180
    %v1182 = vrot.slane %v62, 7
    %v1183 = vsel %vm1121, %v1180, %v1182
    %v1184 = vrot.slane %v63, 7
    %v1185 = vsel %vm1121, %v1182, %v1184
    %v1186 = vrot.slane %v64, 7
    %v1187 = vsel %vm1121, %v1184, %v1186
    %v1188 = vrot.slane %v65, 7
    %v1189 = vsel %vm1121, %v1186, %v1188
    %v1190 = vrot.slane %v66, 7
    %v1191 = vsel %vm1121, %v1188, %v1190
    %v1192 = vrot.slane %v67, 7
    %v1193 = vsel %vm1121, %v1190, %v1192
    %v1194 = vrot.slane %v68, 7
    %v1195 = vsel %vm1121, %v1192, %v1194
    %v1196 = vrot.slane %v69, 7
    %v1197 = vsel %vm1121, %v1194, %v1196
    %v1198 = vrot.slane %v70, 7
    %v1199 = vsel %vm1121, %v1196, %v1198
    %v1200 = vrot.slane %v71, 7
    %v1201 = vsel %vm1121, %v1198, %v1200
    %v1202 = vrot.slane %v72, 7
    %v1203 = vsel %vm1121, %v1200, %v1202
    %v1204 = vrot.slane %v73, 7
    %v1205 = vsel %vm1121, %v1202, %v1204
    %v1206 = vrot.slane %v74, 7
    %v1207 = vsel %vm1121, %v1204, %v1206
    %v1208 = vrot.slane %v75, 7
    %v1209 = vsel %vm1121, %v1206, %v1208
    %v1210 = vrot.slane %v76, 7
    %v1211 = vsel %vm1121, %v1208, %v1210
    %v1212 = vrot.slane %v77, 7
    %v1213 = vsel %vm1121, %v1210, %v1212
    %v1214 = vrot.slane %v78, 7
    %v1215 = vsel %vm1121, %v1212, %v1214
    %v1216 = vrot.slane %v79, 7
    %v1217 = vsel %vm1121, %v1214, %v1216
    %v1218 = vrot.slane %v80, 7
    %v1219 = vsel %vm1121, %v1216, %v1218
    %v1220 = vrot.slane %v81, 7
    %v1221 = vsel %vm1121, %v1218, %v1220
    %v1222 = vrot.slane %v82, 7
    %v1223 = vsel %vm1121, %v1220, %v1222
    %v1224 = vrot.slane %v83, 7
    %v1225 = vsel %vm1121, %v1222, %v1224
    %v1226 = vrot.slane %v84, 7
    %v1227 = vsel %vm1121, %v1224, %v1226
    %v1228 = vrot.slane %v85, 7
    %v1229 = vsel %vm1121, %v1226, %v1228
    %v1230 = vrot.slane %v86, 7
    %v1231 = vsel %vm1121, %v1228, %v1230
    %v1232 = vrot.slane %v87, 7
    %v1233 = vsel %vm1121, %v1230, %v1232
    %v1234 = vrot.slane %v88, 7
    %v1235 = vsel %vm1121, %v1232, %v1234
    %v1236 = vrot.slane %v89, 7
    %v1237 = vsel %vm1121, %v1234, %v1236
    %v1238 = vrot.slane %v90, 7
    %v1239 = vsel %vm1121, %v1236, %v1238
    %v1240 = vrot.slane %v91, 7
    %v1241 = vsel %vm1121, %v1238, %v1240
    %v1242 = vrot.slane %v92, 7
    %v1243 = vsel %vm1121, %v1240, %v1242
    %v1244 = vrot.slane %v93, 7
    %v1245 = vsel %vm1121, %v1242, %v1244
    %v1246 = vrot.slane %v94, 7
    %v1247 = vsel %vm1121, %v1244, %v1246
    %v1311 = vsel %vm994, %v1123, 0.0
    %v1312 = vsel %vm995, %v1123, 0.0
    %v1313 = vsel %vm996, %v1125, 0.0
    %v1314 = vsel %vm997, %v1127, 0.0
    %v1315 = vsel %vm998, %v1129, 0.0
    %v1316 = vsel %vm999, %v1131, 0.0
    %v1317 = vsel %vm1000, %v1133, 0.0
    %v1318 = vsel %vm1001, %v1135, 0.0
    %v1319 = vsel %vm1002, %v1137, 0.0
    %v1320 = vsel %vm1003, %v1139, 0.0
    %v1321 = vsel %vm1004, %v1141, 0.0
    %v1322 = vsel %vm1005, %v1143, 0.0
    %v1323 = vsel %vm1006, %v1145, 0.0
    %v1324 = vsel %vm1007, %v1147, 0.0
    %v1325 = vsel %vm1008, %v1149, 0.0
    %v1326 = vsel %vm1009, %v1151, 0.0
    %v1327 = vsel %vm1010, %v1153, 0.0
    %v1328 = vsel %vm1011, %v1155, 0.0
    %v1329 = vsel %vm1012, %v1157, 0.0
    %v1330 = vsel %vm1013, %v1159, 0.0
    %v1331 = vsel %vm1014, %v1161, 0.0
    %v1332 = vsel %vm1015, %v1163, 0.0
    %v1333 = vsel %vm1016, %v1165, 0.0
    %v1334 = vsel %vm1017, %v1167, 0.0
    %v1335 = vsel %vm1018, %v1169, 0.0
    %v1336 = vsel %vm1019, %v1171, 0.0
    %v1337 = vsel %vm1020, %v1173, 0.0
    %v1338 = vsel %vm1021, %v1175, 0.0
    %v1339 = vsel %vm1022, %v1177, 0.0
    %v1340 = vsel %vm1023, %v1179, 0.0
    %v1341 = vsel %vm1024, %v1181, 0.0
    %v1342 = vsel %vm1025, %v1183, 0.0
    %v1343 = vsel %vm1026, %v1185, 0.0
    %v1344 = vsel %vm1027, %v1187, 0.0
    %v1345 = vsel %vm1028, %v1189, 0.0
    %v1346 = vsel %vm1029, %v1191, 0.0
    %v1347 = vsel %vm1030, %v1193, 0.0
    %v1348 = vsel %vm1031, %v1195, 0.0
    %v1349 = vsel %vm1032, %v1197, 0.0
    %v1350 = vsel %vm1033, %v1199, 0.0
    %v1351 = vsel %vm1034, %v1201, 0.0
    %v1352 = vsel %vm1035, %v1203, 0.0
    %v1353 = vsel %vm1036, %v1205, 0.0
    %v1354 = vsel %vm1037, %v1207, 0.0
    %v1355 = vsel %vm1038, %v1209, 0.0
    %v1356 = vsel %vm1039, %v1211, 0.0
    %v1357 = vsel %vm1040, %v1213, 0.0
    %v1358 = vsel %vm1041, %v1215, 0.0
    %v1359 = vsel %vm1042, %v1217, 0.0
    %v1360 = vsel %vm1043, %v1219, 0.0
    %v1361 = vsel %vm1044, %v1221, 0.0
    %v1362 = vsel %vm1045, %v1223, 0.0
    %v1363 = vsel %vm1046, %v1225, 0.0
    %v1364 = vsel %vm1047, %v1227, 0.0
    %v1365 = vsel %vm1048, %v1229, 0.0
    %v1366 = vsel %vm1049, %v1231, 0.0
    %v1367 = vsel %vm1050, %v1233, 0.0
    %v1368 = vsel %vm1051, %v1235, 0.0
    %v1369 = vsel %vm1052, %v1237, 0.0
    %v1370 = vsel %vm1053, %v1239, 0.0
    %v1371 = vsel %vm1054, %v1241, 0.0
    %v1372 = vsel %vm1055, %v1243, 0.0
    %v1373 = vsel %vm1056, %v1245, 0.0
    %v1374 = vsel %vm1057, %v1247, 0.0
    %vm1375 = vcmp.ge.s32.totalorder %v162, 0
    %vm1376 = vcmp.ge.s32.totalorder %v163, 0
    %vm1377 = vcmp.ge.s32.totalorder %v164, 0
    %vm1378 = vcmp.ge.s32.totalorder %v165, 0
    %vm1379 = vcmp.ge.s32.totalorder %v166, 0
    %vm1380 = vcmp.ge.s32.totalorder %v167, 0
    %vm1381 = vcmp.ge.s32.totalorder %v168, 0
    %vm1382 = vcmp.ge.s32.totalorder %v169, 0
    %vm1383 = vcmp.ge.s32.totalorder %v170, 0
    %vm1384 = vcmp.ge.s32.totalorder %v171, 0
    %vm1385 = vcmp.ge.s32.totalorder %v172, 0
    %vm1386 = vcmp.ge.s32.totalorder %v173, 0
    %vm1387 = vcmp.ge.s32.totalorder %v174, 0
    %vm1388 = vcmp.ge.s32.totalorder %v175, 0
    %vm1389 = vcmp.ge.s32.totalorder %v176, 0
    %vm1390 = vcmp.ge.s32.totalorder %v177, 0
    %vm1391 = vcmp.ge.s32.totalorder %v178, 0
    %vm1392 = vcmp.ge.s32.totalorder %v179, 0
    %vm1393 = vcmp.ge.s32.totalorder %v180, 0
    %vm1394 = vcmp.ge.s32.totalorder %v181, 0
    %vm1395 = vcmp.ge.s32.totalorder %v182, 0
    %vm1396 = vcmp.ge.s32.totalorder %v183, 0
    %vm1397 = vcmp.ge.s32.totalorder %v184, 0
    %vm1398 = vcmp.ge.s32.totalorder %v185, 0
    %vm1399 = vcmp.ge.s32.totalorder %v186, 0
    %vm1400 = vcmp.ge.s32.totalorder %v187, 0
    %vm1401 = vcmp.ge.s32.totalorder %v188, 0
    %vm1402 = vcmp.ge.s32.totalorder %v189, 0
    %vm1403 = vcmp.ge.s32.totalorder %v190, 0
    %vm1404 = vcmp.ge.s32.totalorder %v191, 0
    %vm1405 = vcmp.ge.s32.totalorder %v192, 0
    %vm1406 = vcmp.ge.s32.totalorder %v193, 0
    %vm1407 = vcmp.ge.s32.totalorder %v194, 0
    %vm1408 = vcmp.ge.s32.totalorder %v195, 0
    %vm1409 = vcmp.ge.s32.totalorder %v196, 0
    %vm1410 = vcmp.ge.s32.totalorder %v197, 0
    %vm1411 = vcmp.ge.s32.totalorder %v198, 0
    %vm1412 = vcmp.ge.s32.totalorder %v199, 0
    %vm1413 = vcmp.ge.s32.totalorder %v200, 0
    %vm1414 = vcmp.ge.s32.totalorder %v201, 0
    %vm1415 = vcmp.ge.s32.totalorder %v202, 0
    %vm1416 = vcmp.ge.s32.totalorder %v203, 0
    %vm1417 = vcmp.ge.s32.totalorder %v204, 0
    %vm1418 = vcmp.ge.s32.totalorder %v205, 0
    %vm1419 = vcmp.ge.s32.totalorder %v206, 0
    %vm1420 = vcmp.ge.s32.totalorder %v207, 0
    %vm1421 = vcmp.ge.s32.totalorder %v208, 0
    %vm1422 = vcmp.ge.s32.totalorder %v209, 0
    %vm1423 = vcmp.ge.s32.totalorder %v210, 0
    %vm1424 = vcmp.ge.s32.totalorder %v211, 0
    %vm1425 = vcmp.ge.s32.totalorder %v212, 0
    %vm1426 = vcmp.ge.s32.totalorder %v213, 0
    %vm1427 = vcmp.ge.s32.totalorder %v214, 0
    %vm1428 = vcmp.ge.s32.totalorder %v215, 0
    %vm1429 = vcmp.ge.s32.totalorder %v216, 0
    %vm1430 = vcmp.ge.s32.totalorder %v217, 0
    %vm1431 = vcmp.ge.s32.totalorder %v218, 0
    %vm1432 = vcmp.ge.s32.totalorder %v219, 0
    %vm1433 = vcmp.ge.s32.totalorder %v220, 0
    %vm1434 = vcmp.ge.s32.totalorder %v221, 0
    %vm1435 = vcmp.ge.s32.totalorder %v222, 0
    %vm1436 = vcmp.ge.s32.totalorder %v223, 0
    %vm1437 = vcmp.ge.s32.totalorder %v224, 0
    %vm1438 = vcmp.ge.s32.totalorder %v225, 0
    %vm1439 = vmand %vm548, %vm1377
    %vm1440 = vmand %vm549, %vm1378
    %vm1441 = vmand %vm550, %vm1379
    %vm1442 = vmand %vm551, %vm1380
    %vm1443 = vmand %vm552, %vm1381
    %vm1444 = vmand %vm553, %vm1382
    %vm1445 = vmand %vm554, %vm1383
    %vm1446 = vmand %vm555, %vm1384
    %vm1447 = vmand %vm556, %vm1385
    %vm1448 = vmand %vm557, %vm1386
    %vm1449 = vmand %vm558, %vm1387
    %vm1450 = vmand %vm559, %vm1388
    %vm1451 = vmand %vm560, %vm1389
    %vm1452 = vmand %vm561, %vm1390
    %vm1453 = vmand %vm562, %vm1391
    %vm1454 = vmand %vm563, %vm1392
    %vm1455 = vmand %vm564, %vm1393
    %vm1456 = vmand %vm565, %vm1394
    %vm1457 = vmand %vm566, %vm1395
    %vm1458 = vmand %vm567, %vm1396
    %vm1459 = vmand %vm568, %vm1397
    %vm1460 = vmand %vm569, %vm1398
    %vm1461 = vmand %vm570, %vm1399
    %vm1462 = vmand %vm571, %vm1400
    %vm1463 = vmand %vm572, %vm1401
    %vm1464 = vmand %vm573, %vm1402
    %vm1465 = vmand %vm574, %vm1403
    %vm1466 = vmand %vm575, %vm1404
    %vm1467 = vmand %vm576, %vm1405
    %vm1468 = vmand %vm577, %vm1406
    %vm1469 = vmand %vm578, %vm1407
    %vm1470 = vmand %vm579, %vm1408
    %vm1471 = vmand %vm580, %vm1409
    %vm1472 = vmand %vm581, %vm1410
    %vm1473 = vmand %vm582, %vm1411
    %vm1474 = vmand %vm583, %vm1412
    %vm1475 = vmand %vm584, %vm1413
    %vm1476 = vmand %vm585, %vm1414
    %vm1477 = vmand %vm586, %vm1415
    %vm1478 = vmand %vm587, %vm1416
    %vm1479 = vmand %vm588, %vm1417
    %vm1480 = vmand %vm589, %vm1418
    %vm1481 = vmand %vm590, %vm1419
    %vm1482 = vmand %vm591, %vm1420
    %vm1483 = vmand %vm592, %vm1421
    %vm1484 = vmand %vm593, %vm1422
    %vm1485 = vmand %vm594, %vm1423
    %vm1486 = vmand %vm595, %vm1424
    %vm1487 = vmand %vm596, %vm1425
    %vm1488 = vmand %vm597, %vm1426
    %vm1489 = vmand %vm598, %vm1427
    %vm1490 = vmand %vm599, %vm1428
    %vm1491 = vmand %vm600, %vm1429
    %vm1492 = vmand %vm601, %vm1430
    %vm1493 = vmand %vm602, %vm1431
    %vm1494 = vmand %vm603, %vm1432
    %vm1495 = vmand %vm604, %vm1433
    %vm1496 = vmand %vm605, %vm1434
    %vm1497 = vmand %vm606, %vm1435
    %vm1498 = vmand %vm607, %vm1436
    %vm1499 = vmand %vm608, %vm1437
    %vm1500 = vmand %vm609, %vm1438
    %vm1501 = vcmp.lt.s32.totalorder %v162, 16
    %vm1502 = vcmp.lt.s32.totalorder %v163, 16
    %vm1503 = vcmp.lt.s32.totalorder %v164, 16
    %vm1504 = vcmp.lt.s32.totalorder %v165, 16
    %vm1505 = vcmp.lt.s32.totalorder %v166, 16
    %vm1506 = vcmp.lt.s32.totalorder %v167, 16
    %vm1507 = vcmp.lt.s32.totalorder %v168, 16
    %vm1508 = vcmp.lt.s32.totalorder %v169, 16
    %vm1509 = vcmp.lt.s32.totalorder %v170, 16
    %vm1510 = vcmp.lt.s32.totalorder %v171, 16
    %vm1511 = vcmp.lt.s32.totalorder %v172, 16
    %vm1512 = vcmp.lt.s32.totalorder %v173, 16
    %vm1513 = vcmp.lt.s32.totalorder %v174, 16
    %vm1514 = vcmp.lt.s32.totalorder %v175, 16
    %vm1515 = vcmp.lt.s32.totalorder %v176, 16
    %vm1516 = vcmp.lt.s32.totalorder %v177, 16
    %vm1517 = vcmp.lt.s32.totalorder %v178, 16
    %vm1518 = vcmp.lt.s32.totalorder %v179, 16
    %vm1519 = vcmp.lt.s32.totalorder %v180, 16
    %vm1520 = vcmp.lt.s32.totalorder %v181, 16
    %vm1521 = vcmp.lt.s32.totalorder %v182, 16
    %vm1522 = vcmp.lt.s32.totalorder %v183, 16
    %vm1523 = vcmp.lt.s32.totalorder %v184, 16
    %vm1524 = vcmp.lt.s32.totalorder %v185, 16
    %vm1525 = vcmp.lt.s32.totalorder %v186, 16
    %vm1526 = vcmp.lt.s32.totalorder %v187, 16
    %vm1527 = vcmp.lt.s32.totalorder %v188, 16
    %vm1528 = vcmp.lt.s32.totalorder %v189, 16
    %vm1529 = vcmp.lt.s32.totalorder %v190, 16
    %vm1530 = vcmp.lt.s32.totalorder %v191, 16
    %vm1531 = vcmp.lt.s32.totalorder %v192, 16
    %vm1532 = vcmp.lt.s32.totalorder %v193, 16
    %vm1533 = vcmp.lt.s32.totalorder %v194, 16
    %vm1534 = vcmp.lt.s32.totalorder %v195, 16
    %vm1535 = vcmp.lt.s32.totalorder %v196, 16
    %vm1536 = vcmp.lt.s32.totalorder %v197, 16
    %vm1537 = vcmp.lt.s32.totalorder %v198, 16
    %vm1538 = vcmp.lt.s32.totalorder %v199, 16
    %vm1539 = vcmp.lt.s32.totalorder %v200, 16
    %vm1540 = vcmp.lt.s32.totalorder %v201, 16
    %vm1541 = vcmp.lt.s32.totalorder %v202, 16
    %vm1542 = vcmp.lt.s32.totalorder %v203, 16
    %vm1543 = vcmp.lt.s32.totalorder %v204, 16
    %vm1544 = vcmp.lt.s32.totalorder %v205, 16
    %vm1545 = vcmp.lt.s32.totalorder %v206, 16
    %vm1546 = vcmp.lt.s32.totalorder %v207, 16
    %vm1547 = vcmp.lt.s32.totalorder %v208, 16
    %vm1548 = vcmp.lt.s32.totalorder %v209, 16
    %vm1549 = vcmp.lt.s32.totalorder %v210, 16
    %vm1550 = vcmp.lt.s32.totalorder %v211, 16
    %vm1551 = vcmp.lt.s32.totalorder %v212, 16
    %vm1552 = vcmp.lt.s32.totalorder %v213, 16
    %vm1553 = vcmp.lt.s32.totalorder %v214, 16
    %vm1554 = vcmp.lt.s32.totalorder %v215, 16
    %vm1555 = vcmp.lt.s32.totalorder %v216, 16
    %vm1556 = vcmp.lt.s32.totalorder %v217, 16
    %vm1557 = vcmp.lt.s32.totalorder %v218, 16
    %vm1558 = vcmp.lt.s32.totalorder %v219, 16
    %vm1559 = vcmp.lt.s32.totalorder %v220, 16
    %vm1560 = vcmp.lt.s32.totalorder %v221, 16
    %vm1561 = vcmp.lt.s32.totalorder %v222, 16
    %vm1562 = vcmp.lt.s32.totalorder %v223, 16
    %vm1563 = vcmp.lt.s32.totalorder %v224, 16
    %vm1564 = vcmp.lt.s32.totalorder %v225, 16
    %vm1565 = vmand %vm1439, %vm1503
    %vm1566 = vmand %vm1440, %vm1504
    %vm1567 = vmand %vm1441, %vm1505
    %vm1568 = vmand %vm1442, %vm1506
    %vm1569 = vmand %vm1443, %vm1507
    %vm1570 = vmand %vm1444, %vm1508
    %vm1571 = vmand %vm1445, %vm1509
    %vm1572 = vmand %vm1446, %vm1510
    %vm1573 = vmand %vm1447, %vm1511
    %vm1574 = vmand %vm1448, %vm1512
    %vm1575 = vmand %vm1449, %vm1513
    %vm1576 = vmand %vm1450, %vm1514
    %vm1577 = vmand %vm1451, %vm1515
    %vm1578 = vmand %vm1452, %vm1516
    %vm1579 = vmand %vm1453, %vm1517
    %vm1580 = vmand %vm1454, %vm1518
    %vm1581 = vmand %vm1455, %vm1519
    %vm1582 = vmand %vm1456, %vm1520
    %vm1583 = vmand %vm1457, %vm1521
    %vm1584 = vmand %vm1458, %vm1522
    %vm1585 = vmand %vm1459, %vm1523
    %vm1586 = vmand %vm1460, %vm1524
    %vm1587 = vmand %vm1461, %vm1525
    %vm1588 = vmand %vm1462, %vm1526
    %vm1589 = vmand %vm1463, %vm1527
    %vm1590 = vmand %vm1464, %vm1528
    %vm1591 = vmand %vm1465, %vm1529
    %vm1592 = vmand %vm1466, %vm1530
    %vm1593 = vmand %vm1467, %vm1531
    %vm1594 = vmand %vm1468, %vm1532
    %vm1595 = vmand %vm1469, %vm1533
    %vm1596 = vmand %vm1470, %vm1534
    %vm1597 = vmand %vm1471, %vm1535
    %vm1598 = vmand %vm1472, %vm1536
    %vm1599 = vmand %vm1473, %vm1537
    %vm1600 = vmand %vm1474, %vm1538
    %vm1601 = vmand %vm1475, %vm1539
    %vm1602 = vmand %vm1476, %vm1540
    %vm1603 = vmand %vm1477, %vm1541
    %vm1604 = vmand %vm1478, %vm1542
    %vm1605 = vmand %vm1479, %vm1543
    %vm1606 = vmand %vm1480, %vm1544
    %vm1607 = vmand %vm1481, %vm1545
    %vm1608 = vmand %vm1482, %vm1546
    %vm1609 = vmand %vm1483, %vm1547
    %vm1610 = vmand %vm1484, %vm1548
    %vm1611 = vmand %vm1485, %vm1549
    %vm1612 = vmand %vm1486, %vm1550
    %vm1613 = vmand %vm1487, %vm1551
    %vm1614 = vmand %vm1488, %vm1552
    %vm1615 = vmand %vm1489, %vm1553
    %vm1616 = vmand %vm1490, %vm1554
    %vm1617 = vmand %vm1491, %vm1555
    %vm1618 = vmand %vm1492, %vm1556
    %vm1619 = vmand %vm1493, %vm1557
    %vm1620 = vmand %vm1494, %vm1558
    %vm1621 = vmand %vm1495, %vm1559
    %vm1622 = vmand %vm1496, %vm1560
    %vm1623 = vmand %vm1497, %vm1561
    %vm1624 = vmand %vm1498, %vm1562
    %vm1625 = vmand %vm1499, %vm1563
    %vm1626 = vmand %vm1500, %vm1564
    %v1627 = vsel %vm1565, 1, 0
    %v1628 = vsel %vm1566, 1, 0
    %v1629 = vsel %vm1567, 1, 0
    %v1630 = vsel %vm1568, 1, 0
    %v1631 = vsel %vm1569, 1, 0
    %v1632 = vsel %vm1570, 1, 0
    %v1633 = vsel %vm1571, 1, 0
    %v1634 = vsel %vm1572, 1, 0
    %v1635 = vsel %vm1573, 1, 0
    %v1636 = vsel %vm1574, 1, 0
    %v1637 = vsel %vm1575, 1, 0
    %v1638 = vsel %vm1576, 1, 0
    %v1639 = vsel %vm1577, 1, 0
    %v1640 = vsel %vm1578, 1, 0
    %v1641 = vsel %vm1579, 1, 0
    %v1642 = vsel %vm1580, 1, 0
    %v1643 = vsel %vm1581, 1, 0
    %v1644 = vsel %vm1582, 1, 0
    %v1645 = vsel %vm1583, 1, 0
    %v1646 = vsel %vm1584, 1, 0
    %v1647 = vsel %vm1585, 1, 0
    %v1648 = vsel %vm1586, 1, 0
    %v1649 = vsel %vm1587, 1, 0
    %v1650 = vsel %vm1588, 1, 0
    %v1651 = vsel %vm1589, 1, 0
    %v1652 = vsel %vm1590, 1, 0
    %v1653 = vsel %vm1591, 1, 0
    %v1654 = vsel %vm1592, 1, 0
    %v1655 = vsel %vm1593, 1, 0
    %v1656 = vsel %vm1594, 1, 0
    %v1657 = vsel %vm1595, 1, 0
    %v1658 = vsel %vm1596, 1, 0
    %v1659 = vsel %vm1597, 1, 0
    %v1660 = vsel %vm1598, 1, 0
    %v1661 = vsel %vm1599, 1, 0
    %v1662 = vsel %vm1600, 1, 0
    %v1663 = vsel %vm1601, 1, 0
    %v1664 = vsel %vm1602, 1, 0
    %v1665 = vsel %vm1603, 1, 0
    %v1666 = vsel %vm1604, 1, 0
    %v1667 = vsel %vm1605, 1, 0
    %v1668 = vsel %vm1606, 1, 0
    %v1669 = vsel %vm1607, 1, 0
    %v1670 = vsel %vm1608, 1, 0
    %v1671 = vsel %vm1609, 1, 0
    %v1672 = vsel %vm1610, 1, 0
    %v1673 = vsel %vm1611, 1, 0
    %v1674 = vsel %vm1612, 1, 0
    %v1675 = vsel %vm1613, 1, 0
    %v1676 = vsel %vm1614, 1, 0
    %v1677 = vsel %vm1615, 1, 0
    %v1678 = vsel %vm1616, 1, 0
    %v1679 = vsel %vm1617, 1, 0
    %v1680 = vsel %vm1618, 1, 0
    %v1681 = vsel %vm1619, 1, 0
    %v1682 = vsel %vm1620, 1, 0
    %v1683 = vsel %vm1621, 1, 0
    %v1684 = vsel %vm1622, 1, 0
    %v1685 = vsel %vm1623, 1, 0
    %v1686 = vsel %vm1624, 1, 0
    %v1687 = vsel %vm1625, 1, 0
    %v1688 = vsel %vm1626, 1, 0
    %vm1689 = vcmp.eq.s32.totalorder %v1627, 1
    %vm1690 = vcmp.eq.s32.totalorder %v1628, 1
    %vm1691 = vcmp.eq.s32.totalorder %v1629, 1
    %vm1692 = vcmp.eq.s32.totalorder %v1630, 1
    %vm1693 = vcmp.eq.s32.totalorder %v1631, 1
    %vm1694 = vcmp.eq.s32.totalorder %v1632, 1
    %vm1695 = vcmp.eq.s32.totalorder %v1633, 1
    %vm1696 = vcmp.eq.s32.totalorder %v1634, 1
    %vm1697 = vcmp.eq.s32.totalorder %v1635, 1
    %vm1698 = vcmp.eq.s32.totalorder %v1636, 1
    %vm1699 = vcmp.eq.s32.totalorder %v1637, 1
    %vm1700 = vcmp.eq.s32.totalorder %v1638, 1
    %vm1701 = vcmp.eq.s32.totalorder %v1639, 1
    %vm1702 = vcmp.eq.s32.totalorder %v1640, 1
    %vm1703 = vcmp.eq.s32.totalorder %v1641, 1
    %vm1704 = vcmp.eq.s32.totalorder %v1642, 1
    %vm1705 = vcmp.eq.s32.totalorder %v1643, 1
    %vm1706 = vcmp.eq.s32.totalorder %v1644, 1
    %vm1707 = vcmp.eq.s32.totalorder %v1645, 1
    %vm1708 = vcmp.eq.s32.totalorder %v1646, 1
    %vm1709 = vcmp.eq.s32.totalorder %v1647, 1
    %vm1710 = vcmp.eq.s32.totalorder %v1648, 1
    %vm1711 = vcmp.eq.s32.totalorder %v1649, 1
    %vm1712 = vcmp.eq.s32.totalorder %v1650, 1
    %vm1713 = vcmp.eq.s32.totalorder %v1651, 1
    %vm1714 = vcmp.eq.s32.totalorder %v1652, 1
    %vm1715 = vcmp.eq.s32.totalorder %v1653, 1
    %vm1716 = vcmp.eq.s32.totalorder %v1654, 1
    %vm1717 = vcmp.eq.s32.totalorder %v1655, 1
    %vm1718 = vcmp.eq.s32.totalorder %v1656, 1
    %vm1719 = vcmp.eq.s32.totalorder %v1657, 1
    %vm1720 = vcmp.eq.s32.totalorder %v1658, 1
    %vm1721 = vcmp.eq.s32.totalorder %v1659, 1
    %vm1722 = vcmp.eq.s32.totalorder %v1660, 1
    %vm1723 = vcmp.eq.s32.totalorder %v1661, 1
    %vm1724 = vcmp.eq.s32.totalorder %v1662, 1
    %vm1725 = vcmp.eq.s32.totalorder %v1663, 1
    %vm1726 = vcmp.eq.s32.totalorder %v1664, 1
    %vm1727 = vcmp.eq.s32.totalorder %v1665, 1
    %vm1728 = vcmp.eq.s32.totalorder %v1666, 1
    %vm1729 = vcmp.eq.s32.totalorder %v1667, 1
    %vm1730 = vcmp.eq.s32.totalorder %v1668, 1
    %vm1731 = vcmp.eq.s32.totalorder %v1669, 1
    %vm1732 = vcmp.eq.s32.totalorder %v1670, 1
    %vm1733 = vcmp.eq.s32.totalorder %v1671, 1
    %vm1734 = vcmp.eq.s32.totalorder %v1672, 1
    %vm1735 = vcmp.eq.s32.totalorder %v1673, 1
    %vm1736 = vcmp.eq.s32.totalorder %v1674, 1
    %vm1737 = vcmp.eq.s32.totalorder %v1675, 1
    %vm1738 = vcmp.eq.s32.totalorder %v1676, 1
    %vm1739 = vcmp.eq.s32.totalorder %v1677, 1
    %vm1740 = vcmp.eq.s32.totalorder %v1678, 1
    %vm1741 = vcmp.eq.s32.totalorder %v1679, 1
    %vm1742 = vcmp.eq.s32.totalorder %v1680, 1
    %vm1743 = vcmp.eq.s32.totalorder %v1681, 1
    %vm1744 = vcmp.eq.s32.totalorder %v1682, 1
    %vm1745 = vcmp.eq.s32.totalorder %v1683, 1
    %vm1746 = vcmp.eq.s32.totalorder %v1684, 1
    %vm1747 = vcmp.eq.s32.totalorder %v1685, 1
    %vm1748 = vcmp.eq.s32.totalorder %v1686, 1
    %vm1749 = vcmp.eq.s32.totalorder %v1687, 1
    %vm1750 = vcmp.eq.s32.totalorder %v1688, 1
    %v1751 = vsel %vm1689, %v33, 0.0
    %v1752 = vsel %vm1690, %v34, 0.0
    %v1753 = vsel %vm1691, %v35, 0.0
    %v1754 = vsel %vm1692, %v36, 0.0
    %v1755 = vsel %vm1693, %v37, 0.0
    %v1756 = vsel %vm1694, %v38, 0.0
    %v1757 = vsel %vm1695, %v39, 0.0
    %v1758 = vsel %vm1696, %v40, 0.0
    %v1759 = vsel %vm1697, %v41, 0.0
    %v1760 = vsel %vm1698, %v42, 0.0
    %v1761 = vsel %vm1699, %v43, 0.0
    %v1762 = vsel %vm1700, %v44, 0.0
    %v1763 = vsel %vm1701, %v45, 0.0
    %v1764 = vsel %vm1702, %v46, 0.0
    %v1765 = vsel %vm1703, %v47, 0.0
    %v1766 = vsel %vm1704, %v48, 0.0
    %v1767 = vsel %vm1705, %v49, 0.0
    %v1768 = vsel %vm1706, %v50, 0.0
    %v1769 = vsel %vm1707, %v51, 0.0
    %v1770 = vsel %vm1708, %v52, 0.0
    %v1771 = vsel %vm1709, %v53, 0.0
    %v1772 = vsel %vm1710, %v54, 0.0
    %v1773 = vsel %vm1711, %v55, 0.0
    %v1774 = vsel %vm1712, %v56, 0.0
    %v1775 = vsel %vm1713, %v57, 0.0
    %v1776 = vsel %vm1714, %v58, 0.0
    %v1777 = vsel %vm1715, %v59, 0.0
    %v1778 = vsel %vm1716, %v60, 0.0
    %v1779 = vsel %vm1717, %v61, 0.0
    %v1780 = vsel %vm1718, %v62, 0.0
    %v1781 = vsel %vm1719, %v63, 0.0
    %v1782 = vsel %vm1720, %v64, 0.0
    %v1783 = vsel %vm1721, %v65, 0.0
    %v1784 = vsel %vm1722, %v66, 0.0
    %v1785 = vsel %vm1723, %v67, 0.0
    %v1786 = vsel %vm1724, %v68, 0.0
    %v1787 = vsel %vm1725, %v69, 0.0
    %v1788 = vsel %vm1726, %v70, 0.0
    %v1789 = vsel %vm1727, %v71, 0.0
    %v1790 = vsel %vm1728, %v72, 0.0
    %v1791 = vsel %vm1729, %v73, 0.0
    %v1792 = vsel %vm1730, %v74, 0.0
    %v1793 = vsel %vm1731, %v75, 0.0
    %v1794 = vsel %vm1732, %v76, 0.0
    %v1795 = vsel %vm1733, %v77, 0.0
    %v1796 = vsel %vm1734, %v78, 0.0
    %v1797 = vsel %vm1735, %v79, 0.0
    %v1798 = vsel %vm1736, %v80, 0.0
    %v1799 = vsel %vm1737, %v81, 0.0
    %v1800 = vsel %vm1738, %v82, 0.0
    %v1801 = vsel %vm1739, %v83, 0.0
    %v1802 = vsel %vm1740, %v84, 0.0
    %v1803 = vsel %vm1741, %v85, 0.0
    %v1804 = vsel %vm1742, %v86, 0.0
    %v1805 = vsel %vm1743, %v87, 0.0
    %v1806 = vsel %vm1744, %v88, 0.0
    %v1807 = vsel %vm1745, %v89, 0.0
    %v1808 = vsel %vm1746, %v90, 0.0
    %v1809 = vsel %vm1747, %v91, 0.0
    %v1810 = vsel %vm1748, %v92, 0.0
    %v1811 = vsel %vm1749, %v93, 0.0
    %v1812 = vsel %vm1750, %v94, 0.0
    %v1813 = vadd.s32 %v162, 1
    %v1814 = vadd.s32 %v163, 1
    %v1815 = vadd.s32 %v164, 1
    %v1816 = vadd.s32 %v165, 1
    %v1817 = vadd.s32 %v166, 1
    %v1818 = vadd.s32 %v167, 1
    %v1819 = vadd.s32 %v168, 1
    %v1820 = vadd.s32 %v169, 1
    %v1821 = vadd.s32 %v170, 1
    %v1822 = vadd.s32 %v171, 1
    %v1823 = vadd.s32 %v172, 1
    %v1824 = vadd.s32 %v173, 1
    %v1825 = vadd.s32 %v174, 1
    %v1826 = vadd.s32 %v175, 1
    %v1827 = vadd.s32 %v176, 1
    %v1828 = vadd.s32 %v177, 1
    %v1829 = vadd.s32 %v178, 1
    %v1830 = vadd.s32 %v179, 1
    %v1831 = vadd.s32 %v180, 1
    %v1832 = vadd.s32 %v181, 1
    %v1833 = vadd.s32 %v182, 1
    %v1834 = vadd.s32 %v183, 1
    %v1835 = vadd.s32 %v184, 1
    %v1836 = vadd.s32 %v185, 1
    %v1837 = vadd.s32 %v186, 1
    %v1838 = vadd.s32 %v187, 1
    %v1839 = vadd.s32 %v188, 1
    %v1840 = vadd.s32 %v189, 1
    %v1841 = vadd.s32 %v190, 1
    %v1842 = vadd.s32 %v191, 1
    %v1843 = vadd.s32 %v192, 1
    %v1844 = vadd.s32 %v193, 1
    %v1845 = vadd.s32 %v194, 1
    %v1846 = vadd.s32 %v195, 1
    %v1847 = vadd.s32 %v196, 1
    %v1848 = vadd.s32 %v197, 1
    %v1849 = vadd.s32 %v198, 1
    %v1850 = vadd.s32 %v199, 1
    %v1851 = vadd.s32 %v200, 1
    %v1852 = vadd.s32 %v201, 1
    %v1853 = vadd.s32 %v202, 1
    %v1854 = vadd.s32 %v203, 1
    %v1855 = vadd.s32 %v204, 1
    %v1856 = vadd.s32 %v205, 1
    %v1857 = vadd.s32 %v206, 1
    %v1858 = vadd.s32 %v207, 1
    %v1859 = vadd.s32 %v208, 1
    %v1860 = vadd.s32 %v209, 1
    %v1861 = vadd.s32 %v210, 1
    %v1862 = vadd.s32 %v211, 1
    %v1863 = vadd.s32 %v212, 1
    %v1864 = vadd.s32 %v213, 1
    %v1865 = vadd.s32 %v214, 1
    %v1866 = vadd.s32 %v215, 1
    %v1867 = vadd.s32 %v216, 1
    %v1868 = vadd.s32 %v217, 1
    %v1869 = vadd.s32 %v218, 1
    %v1870 = vadd.s32 %v219, 1
    %v1871 = vadd.s32 %v220, 1
    %v1872 = vadd.s32 %v221, 1
    %v1873 = vadd.s32 %v222, 1
    %v1874 = vadd.s32 %v223, 1
    %v1875 = vadd.s32 %v224, 1
    %v1876 = vadd.s32 %v225, 1
    %vm1877 = vcmp.ge.s32.totalorder %v1813, 0
    %vm1878 = vcmp.ge.s32.totalorder %v1814, 0
    %vm1879 = vcmp.ge.s32.totalorder %v1815, 0
    %vm1880 = vcmp.ge.s32.totalorder %v1816, 0
    %vm1881 = vcmp.ge.s32.totalorder %v1817, 0
    %vm1882 = vcmp.ge.s32.totalorder %v1818, 0
    %vm1883 = vcmp.ge.s32.totalorder %v1819, 0
    %vm1884 = vcmp.ge.s32.totalorder %v1820, 0
    %vm1885 = vcmp.ge.s32.totalorder %v1821, 0
    %vm1886 = vcmp.ge.s32.totalorder %v1822, 0
    %vm1887 = vcmp.ge.s32.totalorder %v1823, 0
    %vm1888 = vcmp.ge.s32.totalorder %v1824, 0
    %vm1889 = vcmp.ge.s32.totalorder %v1825, 0
    %vm1890 = vcmp.ge.s32.totalorder %v1826, 0
    %vm1891 = vcmp.ge.s32.totalorder %v1827, 0
    %vm1892 = vcmp.ge.s32.totalorder %v1828, 0
    %vm1893 = vcmp.ge.s32.totalorder %v1829, 0
    %vm1894 = vcmp.ge.s32.totalorder %v1830, 0
    %vm1895 = vcmp.ge.s32.totalorder %v1831, 0
    %vm1896 = vcmp.ge.s32.totalorder %v1832, 0
    %vm1897 = vcmp.ge.s32.totalorder %v1833, 0
    %vm1898 = vcmp.ge.s32.totalorder %v1834, 0
    %vm1899 = vcmp.ge.s32.totalorder %v1835, 0
    %vm1900 = vcmp.ge.s32.totalorder %v1836, 0
    %vm1901 = vcmp.ge.s32.totalorder %v1837, 0
    %vm1902 = vcmp.ge.s32.totalorder %v1838, 0
    %vm1903 = vcmp.ge.s32.totalorder %v1839, 0
    %vm1904 = vcmp.ge.s32.totalorder %v1840, 0
    %vm1905 = vcmp.ge.s32.totalorder %v1841, 0
    %vm1906 = vcmp.ge.s32.totalorder %v1842, 0
    %vm1907 = vcmp.ge.s32.totalorder %v1843, 0
    %vm1908 = vcmp.ge.s32.totalorder %v1844, 0
    %vm1909 = vcmp.ge.s32.totalorder %v1845, 0
    %vm1910 = vcmp.ge.s32.totalorder %v1846, 0
    %vm1911 = vcmp.ge.s32.totalorder %v1847, 0
    %vm1912 = vcmp.ge.s32.totalorder %v1848, 0
    %vm1913 = vcmp.ge.s32.totalorder %v1849, 0
    %vm1914 = vcmp.ge.s32.totalorder %v1850, 0
    %vm1915 = vcmp.ge.s32.totalorder %v1851, 0
    %vm1916 = vcmp.ge.s32.totalorder %v1852, 0
    %vm1917 = vcmp.ge.s32.totalorder %v1853, 0
    %vm1918 = vcmp.ge.s32.totalorder %v1854, 0
    %vm1919 = vcmp.ge.s32.totalorder %v1855, 0
    %vm1920 = vcmp.ge.s32.totalorder %v1856, 0
    %vm1921 = vcmp.ge.s32.totalorder %v1857, 0
    %vm1922 = vcmp.ge.s32.totalorder %v1858, 0
    %vm1923 = vcmp.ge.s32.totalorder %v1859, 0
    %vm1924 = vcmp.ge.s32.totalorder %v1860, 0
    %vm1925 = vcmp.ge.s32.totalorder %v1861, 0
    %vm1926 = vcmp.ge.s32.totalorder %v1862, 0
    %vm1927 = vcmp.ge.s32.totalorder %v1863, 0
    %vm1928 = vcmp.ge.s32.totalorder %v1864, 0
    %vm1929 = vcmp.ge.s32.totalorder %v1865, 0
    %vm1930 = vcmp.ge.s32.totalorder %v1866, 0
    %vm1931 = vcmp.ge.s32.totalorder %v1867, 0
    %vm1932 = vcmp.ge.s32.totalorder %v1868, 0
    %vm1933 = vcmp.ge.s32.totalorder %v1869, 0
    %vm1934 = vcmp.ge.s32.totalorder %v1870, 0
    %vm1935 = vcmp.ge.s32.totalorder %v1871, 0
    %vm1936 = vcmp.ge.s32.totalorder %v1872, 0
    %vm1937 = vcmp.ge.s32.totalorder %v1873, 0
    %vm1938 = vcmp.ge.s32.totalorder %v1874, 0
    %vm1939 = vcmp.ge.s32.totalorder %v1875, 0
    %vm1940 = vcmp.ge.s32.totalorder %v1876, 0
    %vm1941 = vmand %vm546, %vm1877
    %vm1942 = vmand %vm547, %vm1878
    %vm1943 = vmand %vm548, %vm1879
    %vm1944 = vmand %vm549, %vm1880
    %vm1945 = vmand %vm550, %vm1881
    %vm1946 = vmand %vm551, %vm1882
    %vm1947 = vmand %vm552, %vm1883
    %vm1948 = vmand %vm553, %vm1884
    %vm1949 = vmand %vm554, %vm1885
    %vm1950 = vmand %vm555, %vm1886
    %vm1951 = vmand %vm556, %vm1887
    %vm1952 = vmand %vm557, %vm1888
    %vm1953 = vmand %vm558, %vm1889
    %vm1954 = vmand %vm559, %vm1890
    %vm1955 = vmand %vm560, %vm1891
    %vm1956 = vmand %vm561, %vm1892
    %vm1957 = vmand %vm562, %vm1893
    %vm1958 = vmand %vm563, %vm1894
    %vm1959 = vmand %vm564, %vm1895
    %vm1960 = vmand %vm565, %vm1896
    %vm1961 = vmand %vm566, %vm1897
    %vm1962 = vmand %vm567, %vm1898
    %vm1963 = vmand %vm568, %vm1899
    %vm1964 = vmand %vm569, %vm1900
    %vm1965 = vmand %vm570, %vm1901
    %vm1966 = vmand %vm571, %vm1902
    %vm1967 = vmand %vm572, %vm1903
    %vm1968 = vmand %vm573, %vm1904
    %vm1969 = vmand %vm574, %vm1905
    %vm1970 = vmand %vm575, %vm1906
    %vm1971 = vmand %vm576, %vm1907
    %vm1972 = vmand %vm577, %vm1908
    %vm1973 = vmand %vm578, %vm1909
    %vm1974 = vmand %vm579, %vm1910
    %vm1975 = vmand %vm580, %vm1911
    %vm1976 = vmand %vm581, %vm1912
    %vm1977 = vmand %vm582, %vm1913
    %vm1978 = vmand %vm583, %vm1914
    %vm1979 = vmand %vm584, %vm1915
    %vm1980 = vmand %vm585, %vm1916
    %vm1981 = vmand %vm586, %vm1917
    %vm1982 = vmand %vm587, %vm1918
    %vm1983 = vmand %vm588, %vm1919
    %vm1984 = vmand %vm589, %vm1920
    %vm1985 = vmand %vm590, %vm1921
    %vm1986 = vmand %vm591, %vm1922
    %vm1987 = vmand %vm592, %vm1923
    %vm1988 = vmand %vm593, %vm1924
    %vm1989 = vmand %vm594, %vm1925
    %vm1990 = vmand %vm595, %vm1926
    %vm1991 = vmand %vm596, %vm1927
    %vm1992 = vmand %vm597, %vm1928
    %vm1993 = vmand %vm598, %vm1929
    %vm1994 = vmand %vm599, %vm1930
    %vm1995 = vmand %vm600, %vm1931
    %vm1996 = vmand %vm601, %vm1932
    %vm1997 = vmand %vm602, %vm1933
    %vm1998 = vmand %vm603, %vm1934
    %vm1999 = vmand %vm604, %vm1935
    %vm2000 = vmand %vm605, %vm1936
    %vm2001 = vmand %vm606, %vm1937
    %vm2002 = vmand %vm607, %vm1938
    %vm2003 = vmand %vm608, %vm1939
    %vm2004 = vmand %vm609, %vm1940
    %vm2005 = vcmp.lt.s32.totalorder %v1813, 16
    %vm2006 = vcmp.lt.s32.totalorder %v1814, 16
    %vm2007 = vcmp.lt.s32.totalorder %v1815, 16
    %vm2008 = vcmp.lt.s32.totalorder %v1816, 16
    %vm2009 = vcmp.lt.s32.totalorder %v1817, 16
    %vm2010 = vcmp.lt.s32.totalorder %v1818, 16
    %vm2011 = vcmp.lt.s32.totalorder %v1819, 16
    %vm2012 = vcmp.lt.s32.totalorder %v1820, 16
    %vm2013 = vcmp.lt.s32.totalorder %v1821, 16
    %vm2014 = vcmp.lt.s32.totalorder %v1822, 16
    %vm2015 = vcmp.lt.s32.totalorder %v1823, 16
    %vm2016 = vcmp.lt.s32.totalorder %v1824, 16
    %vm2017 = vcmp.lt.s32.totalorder %v1825, 16
    %vm2018 = vcmp.lt.s32.totalorder %v1826, 16
    %vm2019 = vcmp.lt.s32.totalorder %v1827, 16
    %vm2020 = vcmp.lt.s32.totalorder %v1828, 16
    %vm2021 = vcmp.lt.s32.totalorder %v1829, 16
    %vm2022 = vcmp.lt.s32.totalorder %v1830, 16
    %vm2023 = vcmp.lt.s32.totalorder %v1831, 16
    %vm2024 = vcmp.lt.s32.totalorder %v1832, 16
    %vm2025 = vcmp.lt.s32.totalorder %v1833, 16
    %vm2026 = vcmp.lt.s32.totalorder %v1834, 16
    %vm2027 = vcmp.lt.s32.totalorder %v1835, 16
    %vm2028 = vcmp.lt.s32.totalorder %v1836, 16
    %vm2029 = vcmp.lt.s32.totalorder %v1837, 16
    %vm2030 = vcmp.lt.s32.totalorder %v1838, 16
    %vm2031 = vcmp.lt.s32.totalorder %v1839, 16
    %vm2032 = vcmp.lt.s32.totalorder %v1840, 16
    %vm2033 = vcmp.lt.s32.totalorder %v1841, 16
    %vm2034 = vcmp.lt.s32.totalorder %v1842, 16
    %vm2035 = vcmp.lt.s32.totalorder %v1843, 16
    %vm2036 = vcmp.lt.s32.totalorder %v1844, 16
    %vm2037 = vcmp.lt.s32.totalorder %v1845, 16
    %vm2038 = vcmp.lt.s32.totalorder %v1846, 16
    %vm2039 = vcmp.lt.s32.totalorder %v1847, 16
    %vm2040 = vcmp.lt.s32.totalorder %v1848, 16
    %vm2041 = vcmp.lt.s32.totalorder %v1849, 16
    %vm2042 = vcmp.lt.s32.totalorder %v1850, 16
    %vm2043 = vcmp.lt.s32.totalorder %v1851, 16
    %vm2044 = vcmp.lt.s32.totalorder %v1852, 16
    %vm2045 = vcmp.lt.s32.totalorder %v1853, 16
    %vm2046 = vcmp.lt.s32.totalorder %v1854, 16
    %vm2047 = vcmp.lt.s32.totalorder %v1855, 16
    %vm2048 = vcmp.lt.s32.totalorder %v1856, 16
    %vm2049 = vcmp.lt.s32.totalorder %v1857, 16
    %vm2050 = vcmp.lt.s32.totalorder %v1858, 16
    %vm2051 = vcmp.lt.s32.totalorder %v1859, 16
    %vm2052 = vcmp.lt.s32.totalorder %v1860, 16
    %vm2053 = vcmp.lt.s32.totalorder %v1861, 16
    %vm2054 = vcmp.lt.s32.totalorder %v1862, 16
    %vm2055 = vcmp.lt.s32.totalorder %v1863, 16
    %vm2056 = vcmp.lt.s32.totalorder %v1864, 16
    %vm2057 = vcmp.lt.s32.totalorder %v1865, 16
    %vm2058 = vcmp.lt.s32.totalorder %v1866, 16
    %vm2059 = vcmp.lt.s32.totalorder %v1867, 16
    %vm2060 = vcmp.lt.s32.totalorder %v1868, 16
    %vm2061 = vcmp.lt.s32.totalorder %v1869, 16
    %vm2062 = vcmp.lt.s32.totalorder %v1870, 16
    %vm2063 = vcmp.lt.s32.totalorder %v1871, 16
    %vm2064 = vcmp.lt.s32.totalorder %v1872, 16
    %vm2065 = vcmp.lt.s32.totalorder %v1873, 16
    %vm2066 = vcmp.lt.s32.totalorder %v1874, 16
    %vm2067 = vcmp.lt.s32.totalorder %v1875, 16
    %vm2068 = vcmp.lt.s32.totalorder %v1876, 16
    %vm2069 = vmand %vm1941, %vm2005
    %vm2070 = vmand %vm1942, %vm2006
    %vm2071 = vmand %vm1943, %vm2007
    %vm2072 = vmand %vm1944, %vm2008
    %vm2073 = vmand %vm1945, %vm2009
    %vm2074 = vmand %vm1946, %vm2010
    %vm2075 = vmand %vm1947, %vm2011
    %vm2076 = vmand %vm1948, %vm2012
    %vm2077 = vmand %vm1949, %vm2013
    %vm2078 = vmand %vm1950, %vm2014
    %vm2079 = vmand %vm1951, %vm2015
    %vm2080 = vmand %vm1952, %vm2016
    %vm2081 = vmand %vm1953, %vm2017
    %vm2082 = vmand %vm1954, %vm2018
    %vm2083 = vmand %vm1955, %vm2019
    %vm2084 = vmand %vm1956, %vm2020
    %vm2085 = vmand %vm1957, %vm2021
    %vm2086 = vmand %vm1958, %vm2022
    %vm2087 = vmand %vm1959, %vm2023
    %vm2088 = vmand %vm1960, %vm2024
    %vm2089 = vmand %vm1961, %vm2025
    %vm2090 = vmand %vm1962, %vm2026
    %vm2091 = vmand %vm1963, %vm2027
    %vm2092 = vmand %vm1964, %vm2028
    %vm2093 = vmand %vm1965, %vm2029
    %vm2094 = vmand %vm1966, %vm2030
    %vm2095 = vmand %vm1967, %vm2031
    %vm2096 = vmand %vm1968, %vm2032
    %vm2097 = vmand %vm1969, %vm2033
    %vm2098 = vmand %vm1970, %vm2034
    %vm2099 = vmand %vm1971, %vm2035
    %vm2100 = vmand %vm1972, %vm2036
    %vm2101 = vmand %vm1973, %vm2037
    %vm2102 = vmand %vm1974, %vm2038
    %vm2103 = vmand %vm1975, %vm2039
    %vm2104 = vmand %vm1976, %vm2040
    %vm2105 = vmand %vm1977, %vm2041
    %vm2106 = vmand %vm1978, %vm2042
    %vm2107 = vmand %vm1979, %vm2043
    %vm2108 = vmand %vm1980, %vm2044
    %vm2109 = vmand %vm1981, %vm2045
    %vm2110 = vmand %vm1982, %vm2046
    %vm2111 = vmand %vm1983, %vm2047
    %vm2112 = vmand %vm1984, %vm2048
    %vm2113 = vmand %vm1985, %vm2049
    %vm2114 = vmand %vm1986, %vm2050
    %vm2115 = vmand %vm1987, %vm2051
    %vm2116 = vmand %vm1988, %vm2052
    %vm2117 = vmand %vm1989, %vm2053
    %vm2118 = vmand %vm1990, %vm2054
    %vm2119 = vmand %vm1991, %vm2055
    %vm2120 = vmand %vm1992, %vm2056
    %vm2121 = vmand %vm1993, %vm2057
    %vm2122 = vmand %vm1994, %vm2058
    %vm2123 = vmand %vm1995, %vm2059
    %vm2124 = vmand %vm1996, %vm2060
    %vm2125 = vmand %vm1997, %vm2061
    %vm2126 = vmand %vm1998, %vm2062
    %vm2127 = vmand %vm1999, %vm2063
    %vm2128 = vmand %vm2000, %vm2064
    %vm2129 = vmand %vm2001, %vm2065
    %vm2130 = vmand %vm2002, %vm2066
    %vm2131 = vmand %vm2003, %vm2067
    %vm2132 = vmand %vm2004, %vm2068
    %v2133 = vsel %vm2069, 1, 0
    %v2134 = vsel %vm2070, 1, 0
    %v2135 = vsel %vm2071, 1, 0
    %v2136 = vsel %vm2072, 1, 0
    %v2137 = vsel %vm2073, 1, 0
    %v2138 = vsel %vm2074, 1, 0
    %v2139 = vsel %vm2075, 1, 0
    %v2140 = vsel %vm2076, 1, 0
    %v2141 = vsel %vm2077, 1, 0
    %v2142 = vsel %vm2078, 1, 0
    %v2143 = vsel %vm2079, 1, 0
    %v2144 = vsel %vm2080, 1, 0
    %v2145 = vsel %vm2081, 1, 0
    %v2146 = vsel %vm2082, 1, 0
    %v2147 = vsel %vm2083, 1, 0
    %v2148 = vsel %vm2084, 1, 0
    %v2149 = vsel %vm2085, 1, 0
    %v2150 = vsel %vm2086, 1, 0
    %v2151 = vsel %vm2087, 1, 0
    %v2152 = vsel %vm2088, 1, 0
    %v2153 = vsel %vm2089, 1, 0
    %v2154 = vsel %vm2090, 1, 0
    %v2155 = vsel %vm2091, 1, 0
    %v2156 = vsel %vm2092, 1, 0
    %v2157 = vsel %vm2093, 1, 0
    %v2158 = vsel %vm2094, 1, 0
    %v2159 = vsel %vm2095, 1, 0
    %v2160 = vsel %vm2096, 1, 0
    %v2161 = vsel %vm2097, 1, 0
    %v2162 = vsel %vm2098, 1, 0
    %v2163 = vsel %vm2099, 1, 0
    %v2164 = vsel %vm2100, 1, 0
    %v2165 = vsel %vm2101, 1, 0
    %v2166 = vsel %vm2102, 1, 0
    %v2167 = vsel %vm2103, 1, 0
    %v2168 = vsel %vm2104, 1, 0
    %v2169 = vsel %vm2105, 1, 0
    %v2170 = vsel %vm2106, 1, 0
    %v2171 = vsel %vm2107, 1, 0
    %v2172 = vsel %vm2108, 1, 0
    %v2173 = vsel %vm2109, 1, 0
    %v2174 = vsel %vm2110, 1, 0
    %v2175 = vsel %vm2111, 1, 0
    %v2176 = vsel %vm2112, 1, 0
    %v2177 = vsel %vm2113, 1, 0
    %v2178 = vsel %vm2114, 1, 0
    %v2179 = vsel %vm2115, 1, 0
    %v2180 = vsel %vm2116, 1, 0
    %v2181 = vsel %vm2117, 1, 0
    %v2182 = vsel %vm2118, 1, 0
    %v2183 = vsel %vm2119, 1, 0
    %v2184 = vsel %vm2120, 1, 0
    %v2185 = vsel %vm2121, 1, 0
    %v2186 = vsel %vm2122, 1, 0
    %v2187 = vsel %vm2123, 1, 0
    %v2188 = vsel %vm2124, 1, 0
    %v2189 = vsel %vm2125, 1, 0
    %v2190 = vsel %vm2126, 1, 0
    %v2191 = vsel %vm2127, 1, 0
    %v2192 = vsel %vm2128, 1, 0
    %v2193 = vsel %vm2129, 1, 0
    %v2194 = vsel %vm2130, 1, 0
    %v2195 = vsel %vm2131, 1, 0
    %v2196 = vsel %vm2132, 1, 0
    %vm2197 = vcmp.eq.s32.totalorder %v2133, 1
    %vm2198 = vcmp.eq.s32.totalorder %v2134, 1
    %vm2199 = vcmp.eq.s32.totalorder %v2135, 1
    %vm2200 = vcmp.eq.s32.totalorder %v2136, 1
    %vm2201 = vcmp.eq.s32.totalorder %v2137, 1
    %vm2202 = vcmp.eq.s32.totalorder %v2138, 1
    %vm2203 = vcmp.eq.s32.totalorder %v2139, 1
    %vm2204 = vcmp.eq.s32.totalorder %v2140, 1
    %vm2205 = vcmp.eq.s32.totalorder %v2141, 1
    %vm2206 = vcmp.eq.s32.totalorder %v2142, 1
    %vm2207 = vcmp.eq.s32.totalorder %v2143, 1
    %vm2208 = vcmp.eq.s32.totalorder %v2144, 1
    %vm2209 = vcmp.eq.s32.totalorder %v2145, 1
    %vm2210 = vcmp.eq.s32.totalorder %v2146, 1
    %vm2211 = vcmp.eq.s32.totalorder %v2147, 1
    %vm2212 = vcmp.eq.s32.totalorder %v2148, 1
    %vm2213 = vcmp.eq.s32.totalorder %v2149, 1
    %vm2214 = vcmp.eq.s32.totalorder %v2150, 1
    %vm2215 = vcmp.eq.s32.totalorder %v2151, 1
    %vm2216 = vcmp.eq.s32.totalorder %v2152, 1
    %vm2217 = vcmp.eq.s32.totalorder %v2153, 1
    %vm2218 = vcmp.eq.s32.totalorder %v2154, 1
    %vm2219 = vcmp.eq.s32.totalorder %v2155, 1
    %vm2220 = vcmp.eq.s32.totalorder %v2156, 1
    %vm2221 = vcmp.eq.s32.totalorder %v2157, 1
    %vm2222 = vcmp.eq.s32.totalorder %v2158, 1
    %vm2223 = vcmp.eq.s32.totalorder %v2159, 1
    %vm2224 = vcmp.eq.s32.totalorder %v2160, 1
    %vm2225 = vcmp.eq.s32.totalorder %v2161, 1
    %vm2226 = vcmp.eq.s32.totalorder %v2162, 1
    %vm2227 = vcmp.eq.s32.totalorder %v2163, 1
    %vm2228 = vcmp.eq.s32.totalorder %v2164, 1
    %vm2229 = vcmp.eq.s32.totalorder %v2165, 1
    %vm2230 = vcmp.eq.s32.totalorder %v2166, 1
    %vm2231 = vcmp.eq.s32.totalorder %v2167, 1
    %vm2232 = vcmp.eq.s32.totalorder %v2168, 1
    %vm2233 = vcmp.eq.s32.totalorder %v2169, 1
    %vm2234 = vcmp.eq.s32.totalorder %v2170, 1
    %vm2235 = vcmp.eq.s32.totalorder %v2171, 1
    %vm2236 = vcmp.eq.s32.totalorder %v2172, 1
    %vm2237 = vcmp.eq.s32.totalorder %v2173, 1
    %vm2238 = vcmp.eq.s32.totalorder %v2174, 1
    %vm2239 = vcmp.eq.s32.totalorder %v2175, 1
    %vm2240 = vcmp.eq.s32.totalorder %v2176, 1
    %vm2241 = vcmp.eq.s32.totalorder %v2177, 1
    %vm2242 = vcmp.eq.s32.totalorder %v2178, 1
    %vm2243 = vcmp.eq.s32.totalorder %v2179, 1
    %vm2244 = vcmp.eq.s32.totalorder %v2180, 1
    %vm2245 = vcmp.eq.s32.totalorder %v2181, 1
    %vm2246 = vcmp.eq.s32.totalorder %v2182, 1
    %vm2247 = vcmp.eq.s32.totalorder %v2183, 1
    %vm2248 = vcmp.eq.s32.totalorder %v2184, 1
    %vm2249 = vcmp.eq.s32.totalorder %v2185, 1
    %vm2250 = vcmp.eq.s32.totalorder %v2186, 1
    %vm2251 = vcmp.eq.s32.totalorder %v2187, 1
    %vm2252 = vcmp.eq.s32.totalorder %v2188, 1
    %vm2253 = vcmp.eq.s32.totalorder %v2189, 1
    %vm2254 = vcmp.eq.s32.totalorder %v2190, 1
    %vm2255 = vcmp.eq.s32.totalorder %v2191, 1
    %vm2256 = vcmp.eq.s32.totalorder %v2192, 1
    %vm2257 = vcmp.eq.s32.totalorder %v2193, 1
    %vm2258 = vcmp.eq.s32.totalorder %v2194, 1
    %vm2259 = vcmp.eq.s32.totalorder %v2195, 1
    %vm2260 = vcmp.eq.s32.totalorder %v2196, 1
    %vm2262 = vcmask 1046528
    %v2263 = vrot.slane 0.0, 1
    %v2264 = vsel %vm2262, %v2263, %v2263
    %v2265 = vrot.slane %v33, 1
    %v2266 = vsel %vm2262, %v2263, %v2265
    %v2267 = vrot.slane %v34, 1
    %v2268 = vsel %vm2262, %v2265, %v2267
    %v2269 = vrot.slane %v35, 1
    %v2270 = vsel %vm2262, %v2267, %v2269
    %v2271 = vrot.slane %v36, 1
    %v2272 = vsel %vm2262, %v2269, %v2271
    %v2273 = vrot.slane %v37, 1
    %v2274 = vsel %vm2262, %v2271, %v2273
    %v2275 = vrot.slane %v38, 1
    %v2276 = vsel %vm2262, %v2273, %v2275
    %v2277 = vrot.slane %v39, 1
    %v2278 = vsel %vm2262, %v2275, %v2277
    %v2279 = vrot.slane %v40, 1
    %v2280 = vsel %vm2262, %v2277, %v2279
    %v2281 = vrot.slane %v41, 1
    %v2282 = vsel %vm2262, %v2279, %v2281
    %v2283 = vrot.slane %v42, 1
    %v2284 = vsel %vm2262, %v2281, %v2283
    %v2285 = vrot.slane %v43, 1
    %v2286 = vsel %vm2262, %v2283, %v2285
    %v2287 = vrot.slane %v44, 1
    %v2288 = vsel %vm2262, %v2285, %v2287
    %v2289 = vrot.slane %v45, 1
    %v2290 = vsel %vm2262, %v2287, %v2289
    %v2291 = vrot.slane %v46, 1
    %v2292 = vsel %vm2262, %v2289, %v2291
    %v2293 = vrot.slane %v47, 1
    %v2294 = vsel %vm2262, %v2291, %v2293
    %v2295 = vrot.slane %v48, 1
    %v2296 = vsel %vm2262, %v2293, %v2295
    %v2297 = vrot.slane %v49, 1
    %v2298 = vsel %vm2262, %v2295, %v2297
    %v2299 = vrot.slane %v50, 1
    %v2300 = vsel %vm2262, %v2297, %v2299
    %v2301 = vrot.slane %v51, 1
    %v2302 = vsel %vm2262, %v2299, %v2301
    %v2303 = vrot.slane %v52, 1
    %v2304 = vsel %vm2262, %v2301, %v2303
    %v2305 = vrot.slane %v53, 1
    %v2306 = vsel %vm2262, %v2303, %v2305
    %v2307 = vrot.slane %v54, 1
    %v2308 = vsel %vm2262, %v2305, %v2307
    %v2309 = vrot.slane %v55, 1
    %v2310 = vsel %vm2262, %v2307, %v2309
    %v2311 = vrot.slane %v56, 1
    %v2312 = vsel %vm2262, %v2309, %v2311
    %v2313 = vrot.slane %v57, 1
    %v2314 = vsel %vm2262, %v2311, %v2313
    %v2315 = vrot.slane %v58, 1
    %v2316 = vsel %vm2262, %v2313, %v2315
    %v2317 = vrot.slane %v59, 1
    %v2318 = vsel %vm2262, %v2315, %v2317
    %v2319 = vrot.slane %v60, 1
    %v2320 = vsel %vm2262, %v2317, %v2319
    %v2321 = vrot.slane %v61, 1
    %v2322 = vsel %vm2262, %v2319, %v2321
    %v2323 = vrot.slane %v62, 1
    %v2324 = vsel %vm2262, %v2321, %v2323
    %v2325 = vrot.slane %v63, 1
    %v2326 = vsel %vm2262, %v2323, %v2325
    %v2327 = vrot.slane %v64, 1
    %v2328 = vsel %vm2262, %v2325, %v2327
    %v2329 = vrot.slane %v65, 1
    %v2330 = vsel %vm2262, %v2327, %v2329
    %v2331 = vrot.slane %v66, 1
    %v2332 = vsel %vm2262, %v2329, %v2331
    %v2333 = vrot.slane %v67, 1
    %v2334 = vsel %vm2262, %v2331, %v2333
    %v2335 = vrot.slane %v68, 1
    %v2336 = vsel %vm2262, %v2333, %v2335
    %v2337 = vrot.slane %v69, 1
    %v2338 = vsel %vm2262, %v2335, %v2337
    %v2339 = vrot.slane %v70, 1
    %v2340 = vsel %vm2262, %v2337, %v2339
    %v2341 = vrot.slane %v71, 1
    %v2342 = vsel %vm2262, %v2339, %v2341
    %v2343 = vrot.slane %v72, 1
    %v2344 = vsel %vm2262, %v2341, %v2343
    %v2345 = vrot.slane %v73, 1
    %v2346 = vsel %vm2262, %v2343, %v2345
    %v2347 = vrot.slane %v74, 1
    %v2348 = vsel %vm2262, %v2345, %v2347
    %v2349 = vrot.slane %v75, 1
    %v2350 = vsel %vm2262, %v2347, %v2349
    %v2351 = vrot.slane %v76, 1
    %v2352 = vsel %vm2262, %v2349, %v2351
    %v2353 = vrot.slane %v77, 1
    %v2354 = vsel %vm2262, %v2351, %v2353
    %v2355 = vrot.slane %v78, 1
    %v2356 = vsel %vm2262, %v2353, %v2355
    %v2357 = vrot.slane %v79, 1
    %v2358 = vsel %vm2262, %v2355, %v2357
    %v2359 = vrot.slane %v80, 1
    %v2360 = vsel %vm2262, %v2357, %v2359
    %v2361 = vrot.slane %v81, 1
    %v2362 = vsel %vm2262, %v2359, %v2361
    %v2363 = vrot.slane %v82, 1
    %v2364 = vsel %vm2262, %v2361, %v2363
    %v2365 = vrot.slane %v83, 1
    %v2366 = vsel %vm2262, %v2363, %v2365
    %v2367 = vrot.slane %v84, 1
    %v2368 = vsel %vm2262, %v2365, %v2367
    %v2369 = vrot.slane %v85, 1
    %v2370 = vsel %vm2262, %v2367, %v2369
    %v2371 = vrot.slane %v86, 1
    %v2372 = vsel %vm2262, %v2369, %v2371
    %v2373 = vrot.slane %v87, 1
    %v2374 = vsel %vm2262, %v2371, %v2373
    %v2375 = vrot.slane %v88, 1
    %v2376 = vsel %vm2262, %v2373, %v2375
    %v2377 = vrot.slane %v89, 1
    %v2378 = vsel %vm2262, %v2375, %v2377
    %v2379 = vrot.slane %v90, 1
    %v2380 = vsel %vm2262, %v2377, %v2379
    %v2381 = vrot.slane %v91, 1
    %v2382 = vsel %vm2262, %v2379, %v2381
    %v2383 = vrot.slane %v92, 1
    %v2384 = vsel %vm2262, %v2381, %v2383
    %v2385 = vrot.slane %v93, 1
    %v2386 = vsel %vm2262, %v2383, %v2385
    %v2387 = vrot.slane %v94, 1
    %v2388 = vsel %vm2262, %v2385, %v2387
    %v2389 = vrot.slane %v95, 1
    %v2390 = vsel %vm2262, %v2387, %v2389
    %v2455 = vsel %vm2197, %v2264, 0.0
    %v2456 = vsel %vm2198, %v2266, 0.0
    %v2457 = vsel %vm2199, %v2268, 0.0
    %v2458 = vsel %vm2200, %v2270, 0.0
    %v2459 = vsel %vm2201, %v2272, 0.0
    %v2460 = vsel %vm2202, %v2274, 0.0
    %v2461 = vsel %vm2203, %v2276, 0.0
    %v2462 = vsel %vm2204, %v2278, 0.0
    %v2463 = vsel %vm2205, %v2280, 0.0
    %v2464 = vsel %vm2206, %v2282, 0.0
    %v2465 = vsel %vm2207, %v2284, 0.0
    %v2466 = vsel %vm2208, %v2286, 0.0
    %v2467 = vsel %vm2209, %v2288, 0.0
    %v2468 = vsel %vm2210, %v2290, 0.0
    %v2469 = vsel %vm2211, %v2292, 0.0
    %v2470 = vsel %vm2212, %v2294, 0.0
    %v2471 = vsel %vm2213, %v2296, 0.0
    %v2472 = vsel %vm2214, %v2298, 0.0
    %v2473 = vsel %vm2215, %v2300, 0.0
    %v2474 = vsel %vm2216, %v2302, 0.0
    %v2475 = vsel %vm2217, %v2304, 0.0
    %v2476 = vsel %vm2218, %v2306, 0.0
    %v2477 = vsel %vm2219, %v2308, 0.0
    %v2478 = vsel %vm2220, %v2310, 0.0
    %v2479 = vsel %vm2221, %v2312, 0.0
    %v2480 = vsel %vm2222, %v2314, 0.0
    %v2481 = vsel %vm2223, %v2316, 0.0
    %v2482 = vsel %vm2224, %v2318, 0.0
    %v2483 = vsel %vm2225, %v2320, 0.0
    %v2484 = vsel %vm2226, %v2322, 0.0
    %v2485 = vsel %vm2227, %v2324, 0.0
    %v2486 = vsel %vm2228, %v2326, 0.0
    %v2487 = vsel %vm2229, %v2328, 0.0
    %v2488 = vsel %vm2230, %v2330, 0.0
    %v2489 = vsel %vm2231, %v2332, 0.0
    %v2490 = vsel %vm2232, %v2334, 0.0
    %v2491 = vsel %vm2233, %v2336, 0.0
    %v2492 = vsel %vm2234, %v2338, 0.0
    %v2493 = vsel %vm2235, %v2340, 0.0
    %v2494 = vsel %vm2236, %v2342, 0.0
    %v2495 = vsel %vm2237, %v2344, 0.0
    %v2496 = vsel %vm2238, %v2346, 0.0
    %v2497 = vsel %vm2239, %v2348, 0.0
    %v2498 = vsel %vm2240, %v2350, 0.0
    %v2499 = vsel %vm2241, %v2352, 0.0
    %v2500 = vsel %vm2242, %v2354, 0.0
    %v2501 = vsel %vm2243, %v2356, 0.0
    %v2502 = vsel %vm2244, %v2358, 0.0
    %v2503 = vsel %vm2245, %v2360, 0.0
    %v2504 = vsel %vm2246, %v2362, 0.0
    %v2505 = vsel %vm2247, %v2364, 0.0
    %v2506 = vsel %vm2248, %v2366, 0.0
    %v2507 = vsel %vm2249, %v2368, 0.0
    %v2508 = vsel %vm2250, %v2370, 0.0
    %v2509 = vsel %vm2251, %v2372, 0.0
    %v2510 = vsel %vm2252, %v2374, 0.0
    %v2511 = vsel %vm2253, %v2376, 0.0
    %v2512 = vsel %vm2254, %v2378, 0.0
    %v2513 = vsel %vm2255, %v2380, 0.0
    %v2514 = vsel %vm2256, %v2382, 0.0
    %v2515 = vsel %vm2257, %v2384, 0.0
    %v2516 = vsel %vm2258, %v2386, 0.0
    %v2517 = vsel %vm2259, %v2388, 0.0
    %v2518 = vsel %vm2260, %v2390, 0.0
    %vm2519 = vcmp.ge.s32.totalorder %v290, 0
    %vm2520 = vcmp.ge.s32.totalorder %v291, 0
    %vm2521 = vcmp.ge.s32.totalorder %v292, 0
    %vm2522 = vcmp.ge.s32.totalorder %v293, 0
    %vm2523 = vcmp.ge.s32.totalorder %v294, 0
    %vm2524 = vcmp.ge.s32.totalorder %v295, 0
    %vm2525 = vcmp.ge.s32.totalorder %v296, 0
    %vm2526 = vcmp.ge.s32.totalorder %v297, 0
    %vm2527 = vcmp.ge.s32.totalorder %v298, 0
    %vm2528 = vcmp.ge.s32.totalorder %v299, 0
    %vm2529 = vcmp.ge.s32.totalorder %v300, 0
    %vm2530 = vcmp.ge.s32.totalorder %v301, 0
    %vm2531 = vcmp.ge.s32.totalorder %v302, 0
    %vm2532 = vcmp.ge.s32.totalorder %v303, 0
    %vm2533 = vcmp.ge.s32.totalorder %v304, 0
    %vm2534 = vcmp.ge.s32.totalorder %v305, 0
    %vm2535 = vcmp.ge.s32.totalorder %v306, 0
    %vm2536 = vcmp.ge.s32.totalorder %v307, 0
    %vm2537 = vcmp.ge.s32.totalorder %v308, 0
    %vm2538 = vcmp.ge.s32.totalorder %v309, 0
    %vm2539 = vcmp.ge.s32.totalorder %v310, 0
    %vm2540 = vcmp.ge.s32.totalorder %v311, 0
    %vm2541 = vcmp.ge.s32.totalorder %v312, 0
    %vm2542 = vcmp.ge.s32.totalorder %v313, 0
    %vm2543 = vcmp.ge.s32.totalorder %v314, 0
    %vm2544 = vcmp.ge.s32.totalorder %v315, 0
    %vm2545 = vcmp.ge.s32.totalorder %v316, 0
    %vm2546 = vcmp.ge.s32.totalorder %v317, 0
    %vm2547 = vcmp.ge.s32.totalorder %v318, 0
    %vm2548 = vcmp.ge.s32.totalorder %v319, 0
    %vm2549 = vcmp.ge.s32.totalorder %v320, 0
    %vm2550 = vcmp.ge.s32.totalorder %v321, 0
    %vm2551 = vcmp.ge.s32.totalorder %v322, 0
    %vm2552 = vcmp.ge.s32.totalorder %v323, 0
    %vm2553 = vcmp.ge.s32.totalorder %v324, 0
    %vm2554 = vcmp.ge.s32.totalorder %v325, 0
    %vm2555 = vcmp.ge.s32.totalorder %v326, 0
    %vm2556 = vcmp.ge.s32.totalorder %v327, 0
    %vm2557 = vcmp.ge.s32.totalorder %v328, 0
    %vm2558 = vcmp.ge.s32.totalorder %v329, 0
    %vm2559 = vcmp.ge.s32.totalorder %v330, 0
    %vm2560 = vcmp.ge.s32.totalorder %v331, 0
    %vm2561 = vcmp.ge.s32.totalorder %v332, 0
    %vm2562 = vcmp.ge.s32.totalorder %v333, 0
    %vm2563 = vcmp.ge.s32.totalorder %v334, 0
    %vm2564 = vcmp.ge.s32.totalorder %v335, 0
    %vm2565 = vcmp.ge.s32.totalorder %v336, 0
    %vm2566 = vcmp.ge.s32.totalorder %v337, 0
    %vm2567 = vcmp.ge.s32.totalorder %v338, 0
    %vm2568 = vcmp.ge.s32.totalorder %v339, 0
    %vm2569 = vcmp.ge.s32.totalorder %v340, 0
    %vm2570 = vcmp.ge.s32.totalorder %v341, 0
    %vm2571 = vcmp.ge.s32.totalorder %v342, 0
    %vm2572 = vcmp.ge.s32.totalorder %v343, 0
    %vm2573 = vcmp.ge.s32.totalorder %v344, 0
    %vm2574 = vcmp.ge.s32.totalorder %v345, 0
    %vm2575 = vcmp.ge.s32.totalorder %v346, 0
    %vm2576 = vcmp.ge.s32.totalorder %v347, 0
    %vm2577 = vcmp.ge.s32.totalorder %v348, 0
    %vm2578 = vcmp.ge.s32.totalorder %v349, 0
    %vm2579 = vcmp.ge.s32.totalorder %v350, 0
    %vm2580 = vcmp.ge.s32.totalorder %v351, 0
    %vm2581 = vcmp.ge.s32.totalorder %v352, 0
    %vm2582 = vcmp.ge.s32.totalorder %v353, 0
    %vm2583 = vcmp.lt.s32.totalorder %v290, 16
    %vm2584 = vcmp.lt.s32.totalorder %v291, 16
    %vm2585 = vcmp.lt.s32.totalorder %v292, 16
    %vm2586 = vcmp.lt.s32.totalorder %v293, 16
    %vm2587 = vcmp.lt.s32.totalorder %v294, 16
    %vm2588 = vcmp.lt.s32.totalorder %v295, 16
    %vm2589 = vcmp.lt.s32.totalorder %v296, 16
    %vm2590 = vcmp.lt.s32.totalorder %v297, 16
    %vm2591 = vcmp.lt.s32.totalorder %v298, 16
    %vm2592 = vcmp.lt.s32.totalorder %v299, 16
    %vm2593 = vcmp.lt.s32.totalorder %v300, 16
    %vm2594 = vcmp.lt.s32.totalorder %v301, 16
    %vm2595 = vcmp.lt.s32.totalorder %v302, 16
    %vm2596 = vcmp.lt.s32.totalorder %v303, 16
    %vm2597 = vcmp.lt.s32.totalorder %v304, 16
    %vm2598 = vcmp.lt.s32.totalorder %v305, 16
    %vm2599 = vcmp.lt.s32.totalorder %v306, 16
    %vm2600 = vcmp.lt.s32.totalorder %v307, 16
    %vm2601 = vcmp.lt.s32.totalorder %v308, 16
    %vm2602 = vcmp.lt.s32.totalorder %v309, 16
    %vm2603 = vcmp.lt.s32.totalorder %v310, 16
    %vm2604 = vcmp.lt.s32.totalorder %v311, 16
    %vm2605 = vcmp.lt.s32.totalorder %v312, 16
    %vm2606 = vcmp.lt.s32.totalorder %v313, 16
    %vm2607 = vcmp.lt.s32.totalorder %v314, 16
    %vm2608 = vcmp.lt.s32.totalorder %v315, 16
    %vm2609 = vcmp.lt.s32.totalorder %v316, 16
    %vm2610 = vcmp.lt.s32.totalorder %v317, 16
    %vm2611 = vcmp.lt.s32.totalorder %v318, 16
    %vm2612 = vcmp.lt.s32.totalorder %v319, 16
    %vm2613 = vcmp.lt.s32.totalorder %v320, 16
    %vm2614 = vcmp.lt.s32.totalorder %v321, 16
    %vm2615 = vcmp.lt.s32.totalorder %v322, 16
    %vm2616 = vcmp.lt.s32.totalorder %v323, 16
    %vm2617 = vcmp.lt.s32.totalorder %v324, 16
    %vm2618 = vcmp.lt.s32.totalorder %v325, 16
    %vm2619 = vcmp.lt.s32.totalorder %v326, 16
    %vm2620 = vcmp.lt.s32.totalorder %v327, 16
    %vm2621 = vcmp.lt.s32.totalorder %v328, 16
    %vm2622 = vcmp.lt.s32.totalorder %v329, 16
    %vm2623 = vcmp.lt.s32.totalorder %v330, 16
    %vm2624 = vcmp.lt.s32.totalorder %v331, 16
    %vm2625 = vcmp.lt.s32.totalorder %v332, 16
    %vm2626 = vcmp.lt.s32.totalorder %v333, 16
    %vm2627 = vcmp.lt.s32.totalorder %v334, 16
    %vm2628 = vcmp.lt.s32.totalorder %v335, 16
    %vm2629 = vcmp.lt.s32.totalorder %v336, 16
    %vm2630 = vcmp.lt.s32.totalorder %v337, 16
    %vm2631 = vcmp.lt.s32.totalorder %v338, 16
    %vm2632 = vcmp.lt.s32.totalorder %v339, 16
    %vm2633 = vcmp.lt.s32.totalorder %v340, 16
    %vm2634 = vcmp.lt.s32.totalorder %v341, 16
    %vm2635 = vcmp.lt.s32.totalorder %v342, 16
    %vm2636 = vcmp.lt.s32.totalorder %v343, 16
    %vm2637 = vcmp.lt.s32.totalorder %v344, 16
    %vm2638 = vcmp.lt.s32.totalorder %v345, 16
    %vm2639 = vcmp.lt.s32.totalorder %v346, 16
    %vm2640 = vcmp.lt.s32.totalorder %v347, 16
    %vm2641 = vcmp.lt.s32.totalorder %v348, 16
    %vm2642 = vcmp.lt.s32.totalorder %v349, 16
    %vm2643 = vcmp.lt.s32.totalorder %v350, 16
    %vm2644 = vcmp.lt.s32.totalorder %v351, 16
    %vm2645 = vcmp.lt.s32.totalorder %v352, 16
    %vm2646 = vcmp.lt.s32.totalorder %v353, 16
    %vm2647 = vmand %vm2519, %vm2583
    %vm2648 = vmand %vm2520, %vm2584
    %vm2649 = vmand %vm2521, %vm2585
    %vm2650 = vmand %vm2522, %vm2586
    %vm2651 = vmand %vm2523, %vm2587
    %vm2652 = vmand %vm2524, %vm2588
    %vm2653 = vmand %vm2525, %vm2589
    %vm2654 = vmand %vm2526, %vm2590
    %vm2655 = vmand %vm2527, %vm2591
    %vm2656 = vmand %vm2528, %vm2592
    %vm2657 = vmand %vm2529, %vm2593
    %vm2658 = vmand %vm2530, %vm2594
    %vm2659 = vmand %vm2531, %vm2595
    %vm2660 = vmand %vm2532, %vm2596
    %vm2661 = vmand %vm2533, %vm2597
    %vm2662 = vmand %vm2534, %vm2598
    %vm2663 = vmand %vm2535, %vm2599
    %vm2664 = vmand %vm2536, %vm2600
    %vm2665 = vmand %vm2537, %vm2601
    %vm2666 = vmand %vm2538, %vm2602
    %vm2667 = vmand %vm2539, %vm2603
    %vm2668 = vmand %vm2540, %vm2604
    %vm2669 = vmand %vm2541, %vm2605
    %vm2670 = vmand %vm2542, %vm2606
    %vm2671 = vmand %vm2543, %vm2607
    %vm2672 = vmand %vm2544, %vm2608
    %vm2673 = vmand %vm2545, %vm2609
    %vm2674 = vmand %vm2546, %vm2610
    %vm2675 = vmand %vm2547, %vm2611
    %vm2676 = vmand %vm2548, %vm2612
    %vm2677 = vmand %vm2549, %vm2613
    %vm2678 = vmand %vm2550, %vm2614
    %vm2679 = vmand %vm2551, %vm2615
    %vm2680 = vmand %vm2552, %vm2616
    %vm2681 = vmand %vm2553, %vm2617
    %vm2682 = vmand %vm2554, %vm2618
    %vm2683 = vmand %vm2555, %vm2619
    %vm2684 = vmand %vm2556, %vm2620
    %vm2685 = vmand %vm2557, %vm2621
    %vm2686 = vmand %vm2558, %vm2622
    %vm2687 = vmand %vm2559, %vm2623
    %vm2688 = vmand %vm2560, %vm2624
    %vm2689 = vmand %vm2561, %vm2625
    %vm2690 = vmand %vm2562, %vm2626
    %vm2691 = vmand %vm2563, %vm2627
    %vm2692 = vmand %vm2564, %vm2628
    %vm2693 = vmand %vm2565, %vm2629
    %vm2694 = vmand %vm2566, %vm2630
    %vm2695 = vmand %vm2567, %vm2631
    %vm2696 = vmand %vm2568, %vm2632
    %vm2697 = vmand %vm2569, %vm2633
    %vm2698 = vmand %vm2570, %vm2634
    %vm2699 = vmand %vm2571, %vm2635
    %vm2700 = vmand %vm2572, %vm2636
    %vm2701 = vmand %vm2573, %vm2637
    %vm2702 = vmand %vm2574, %vm2638
    %vm2703 = vmand %vm2575, %vm2639
    %vm2704 = vmand %vm2576, %vm2640
    %vm2705 = vmand %vm2577, %vm2641
    %vm2706 = vmand %vm2578, %vm2642
    %vm2707 = vmand %vm2579, %vm2643
    %vm2708 = vmand %vm2580, %vm2644
    %vm2709 = vmand %vm2581, %vm2645
    %vm2710 = vmand %vm2582, %vm2646
    %vm2711 = vmand %vm2647, %vm674
    %vm2712 = vmand %vm2648, %vm675
    %vm2713 = vmand %vm2649, %vm676
    %vm2714 = vmand %vm2650, %vm677
    %vm2715 = vmand %vm2651, %vm678
    %vm2716 = vmand %vm2652, %vm679
    %vm2717 = vmand %vm2653, %vm680
    %vm2718 = vmand %vm2654, %vm681
    %vm2719 = vmand %vm2655, %vm682
    %vm2720 = vmand %vm2656, %vm683
    %vm2721 = vmand %vm2657, %vm684
    %vm2722 = vmand %vm2658, %vm685
    %vm2723 = vmand %vm2659, %vm686
    %vm2724 = vmand %vm2660, %vm687
    %vm2725 = vmand %vm2661, %vm688
    %vm2726 = vmand %vm2662, %vm689
    %vm2727 = vmand %vm2663, %vm690
    %vm2728 = vmand %vm2664, %vm691
    %vm2729 = vmand %vm2665, %vm692
    %vm2730 = vmand %vm2666, %vm693
    %vm2731 = vmand %vm2667, %vm694
    %vm2732 = vmand %vm2668, %vm695
    %vm2733 = vmand %vm2669, %vm696
    %vm2734 = vmand %vm2670, %vm697
    %vm2735 = vmand %vm2671, %vm698
    %vm2736 = vmand %vm2672, %vm699
    %vm2737 = vmand %vm2673, %vm700
    %vm2738 = vmand %vm2674, %vm701
    %vm2739 = vmand %vm2675, %vm702
    %vm2740 = vmand %vm2676, %vm703
    %vm2741 = vmand %vm2677, %vm704
    %vm2742 = vmand %vm2678, %vm705
    %vm2743 = vmand %vm2679, %vm706
    %vm2744 = vmand %vm2680, %vm707
    %vm2745 = vmand %vm2681, %vm708
    %vm2746 = vmand %vm2682, %vm709
    %vm2747 = vmand %vm2683, %vm710
    %vm2748 = vmand %vm2684, %vm711
    %vm2749 = vmand %vm2685, %vm712
    %vm2750 = vmand %vm2686, %vm713
    %vm2751 = vmand %vm2687, %vm714
    %vm2752 = vmand %vm2688, %vm715
    %vm2753 = vmand %vm2689, %vm716
    %vm2754 = vmand %vm2690, %vm717
    %vm2755 = vmand %vm2691, %vm718
    %vm2756 = vmand %vm2692, %vm719
    %vm2757 = vmand %vm2693, %vm720
    %vm2758 = vmand %vm2694, %vm721
    %vm2759 = vmand %vm2695, %vm722
    %vm2760 = vmand %vm2696, %vm723
    %vm2761 = vmand %vm2697, %vm724
    %vm2762 = vmand %vm2698, %vm725
    %vm2763 = vmand %vm2699, %vm726
    %vm2764 = vmand %vm2700, %vm727
    %vm2765 = vmand %vm2701, %vm728
    %vm2766 = vmand %vm2702, %vm729
    %vm2767 = vmand %vm2703, %vm730
    %vm2768 = vmand %vm2704, %vm731
    %vm2769 = vmand %vm2705, %vm732
    %vm2770 = vmand %vm2706, %vm733
    %vm2771 = vmand %vm2707, %vm734
    %vm2772 = vmand %vm2708, %vm735
    %vm2773 = vmand %vm2709, %vm736
    %vm2774 = vmand %vm2710, %vm737
    %vm2775 = vmand %vm2711, %vm802
    %vm2776 = vmand %vm2712, %vm803
    %vm2777 = vmand %vm2713, %vm804
    %vm2778 = vmand %vm2714, %vm805
    %vm2779 = vmand %vm2715, %vm806
    %vm2780 = vmand %vm2716, %vm807
    %vm2781 = vmand %vm2717, %vm808
    %vm2782 = vmand %vm2718, %vm809
    %vm2783 = vmand %vm2719, %vm810
    %vm2784 = vmand %vm2720, %vm811
    %vm2785 = vmand %vm2721, %vm812
    %vm2786 = vmand %vm2722, %vm813
    %vm2787 = vmand %vm2723, %vm814
    %vm2788 = vmand %vm2724, %vm815
    %vm2789 = vmand %vm2725, %vm816
    %vm2790 = vmand %vm2726, %vm817
    %vm2791 = vmand %vm2727, %vm818
    %vm2792 = vmand %vm2728, %vm819
    %vm2793 = vmand %vm2729, %vm820
    %vm2794 = vmand %vm2730, %vm821
    %vm2795 = vmand %vm2731, %vm822
    %vm2796 = vmand %vm2732, %vm823
    %vm2797 = vmand %vm2733, %vm824
    %vm2798 = vmand %vm2734, %vm825
    %vm2799 = vmand %vm2735, %vm826
    %vm2800 = vmand %vm2736, %vm827
    %vm2801 = vmand %vm2737, %vm828
    %vm2802 = vmand %vm2738, %vm829
    %vm2803 = vmand %vm2739, %vm830
    %vm2804 = vmand %vm2740, %vm831
    %vm2805 = vmand %vm2741, %vm832
    %vm2806 = vmand %vm2742, %vm833
    %vm2807 = vmand %vm2743, %vm834
    %vm2808 = vmand %vm2744, %vm835
    %vm2809 = vmand %vm2745, %vm836
    %vm2810 = vmand %vm2746, %vm837
    %vm2811 = vmand %vm2747, %vm838
    %vm2812 = vmand %vm2748, %vm839
    %vm2813 = vmand %vm2749, %vm840
    %vm2814 = vmand %vm2750, %vm841
    %vm2815 = vmand %vm2751, %vm842
    %vm2816 = vmand %vm2752, %vm843
    %vm2817 = vmand %vm2753, %vm844
    %vm2818 = vmand %vm2754, %vm845
    %vm2819 = vmand %vm2755, %vm846
    %vm2820 = vmand %vm2756, %vm847
    %vm2821 = vmand %vm2757, %vm848
    %vm2822 = vmand %vm2758, %vm849
    %vm2823 = vmand %vm2759, %vm850
    %vm2824 = vmand %vm2760, %vm851
    %vm2825 = vmand %vm2761, %vm852
    %vm2826 = vmand %vm2762, %vm853
    %vm2827 = vmand %vm2763, %vm854
    %vm2828 = vmand %vm2764, %vm855
    %vm2829 = vmand %vm2765, %vm856
    %vm2830 = vmand %vm2766, %vm857
    %vm2831 = vmand %vm2767, %vm858
    %vm2832 = vmand %vm2768, %vm859
    %vm2833 = vmand %vm2769, %vm860
    %vm2834 = vmand %vm2770, %vm861
    %vm2835 = vmand %vm2771, %vm862
    %vm2836 = vmand %vm2772, %vm863
    %vm2837 = vmand %vm2773, %vm864
    %vm2838 = vmand %vm2774, %vm865
    %v2839 = vsel %vm2775, 1, 0
    %v2840 = vsel %vm2776, 1, 0
    %v2841 = vsel %vm2777, 1, 0
    %v2842 = vsel %vm2778, 1, 0
    %v2843 = vsel %vm2779, 1, 0
    %v2844 = vsel %vm2780, 1, 0
    %v2845 = vsel %vm2781, 1, 0
    %v2846 = vsel %vm2782, 1, 0
    %v2847 = vsel %vm2783, 1, 0
    %v2848 = vsel %vm2784, 1, 0
    %v2849 = vsel %vm2785, 1, 0
    %v2850 = vsel %vm2786, 1, 0
    %v2851 = vsel %vm2787, 1, 0
    %v2852 = vsel %vm2788, 1, 0
    %v2853 = vsel %vm2789, 1, 0
    %v2854 = vsel %vm2790, 1, 0
    %v2855 = vsel %vm2791, 1, 0
    %v2856 = vsel %vm2792, 1, 0
    %v2857 = vsel %vm2793, 1, 0
    %v2858 = vsel %vm2794, 1, 0
    %v2859 = vsel %vm2795, 1, 0
    %v2860 = vsel %vm2796, 1, 0
    %v2861 = vsel %vm2797, 1, 0
    %v2862 = vsel %vm2798, 1, 0
    %v2863 = vsel %vm2799, 1, 0
    %v2864 = vsel %vm2800, 1, 0
    %v2865 = vsel %vm2801, 1, 0
    %v2866 = vsel %vm2802, 1, 0
    %v2867 = vsel %vm2803, 1, 0
    %v2868 = vsel %vm2804, 1, 0
    %v2869 = vsel %vm2805, 1, 0
    %v2870 = vsel %vm2806, 1, 0
    %v2871 = vsel %vm2807, 1, 0
    %v2872 = vsel %vm2808, 1, 0
    %v2873 = vsel %vm2809, 1, 0
    %v2874 = vsel %vm2810, 1, 0
    %v2875 = vsel %vm2811, 1, 0
    %v2876 = vsel %vm2812, 1, 0
    %v2877 = vsel %vm2813, 1, 0
    %v2878 = vsel %vm2814, 1, 0
    %v2879 = vsel %vm2815, 1, 0
    %v2880 = vsel %vm2816, 1, 0
    %v2881 = vsel %vm2817, 1, 0
    %v2882 = vsel %vm2818, 1, 0
    %v2883 = vsel %vm2819, 1, 0
    %v2884 = vsel %vm2820, 1, 0
    %v2885 = vsel %vm2821, 1, 0
    %v2886 = vsel %vm2822, 1, 0
    %v2887 = vsel %vm2823, 1, 0
    %v2888 = vsel %vm2824, 1, 0
    %v2889 = vsel %vm2825, 1, 0
    %v2890 = vsel %vm2826, 1, 0
    %v2891 = vsel %vm2827, 1, 0
    %v2892 = vsel %vm2828, 1, 0
    %v2893 = vsel %vm2829, 1, 0
    %v2894 = vsel %vm2830, 1, 0
    %v2895 = vsel %vm2831, 1, 0
    %v2896 = vsel %vm2832, 1, 0
    %v2897 = vsel %vm2833, 1, 0
    %v2898 = vsel %vm2834, 1, 0
    %v2899 = vsel %vm2835, 1, 0
    %v2900 = vsel %vm2836, 1, 0
    %v2901 = vsel %vm2837, 1, 0
    %v2902 = vsel %vm2838, 1, 0
    %vm2903 = vcmp.eq.s32.totalorder %v2839, 1
    %vm2904 = vcmp.eq.s32.totalorder %v2840, 1
    %vm2905 = vcmp.eq.s32.totalorder %v2841, 1
    %vm2906 = vcmp.eq.s32.totalorder %v2842, 1
    %vm2907 = vcmp.eq.s32.totalorder %v2843, 1
    %vm2908 = vcmp.eq.s32.totalorder %v2844, 1
    %vm2909 = vcmp.eq.s32.totalorder %v2845, 1
    %vm2910 = vcmp.eq.s32.totalorder %v2846, 1
    %vm2911 = vcmp.eq.s32.totalorder %v2847, 1
    %vm2912 = vcmp.eq.s32.totalorder %v2848, 1
    %vm2913 = vcmp.eq.s32.totalorder %v2849, 1
    %vm2914 = vcmp.eq.s32.totalorder %v2850, 1
    %vm2915 = vcmp.eq.s32.totalorder %v2851, 1
    %vm2916 = vcmp.eq.s32.totalorder %v2852, 1
    %vm2917 = vcmp.eq.s32.totalorder %v2853, 1
    %vm2918 = vcmp.eq.s32.totalorder %v2854, 1
    %vm2919 = vcmp.eq.s32.totalorder %v2855, 1
    %vm2920 = vcmp.eq.s32.totalorder %v2856, 1
    %vm2921 = vcmp.eq.s32.totalorder %v2857, 1
    %vm2922 = vcmp.eq.s32.totalorder %v2858, 1
    %vm2923 = vcmp.eq.s32.totalorder %v2859, 1
    %vm2924 = vcmp.eq.s32.totalorder %v2860, 1
    %vm2925 = vcmp.eq.s32.totalorder %v2861, 1
    %vm2926 = vcmp.eq.s32.totalorder %v2862, 1
    %vm2927 = vcmp.eq.s32.totalorder %v2863, 1
    %vm2928 = vcmp.eq.s32.totalorder %v2864, 1
    %vm2929 = vcmp.eq.s32.totalorder %v2865, 1
    %vm2930 = vcmp.eq.s32.totalorder %v2866, 1
    %vm2931 = vcmp.eq.s32.totalorder %v2867, 1
    %vm2932 = vcmp.eq.s32.totalorder %v2868, 1
    %vm2933 = vcmp.eq.s32.totalorder %v2869, 1
    %vm2934 = vcmp.eq.s32.totalorder %v2870, 1
    %vm2935 = vcmp.eq.s32.totalorder %v2871, 1
    %vm2936 = vcmp.eq.s32.totalorder %v2872, 1
    %vm2937 = vcmp.eq.s32.totalorder %v2873, 1
    %vm2938 = vcmp.eq.s32.totalorder %v2874, 1
    %vm2939 = vcmp.eq.s32.totalorder %v2875, 1
    %vm2940 = vcmp.eq.s32.totalorder %v2876, 1
    %vm2941 = vcmp.eq.s32.totalorder %v2877, 1
    %vm2942 = vcmp.eq.s32.totalorder %v2878, 1
    %vm2943 = vcmp.eq.s32.totalorder %v2879, 1
    %vm2944 = vcmp.eq.s32.totalorder %v2880, 1
    %vm2945 = vcmp.eq.s32.totalorder %v2881, 1
    %vm2946 = vcmp.eq.s32.totalorder %v2882, 1
    %vm2947 = vcmp.eq.s32.totalorder %v2883, 1
    %vm2948 = vcmp.eq.s32.totalorder %v2884, 1
    %vm2949 = vcmp.eq.s32.totalorder %v2885, 1
    %vm2950 = vcmp.eq.s32.totalorder %v2886, 1
    %vm2951 = vcmp.eq.s32.totalorder %v2887, 1
    %vm2952 = vcmp.eq.s32.totalorder %v2888, 1
    %vm2953 = vcmp.eq.s32.totalorder %v2889, 1
    %vm2954 = vcmp.eq.s32.totalorder %v2890, 1
    %vm2955 = vcmp.eq.s32.totalorder %v2891, 1
    %vm2956 = vcmp.eq.s32.totalorder %v2892, 1
    %vm2957 = vcmp.eq.s32.totalorder %v2893, 1
    %vm2958 = vcmp.eq.s32.totalorder %v2894, 1
    %vm2959 = vcmp.eq.s32.totalorder %v2895, 1
    %vm2960 = vcmp.eq.s32.totalorder %v2896, 1
    %vm2961 = vcmp.eq.s32.totalorder %v2897, 1
    %vm2962 = vcmp.eq.s32.totalorder %v2898, 1
    %vm2963 = vcmp.eq.s32.totalorder %v2899, 1
    %vm2964 = vcmp.eq.s32.totalorder %v2900, 1
    %vm2965 = vcmp.eq.s32.totalorder %v2901, 1
    %vm2966 = vcmp.eq.s32.totalorder %v2902, 1
    %v2968 = vrot.slane %v95, 7
    %v2969 = vsel %vm1121, %v1246, %v2968
    %v2970 = vrot.slane %v96, 7
    %v2971 = vsel %vm1121, %v2968, %v2970
    %v2974 = vsel %vm2903, %v1125, 0.0
    %v2975 = vsel %vm2904, %v1127, 0.0
    %v2976 = vsel %vm2905, %v1129, 0.0
    %v2977 = vsel %vm2906, %v1131, 0.0
    %v2978 = vsel %vm2907, %v1133, 0.0
    %v2979 = vsel %vm2908, %v1135, 0.0
    %v2980 = vsel %vm2909, %v1137, 0.0
    %v2981 = vsel %vm2910, %v1139, 0.0
    %v2982 = vsel %vm2911, %v1141, 0.0
    %v2983 = vsel %vm2912, %v1143, 0.0
    %v2984 = vsel %vm2913, %v1145, 0.0
    %v2985 = vsel %vm2914, %v1147, 0.0
    %v2986 = vsel %vm2915, %v1149, 0.0
    %v2987 = vsel %vm2916, %v1151, 0.0
    %v2988 = vsel %vm2917, %v1153, 0.0
    %v2989 = vsel %vm2918, %v1155, 0.0
    %v2990 = vsel %vm2919, %v1157, 0.0
    %v2991 = vsel %vm2920, %v1159, 0.0
    %v2992 = vsel %vm2921, %v1161, 0.0
    %v2993 = vsel %vm2922, %v1163, 0.0
    %v2994 = vsel %vm2923, %v1165, 0.0
    %v2995 = vsel %vm2924, %v1167, 0.0
    %v2996 = vsel %vm2925, %v1169, 0.0
    %v2997 = vsel %vm2926, %v1171, 0.0
    %v2998 = vsel %vm2927, %v1173, 0.0
    %v2999 = vsel %vm2928, %v1175, 0.0
    %v3000 = vsel %vm2929, %v1177, 0.0
    %v3001 = vsel %vm2930, %v1179, 0.0
    %v3002 = vsel %vm2931, %v1181, 0.0
    %v3003 = vsel %vm2932, %v1183, 0.0
    %v3004 = vsel %vm2933, %v1185, 0.0
    %v3005 = vsel %vm2934, %v1187, 0.0
    %v3006 = vsel %vm2935, %v1189, 0.0
    %v3007 = vsel %vm2936, %v1191, 0.0
    %v3008 = vsel %vm2937, %v1193, 0.0
    %v3009 = vsel %vm2938, %v1195, 0.0
    %v3010 = vsel %vm2939, %v1197, 0.0
    %v3011 = vsel %vm2940, %v1199, 0.0
    %v3012 = vsel %vm2941, %v1201, 0.0
    %v3013 = vsel %vm2942, %v1203, 0.0
    %v3014 = vsel %vm2943, %v1205, 0.0
    %v3015 = vsel %vm2944, %v1207, 0.0
    %v3016 = vsel %vm2945, %v1209, 0.0
    %v3017 = vsel %vm2946, %v1211, 0.0
    %v3018 = vsel %vm2947, %v1213, 0.0
    %v3019 = vsel %vm2948, %v1215, 0.0
    %v3020 = vsel %vm2949, %v1217, 0.0
    %v3021 = vsel %vm2950, %v1219, 0.0
    %v3022 = vsel %vm2951, %v1221, 0.0
    %v3023 = vsel %vm2952, %v1223, 0.0
    %v3024 = vsel %vm2953, %v1225, 0.0
    %v3025 = vsel %vm2954, %v1227, 0.0
    %v3026 = vsel %vm2955, %v1229, 0.0
    %v3027 = vsel %vm2956, %v1231, 0.0
    %v3028 = vsel %vm2957, %v1233, 0.0
    %v3029 = vsel %vm2958, %v1235, 0.0
    %v3030 = vsel %vm2959, %v1237, 0.0
    %v3031 = vsel %vm2960, %v1239, 0.0
    %v3032 = vsel %vm2961, %v1241, 0.0
    %v3033 = vsel %vm2962, %v1243, 0.0
    %v3034 = vsel %vm2963, %v1245, 0.0
    %v3035 = vsel %vm2964, %v1247, 0.0
    %v3036 = vsel %vm2965, %v2969, 0.0
    %v3037 = vsel %vm2966, %v2971, 0.0
    %vm3038 = vmand %vm2647, %vm1375
    %vm3039 = vmand %vm2648, %vm1376
    %vm3040 = vmand %vm2649, %vm1377
    %vm3041 = vmand %vm2650, %vm1378
    %vm3042 = vmand %vm2651, %vm1379
    %vm3043 = vmand %vm2652, %vm1380
    %vm3044 = vmand %vm2653, %vm1381
    %vm3045 = vmand %vm2654, %vm1382
    %vm3046 = vmand %vm2655, %vm1383
    %vm3047 = vmand %vm2656, %vm1384
    %vm3048 = vmand %vm2657, %vm1385
    %vm3049 = vmand %vm2658, %vm1386
    %vm3050 = vmand %vm2659, %vm1387
    %vm3051 = vmand %vm2660, %vm1388
    %vm3052 = vmand %vm2661, %vm1389
    %vm3053 = vmand %vm2662, %vm1390
    %vm3054 = vmand %vm2663, %vm1391
    %vm3055 = vmand %vm2664, %vm1392
    %vm3056 = vmand %vm2665, %vm1393
    %vm3057 = vmand %vm2666, %vm1394
    %vm3058 = vmand %vm2667, %vm1395
    %vm3059 = vmand %vm2668, %vm1396
    %vm3060 = vmand %vm2669, %vm1397
    %vm3061 = vmand %vm2670, %vm1398
    %vm3062 = vmand %vm2671, %vm1399
    %vm3063 = vmand %vm2672, %vm1400
    %vm3064 = vmand %vm2673, %vm1401
    %vm3065 = vmand %vm2674, %vm1402
    %vm3066 = vmand %vm2675, %vm1403
    %vm3067 = vmand %vm2676, %vm1404
    %vm3068 = vmand %vm2677, %vm1405
    %vm3069 = vmand %vm2678, %vm1406
    %vm3070 = vmand %vm2679, %vm1407
    %vm3071 = vmand %vm2680, %vm1408
    %vm3072 = vmand %vm2681, %vm1409
    %vm3073 = vmand %vm2682, %vm1410
    %vm3074 = vmand %vm2683, %vm1411
    %vm3075 = vmand %vm2684, %vm1412
    %vm3076 = vmand %vm2685, %vm1413
    %vm3077 = vmand %vm2686, %vm1414
    %vm3078 = vmand %vm2687, %vm1415
    %vm3079 = vmand %vm2688, %vm1416
    %vm3080 = vmand %vm2689, %vm1417
    %vm3081 = vmand %vm2690, %vm1418
    %vm3082 = vmand %vm2691, %vm1419
    %vm3083 = vmand %vm2692, %vm1420
    %vm3084 = vmand %vm2693, %vm1421
    %vm3085 = vmand %vm2694, %vm1422
    %vm3086 = vmand %vm2695, %vm1423
    %vm3087 = vmand %vm2696, %vm1424
    %vm3088 = vmand %vm2697, %vm1425
    %vm3089 = vmand %vm2698, %vm1426
    %vm3090 = vmand %vm2699, %vm1427
    %vm3091 = vmand %vm2700, %vm1428
    %vm3092 = vmand %vm2701, %vm1429
    %vm3093 = vmand %vm2702, %vm1430
    %vm3094 = vmand %vm2703, %vm1431
    %vm3095 = vmand %vm2704, %vm1432
    %vm3096 = vmand %vm2705, %vm1433
    %vm3097 = vmand %vm2706, %vm1434
    %vm3098 = vmand %vm2707, %vm1435
    %vm3099 = vmand %vm2708, %vm1436
    %vm3100 = vmand %vm2709, %vm1437
    %vm3101 = vmand %vm2710, %vm1438
    %vm3102 = vmand %vm3038, %vm1501
    %vm3103 = vmand %vm3039, %vm1502
    %vm3104 = vmand %vm3040, %vm1503
    %vm3105 = vmand %vm3041, %vm1504
    %vm3106 = vmand %vm3042, %vm1505
    %vm3107 = vmand %vm3043, %vm1506
    %vm3108 = vmand %vm3044, %vm1507
    %vm3109 = vmand %vm3045, %vm1508
    %vm3110 = vmand %vm3046, %vm1509
    %vm3111 = vmand %vm3047, %vm1510
    %vm3112 = vmand %vm3048, %vm1511
    %vm3113 = vmand %vm3049, %vm1512
    %vm3114 = vmand %vm3050, %vm1513
    %vm3115 = vmand %vm3051, %vm1514
    %vm3116 = vmand %vm3052, %vm1515
    %vm3117 = vmand %vm3053, %vm1516
    %vm3118 = vmand %vm3054, %vm1517
    %vm3119 = vmand %vm3055, %vm1518
    %vm3120 = vmand %vm3056, %vm1519
    %vm3121 = vmand %vm3057, %vm1520
    %vm3122 = vmand %vm3058, %vm1521
    %vm3123 = vmand %vm3059, %vm1522
    %vm3124 = vmand %vm3060, %vm1523
    %vm3125 = vmand %vm3061, %vm1524
    %vm3126 = vmand %vm3062, %vm1525
    %vm3127 = vmand %vm3063, %vm1526
    %vm3128 = vmand %vm3064, %vm1527
    %vm3129 = vmand %vm3065, %vm1528
    %vm3130 = vmand %vm3066, %vm1529
    %vm3131 = vmand %vm3067, %vm1530
    %vm3132 = vmand %vm3068, %vm1531
    %vm3133 = vmand %vm3069, %vm1532
    %vm3134 = vmand %vm3070, %vm1533
    %vm3135 = vmand %vm3071, %vm1534
    %vm3136 = vmand %vm3072, %vm1535
    %vm3137 = vmand %vm3073, %vm1536
    %vm3138 = vmand %vm3074, %vm1537
    %vm3139 = vmand %vm3075, %vm1538
    %vm3140 = vmand %vm3076, %vm1539
    %vm3141 = vmand %vm3077, %vm1540
    %vm3142 = vmand %vm3078, %vm1541
    %vm3143 = vmand %vm3079, %vm1542
    %vm3144 = vmand %vm3080, %vm1543
    %vm3145 = vmand %vm3081, %vm1544
    %vm3146 = vmand %vm3082, %vm1545
    %vm3147 = vmand %vm3083, %vm1546
    %vm3148 = vmand %vm3084, %vm1547
    %vm3149 = vmand %vm3085, %vm1548
    %vm3150 = vmand %vm3086, %vm1549
    %vm3151 = vmand %vm3087, %vm1550
    %vm3152 = vmand %vm3088, %vm1551
    %vm3153 = vmand %vm3089, %vm1552
    %vm3154 = vmand %vm3090, %vm1553
    %vm3155 = vmand %vm3091, %vm1554
    %vm3156 = vmand %vm3092, %vm1555
    %vm3157 = vmand %vm3093, %vm1556
    %vm3158 = vmand %vm3094, %vm1557
    %vm3159 = vmand %vm3095, %vm1558
    %vm3160 = vmand %vm3096, %vm1559
    %vm3161 = vmand %vm3097, %vm1560
    %vm3162 = vmand %vm3098, %vm1561
    %vm3163 = vmand %vm3099, %vm1562
    %vm3164 = vmand %vm3100, %vm1563
    %vm3165 = vmand %vm3101, %vm1564
    %v3166 = vsel %vm3102, 1, 0
    %v3167 = vsel %vm3103, 1, 0
    %v3168 = vsel %vm3104, 1, 0
    %v3169 = vsel %vm3105, 1, 0
    %v3170 = vsel %vm3106, 1, 0
    %v3171 = vsel %vm3107, 1, 0
    %v3172 = vsel %vm3108, 1, 0
    %v3173 = vsel %vm3109, 1, 0
    %v3174 = vsel %vm3110, 1, 0
    %v3175 = vsel %vm3111, 1, 0
    %v3176 = vsel %vm3112, 1, 0
    %v3177 = vsel %vm3113, 1, 0
    %v3178 = vsel %vm3114, 1, 0
    %v3179 = vsel %vm3115, 1, 0
    %v3180 = vsel %vm3116, 1, 0
    %v3181 = vsel %vm3117, 1, 0
    %v3182 = vsel %vm3118, 1, 0
    %v3183 = vsel %vm3119, 1, 0
    %v3184 = vsel %vm3120, 1, 0
    %v3185 = vsel %vm3121, 1, 0
    %v3186 = vsel %vm3122, 1, 0
    %v3187 = vsel %vm3123, 1, 0
    %v3188 = vsel %vm3124, 1, 0
    %v3189 = vsel %vm3125, 1, 0
    %v3190 = vsel %vm3126, 1, 0
    %v3191 = vsel %vm3127, 1, 0
    %v3192 = vsel %vm3128, 1, 0
    %v3193 = vsel %vm3129, 1, 0
    %v3194 = vsel %vm3130, 1, 0
    %v3195 = vsel %vm3131, 1, 0
    %v3196 = vsel %vm3132, 1, 0
    %v3197 = vsel %vm3133, 1, 0
    %v3198 = vsel %vm3134, 1, 0
    %v3199 = vsel %vm3135, 1, 0
    %v3200 = vsel %vm3136, 1, 0
    %v3201 = vsel %vm3137, 1, 0
    %v3202 = vsel %vm3138, 1, 0
    %v3203 = vsel %vm3139, 1, 0
    %v3204 = vsel %vm3140, 1, 0
    %v3205 = vsel %vm3141, 1, 0
    %v3206 = vsel %vm3142, 1, 0
    %v3207 = vsel %vm3143, 1, 0
    %v3208 = vsel %vm3144, 1, 0
    %v3209 = vsel %vm3145, 1, 0
    %v3210 = vsel %vm3146, 1, 0
    %v3211 = vsel %vm3147, 1, 0
    %v3212 = vsel %vm3148, 1, 0
    %v3213 = vsel %vm3149, 1, 0
    %v3214 = vsel %vm3150, 1, 0
    %v3215 = vsel %vm3151, 1, 0
    %v3216 = vsel %vm3152, 1, 0
    %v3217 = vsel %vm3153, 1, 0
    %v3218 = vsel %vm3154, 1, 0
    %v3219 = vsel %vm3155, 1, 0
    %v3220 = vsel %vm3156, 1, 0
    %v3221 = vsel %vm3157, 1, 0
    %v3222 = vsel %vm3158, 1, 0
    %v3223 = vsel %vm3159, 1, 0
    %v3224 = vsel %vm3160, 1, 0
    %v3225 = vsel %vm3161, 1, 0
    %v3226 = vsel %vm3162, 1, 0
    %v3227 = vsel %vm3163, 1, 0
    %v3228 = vsel %vm3164, 1, 0
    %v3229 = vsel %vm3165, 1, 0
    %vm3230 = vcmp.eq.s32.totalorder %v3166, 1
    %vm3231 = vcmp.eq.s32.totalorder %v3167, 1
    %vm3232 = vcmp.eq.s32.totalorder %v3168, 1
    %vm3233 = vcmp.eq.s32.totalorder %v3169, 1
    %vm3234 = vcmp.eq.s32.totalorder %v3170, 1
    %vm3235 = vcmp.eq.s32.totalorder %v3171, 1
    %vm3236 = vcmp.eq.s32.totalorder %v3172, 1
    %vm3237 = vcmp.eq.s32.totalorder %v3173, 1
    %vm3238 = vcmp.eq.s32.totalorder %v3174, 1
    %vm3239 = vcmp.eq.s32.totalorder %v3175, 1
    %vm3240 = vcmp.eq.s32.totalorder %v3176, 1
    %vm3241 = vcmp.eq.s32.totalorder %v3177, 1
    %vm3242 = vcmp.eq.s32.totalorder %v3178, 1
    %vm3243 = vcmp.eq.s32.totalorder %v3179, 1
    %vm3244 = vcmp.eq.s32.totalorder %v3180, 1
    %vm3245 = vcmp.eq.s32.totalorder %v3181, 1
    %vm3246 = vcmp.eq.s32.totalorder %v3182, 1
    %vm3247 = vcmp.eq.s32.totalorder %v3183, 1
    %vm3248 = vcmp.eq.s32.totalorder %v3184, 1
    %vm3249 = vcmp.eq.s32.totalorder %v3185, 1
    %vm3250 = vcmp.eq.s32.totalorder %v3186, 1
    %vm3251 = vcmp.eq.s32.totalorder %v3187, 1
    %vm3252 = vcmp.eq.s32.totalorder %v3188, 1
    %vm3253 = vcmp.eq.s32.totalorder %v3189, 1
    %vm3254 = vcmp.eq.s32.totalorder %v3190, 1
    %vm3255 = vcmp.eq.s32.totalorder %v3191, 1
    %vm3256 = vcmp.eq.s32.totalorder %v3192, 1
    %vm3257 = vcmp.eq.s32.totalorder %v3193, 1
    %vm3258 = vcmp.eq.s32.totalorder %v3194, 1
    %vm3259 = vcmp.eq.s32.totalorder %v3195, 1
    %vm3260 = vcmp.eq.s32.totalorder %v3196, 1
    %vm3261 = vcmp.eq.s32.totalorder %v3197, 1
    %vm3262 = vcmp.eq.s32.totalorder %v3198, 1
    %vm3263 = vcmp.eq.s32.totalorder %v3199, 1
    %vm3264 = vcmp.eq.s32.totalorder %v3200, 1
    %vm3265 = vcmp.eq.s32.totalorder %v3201, 1
    %vm3266 = vcmp.eq.s32.totalorder %v3202, 1
    %vm3267 = vcmp.eq.s32.totalorder %v3203, 1
    %vm3268 = vcmp.eq.s32.totalorder %v3204, 1
    %vm3269 = vcmp.eq.s32.totalorder %v3205, 1
    %vm3270 = vcmp.eq.s32.totalorder %v3206, 1
    %vm3271 = vcmp.eq.s32.totalorder %v3207, 1
    %vm3272 = vcmp.eq.s32.totalorder %v3208, 1
    %vm3273 = vcmp.eq.s32.totalorder %v3209, 1
    %vm3274 = vcmp.eq.s32.totalorder %v3210, 1
    %vm3275 = vcmp.eq.s32.totalorder %v3211, 1
    %vm3276 = vcmp.eq.s32.totalorder %v3212, 1
    %vm3277 = vcmp.eq.s32.totalorder %v3213, 1
    %vm3278 = vcmp.eq.s32.totalorder %v3214, 1
    %vm3279 = vcmp.eq.s32.totalorder %v3215, 1
    %vm3280 = vcmp.eq.s32.totalorder %v3216, 1
    %vm3281 = vcmp.eq.s32.totalorder %v3217, 1
    %vm3282 = vcmp.eq.s32.totalorder %v3218, 1
    %vm3283 = vcmp.eq.s32.totalorder %v3219, 1
    %vm3284 = vcmp.eq.s32.totalorder %v3220, 1
    %vm3285 = vcmp.eq.s32.totalorder %v3221, 1
    %vm3286 = vcmp.eq.s32.totalorder %v3222, 1
    %vm3287 = vcmp.eq.s32.totalorder %v3223, 1
    %vm3288 = vcmp.eq.s32.totalorder %v3224, 1
    %vm3289 = vcmp.eq.s32.totalorder %v3225, 1
    %vm3290 = vcmp.eq.s32.totalorder %v3226, 1
    %vm3291 = vcmp.eq.s32.totalorder %v3227, 1
    %vm3292 = vcmp.eq.s32.totalorder %v3228, 1
    %vm3293 = vcmp.eq.s32.totalorder %v3229, 1
    %v3294 = vsel %vm3230, %v33, 0.0
    %v3295 = vsel %vm3231, %v34, 0.0
    %v3296 = vsel %vm3232, %v35, 0.0
    %v3297 = vsel %vm3233, %v36, 0.0
    %v3298 = vsel %vm3234, %v37, 0.0
    %v3299 = vsel %vm3235, %v38, 0.0
    %v3300 = vsel %vm3236, %v39, 0.0
    %v3301 = vsel %vm3237, %v40, 0.0
    %v3302 = vsel %vm3238, %v41, 0.0
    %v3303 = vsel %vm3239, %v42, 0.0
    %v3304 = vsel %vm3240, %v43, 0.0
    %v3305 = vsel %vm3241, %v44, 0.0
    %v3306 = vsel %vm3242, %v45, 0.0
    %v3307 = vsel %vm3243, %v46, 0.0
    %v3308 = vsel %vm3244, %v47, 0.0
    %v3309 = vsel %vm3245, %v48, 0.0
    %v3310 = vsel %vm3246, %v49, 0.0
    %v3311 = vsel %vm3247, %v50, 0.0
    %v3312 = vsel %vm3248, %v51, 0.0
    %v3313 = vsel %vm3249, %v52, 0.0
    %v3314 = vsel %vm3250, %v53, 0.0
    %v3315 = vsel %vm3251, %v54, 0.0
    %v3316 = vsel %vm3252, %v55, 0.0
    %v3317 = vsel %vm3253, %v56, 0.0
    %v3318 = vsel %vm3254, %v57, 0.0
    %v3319 = vsel %vm3255, %v58, 0.0
    %v3320 = vsel %vm3256, %v59, 0.0
    %v3321 = vsel %vm3257, %v60, 0.0
    %v3322 = vsel %vm3258, %v61, 0.0
    %v3323 = vsel %vm3259, %v62, 0.0
    %v3324 = vsel %vm3260, %v63, 0.0
    %v3325 = vsel %vm3261, %v64, 0.0
    %v3326 = vsel %vm3262, %v65, 0.0
    %v3327 = vsel %vm3263, %v66, 0.0
    %v3328 = vsel %vm3264, %v67, 0.0
    %v3329 = vsel %vm3265, %v68, 0.0
    %v3330 = vsel %vm3266, %v69, 0.0
    %v3331 = vsel %vm3267, %v70, 0.0
    %v3332 = vsel %vm3268, %v71, 0.0
    %v3333 = vsel %vm3269, %v72, 0.0
    %v3334 = vsel %vm3270, %v73, 0.0
    %v3335 = vsel %vm3271, %v74, 0.0
    %v3336 = vsel %vm3272, %v75, 0.0
    %v3337 = vsel %vm3273, %v76, 0.0
    %v3338 = vsel %vm3274, %v77, 0.0
    %v3339 = vsel %vm3275, %v78, 0.0
    %v3340 = vsel %vm3276, %v79, 0.0
    %v3341 = vsel %vm3277, %v80, 0.0
    %v3342 = vsel %vm3278, %v81, 0.0
    %v3343 = vsel %vm3279, %v82, 0.0
    %v3344 = vsel %vm3280, %v83, 0.0
    %v3345 = vsel %vm3281, %v84, 0.0
    %v3346 = vsel %vm3282, %v85, 0.0
    %v3347 = vsel %vm3283, %v86, 0.0
    %v3348 = vsel %vm3284, %v87, 0.0
    %v3349 = vsel %vm3285, %v88, 0.0
    %v3350 = vsel %vm3286, %v89, 0.0
    %v3351 = vsel %vm3287, %v90, 0.0
    %v3352 = vsel %vm3288, %v91, 0.0
    %v3353 = vsel %vm3289, %v92, 0.0
    %v3354 = vsel %vm3290, %v93, 0.0
    %v3355 = vsel %vm3291, %v94, 0.0
    %v3356 = vsel %vm3292, %v95, 0.0
    %v3357 = vsel %vm3293, %v96, 0.0
    %vm3358 = vmand %vm2647, %vm1877
    %vm3359 = vmand %vm2648, %vm1878
    %vm3360 = vmand %vm2649, %vm1879
    %vm3361 = vmand %vm2650, %vm1880
    %vm3362 = vmand %vm2651, %vm1881
    %vm3363 = vmand %vm2652, %vm1882
    %vm3364 = vmand %vm2653, %vm1883
    %vm3365 = vmand %vm2654, %vm1884
    %vm3366 = vmand %vm2655, %vm1885
    %vm3367 = vmand %vm2656, %vm1886
    %vm3368 = vmand %vm2657, %vm1887
    %vm3369 = vmand %vm2658, %vm1888
    %vm3370 = vmand %vm2659, %vm1889
    %vm3371 = vmand %vm2660, %vm1890
    %vm3372 = vmand %vm2661, %vm1891
    %vm3373 = vmand %vm2662, %vm1892
    %vm3374 = vmand %vm2663, %vm1893
    %vm3375 = vmand %vm2664, %vm1894
    %vm3376 = vmand %vm2665, %vm1895
    %vm3377 = vmand %vm2666, %vm1896
    %vm3378 = vmand %vm2667, %vm1897
    %vm3379 = vmand %vm2668, %vm1898
    %vm3380 = vmand %vm2669, %vm1899
    %vm3381 = vmand %vm2670, %vm1900
    %vm3382 = vmand %vm2671, %vm1901
    %vm3383 = vmand %vm2672, %vm1902
    %vm3384 = vmand %vm2673, %vm1903
    %vm3385 = vmand %vm2674, %vm1904
    %vm3386 = vmand %vm2675, %vm1905
    %vm3387 = vmand %vm2676, %vm1906
    %vm3388 = vmand %vm2677, %vm1907
    %vm3389 = vmand %vm2678, %vm1908
    %vm3390 = vmand %vm2679, %vm1909
    %vm3391 = vmand %vm2680, %vm1910
    %vm3392 = vmand %vm2681, %vm1911
    %vm3393 = vmand %vm2682, %vm1912
    %vm3394 = vmand %vm2683, %vm1913
    %vm3395 = vmand %vm2684, %vm1914
    %vm3396 = vmand %vm2685, %vm1915
    %vm3397 = vmand %vm2686, %vm1916
    %vm3398 = vmand %vm2687, %vm1917
    %vm3399 = vmand %vm2688, %vm1918
    %vm3400 = vmand %vm2689, %vm1919
    %vm3401 = vmand %vm2690, %vm1920
    %vm3402 = vmand %vm2691, %vm1921
    %vm3403 = vmand %vm2692, %vm1922
    %vm3404 = vmand %vm2693, %vm1923
    %vm3405 = vmand %vm2694, %vm1924
    %vm3406 = vmand %vm2695, %vm1925
    %vm3407 = vmand %vm2696, %vm1926
    %vm3408 = vmand %vm2697, %vm1927
    %vm3409 = vmand %vm2698, %vm1928
    %vm3410 = vmand %vm2699, %vm1929
    %vm3411 = vmand %vm2700, %vm1930
    %vm3412 = vmand %vm2701, %vm1931
    %vm3413 = vmand %vm2702, %vm1932
    %vm3414 = vmand %vm2703, %vm1933
    %vm3415 = vmand %vm2704, %vm1934
    %vm3416 = vmand %vm2705, %vm1935
    %vm3417 = vmand %vm2706, %vm1936
    %vm3418 = vmand %vm2707, %vm1937
    %vm3419 = vmand %vm2708, %vm1938
    %vm3420 = vmand %vm2709, %vm1939
    %vm3421 = vmand %vm2710, %vm1940
    %vm3422 = vmand %vm3358, %vm2005
    %vm3423 = vmand %vm3359, %vm2006
    %vm3424 = vmand %vm3360, %vm2007
    %vm3425 = vmand %vm3361, %vm2008
    %vm3426 = vmand %vm3362, %vm2009
    %vm3427 = vmand %vm3363, %vm2010
    %vm3428 = vmand %vm3364, %vm2011
    %vm3429 = vmand %vm3365, %vm2012
    %vm3430 = vmand %vm3366, %vm2013
    %vm3431 = vmand %vm3367, %vm2014
    %vm3432 = vmand %vm3368, %vm2015
    %vm3433 = vmand %vm3369, %vm2016
    %vm3434 = vmand %vm3370, %vm2017
    %vm3435 = vmand %vm3371, %vm2018
    %vm3436 = vmand %vm3372, %vm2019
    %vm3437 = vmand %vm3373, %vm2020
    %vm3438 = vmand %vm3374, %vm2021
    %vm3439 = vmand %vm3375, %vm2022
    %vm3440 = vmand %vm3376, %vm2023
    %vm3441 = vmand %vm3377, %vm2024
    %vm3442 = vmand %vm3378, %vm2025
    %vm3443 = vmand %vm3379, %vm2026
    %vm3444 = vmand %vm3380, %vm2027
    %vm3445 = vmand %vm3381, %vm2028
    %vm3446 = vmand %vm3382, %vm2029
    %vm3447 = vmand %vm3383, %vm2030
    %vm3448 = vmand %vm3384, %vm2031
    %vm3449 = vmand %vm3385, %vm2032
    %vm3450 = vmand %vm3386, %vm2033
    %vm3451 = vmand %vm3387, %vm2034
    %vm3452 = vmand %vm3388, %vm2035
    %vm3453 = vmand %vm3389, %vm2036
    %vm3454 = vmand %vm3390, %vm2037
    %vm3455 = vmand %vm3391, %vm2038
    %vm3456 = vmand %vm3392, %vm2039
    %vm3457 = vmand %vm3393, %vm2040
    %vm3458 = vmand %vm3394, %vm2041
    %vm3459 = vmand %vm3395, %vm2042
    %vm3460 = vmand %vm3396, %vm2043
    %vm3461 = vmand %vm3397, %vm2044
    %vm3462 = vmand %vm3398, %vm2045
    %vm3463 = vmand %vm3399, %vm2046
    %vm3464 = vmand %vm3400, %vm2047
    %vm3465 = vmand %vm3401, %vm2048
    %vm3466 = vmand %vm3402, %vm2049
    %vm3467 = vmand %vm3403, %vm2050
    %vm3468 = vmand %vm3404, %vm2051
    %vm3469 = vmand %vm3405, %vm2052
    %vm3470 = vmand %vm3406, %vm2053
    %vm3471 = vmand %vm3407, %vm2054
    %vm3472 = vmand %vm3408, %vm2055
    %vm3473 = vmand %vm3409, %vm2056
    %vm3474 = vmand %vm3410, %vm2057
    %vm3475 = vmand %vm3411, %vm2058
    %vm3476 = vmand %vm3412, %vm2059
    %vm3477 = vmand %vm3413, %vm2060
    %vm3478 = vmand %vm3414, %vm2061
    %vm3479 = vmand %vm3415, %vm2062
    %vm3480 = vmand %vm3416, %vm2063
    %vm3481 = vmand %vm3417, %vm2064
    %vm3482 = vmand %vm3418, %vm2065
    %vm3483 = vmand %vm3419, %vm2066
    %vm3484 = vmand %vm3420, %vm2067
    %vm3485 = vmand %vm3421, %vm2068
    %v3486 = vsel %vm3422, 1, 0
    %v3487 = vsel %vm3423, 1, 0
    %v3488 = vsel %vm3424, 1, 0
    %v3489 = vsel %vm3425, 1, 0
    %v3490 = vsel %vm3426, 1, 0
    %v3491 = vsel %vm3427, 1, 0
    %v3492 = vsel %vm3428, 1, 0
    %v3493 = vsel %vm3429, 1, 0
    %v3494 = vsel %vm3430, 1, 0
    %v3495 = vsel %vm3431, 1, 0
    %v3496 = vsel %vm3432, 1, 0
    %v3497 = vsel %vm3433, 1, 0
    %v3498 = vsel %vm3434, 1, 0
    %v3499 = vsel %vm3435, 1, 0
    %v3500 = vsel %vm3436, 1, 0
    %v3501 = vsel %vm3437, 1, 0
    %v3502 = vsel %vm3438, 1, 0
    %v3503 = vsel %vm3439, 1, 0
    %v3504 = vsel %vm3440, 1, 0
    %v3505 = vsel %vm3441, 1, 0
    %v3506 = vsel %vm3442, 1, 0
    %v3507 = vsel %vm3443, 1, 0
    %v3508 = vsel %vm3444, 1, 0
    %v3509 = vsel %vm3445, 1, 0
    %v3510 = vsel %vm3446, 1, 0
    %v3511 = vsel %vm3447, 1, 0
    %v3512 = vsel %vm3448, 1, 0
    %v3513 = vsel %vm3449, 1, 0
    %v3514 = vsel %vm3450, 1, 0
    %v3515 = vsel %vm3451, 1, 0
    %v3516 = vsel %vm3452, 1, 0
    %v3517 = vsel %vm3453, 1, 0
    %v3518 = vsel %vm3454, 1, 0
    %v3519 = vsel %vm3455, 1, 0
    %v3520 = vsel %vm3456, 1, 0
    %v3521 = vsel %vm3457, 1, 0
    %v3522 = vsel %vm3458, 1, 0
    %v3523 = vsel %vm3459, 1, 0
    %v3524 = vsel %vm3460, 1, 0
    %v3525 = vsel %vm3461, 1, 0
    %v3526 = vsel %vm3462, 1, 0
    %v3527 = vsel %vm3463, 1, 0
    %v3528 = vsel %vm3464, 1, 0
    %v3529 = vsel %vm3465, 1, 0
    %v3530 = vsel %vm3466, 1, 0
    %v3531 = vsel %vm3467, 1, 0
    %v3532 = vsel %vm3468, 1, 0
    %v3533 = vsel %vm3469, 1, 0
    %v3534 = vsel %vm3470, 1, 0
    %v3535 = vsel %vm3471, 1, 0
    %v3536 = vsel %vm3472, 1, 0
    %v3537 = vsel %vm3473, 1, 0
    %v3538 = vsel %vm3474, 1, 0
    %v3539 = vsel %vm3475, 1, 0
    %v3540 = vsel %vm3476, 1, 0
    %v3541 = vsel %vm3477, 1, 0
    %v3542 = vsel %vm3478, 1, 0
    %v3543 = vsel %vm3479, 1, 0
    %v3544 = vsel %vm3480, 1, 0
    %v3545 = vsel %vm3481, 1, 0
    %v3546 = vsel %vm3482, 1, 0
    %v3547 = vsel %vm3483, 1, 0
    %v3548 = vsel %vm3484, 1, 0
    %v3549 = vsel %vm3485, 1, 0
    %vm3550 = vcmp.eq.s32.totalorder %v3486, 1
    %vm3551 = vcmp.eq.s32.totalorder %v3487, 1
    %vm3552 = vcmp.eq.s32.totalorder %v3488, 1
    %vm3553 = vcmp.eq.s32.totalorder %v3489, 1
    %vm3554 = vcmp.eq.s32.totalorder %v3490, 1
    %vm3555 = vcmp.eq.s32.totalorder %v3491, 1
    %vm3556 = vcmp.eq.s32.totalorder %v3492, 1
    %vm3557 = vcmp.eq.s32.totalorder %v3493, 1
    %vm3558 = vcmp.eq.s32.totalorder %v3494, 1
    %vm3559 = vcmp.eq.s32.totalorder %v3495, 1
    %vm3560 = vcmp.eq.s32.totalorder %v3496, 1
    %vm3561 = vcmp.eq.s32.totalorder %v3497, 1
    %vm3562 = vcmp.eq.s32.totalorder %v3498, 1
    %vm3563 = vcmp.eq.s32.totalorder %v3499, 1
    %vm3564 = vcmp.eq.s32.totalorder %v3500, 1
    %vm3565 = vcmp.eq.s32.totalorder %v3501, 1
    %vm3566 = vcmp.eq.s32.totalorder %v3502, 1
    %vm3567 = vcmp.eq.s32.totalorder %v3503, 1
    %vm3568 = vcmp.eq.s32.totalorder %v3504, 1
    %vm3569 = vcmp.eq.s32.totalorder %v3505, 1
    %vm3570 = vcmp.eq.s32.totalorder %v3506, 1
    %vm3571 = vcmp.eq.s32.totalorder %v3507, 1
    %vm3572 = vcmp.eq.s32.totalorder %v3508, 1
    %vm3573 = vcmp.eq.s32.totalorder %v3509, 1
    %vm3574 = vcmp.eq.s32.totalorder %v3510, 1
    %vm3575 = vcmp.eq.s32.totalorder %v3511, 1
    %vm3576 = vcmp.eq.s32.totalorder %v3512, 1
    %vm3577 = vcmp.eq.s32.totalorder %v3513, 1
    %vm3578 = vcmp.eq.s32.totalorder %v3514, 1
    %vm3579 = vcmp.eq.s32.totalorder %v3515, 1
    %vm3580 = vcmp.eq.s32.totalorder %v3516, 1
    %vm3581 = vcmp.eq.s32.totalorder %v3517, 1
    %vm3582 = vcmp.eq.s32.totalorder %v3518, 1
    %vm3583 = vcmp.eq.s32.totalorder %v3519, 1
    %vm3584 = vcmp.eq.s32.totalorder %v3520, 1
    %vm3585 = vcmp.eq.s32.totalorder %v3521, 1
    %vm3586 = vcmp.eq.s32.totalorder %v3522, 1
    %vm3587 = vcmp.eq.s32.totalorder %v3523, 1
    %vm3588 = vcmp.eq.s32.totalorder %v3524, 1
    %vm3589 = vcmp.eq.s32.totalorder %v3525, 1
    %vm3590 = vcmp.eq.s32.totalorder %v3526, 1
    %vm3591 = vcmp.eq.s32.totalorder %v3527, 1
    %vm3592 = vcmp.eq.s32.totalorder %v3528, 1
    %vm3593 = vcmp.eq.s32.totalorder %v3529, 1
    %vm3594 = vcmp.eq.s32.totalorder %v3530, 1
    %vm3595 = vcmp.eq.s32.totalorder %v3531, 1
    %vm3596 = vcmp.eq.s32.totalorder %v3532, 1
    %vm3597 = vcmp.eq.s32.totalorder %v3533, 1
    %vm3598 = vcmp.eq.s32.totalorder %v3534, 1
    %vm3599 = vcmp.eq.s32.totalorder %v3535, 1
    %vm3600 = vcmp.eq.s32.totalorder %v3536, 1
    %vm3601 = vcmp.eq.s32.totalorder %v3537, 1
    %vm3602 = vcmp.eq.s32.totalorder %v3538, 1
    %vm3603 = vcmp.eq.s32.totalorder %v3539, 1
    %vm3604 = vcmp.eq.s32.totalorder %v3540, 1
    %vm3605 = vcmp.eq.s32.totalorder %v3541, 1
    %vm3606 = vcmp.eq.s32.totalorder %v3542, 1
    %vm3607 = vcmp.eq.s32.totalorder %v3543, 1
    %vm3608 = vcmp.eq.s32.totalorder %v3544, 1
    %vm3609 = vcmp.eq.s32.totalorder %v3545, 1
    %vm3610 = vcmp.eq.s32.totalorder %v3546, 1
    %vm3611 = vcmp.eq.s32.totalorder %v3547, 1
    %vm3612 = vcmp.eq.s32.totalorder %v3548, 1
    %vm3613 = vcmp.eq.s32.totalorder %v3549, 1
    %v3614 = vrot.slane %v96, 1
    %v3615 = vsel %vm2262, %v2389, %v3614
    %v3616 = vsel %vm2262, %v3614, %v2263
    %v3619 = vsel %vm3550, %v2268, 0.0
    %v3620 = vsel %vm3551, %v2270, 0.0
    %v3621 = vsel %vm3552, %v2272, 0.0
    %v3622 = vsel %vm3553, %v2274, 0.0
    %v3623 = vsel %vm3554, %v2276, 0.0
    %v3624 = vsel %vm3555, %v2278, 0.0
    %v3625 = vsel %vm3556, %v2280, 0.0
    %v3626 = vsel %vm3557, %v2282, 0.0
    %v3627 = vsel %vm3558, %v2284, 0.0
    %v3628 = vsel %vm3559, %v2286, 0.0
    %v3629 = vsel %vm3560, %v2288, 0.0
    %v3630 = vsel %vm3561, %v2290, 0.0
    %v3631 = vsel %vm3562, %v2292, 0.0
    %v3632 = vsel %vm3563, %v2294, 0.0
    %v3633 = vsel %vm3564, %v2296, 0.0
    %v3634 = vsel %vm3565, %v2298, 0.0
    %v3635 = vsel %vm3566, %v2300, 0.0
    %v3636 = vsel %vm3567, %v2302, 0.0
    %v3637 = vsel %vm3568, %v2304, 0.0
    %v3638 = vsel %vm3569, %v2306, 0.0
    %v3639 = vsel %vm3570, %v2308, 0.0
    %v3640 = vsel %vm3571, %v2310, 0.0
    %v3641 = vsel %vm3572, %v2312, 0.0
    %v3642 = vsel %vm3573, %v2314, 0.0
    %v3643 = vsel %vm3574, %v2316, 0.0
    %v3644 = vsel %vm3575, %v2318, 0.0
    %v3645 = vsel %vm3576, %v2320, 0.0
    %v3646 = vsel %vm3577, %v2322, 0.0
    %v3647 = vsel %vm3578, %v2324, 0.0
    %v3648 = vsel %vm3579, %v2326, 0.0
    %v3649 = vsel %vm3580, %v2328, 0.0
    %v3650 = vsel %vm3581, %v2330, 0.0
    %v3651 = vsel %vm3582, %v2332, 0.0
    %v3652 = vsel %vm3583, %v2334, 0.0
    %v3653 = vsel %vm3584, %v2336, 0.0
    %v3654 = vsel %vm3585, %v2338, 0.0
    %v3655 = vsel %vm3586, %v2340, 0.0
    %v3656 = vsel %vm3587, %v2342, 0.0
    %v3657 = vsel %vm3588, %v2344, 0.0
    %v3658 = vsel %vm3589, %v2346, 0.0
    %v3659 = vsel %vm3590, %v2348, 0.0
    %v3660 = vsel %vm3591, %v2350, 0.0
    %v3661 = vsel %vm3592, %v2352, 0.0
    %v3662 = vsel %vm3593, %v2354, 0.0
    %v3663 = vsel %vm3594, %v2356, 0.0
    %v3664 = vsel %vm3595, %v2358, 0.0
    %v3665 = vsel %vm3596, %v2360, 0.0
    %v3666 = vsel %vm3597, %v2362, 0.0
    %v3667 = vsel %vm3598, %v2364, 0.0
    %v3668 = vsel %vm3599, %v2366, 0.0
    %v3669 = vsel %vm3600, %v2368, 0.0
    %v3670 = vsel %vm3601, %v2370, 0.0
    %v3671 = vsel %vm3602, %v2372, 0.0
    %v3672 = vsel %vm3603, %v2374, 0.0
    %v3673 = vsel %vm3604, %v2376, 0.0
    %v3674 = vsel %vm3605, %v2378, 0.0
    %v3675 = vsel %vm3606, %v2380, 0.0
    %v3676 = vsel %vm3607, %v2382, 0.0
    %v3677 = vsel %vm3608, %v2384, 0.0
    %v3678 = vsel %vm3609, %v2386, 0.0
    %v3679 = vsel %vm3610, %v2388, 0.0
    %v3680 = vsel %vm3611, %v2390, 0.0
    %v3681 = vsel %vm3612, %v3615, 0.0
    %v3682 = vsel %vm3613, %v3616, 0.0
    %v3683 = vadd.s32 %v290, 1
    %v3684 = vadd.s32 %v291, 1
    %v3685 = vadd.s32 %v292, 1
    %v3686 = vadd.s32 %v293, 1
    %v3687 = vadd.s32 %v294, 1
    %v3688 = vadd.s32 %v295, 1
    %v3689 = vadd.s32 %v296, 1
    %v3690 = vadd.s32 %v297, 1
    %v3691 = vadd.s32 %v298, 1
    %v3692 = vadd.s32 %v299, 1
    %v3693 = vadd.s32 %v300, 1
    %v3694 = vadd.s32 %v301, 1
    %v3695 = vadd.s32 %v302, 1
    %v3696 = vadd.s32 %v303, 1
    %v3697 = vadd.s32 %v304, 1
    %v3698 = vadd.s32 %v305, 1
    %v3699 = vadd.s32 %v306, 1
    %v3700 = vadd.s32 %v307, 1
    %v3701 = vadd.s32 %v308, 1
    %v3702 = vadd.s32 %v309, 1
    %v3703 = vadd.s32 %v310, 1
    %v3704 = vadd.s32 %v311, 1
    %v3705 = vadd.s32 %v312, 1
    %v3706 = vadd.s32 %v313, 1
    %v3707 = vadd.s32 %v314, 1
    %v3708 = vadd.s32 %v315, 1
    %v3709 = vadd.s32 %v316, 1
    %v3710 = vadd.s32 %v317, 1
    %v3711 = vadd.s32 %v318, 1
    %v3712 = vadd.s32 %v319, 1
    %v3713 = vadd.s32 %v320, 1
    %v3714 = vadd.s32 %v321, 1
    %v3715 = vadd.s32 %v322, 1
    %v3716 = vadd.s32 %v323, 1
    %v3717 = vadd.s32 %v324, 1
    %v3718 = vadd.s32 %v325, 1
    %v3719 = vadd.s32 %v326, 1
    %v3720 = vadd.s32 %v327, 1
    %v3721 = vadd.s32 %v328, 1
    %v3722 = vadd.s32 %v329, 1
    %v3723 = vadd.s32 %v330, 1
    %v3724 = vadd.s32 %v331, 1
    %v3725 = vadd.s32 %v332, 1
    %v3726 = vadd.s32 %v333, 1
    %v3727 = vadd.s32 %v334, 1
    %v3728 = vadd.s32 %v335, 1
    %v3729 = vadd.s32 %v336, 1
    %v3730 = vadd.s32 %v337, 1
    %v3731 = vadd.s32 %v338, 1
    %v3732 = vadd.s32 %v339, 1
    %v3733 = vadd.s32 %v340, 1
    %v3734 = vadd.s32 %v341, 1
    %v3735 = vadd.s32 %v342, 1
    %v3736 = vadd.s32 %v343, 1
    %v3737 = vadd.s32 %v344, 1
    %v3738 = vadd.s32 %v345, 1
    %v3739 = vadd.s32 %v346, 1
    %v3740 = vadd.s32 %v347, 1
    %v3741 = vadd.s32 %v348, 1
    %v3742 = vadd.s32 %v349, 1
    %v3743 = vadd.s32 %v350, 1
    %v3744 = vadd.s32 %v351, 1
    %v3745 = vadd.s32 %v352, 1
    %v3746 = vadd.s32 %v353, 1
    %vm3747 = vcmp.ge.s32.totalorder %v3683, 0
    %vm3748 = vcmp.ge.s32.totalorder %v3684, 0
    %vm3749 = vcmp.ge.s32.totalorder %v3685, 0
    %vm3750 = vcmp.ge.s32.totalorder %v3686, 0
    %vm3751 = vcmp.ge.s32.totalorder %v3687, 0
    %vm3752 = vcmp.ge.s32.totalorder %v3688, 0
    %vm3753 = vcmp.ge.s32.totalorder %v3689, 0
    %vm3754 = vcmp.ge.s32.totalorder %v3690, 0
    %vm3755 = vcmp.ge.s32.totalorder %v3691, 0
    %vm3756 = vcmp.ge.s32.totalorder %v3692, 0
    %vm3757 = vcmp.ge.s32.totalorder %v3693, 0
    %vm3758 = vcmp.ge.s32.totalorder %v3694, 0
    %vm3759 = vcmp.ge.s32.totalorder %v3695, 0
    %vm3760 = vcmp.ge.s32.totalorder %v3696, 0
    %vm3761 = vcmp.ge.s32.totalorder %v3697, 0
    %vm3762 = vcmp.ge.s32.totalorder %v3698, 0
    %vm3763 = vcmp.ge.s32.totalorder %v3699, 0
    %vm3764 = vcmp.ge.s32.totalorder %v3700, 0
    %vm3765 = vcmp.ge.s32.totalorder %v3701, 0
    %vm3766 = vcmp.ge.s32.totalorder %v3702, 0
    %vm3767 = vcmp.ge.s32.totalorder %v3703, 0
    %vm3768 = vcmp.ge.s32.totalorder %v3704, 0
    %vm3769 = vcmp.ge.s32.totalorder %v3705, 0
    %vm3770 = vcmp.ge.s32.totalorder %v3706, 0
    %vm3771 = vcmp.ge.s32.totalorder %v3707, 0
    %vm3772 = vcmp.ge.s32.totalorder %v3708, 0
    %vm3773 = vcmp.ge.s32.totalorder %v3709, 0
    %vm3774 = vcmp.ge.s32.totalorder %v3710, 0
    %vm3775 = vcmp.ge.s32.totalorder %v3711, 0
    %vm3776 = vcmp.ge.s32.totalorder %v3712, 0
    %vm3777 = vcmp.ge.s32.totalorder %v3713, 0
    %vm3778 = vcmp.ge.s32.totalorder %v3714, 0
    %vm3779 = vcmp.ge.s32.totalorder %v3715, 0
    %vm3780 = vcmp.ge.s32.totalorder %v3716, 0
    %vm3781 = vcmp.ge.s32.totalorder %v3717, 0
    %vm3782 = vcmp.ge.s32.totalorder %v3718, 0
    %vm3783 = vcmp.ge.s32.totalorder %v3719, 0
    %vm3784 = vcmp.ge.s32.totalorder %v3720, 0
    %vm3785 = vcmp.ge.s32.totalorder %v3721, 0
    %vm3786 = vcmp.ge.s32.totalorder %v3722, 0
    %vm3787 = vcmp.ge.s32.totalorder %v3723, 0
    %vm3788 = vcmp.ge.s32.totalorder %v3724, 0
    %vm3789 = vcmp.ge.s32.totalorder %v3725, 0
    %vm3790 = vcmp.ge.s32.totalorder %v3726, 0
    %vm3791 = vcmp.ge.s32.totalorder %v3727, 0
    %vm3792 = vcmp.ge.s32.totalorder %v3728, 0
    %vm3793 = vcmp.ge.s32.totalorder %v3729, 0
    %vm3794 = vcmp.ge.s32.totalorder %v3730, 0
    %vm3795 = vcmp.ge.s32.totalorder %v3731, 0
    %vm3796 = vcmp.ge.s32.totalorder %v3732, 0
    %vm3797 = vcmp.ge.s32.totalorder %v3733, 0
    %vm3798 = vcmp.ge.s32.totalorder %v3734, 0
    %vm3799 = vcmp.ge.s32.totalorder %v3735, 0
    %vm3800 = vcmp.ge.s32.totalorder %v3736, 0
    %vm3801 = vcmp.ge.s32.totalorder %v3737, 0
    %vm3802 = vcmp.ge.s32.totalorder %v3738, 0
    %vm3803 = vcmp.ge.s32.totalorder %v3739, 0
    %vm3804 = vcmp.ge.s32.totalorder %v3740, 0
    %vm3805 = vcmp.ge.s32.totalorder %v3741, 0
    %vm3806 = vcmp.ge.s32.totalorder %v3742, 0
    %vm3807 = vcmp.ge.s32.totalorder %v3743, 0
    %vm3808 = vcmp.ge.s32.totalorder %v3744, 0
    %vm3809 = vcmp.ge.s32.totalorder %v3745, 0
    %vm3810 = vcmp.ge.s32.totalorder %v3746, 0
    %vm3811 = vcmp.lt.s32.totalorder %v3683, 16
    %vm3812 = vcmp.lt.s32.totalorder %v3684, 16
    %vm3813 = vcmp.lt.s32.totalorder %v3685, 16
    %vm3814 = vcmp.lt.s32.totalorder %v3686, 16
    %vm3815 = vcmp.lt.s32.totalorder %v3687, 16
    %vm3816 = vcmp.lt.s32.totalorder %v3688, 16
    %vm3817 = vcmp.lt.s32.totalorder %v3689, 16
    %vm3818 = vcmp.lt.s32.totalorder %v3690, 16
    %vm3819 = vcmp.lt.s32.totalorder %v3691, 16
    %vm3820 = vcmp.lt.s32.totalorder %v3692, 16
    %vm3821 = vcmp.lt.s32.totalorder %v3693, 16
    %vm3822 = vcmp.lt.s32.totalorder %v3694, 16
    %vm3823 = vcmp.lt.s32.totalorder %v3695, 16
    %vm3824 = vcmp.lt.s32.totalorder %v3696, 16
    %vm3825 = vcmp.lt.s32.totalorder %v3697, 16
    %vm3826 = vcmp.lt.s32.totalorder %v3698, 16
    %vm3827 = vcmp.lt.s32.totalorder %v3699, 16
    %vm3828 = vcmp.lt.s32.totalorder %v3700, 16
    %vm3829 = vcmp.lt.s32.totalorder %v3701, 16
    %vm3830 = vcmp.lt.s32.totalorder %v3702, 16
    %vm3831 = vcmp.lt.s32.totalorder %v3703, 16
    %vm3832 = vcmp.lt.s32.totalorder %v3704, 16
    %vm3833 = vcmp.lt.s32.totalorder %v3705, 16
    %vm3834 = vcmp.lt.s32.totalorder %v3706, 16
    %vm3835 = vcmp.lt.s32.totalorder %v3707, 16
    %vm3836 = vcmp.lt.s32.totalorder %v3708, 16
    %vm3837 = vcmp.lt.s32.totalorder %v3709, 16
    %vm3838 = vcmp.lt.s32.totalorder %v3710, 16
    %vm3839 = vcmp.lt.s32.totalorder %v3711, 16
    %vm3840 = vcmp.lt.s32.totalorder %v3712, 16
    %vm3841 = vcmp.lt.s32.totalorder %v3713, 16
    %vm3842 = vcmp.lt.s32.totalorder %v3714, 16
    %vm3843 = vcmp.lt.s32.totalorder %v3715, 16
    %vm3844 = vcmp.lt.s32.totalorder %v3716, 16
    %vm3845 = vcmp.lt.s32.totalorder %v3717, 16
    %vm3846 = vcmp.lt.s32.totalorder %v3718, 16
    %vm3847 = vcmp.lt.s32.totalorder %v3719, 16
    %vm3848 = vcmp.lt.s32.totalorder %v3720, 16
    %vm3849 = vcmp.lt.s32.totalorder %v3721, 16
    %vm3850 = vcmp.lt.s32.totalorder %v3722, 16
    %vm3851 = vcmp.lt.s32.totalorder %v3723, 16
    %vm3852 = vcmp.lt.s32.totalorder %v3724, 16
    %vm3853 = vcmp.lt.s32.totalorder %v3725, 16
    %vm3854 = vcmp.lt.s32.totalorder %v3726, 16
    %vm3855 = vcmp.lt.s32.totalorder %v3727, 16
    %vm3856 = vcmp.lt.s32.totalorder %v3728, 16
    %vm3857 = vcmp.lt.s32.totalorder %v3729, 16
    %vm3858 = vcmp.lt.s32.totalorder %v3730, 16
    %vm3859 = vcmp.lt.s32.totalorder %v3731, 16
    %vm3860 = vcmp.lt.s32.totalorder %v3732, 16
    %vm3861 = vcmp.lt.s32.totalorder %v3733, 16
    %vm3862 = vcmp.lt.s32.totalorder %v3734, 16
    %vm3863 = vcmp.lt.s32.totalorder %v3735, 16
    %vm3864 = vcmp.lt.s32.totalorder %v3736, 16
    %vm3865 = vcmp.lt.s32.totalorder %v3737, 16
    %vm3866 = vcmp.lt.s32.totalorder %v3738, 16
    %vm3867 = vcmp.lt.s32.totalorder %v3739, 16
    %vm3868 = vcmp.lt.s32.totalorder %v3740, 16
    %vm3869 = vcmp.lt.s32.totalorder %v3741, 16
    %vm3870 = vcmp.lt.s32.totalorder %v3742, 16
    %vm3871 = vcmp.lt.s32.totalorder %v3743, 16
    %vm3872 = vcmp.lt.s32.totalorder %v3744, 16
    %vm3873 = vcmp.lt.s32.totalorder %v3745, 16
    %vm3874 = vcmp.lt.s32.totalorder %v3746, 16
    %vm3875 = vmand %vm3747, %vm3811
    %vm3876 = vmand %vm3748, %vm3812
    %vm3877 = vmand %vm3749, %vm3813
    %vm3878 = vmand %vm3750, %vm3814
    %vm3879 = vmand %vm3751, %vm3815
    %vm3880 = vmand %vm3752, %vm3816
    %vm3881 = vmand %vm3753, %vm3817
    %vm3882 = vmand %vm3754, %vm3818
    %vm3883 = vmand %vm3755, %vm3819
    %vm3884 = vmand %vm3756, %vm3820
    %vm3885 = vmand %vm3757, %vm3821
    %vm3886 = vmand %vm3758, %vm3822
    %vm3887 = vmand %vm3759, %vm3823
    %vm3888 = vmand %vm3760, %vm3824
    %vm3889 = vmand %vm3761, %vm3825
    %vm3890 = vmand %vm3762, %vm3826
    %vm3891 = vmand %vm3763, %vm3827
    %vm3892 = vmand %vm3764, %vm3828
    %vm3893 = vmand %vm3765, %vm3829
    %vm3894 = vmand %vm3766, %vm3830
    %vm3895 = vmand %vm3767, %vm3831
    %vm3896 = vmand %vm3768, %vm3832
    %vm3897 = vmand %vm3769, %vm3833
    %vm3898 = vmand %vm3770, %vm3834
    %vm3899 = vmand %vm3771, %vm3835
    %vm3900 = vmand %vm3772, %vm3836
    %vm3901 = vmand %vm3773, %vm3837
    %vm3902 = vmand %vm3774, %vm3838
    %vm3903 = vmand %vm3775, %vm3839
    %vm3904 = vmand %vm3776, %vm3840
    %vm3905 = vmand %vm3777, %vm3841
    %vm3906 = vmand %vm3778, %vm3842
    %vm3907 = vmand %vm3779, %vm3843
    %vm3908 = vmand %vm3780, %vm3844
    %vm3909 = vmand %vm3781, %vm3845
    %vm3910 = vmand %vm3782, %vm3846
    %vm3911 = vmand %vm3783, %vm3847
    %vm3912 = vmand %vm3784, %vm3848
    %vm3913 = vmand %vm3785, %vm3849
    %vm3914 = vmand %vm3786, %vm3850
    %vm3915 = vmand %vm3787, %vm3851
    %vm3916 = vmand %vm3788, %vm3852
    %vm3917 = vmand %vm3789, %vm3853
    %vm3918 = vmand %vm3790, %vm3854
    %vm3919 = vmand %vm3791, %vm3855
    %vm3920 = vmand %vm3792, %vm3856
    %vm3921 = vmand %vm3793, %vm3857
    %vm3922 = vmand %vm3794, %vm3858
    %vm3923 = vmand %vm3795, %vm3859
    %vm3924 = vmand %vm3796, %vm3860
    %vm3925 = vmand %vm3797, %vm3861
    %vm3926 = vmand %vm3798, %vm3862
    %vm3927 = vmand %vm3799, %vm3863
    %vm3928 = vmand %vm3800, %vm3864
    %vm3929 = vmand %vm3801, %vm3865
    %vm3930 = vmand %vm3802, %vm3866
    %vm3931 = vmand %vm3803, %vm3867
    %vm3932 = vmand %vm3804, %vm3868
    %vm3933 = vmand %vm3805, %vm3869
    %vm3934 = vmand %vm3806, %vm3870
    %vm3935 = vmand %vm3807, %vm3871
    %vm3936 = vmand %vm3808, %vm3872
    %vm3937 = vmand %vm3809, %vm3873
    %vm3938 = vmand %vm3810, %vm3874
    %vm3939 = vmand %vm3875, %vm674
    %vm3940 = vmand %vm3876, %vm675
    %vm3941 = vmand %vm3877, %vm676
    %vm3942 = vmand %vm3878, %vm677
    %vm3943 = vmand %vm3879, %vm678
    %vm3944 = vmand %vm3880, %vm679
    %vm3945 = vmand %vm3881, %vm680
    %vm3946 = vmand %vm3882, %vm681
    %vm3947 = vmand %vm3883, %vm682
    %vm3948 = vmand %vm3884, %vm683
    %vm3949 = vmand %vm3885, %vm684
    %vm3950 = vmand %vm3886, %vm685
    %vm3951 = vmand %vm3887, %vm686
    %vm3952 = vmand %vm3888, %vm687
    %vm3953 = vmand %vm3889, %vm688
    %vm3954 = vmand %vm3890, %vm689
    %vm3955 = vmand %vm3891, %vm690
    %vm3956 = vmand %vm3892, %vm691
    %vm3957 = vmand %vm3893, %vm692
    %vm3958 = vmand %vm3894, %vm693
    %vm3959 = vmand %vm3895, %vm694
    %vm3960 = vmand %vm3896, %vm695
    %vm3961 = vmand %vm3897, %vm696
    %vm3962 = vmand %vm3898, %vm697
    %vm3963 = vmand %vm3899, %vm698
    %vm3964 = vmand %vm3900, %vm699
    %vm3965 = vmand %vm3901, %vm700
    %vm3966 = vmand %vm3902, %vm701
    %vm3967 = vmand %vm3903, %vm702
    %vm3968 = vmand %vm3904, %vm703
    %vm3969 = vmand %vm3905, %vm704
    %vm3970 = vmand %vm3906, %vm705
    %vm3971 = vmand %vm3907, %vm706
    %vm3972 = vmand %vm3908, %vm707
    %vm3973 = vmand %vm3909, %vm708
    %vm3974 = vmand %vm3910, %vm709
    %vm3975 = vmand %vm3911, %vm710
    %vm3976 = vmand %vm3912, %vm711
    %vm3977 = vmand %vm3913, %vm712
    %vm3978 = vmand %vm3914, %vm713
    %vm3979 = vmand %vm3915, %vm714
    %vm3980 = vmand %vm3916, %vm715
    %vm3981 = vmand %vm3917, %vm716
    %vm3982 = vmand %vm3918, %vm717
    %vm3983 = vmand %vm3919, %vm718
    %vm3984 = vmand %vm3920, %vm719
    %vm3985 = vmand %vm3921, %vm720
    %vm3986 = vmand %vm3922, %vm721
    %vm3987 = vmand %vm3923, %vm722
    %vm3988 = vmand %vm3924, %vm723
    %vm3989 = vmand %vm3925, %vm724
    %vm3990 = vmand %vm3926, %vm725
    %vm3991 = vmand %vm3927, %vm726
    %vm3992 = vmand %vm3928, %vm727
    %vm3993 = vmand %vm3929, %vm728
    %vm3994 = vmand %vm3930, %vm729
    %vm3995 = vmand %vm3931, %vm730
    %vm3996 = vmand %vm3932, %vm731
    %vm3997 = vmand %vm3933, %vm732
    %vm3998 = vmand %vm3934, %vm733
    %vm3999 = vmand %vm3935, %vm734
    %vm4000 = vmand %vm3936, %vm735
    %vm4001 = vmand %vm3937, %vm736
    %vm4002 = vmand %vm3938, %vm737
    %vm4003 = vmand %vm3939, %vm802
    %vm4004 = vmand %vm3940, %vm803
    %vm4005 = vmand %vm3941, %vm804
    %vm4006 = vmand %vm3942, %vm805
    %vm4007 = vmand %vm3943, %vm806
    %vm4008 = vmand %vm3944, %vm807
    %vm4009 = vmand %vm3945, %vm808
    %vm4010 = vmand %vm3946, %vm809
    %vm4011 = vmand %vm3947, %vm810
    %vm4012 = vmand %vm3948, %vm811
    %vm4013 = vmand %vm3949, %vm812
    %vm4014 = vmand %vm3950, %vm813
    %vm4015 = vmand %vm3951, %vm814
    %vm4016 = vmand %vm3952, %vm815
    %vm4017 = vmand %vm3953, %vm816
    %vm4018 = vmand %vm3954, %vm817
    %vm4019 = vmand %vm3955, %vm818
    %vm4020 = vmand %vm3956, %vm819
    %vm4021 = vmand %vm3957, %vm820
    %vm4022 = vmand %vm3958, %vm821
    %vm4023 = vmand %vm3959, %vm822
    %vm4024 = vmand %vm3960, %vm823
    %vm4025 = vmand %vm3961, %vm824
    %vm4026 = vmand %vm3962, %vm825
    %vm4027 = vmand %vm3963, %vm826
    %vm4028 = vmand %vm3964, %vm827
    %vm4029 = vmand %vm3965, %vm828
    %vm4030 = vmand %vm3966, %vm829
    %vm4031 = vmand %vm3967, %vm830
    %vm4032 = vmand %vm3968, %vm831
    %vm4033 = vmand %vm3969, %vm832
    %vm4034 = vmand %vm3970, %vm833
    %vm4035 = vmand %vm3971, %vm834
    %vm4036 = vmand %vm3972, %vm835
    %vm4037 = vmand %vm3973, %vm836
    %vm4038 = vmand %vm3974, %vm837
    %vm4039 = vmand %vm3975, %vm838
    %vm4040 = vmand %vm3976, %vm839
    %vm4041 = vmand %vm3977, %vm840
    %vm4042 = vmand %vm3978, %vm841
    %vm4043 = vmand %vm3979, %vm842
    %vm4044 = vmand %vm3980, %vm843
    %vm4045 = vmand %vm3981, %vm844
    %vm4046 = vmand %vm3982, %vm845
    %vm4047 = vmand %vm3983, %vm846
    %vm4048 = vmand %vm3984, %vm847
    %vm4049 = vmand %vm3985, %vm848
    %vm4050 = vmand %vm3986, %vm849
    %vm4051 = vmand %vm3987, %vm850
    %vm4052 = vmand %vm3988, %vm851
    %vm4053 = vmand %vm3989, %vm852
    %vm4054 = vmand %vm3990, %vm853
    %vm4055 = vmand %vm3991, %vm854
    %vm4056 = vmand %vm3992, %vm855
    %vm4057 = vmand %vm3993, %vm856
    %vm4058 = vmand %vm3994, %vm857
    %vm4059 = vmand %vm3995, %vm858
    %vm4060 = vmand %vm3996, %vm859
    %vm4061 = vmand %vm3997, %vm860
    %vm4062 = vmand %vm3998, %vm861
    %vm4063 = vmand %vm3999, %vm862
    %vm4064 = vmand %vm4000, %vm863
    %vm4065 = vmand %vm4001, %vm864
    %vm4066 = vmand %vm4002, %vm865
    %v4067 = vsel %vm4003, 1, 0
    %v4068 = vsel %vm4004, 1, 0
    %v4069 = vsel %vm4005, 1, 0
    %v4070 = vsel %vm4006, 1, 0
    %v4071 = vsel %vm4007, 1, 0
    %v4072 = vsel %vm4008, 1, 0
    %v4073 = vsel %vm4009, 1, 0
    %v4074 = vsel %vm4010, 1, 0
    %v4075 = vsel %vm4011, 1, 0
    %v4076 = vsel %vm4012, 1, 0
    %v4077 = vsel %vm4013, 1, 0
    %v4078 = vsel %vm4014, 1, 0
    %v4079 = vsel %vm4015, 1, 0
    %v4080 = vsel %vm4016, 1, 0
    %v4081 = vsel %vm4017, 1, 0
    %v4082 = vsel %vm4018, 1, 0
    %v4083 = vsel %vm4019, 1, 0
    %v4084 = vsel %vm4020, 1, 0
    %v4085 = vsel %vm4021, 1, 0
    %v4086 = vsel %vm4022, 1, 0
    %v4087 = vsel %vm4023, 1, 0
    %v4088 = vsel %vm4024, 1, 0
    %v4089 = vsel %vm4025, 1, 0
    %v4090 = vsel %vm4026, 1, 0
    %v4091 = vsel %vm4027, 1, 0
    %v4092 = vsel %vm4028, 1, 0
    %v4093 = vsel %vm4029, 1, 0
    %v4094 = vsel %vm4030, 1, 0
    %v4095 = vsel %vm4031, 1, 0
    %v4096 = vsel %vm4032, 1, 0
    %v4097 = vsel %vm4033, 1, 0
    %v4098 = vsel %vm4034, 1, 0
    %v4099 = vsel %vm4035, 1, 0
    %v4100 = vsel %vm4036, 1, 0
    %v4101 = vsel %vm4037, 1, 0
    %v4102 = vsel %vm4038, 1, 0
    %v4103 = vsel %vm4039, 1, 0
    %v4104 = vsel %vm4040, 1, 0
    %v4105 = vsel %vm4041, 1, 0
    %v4106 = vsel %vm4042, 1, 0
    %v4107 = vsel %vm4043, 1, 0
    %v4108 = vsel %vm4044, 1, 0
    %v4109 = vsel %vm4045, 1, 0
    %v4110 = vsel %vm4046, 1, 0
    %v4111 = vsel %vm4047, 1, 0
    %v4112 = vsel %vm4048, 1, 0
    %v4113 = vsel %vm4049, 1, 0
    %v4114 = vsel %vm4050, 1, 0
    %v4115 = vsel %vm4051, 1, 0
    %v4116 = vsel %vm4052, 1, 0
    %v4117 = vsel %vm4053, 1, 0
    %v4118 = vsel %vm4054, 1, 0
    %v4119 = vsel %vm4055, 1, 0
    %v4120 = vsel %vm4056, 1, 0
    %v4121 = vsel %vm4057, 1, 0
    %v4122 = vsel %vm4058, 1, 0
    %v4123 = vsel %vm4059, 1, 0
    %v4124 = vsel %vm4060, 1, 0
    %v4125 = vsel %vm4061, 1, 0
    %v4126 = vsel %vm4062, 1, 0
    %v4127 = vsel %vm4063, 1, 0
    %v4128 = vsel %vm4064, 1, 0
    %v4129 = vsel %vm4065, 1, 0
    %v4130 = vsel %vm4066, 1, 0
    %vm4131 = vcmp.eq.s32.totalorder %v4067, 1
    %vm4132 = vcmp.eq.s32.totalorder %v4068, 1
    %vm4133 = vcmp.eq.s32.totalorder %v4069, 1
    %vm4134 = vcmp.eq.s32.totalorder %v4070, 1
    %vm4135 = vcmp.eq.s32.totalorder %v4071, 1
    %vm4136 = vcmp.eq.s32.totalorder %v4072, 1
    %vm4137 = vcmp.eq.s32.totalorder %v4073, 1
    %vm4138 = vcmp.eq.s32.totalorder %v4074, 1
    %vm4139 = vcmp.eq.s32.totalorder %v4075, 1
    %vm4140 = vcmp.eq.s32.totalorder %v4076, 1
    %vm4141 = vcmp.eq.s32.totalorder %v4077, 1
    %vm4142 = vcmp.eq.s32.totalorder %v4078, 1
    %vm4143 = vcmp.eq.s32.totalorder %v4079, 1
    %vm4144 = vcmp.eq.s32.totalorder %v4080, 1
    %vm4145 = vcmp.eq.s32.totalorder %v4081, 1
    %vm4146 = vcmp.eq.s32.totalorder %v4082, 1
    %vm4147 = vcmp.eq.s32.totalorder %v4083, 1
    %vm4148 = vcmp.eq.s32.totalorder %v4084, 1
    %vm4149 = vcmp.eq.s32.totalorder %v4085, 1
    %vm4150 = vcmp.eq.s32.totalorder %v4086, 1
    %vm4151 = vcmp.eq.s32.totalorder %v4087, 1
    %vm4152 = vcmp.eq.s32.totalorder %v4088, 1
    %vm4153 = vcmp.eq.s32.totalorder %v4089, 1
    %vm4154 = vcmp.eq.s32.totalorder %v4090, 1
    %vm4155 = vcmp.eq.s32.totalorder %v4091, 1
    %vm4156 = vcmp.eq.s32.totalorder %v4092, 1
    %vm4157 = vcmp.eq.s32.totalorder %v4093, 1
    %vm4158 = vcmp.eq.s32.totalorder %v4094, 1
    %vm4159 = vcmp.eq.s32.totalorder %v4095, 1
    %vm4160 = vcmp.eq.s32.totalorder %v4096, 1
    %vm4161 = vcmp.eq.s32.totalorder %v4097, 1
    %vm4162 = vcmp.eq.s32.totalorder %v4098, 1
    %vm4163 = vcmp.eq.s32.totalorder %v4099, 1
    %vm4164 = vcmp.eq.s32.totalorder %v4100, 1
    %vm4165 = vcmp.eq.s32.totalorder %v4101, 1
    %vm4166 = vcmp.eq.s32.totalorder %v4102, 1
    %vm4167 = vcmp.eq.s32.totalorder %v4103, 1
    %vm4168 = vcmp.eq.s32.totalorder %v4104, 1
    %vm4169 = vcmp.eq.s32.totalorder %v4105, 1
    %vm4170 = vcmp.eq.s32.totalorder %v4106, 1
    %vm4171 = vcmp.eq.s32.totalorder %v4107, 1
    %vm4172 = vcmp.eq.s32.totalorder %v4108, 1
    %vm4173 = vcmp.eq.s32.totalorder %v4109, 1
    %vm4174 = vcmp.eq.s32.totalorder %v4110, 1
    %vm4175 = vcmp.eq.s32.totalorder %v4111, 1
    %vm4176 = vcmp.eq.s32.totalorder %v4112, 1
    %vm4177 = vcmp.eq.s32.totalorder %v4113, 1
    %vm4178 = vcmp.eq.s32.totalorder %v4114, 1
    %vm4179 = vcmp.eq.s32.totalorder %v4115, 1
    %vm4180 = vcmp.eq.s32.totalorder %v4116, 1
    %vm4181 = vcmp.eq.s32.totalorder %v4117, 1
    %vm4182 = vcmp.eq.s32.totalorder %v4118, 1
    %vm4183 = vcmp.eq.s32.totalorder %v4119, 1
    %vm4184 = vcmp.eq.s32.totalorder %v4120, 1
    %vm4185 = vcmp.eq.s32.totalorder %v4121, 1
    %vm4186 = vcmp.eq.s32.totalorder %v4122, 1
    %vm4187 = vcmp.eq.s32.totalorder %v4123, 1
    %vm4188 = vcmp.eq.s32.totalorder %v4124, 1
    %vm4189 = vcmp.eq.s32.totalorder %v4125, 1
    %vm4190 = vcmp.eq.s32.totalorder %v4126, 1
    %vm4191 = vcmp.eq.s32.totalorder %v4127, 1
    %vm4192 = vcmp.eq.s32.totalorder %v4128, 1
    %vm4193 = vcmp.eq.s32.totalorder %v4129, 1
    %vm4194 = vcmp.eq.s32.totalorder %v4130, 1
    %v4195 = vsel %vm1121, %v2970, %v1122
    %v4197 = vsel %vm4131, %v1129, 0.0
    %v4198 = vsel %vm4132, %v1131, 0.0
    %v4199 = vsel %vm4133, %v1133, 0.0
    %v4200 = vsel %vm4134, %v1135, 0.0
    %v4201 = vsel %vm4135, %v1137, 0.0
    %v4202 = vsel %vm4136, %v1139, 0.0
    %v4203 = vsel %vm4137, %v1141, 0.0
    %v4204 = vsel %vm4138, %v1143, 0.0
    %v4205 = vsel %vm4139, %v1145, 0.0
    %v4206 = vsel %vm4140, %v1147, 0.0
    %v4207 = vsel %vm4141, %v1149, 0.0
    %v4208 = vsel %vm4142, %v1151, 0.0
    %v4209 = vsel %vm4143, %v1153, 0.0
    %v4210 = vsel %vm4144, %v1155, 0.0
    %v4211 = vsel %vm4145, %v1157, 0.0
    %v4212 = vsel %vm4146, %v1159, 0.0
    %v4213 = vsel %vm4147, %v1161, 0.0
    %v4214 = vsel %vm4148, %v1163, 0.0
    %v4215 = vsel %vm4149, %v1165, 0.0
    %v4216 = vsel %vm4150, %v1167, 0.0
    %v4217 = vsel %vm4151, %v1169, 0.0
    %v4218 = vsel %vm4152, %v1171, 0.0
    %v4219 = vsel %vm4153, %v1173, 0.0
    %v4220 = vsel %vm4154, %v1175, 0.0
    %v4221 = vsel %vm4155, %v1177, 0.0
    %v4222 = vsel %vm4156, %v1179, 0.0
    %v4223 = vsel %vm4157, %v1181, 0.0
    %v4224 = vsel %vm4158, %v1183, 0.0
    %v4225 = vsel %vm4159, %v1185, 0.0
    %v4226 = vsel %vm4160, %v1187, 0.0
    %v4227 = vsel %vm4161, %v1189, 0.0
    %v4228 = vsel %vm4162, %v1191, 0.0
    %v4229 = vsel %vm4163, %v1193, 0.0
    %v4230 = vsel %vm4164, %v1195, 0.0
    %v4231 = vsel %vm4165, %v1197, 0.0
    %v4232 = vsel %vm4166, %v1199, 0.0
    %v4233 = vsel %vm4167, %v1201, 0.0
    %v4234 = vsel %vm4168, %v1203, 0.0
    %v4235 = vsel %vm4169, %v1205, 0.0
    %v4236 = vsel %vm4170, %v1207, 0.0
    %v4237 = vsel %vm4171, %v1209, 0.0
    %v4238 = vsel %vm4172, %v1211, 0.0
    %v4239 = vsel %vm4173, %v1213, 0.0
    %v4240 = vsel %vm4174, %v1215, 0.0
    %v4241 = vsel %vm4175, %v1217, 0.0
    %v4242 = vsel %vm4176, %v1219, 0.0
    %v4243 = vsel %vm4177, %v1221, 0.0
    %v4244 = vsel %vm4178, %v1223, 0.0
    %v4245 = vsel %vm4179, %v1225, 0.0
    %v4246 = vsel %vm4180, %v1227, 0.0
    %v4247 = vsel %vm4181, %v1229, 0.0
    %v4248 = vsel %vm4182, %v1231, 0.0
    %v4249 = vsel %vm4183, %v1233, 0.0
    %v4250 = vsel %vm4184, %v1235, 0.0
    %v4251 = vsel %vm4185, %v1237, 0.0
    %v4252 = vsel %vm4186, %v1239, 0.0
    %v4253 = vsel %vm4187, %v1241, 0.0
    %v4254 = vsel %vm4188, %v1243, 0.0
    %v4255 = vsel %vm4189, %v1245, 0.0
    %v4256 = vsel %vm4190, %v1247, 0.0
    %v4257 = vsel %vm4191, %v2969, 0.0
    %v4258 = vsel %vm4192, %v2971, 0.0
    %v4259 = vsel %vm4193, %v4195, 0.0
    %v4260 = vsel %vm4194, %v1123, 0.0
    %vm4261 = vmand %vm3875, %vm1375
    %vm4262 = vmand %vm3876, %vm1376
    %vm4263 = vmand %vm3877, %vm1377
    %vm4264 = vmand %vm3878, %vm1378
    %vm4265 = vmand %vm3879, %vm1379
    %vm4266 = vmand %vm3880, %vm1380
    %vm4267 = vmand %vm3881, %vm1381
    %vm4268 = vmand %vm3882, %vm1382
    %vm4269 = vmand %vm3883, %vm1383
    %vm4270 = vmand %vm3884, %vm1384
    %vm4271 = vmand %vm3885, %vm1385
    %vm4272 = vmand %vm3886, %vm1386
    %vm4273 = vmand %vm3887, %vm1387
    %vm4274 = vmand %vm3888, %vm1388
    %vm4275 = vmand %vm3889, %vm1389
    %vm4276 = vmand %vm3890, %vm1390
    %vm4277 = vmand %vm3891, %vm1391
    %vm4278 = vmand %vm3892, %vm1392
    %vm4279 = vmand %vm3893, %vm1393
    %vm4280 = vmand %vm3894, %vm1394
    %vm4281 = vmand %vm3895, %vm1395
    %vm4282 = vmand %vm3896, %vm1396
    %vm4283 = vmand %vm3897, %vm1397
    %vm4284 = vmand %vm3898, %vm1398
    %vm4285 = vmand %vm3899, %vm1399
    %vm4286 = vmand %vm3900, %vm1400
    %vm4287 = vmand %vm3901, %vm1401
    %vm4288 = vmand %vm3902, %vm1402
    %vm4289 = vmand %vm3903, %vm1403
    %vm4290 = vmand %vm3904, %vm1404
    %vm4291 = vmand %vm3905, %vm1405
    %vm4292 = vmand %vm3906, %vm1406
    %vm4293 = vmand %vm3907, %vm1407
    %vm4294 = vmand %vm3908, %vm1408
    %vm4295 = vmand %vm3909, %vm1409
    %vm4296 = vmand %vm3910, %vm1410
    %vm4297 = vmand %vm3911, %vm1411
    %vm4298 = vmand %vm3912, %vm1412
    %vm4299 = vmand %vm3913, %vm1413
    %vm4300 = vmand %vm3914, %vm1414
    %vm4301 = vmand %vm3915, %vm1415
    %vm4302 = vmand %vm3916, %vm1416
    %vm4303 = vmand %vm3917, %vm1417
    %vm4304 = vmand %vm3918, %vm1418
    %vm4305 = vmand %vm3919, %vm1419
    %vm4306 = vmand %vm3920, %vm1420
    %vm4307 = vmand %vm3921, %vm1421
    %vm4308 = vmand %vm3922, %vm1422
    %vm4309 = vmand %vm3923, %vm1423
    %vm4310 = vmand %vm3924, %vm1424
    %vm4311 = vmand %vm3925, %vm1425
    %vm4312 = vmand %vm3926, %vm1426
    %vm4313 = vmand %vm3927, %vm1427
    %vm4314 = vmand %vm3928, %vm1428
    %vm4315 = vmand %vm3929, %vm1429
    %vm4316 = vmand %vm3930, %vm1430
    %vm4317 = vmand %vm3931, %vm1431
    %vm4318 = vmand %vm3932, %vm1432
    %vm4319 = vmand %vm3933, %vm1433
    %vm4320 = vmand %vm3934, %vm1434
    %vm4321 = vmand %vm3935, %vm1435
    %vm4322 = vmand %vm3936, %vm1436
    %vm4323 = vmand %vm4261, %vm1501
    %vm4324 = vmand %vm4262, %vm1502
    %vm4325 = vmand %vm4263, %vm1503
    %vm4326 = vmand %vm4264, %vm1504
    %vm4327 = vmand %vm4265, %vm1505
    %vm4328 = vmand %vm4266, %vm1506
    %vm4329 = vmand %vm4267, %vm1507
    %vm4330 = vmand %vm4268, %vm1508
    %vm4331 = vmand %vm4269, %vm1509
    %vm4332 = vmand %vm4270, %vm1510
    %vm4333 = vmand %vm4271, %vm1511
    %vm4334 = vmand %vm4272, %vm1512
    %vm4335 = vmand %vm4273, %vm1513
    %vm4336 = vmand %vm4274, %vm1514
    %vm4337 = vmand %vm4275, %vm1515
    %vm4338 = vmand %vm4276, %vm1516
    %vm4339 = vmand %vm4277, %vm1517
    %vm4340 = vmand %vm4278, %vm1518
    %vm4341 = vmand %vm4279, %vm1519
    %vm4342 = vmand %vm4280, %vm1520
    %vm4343 = vmand %vm4281, %vm1521
    %vm4344 = vmand %vm4282, %vm1522
    %vm4345 = vmand %vm4283, %vm1523
    %vm4346 = vmand %vm4284, %vm1524
    %vm4347 = vmand %vm4285, %vm1525
    %vm4348 = vmand %vm4286, %vm1526
    %vm4349 = vmand %vm4287, %vm1527
    %vm4350 = vmand %vm4288, %vm1528
    %vm4351 = vmand %vm4289, %vm1529
    %vm4352 = vmand %vm4290, %vm1530
    %vm4353 = vmand %vm4291, %vm1531
    %vm4354 = vmand %vm4292, %vm1532
    %vm4355 = vmand %vm4293, %vm1533
    %vm4356 = vmand %vm4294, %vm1534
    %vm4357 = vmand %vm4295, %vm1535
    %vm4358 = vmand %vm4296, %vm1536
    %vm4359 = vmand %vm4297, %vm1537
    %vm4360 = vmand %vm4298, %vm1538
    %vm4361 = vmand %vm4299, %vm1539
    %vm4362 = vmand %vm4300, %vm1540
    %vm4363 = vmand %vm4301, %vm1541
    %vm4364 = vmand %vm4302, %vm1542
    %vm4365 = vmand %vm4303, %vm1543
    %vm4366 = vmand %vm4304, %vm1544
    %vm4367 = vmand %vm4305, %vm1545
    %vm4368 = vmand %vm4306, %vm1546
    %vm4369 = vmand %vm4307, %vm1547
    %vm4370 = vmand %vm4308, %vm1548
    %vm4371 = vmand %vm4309, %vm1549
    %vm4372 = vmand %vm4310, %vm1550
    %vm4373 = vmand %vm4311, %vm1551
    %vm4374 = vmand %vm4312, %vm1552
    %vm4375 = vmand %vm4313, %vm1553
    %vm4376 = vmand %vm4314, %vm1554
    %vm4377 = vmand %vm4315, %vm1555
    %vm4378 = vmand %vm4316, %vm1556
    %vm4379 = vmand %vm4317, %vm1557
    %vm4380 = vmand %vm4318, %vm1558
    %vm4381 = vmand %vm4319, %vm1559
    %vm4382 = vmand %vm4320, %vm1560
    %vm4383 = vmand %vm4321, %vm1561
    %vm4384 = vmand %vm4322, %vm1562
    %v4385 = vsel %vm4323, 1, 0
    %v4386 = vsel %vm4324, 1, 0
    %v4387 = vsel %vm4325, 1, 0
    %v4388 = vsel %vm4326, 1, 0
    %v4389 = vsel %vm4327, 1, 0
    %v4390 = vsel %vm4328, 1, 0
    %v4391 = vsel %vm4329, 1, 0
    %v4392 = vsel %vm4330, 1, 0
    %v4393 = vsel %vm4331, 1, 0
    %v4394 = vsel %vm4332, 1, 0
    %v4395 = vsel %vm4333, 1, 0
    %v4396 = vsel %vm4334, 1, 0
    %v4397 = vsel %vm4335, 1, 0
    %v4398 = vsel %vm4336, 1, 0
    %v4399 = vsel %vm4337, 1, 0
    %v4400 = vsel %vm4338, 1, 0
    %v4401 = vsel %vm4339, 1, 0
    %v4402 = vsel %vm4340, 1, 0
    %v4403 = vsel %vm4341, 1, 0
    %v4404 = vsel %vm4342, 1, 0
    %v4405 = vsel %vm4343, 1, 0
    %v4406 = vsel %vm4344, 1, 0
    %v4407 = vsel %vm4345, 1, 0
    %v4408 = vsel %vm4346, 1, 0
    %v4409 = vsel %vm4347, 1, 0
    %v4410 = vsel %vm4348, 1, 0
    %v4411 = vsel %vm4349, 1, 0
    %v4412 = vsel %vm4350, 1, 0
    %v4413 = vsel %vm4351, 1, 0
    %v4414 = vsel %vm4352, 1, 0
    %v4415 = vsel %vm4353, 1, 0
    %v4416 = vsel %vm4354, 1, 0
    %v4417 = vsel %vm4355, 1, 0
    %v4418 = vsel %vm4356, 1, 0
    %v4419 = vsel %vm4357, 1, 0
    %v4420 = vsel %vm4358, 1, 0
    %v4421 = vsel %vm4359, 1, 0
    %v4422 = vsel %vm4360, 1, 0
    %v4423 = vsel %vm4361, 1, 0
    %v4424 = vsel %vm4362, 1, 0
    %v4425 = vsel %vm4363, 1, 0
    %v4426 = vsel %vm4364, 1, 0
    %v4427 = vsel %vm4365, 1, 0
    %v4428 = vsel %vm4366, 1, 0
    %v4429 = vsel %vm4367, 1, 0
    %v4430 = vsel %vm4368, 1, 0
    %v4431 = vsel %vm4369, 1, 0
    %v4432 = vsel %vm4370, 1, 0
    %v4433 = vsel %vm4371, 1, 0
    %v4434 = vsel %vm4372, 1, 0
    %v4435 = vsel %vm4373, 1, 0
    %v4436 = vsel %vm4374, 1, 0
    %v4437 = vsel %vm4375, 1, 0
    %v4438 = vsel %vm4376, 1, 0
    %v4439 = vsel %vm4377, 1, 0
    %v4440 = vsel %vm4378, 1, 0
    %v4441 = vsel %vm4379, 1, 0
    %v4442 = vsel %vm4380, 1, 0
    %v4443 = vsel %vm4381, 1, 0
    %v4444 = vsel %vm4382, 1, 0
    %v4445 = vsel %vm4383, 1, 0
    %v4446 = vsel %vm4384, 1, 0
    %vm4447 = vcmp.eq.s32.totalorder %v4385, 1
    %vm4448 = vcmp.eq.s32.totalorder %v4386, 1
    %vm4449 = vcmp.eq.s32.totalorder %v4387, 1
    %vm4450 = vcmp.eq.s32.totalorder %v4388, 1
    %vm4451 = vcmp.eq.s32.totalorder %v4389, 1
    %vm4452 = vcmp.eq.s32.totalorder %v4390, 1
    %vm4453 = vcmp.eq.s32.totalorder %v4391, 1
    %vm4454 = vcmp.eq.s32.totalorder %v4392, 1
    %vm4455 = vcmp.eq.s32.totalorder %v4393, 1
    %vm4456 = vcmp.eq.s32.totalorder %v4394, 1
    %vm4457 = vcmp.eq.s32.totalorder %v4395, 1
    %vm4458 = vcmp.eq.s32.totalorder %v4396, 1
    %vm4459 = vcmp.eq.s32.totalorder %v4397, 1
    %vm4460 = vcmp.eq.s32.totalorder %v4398, 1
    %vm4461 = vcmp.eq.s32.totalorder %v4399, 1
    %vm4462 = vcmp.eq.s32.totalorder %v4400, 1
    %vm4463 = vcmp.eq.s32.totalorder %v4401, 1
    %vm4464 = vcmp.eq.s32.totalorder %v4402, 1
    %vm4465 = vcmp.eq.s32.totalorder %v4403, 1
    %vm4466 = vcmp.eq.s32.totalorder %v4404, 1
    %vm4467 = vcmp.eq.s32.totalorder %v4405, 1
    %vm4468 = vcmp.eq.s32.totalorder %v4406, 1
    %vm4469 = vcmp.eq.s32.totalorder %v4407, 1
    %vm4470 = vcmp.eq.s32.totalorder %v4408, 1
    %vm4471 = vcmp.eq.s32.totalorder %v4409, 1
    %vm4472 = vcmp.eq.s32.totalorder %v4410, 1
    %vm4473 = vcmp.eq.s32.totalorder %v4411, 1
    %vm4474 = vcmp.eq.s32.totalorder %v4412, 1
    %vm4475 = vcmp.eq.s32.totalorder %v4413, 1
    %vm4476 = vcmp.eq.s32.totalorder %v4414, 1
    %vm4477 = vcmp.eq.s32.totalorder %v4415, 1
    %vm4478 = vcmp.eq.s32.totalorder %v4416, 1
    %vm4479 = vcmp.eq.s32.totalorder %v4417, 1
    %vm4480 = vcmp.eq.s32.totalorder %v4418, 1
    %vm4481 = vcmp.eq.s32.totalorder %v4419, 1
    %vm4482 = vcmp.eq.s32.totalorder %v4420, 1
    %vm4483 = vcmp.eq.s32.totalorder %v4421, 1
    %vm4484 = vcmp.eq.s32.totalorder %v4422, 1
    %vm4485 = vcmp.eq.s32.totalorder %v4423, 1
    %vm4486 = vcmp.eq.s32.totalorder %v4424, 1
    %vm4487 = vcmp.eq.s32.totalorder %v4425, 1
    %vm4488 = vcmp.eq.s32.totalorder %v4426, 1
    %vm4489 = vcmp.eq.s32.totalorder %v4427, 1
    %vm4490 = vcmp.eq.s32.totalorder %v4428, 1
    %vm4491 = vcmp.eq.s32.totalorder %v4429, 1
    %vm4492 = vcmp.eq.s32.totalorder %v4430, 1
    %vm4493 = vcmp.eq.s32.totalorder %v4431, 1
    %vm4494 = vcmp.eq.s32.totalorder %v4432, 1
    %vm4495 = vcmp.eq.s32.totalorder %v4433, 1
    %vm4496 = vcmp.eq.s32.totalorder %v4434, 1
    %vm4497 = vcmp.eq.s32.totalorder %v4435, 1
    %vm4498 = vcmp.eq.s32.totalorder %v4436, 1
    %vm4499 = vcmp.eq.s32.totalorder %v4437, 1
    %vm4500 = vcmp.eq.s32.totalorder %v4438, 1
    %vm4501 = vcmp.eq.s32.totalorder %v4439, 1
    %vm4502 = vcmp.eq.s32.totalorder %v4440, 1
    %vm4503 = vcmp.eq.s32.totalorder %v4441, 1
    %vm4504 = vcmp.eq.s32.totalorder %v4442, 1
    %vm4505 = vcmp.eq.s32.totalorder %v4443, 1
    %vm4506 = vcmp.eq.s32.totalorder %v4444, 1
    %vm4507 = vcmp.eq.s32.totalorder %v4445, 1
    %vm4508 = vcmp.eq.s32.totalorder %v4446, 1
    %v4509 = vsel %vm4447, %v35, 0.0
    %v4510 = vsel %vm4448, %v36, 0.0
    %v4511 = vsel %vm4449, %v37, 0.0
    %v4512 = vsel %vm4450, %v38, 0.0
    %v4513 = vsel %vm4451, %v39, 0.0
    %v4514 = vsel %vm4452, %v40, 0.0
    %v4515 = vsel %vm4453, %v41, 0.0
    %v4516 = vsel %vm4454, %v42, 0.0
    %v4517 = vsel %vm4455, %v43, 0.0
    %v4518 = vsel %vm4456, %v44, 0.0
    %v4519 = vsel %vm4457, %v45, 0.0
    %v4520 = vsel %vm4458, %v46, 0.0
    %v4521 = vsel %vm4459, %v47, 0.0
    %v4522 = vsel %vm4460, %v48, 0.0
    %v4523 = vsel %vm4461, %v49, 0.0
    %v4524 = vsel %vm4462, %v50, 0.0
    %v4525 = vsel %vm4463, %v51, 0.0
    %v4526 = vsel %vm4464, %v52, 0.0
    %v4527 = vsel %vm4465, %v53, 0.0
    %v4528 = vsel %vm4466, %v54, 0.0
    %v4529 = vsel %vm4467, %v55, 0.0
    %v4530 = vsel %vm4468, %v56, 0.0
    %v4531 = vsel %vm4469, %v57, 0.0
    %v4532 = vsel %vm4470, %v58, 0.0
    %v4533 = vsel %vm4471, %v59, 0.0
    %v4534 = vsel %vm4472, %v60, 0.0
    %v4535 = vsel %vm4473, %v61, 0.0
    %v4536 = vsel %vm4474, %v62, 0.0
    %v4537 = vsel %vm4475, %v63, 0.0
    %v4538 = vsel %vm4476, %v64, 0.0
    %v4539 = vsel %vm4477, %v65, 0.0
    %v4540 = vsel %vm4478, %v66, 0.0
    %v4541 = vsel %vm4479, %v67, 0.0
    %v4542 = vsel %vm4480, %v68, 0.0
    %v4543 = vsel %vm4481, %v69, 0.0
    %v4544 = vsel %vm4482, %v70, 0.0
    %v4545 = vsel %vm4483, %v71, 0.0
    %v4546 = vsel %vm4484, %v72, 0.0
    %v4547 = vsel %vm4485, %v73, 0.0
    %v4548 = vsel %vm4486, %v74, 0.0
    %v4549 = vsel %vm4487, %v75, 0.0
    %v4550 = vsel %vm4488, %v76, 0.0
    %v4551 = vsel %vm4489, %v77, 0.0
    %v4552 = vsel %vm4490, %v78, 0.0
    %v4553 = vsel %vm4491, %v79, 0.0
    %v4554 = vsel %vm4492, %v80, 0.0
    %v4555 = vsel %vm4493, %v81, 0.0
    %v4556 = vsel %vm4494, %v82, 0.0
    %v4557 = vsel %vm4495, %v83, 0.0
    %v4558 = vsel %vm4496, %v84, 0.0
    %v4559 = vsel %vm4497, %v85, 0.0
    %v4560 = vsel %vm4498, %v86, 0.0
    %v4561 = vsel %vm4499, %v87, 0.0
    %v4562 = vsel %vm4500, %v88, 0.0
    %v4563 = vsel %vm4501, %v89, 0.0
    %v4564 = vsel %vm4502, %v90, 0.0
    %v4565 = vsel %vm4503, %v91, 0.0
    %v4566 = vsel %vm4504, %v92, 0.0
    %v4567 = vsel %vm4505, %v93, 0.0
    %v4568 = vsel %vm4506, %v94, 0.0
    %v4569 = vsel %vm4507, %v95, 0.0
    %v4570 = vsel %vm4508, %v96, 0.0
    %vm4571 = vmand %vm3875, %vm1877
    %vm4572 = vmand %vm3876, %vm1878
    %vm4573 = vmand %vm3877, %vm1879
    %vm4574 = vmand %vm3878, %vm1880
    %vm4575 = vmand %vm3879, %vm1881
    %vm4576 = vmand %vm3880, %vm1882
    %vm4577 = vmand %vm3881, %vm1883
    %vm4578 = vmand %vm3882, %vm1884
    %vm4579 = vmand %vm3883, %vm1885
    %vm4580 = vmand %vm3884, %vm1886
    %vm4581 = vmand %vm3885, %vm1887
    %vm4582 = vmand %vm3886, %vm1888
    %vm4583 = vmand %vm3887, %vm1889
    %vm4584 = vmand %vm3888, %vm1890
    %vm4585 = vmand %vm3889, %vm1891
    %vm4586 = vmand %vm3890, %vm1892
    %vm4587 = vmand %vm3891, %vm1893
    %vm4588 = vmand %vm3892, %vm1894
    %vm4589 = vmand %vm3893, %vm1895
    %vm4590 = vmand %vm3894, %vm1896
    %vm4591 = vmand %vm3895, %vm1897
    %vm4592 = vmand %vm3896, %vm1898
    %vm4593 = vmand %vm3897, %vm1899
    %vm4594 = vmand %vm3898, %vm1900
    %vm4595 = vmand %vm3899, %vm1901
    %vm4596 = vmand %vm3900, %vm1902
    %vm4597 = vmand %vm3901, %vm1903
    %vm4598 = vmand %vm3902, %vm1904
    %vm4599 = vmand %vm3903, %vm1905
    %vm4600 = vmand %vm3904, %vm1906
    %vm4601 = vmand %vm3905, %vm1907
    %vm4602 = vmand %vm3906, %vm1908
    %vm4603 = vmand %vm3907, %vm1909
    %vm4604 = vmand %vm3908, %vm1910
    %vm4605 = vmand %vm3909, %vm1911
    %vm4606 = vmand %vm3910, %vm1912
    %vm4607 = vmand %vm3911, %vm1913
    %vm4608 = vmand %vm3912, %vm1914
    %vm4609 = vmand %vm3913, %vm1915
    %vm4610 = vmand %vm3914, %vm1916
    %vm4611 = vmand %vm3915, %vm1917
    %vm4612 = vmand %vm3916, %vm1918
    %vm4613 = vmand %vm3917, %vm1919
    %vm4614 = vmand %vm3918, %vm1920
    %vm4615 = vmand %vm3919, %vm1921
    %vm4616 = vmand %vm3920, %vm1922
    %vm4617 = vmand %vm3921, %vm1923
    %vm4618 = vmand %vm3922, %vm1924
    %vm4619 = vmand %vm3923, %vm1925
    %vm4620 = vmand %vm3924, %vm1926
    %vm4621 = vmand %vm3925, %vm1927
    %vm4622 = vmand %vm3926, %vm1928
    %vm4623 = vmand %vm3927, %vm1929
    %vm4624 = vmand %vm3928, %vm1930
    %vm4625 = vmand %vm3929, %vm1931
    %vm4626 = vmand %vm3930, %vm1932
    %vm4627 = vmand %vm3931, %vm1933
    %vm4628 = vmand %vm3932, %vm1934
    %vm4629 = vmand %vm3933, %vm1935
    %vm4630 = vmand %vm3934, %vm1936
    %vm4631 = vmand %vm3935, %vm1937
    %vm4632 = vmand %vm3936, %vm1938
    %vm4633 = vmand %vm3937, %vm1939
    %vm4634 = vmand %vm3938, %vm1940
    %vm4635 = vmand %vm4571, %vm2005
    %vm4636 = vmand %vm4572, %vm2006
    %vm4637 = vmand %vm4573, %vm2007
    %vm4638 = vmand %vm4574, %vm2008
    %vm4639 = vmand %vm4575, %vm2009
    %vm4640 = vmand %vm4576, %vm2010
    %vm4641 = vmand %vm4577, %vm2011
    %vm4642 = vmand %vm4578, %vm2012
    %vm4643 = vmand %vm4579, %vm2013
    %vm4644 = vmand %vm4580, %vm2014
    %vm4645 = vmand %vm4581, %vm2015
    %vm4646 = vmand %vm4582, %vm2016
    %vm4647 = vmand %vm4583, %vm2017
    %vm4648 = vmand %vm4584, %vm2018
    %vm4649 = vmand %vm4585, %vm2019
    %vm4650 = vmand %vm4586, %vm2020
    %vm4651 = vmand %vm4587, %vm2021
    %vm4652 = vmand %vm4588, %vm2022
    %vm4653 = vmand %vm4589, %vm2023
    %vm4654 = vmand %vm4590, %vm2024
    %vm4655 = vmand %vm4591, %vm2025
    %vm4656 = vmand %vm4592, %vm2026
    %vm4657 = vmand %vm4593, %vm2027
    %vm4658 = vmand %vm4594, %vm2028
    %vm4659 = vmand %vm4595, %vm2029
    %vm4660 = vmand %vm4596, %vm2030
    %vm4661 = vmand %vm4597, %vm2031
    %vm4662 = vmand %vm4598, %vm2032
    %vm4663 = vmand %vm4599, %vm2033
    %vm4664 = vmand %vm4600, %vm2034
    %vm4665 = vmand %vm4601, %vm2035
    %vm4666 = vmand %vm4602, %vm2036
    %vm4667 = vmand %vm4603, %vm2037
    %vm4668 = vmand %vm4604, %vm2038
    %vm4669 = vmand %vm4605, %vm2039
    %vm4670 = vmand %vm4606, %vm2040
    %vm4671 = vmand %vm4607, %vm2041
    %vm4672 = vmand %vm4608, %vm2042
    %vm4673 = vmand %vm4609, %vm2043
    %vm4674 = vmand %vm4610, %vm2044
    %vm4675 = vmand %vm4611, %vm2045
    %vm4676 = vmand %vm4612, %vm2046
    %vm4677 = vmand %vm4613, %vm2047
    %vm4678 = vmand %vm4614, %vm2048
    %vm4679 = vmand %vm4615, %vm2049
    %vm4680 = vmand %vm4616, %vm2050
    %vm4681 = vmand %vm4617, %vm2051
    %vm4682 = vmand %vm4618, %vm2052
    %vm4683 = vmand %vm4619, %vm2053
    %vm4684 = vmand %vm4620, %vm2054
    %vm4685 = vmand %vm4621, %vm2055
    %vm4686 = vmand %vm4622, %vm2056
    %vm4687 = vmand %vm4623, %vm2057
    %vm4688 = vmand %vm4624, %vm2058
    %vm4689 = vmand %vm4625, %vm2059
    %vm4690 = vmand %vm4626, %vm2060
    %vm4691 = vmand %vm4627, %vm2061
    %vm4692 = vmand %vm4628, %vm2062
    %vm4693 = vmand %vm4629, %vm2063
    %vm4694 = vmand %vm4630, %vm2064
    %vm4695 = vmand %vm4631, %vm2065
    %vm4696 = vmand %vm4632, %vm2066
    %vm4697 = vmand %vm4633, %vm2067
    %vm4698 = vmand %vm4634, %vm2068
    %v4699 = vsel %vm4635, 1, 0
    %v4700 = vsel %vm4636, 1, 0
    %v4701 = vsel %vm4637, 1, 0
    %v4702 = vsel %vm4638, 1, 0
    %v4703 = vsel %vm4639, 1, 0
    %v4704 = vsel %vm4640, 1, 0
    %v4705 = vsel %vm4641, 1, 0
    %v4706 = vsel %vm4642, 1, 0
    %v4707 = vsel %vm4643, 1, 0
    %v4708 = vsel %vm4644, 1, 0
    %v4709 = vsel %vm4645, 1, 0
    %v4710 = vsel %vm4646, 1, 0
    %v4711 = vsel %vm4647, 1, 0
    %v4712 = vsel %vm4648, 1, 0
    %v4713 = vsel %vm4649, 1, 0
    %v4714 = vsel %vm4650, 1, 0
    %v4715 = vsel %vm4651, 1, 0
    %v4716 = vsel %vm4652, 1, 0
    %v4717 = vsel %vm4653, 1, 0
    %v4718 = vsel %vm4654, 1, 0
    %v4719 = vsel %vm4655, 1, 0
    %v4720 = vsel %vm4656, 1, 0
    %v4721 = vsel %vm4657, 1, 0
    %v4722 = vsel %vm4658, 1, 0
    %v4723 = vsel %vm4659, 1, 0
    %v4724 = vsel %vm4660, 1, 0
    %v4725 = vsel %vm4661, 1, 0
    %v4726 = vsel %vm4662, 1, 0
    %v4727 = vsel %vm4663, 1, 0
    %v4728 = vsel %vm4664, 1, 0
    %v4729 = vsel %vm4665, 1, 0
    %v4730 = vsel %vm4666, 1, 0
    %v4731 = vsel %vm4667, 1, 0
    %v4732 = vsel %vm4668, 1, 0
    %v4733 = vsel %vm4669, 1, 0
    %v4734 = vsel %vm4670, 1, 0
    %v4735 = vsel %vm4671, 1, 0
    %v4736 = vsel %vm4672, 1, 0
    %v4737 = vsel %vm4673, 1, 0
    %v4738 = vsel %vm4674, 1, 0
    %v4739 = vsel %vm4675, 1, 0
    %v4740 = vsel %vm4676, 1, 0
    %v4741 = vsel %vm4677, 1, 0
    %v4742 = vsel %vm4678, 1, 0
    %v4743 = vsel %vm4679, 1, 0
    %v4744 = vsel %vm4680, 1, 0
    %v4745 = vsel %vm4681, 1, 0
    %v4746 = vsel %vm4682, 1, 0
    %v4747 = vsel %vm4683, 1, 0
    %v4748 = vsel %vm4684, 1, 0
    %v4749 = vsel %vm4685, 1, 0
    %v4750 = vsel %vm4686, 1, 0
    %v4751 = vsel %vm4687, 1, 0
    %v4752 = vsel %vm4688, 1, 0
    %v4753 = vsel %vm4689, 1, 0
    %v4754 = vsel %vm4690, 1, 0
    %v4755 = vsel %vm4691, 1, 0
    %v4756 = vsel %vm4692, 1, 0
    %v4757 = vsel %vm4693, 1, 0
    %v4758 = vsel %vm4694, 1, 0
    %v4759 = vsel %vm4695, 1, 0
    %v4760 = vsel %vm4696, 1, 0
    %v4761 = vsel %vm4697, 1, 0
    %v4762 = vsel %vm4698, 1, 0
    %vm4763 = vcmp.eq.s32.totalorder %v4699, 1
    %vm4764 = vcmp.eq.s32.totalorder %v4700, 1
    %vm4765 = vcmp.eq.s32.totalorder %v4701, 1
    %vm4766 = vcmp.eq.s32.totalorder %v4702, 1
    %vm4767 = vcmp.eq.s32.totalorder %v4703, 1
    %vm4768 = vcmp.eq.s32.totalorder %v4704, 1
    %vm4769 = vcmp.eq.s32.totalorder %v4705, 1
    %vm4770 = vcmp.eq.s32.totalorder %v4706, 1
    %vm4771 = vcmp.eq.s32.totalorder %v4707, 1
    %vm4772 = vcmp.eq.s32.totalorder %v4708, 1
    %vm4773 = vcmp.eq.s32.totalorder %v4709, 1
    %vm4774 = vcmp.eq.s32.totalorder %v4710, 1
    %vm4775 = vcmp.eq.s32.totalorder %v4711, 1
    %vm4776 = vcmp.eq.s32.totalorder %v4712, 1
    %vm4777 = vcmp.eq.s32.totalorder %v4713, 1
    %vm4778 = vcmp.eq.s32.totalorder %v4714, 1
    %vm4779 = vcmp.eq.s32.totalorder %v4715, 1
    %vm4780 = vcmp.eq.s32.totalorder %v4716, 1
    %vm4781 = vcmp.eq.s32.totalorder %v4717, 1
    %vm4782 = vcmp.eq.s32.totalorder %v4718, 1
    %vm4783 = vcmp.eq.s32.totalorder %v4719, 1
    %vm4784 = vcmp.eq.s32.totalorder %v4720, 1
    %vm4785 = vcmp.eq.s32.totalorder %v4721, 1
    %vm4786 = vcmp.eq.s32.totalorder %v4722, 1
    %vm4787 = vcmp.eq.s32.totalorder %v4723, 1
    %vm4788 = vcmp.eq.s32.totalorder %v4724, 1
    %vm4789 = vcmp.eq.s32.totalorder %v4725, 1
    %vm4790 = vcmp.eq.s32.totalorder %v4726, 1
    %vm4791 = vcmp.eq.s32.totalorder %v4727, 1
    %vm4792 = vcmp.eq.s32.totalorder %v4728, 1
    %vm4793 = vcmp.eq.s32.totalorder %v4729, 1
    %vm4794 = vcmp.eq.s32.totalorder %v4730, 1
    %vm4795 = vcmp.eq.s32.totalorder %v4731, 1
    %vm4796 = vcmp.eq.s32.totalorder %v4732, 1
    %vm4797 = vcmp.eq.s32.totalorder %v4733, 1
    %vm4798 = vcmp.eq.s32.totalorder %v4734, 1
    %vm4799 = vcmp.eq.s32.totalorder %v4735, 1
    %vm4800 = vcmp.eq.s32.totalorder %v4736, 1
    %vm4801 = vcmp.eq.s32.totalorder %v4737, 1
    %vm4802 = vcmp.eq.s32.totalorder %v4738, 1
    %vm4803 = vcmp.eq.s32.totalorder %v4739, 1
    %vm4804 = vcmp.eq.s32.totalorder %v4740, 1
    %vm4805 = vcmp.eq.s32.totalorder %v4741, 1
    %vm4806 = vcmp.eq.s32.totalorder %v4742, 1
    %vm4807 = vcmp.eq.s32.totalorder %v4743, 1
    %vm4808 = vcmp.eq.s32.totalorder %v4744, 1
    %vm4809 = vcmp.eq.s32.totalorder %v4745, 1
    %vm4810 = vcmp.eq.s32.totalorder %v4746, 1
    %vm4811 = vcmp.eq.s32.totalorder %v4747, 1
    %vm4812 = vcmp.eq.s32.totalorder %v4748, 1
    %vm4813 = vcmp.eq.s32.totalorder %v4749, 1
    %vm4814 = vcmp.eq.s32.totalorder %v4750, 1
    %vm4815 = vcmp.eq.s32.totalorder %v4751, 1
    %vm4816 = vcmp.eq.s32.totalorder %v4752, 1
    %vm4817 = vcmp.eq.s32.totalorder %v4753, 1
    %vm4818 = vcmp.eq.s32.totalorder %v4754, 1
    %vm4819 = vcmp.eq.s32.totalorder %v4755, 1
    %vm4820 = vcmp.eq.s32.totalorder %v4756, 1
    %vm4821 = vcmp.eq.s32.totalorder %v4757, 1
    %vm4822 = vcmp.eq.s32.totalorder %v4758, 1
    %vm4823 = vcmp.eq.s32.totalorder %v4759, 1
    %vm4824 = vcmp.eq.s32.totalorder %v4760, 1
    %vm4825 = vcmp.eq.s32.totalorder %v4761, 1
    %vm4826 = vcmp.eq.s32.totalorder %v4762, 1
    %v4827 = vsel %vm4763, %v2272, 0.0
    %v4828 = vsel %vm4764, %v2274, 0.0
    %v4829 = vsel %vm4765, %v2276, 0.0
    %v4830 = vsel %vm4766, %v2278, 0.0
    %v4831 = vsel %vm4767, %v2280, 0.0
    %v4832 = vsel %vm4768, %v2282, 0.0
    %v4833 = vsel %vm4769, %v2284, 0.0
    %v4834 = vsel %vm4770, %v2286, 0.0
    %v4835 = vsel %vm4771, %v2288, 0.0
    %v4836 = vsel %vm4772, %v2290, 0.0
    %v4837 = vsel %vm4773, %v2292, 0.0
    %v4838 = vsel %vm4774, %v2294, 0.0
    %v4839 = vsel %vm4775, %v2296, 0.0
    %v4840 = vsel %vm4776, %v2298, 0.0
    %v4841 = vsel %vm4777, %v2300, 0.0
    %v4842 = vsel %vm4778, %v2302, 0.0
    %v4843 = vsel %vm4779, %v2304, 0.0
    %v4844 = vsel %vm4780, %v2306, 0.0
    %v4845 = vsel %vm4781, %v2308, 0.0
    %v4846 = vsel %vm4782, %v2310, 0.0
    %v4847 = vsel %vm4783, %v2312, 0.0
    %v4848 = vsel %vm4784, %v2314, 0.0
    %v4849 = vsel %vm4785, %v2316, 0.0
    %v4850 = vsel %vm4786, %v2318, 0.0
    %v4851 = vsel %vm4787, %v2320, 0.0
    %v4852 = vsel %vm4788, %v2322, 0.0
    %v4853 = vsel %vm4789, %v2324, 0.0
    %v4854 = vsel %vm4790, %v2326, 0.0
    %v4855 = vsel %vm4791, %v2328, 0.0
    %v4856 = vsel %vm4792, %v2330, 0.0
    %v4857 = vsel %vm4793, %v2332, 0.0
    %v4858 = vsel %vm4794, %v2334, 0.0
    %v4859 = vsel %vm4795, %v2336, 0.0
    %v4860 = vsel %vm4796, %v2338, 0.0
    %v4861 = vsel %vm4797, %v2340, 0.0
    %v4862 = vsel %vm4798, %v2342, 0.0
    %v4863 = vsel %vm4799, %v2344, 0.0
    %v4864 = vsel %vm4800, %v2346, 0.0
    %v4865 = vsel %vm4801, %v2348, 0.0
    %v4866 = vsel %vm4802, %v2350, 0.0
    %v4867 = vsel %vm4803, %v2352, 0.0
    %v4868 = vsel %vm4804, %v2354, 0.0
    %v4869 = vsel %vm4805, %v2356, 0.0
    %v4870 = vsel %vm4806, %v2358, 0.0
    %v4871 = vsel %vm4807, %v2360, 0.0
    %v4872 = vsel %vm4808, %v2362, 0.0
    %v4873 = vsel %vm4809, %v2364, 0.0
    %v4874 = vsel %vm4810, %v2366, 0.0
    %v4875 = vsel %vm4811, %v2368, 0.0
    %v4876 = vsel %vm4812, %v2370, 0.0
    %v4877 = vsel %vm4813, %v2372, 0.0
    %v4878 = vsel %vm4814, %v2374, 0.0
    %v4879 = vsel %vm4815, %v2376, 0.0
    %v4880 = vsel %vm4816, %v2378, 0.0
    %v4881 = vsel %vm4817, %v2380, 0.0
    %v4882 = vsel %vm4818, %v2382, 0.0
    %v4883 = vsel %vm4819, %v2384, 0.0
    %v4884 = vsel %vm4820, %v2386, 0.0
    %v4885 = vsel %vm4821, %v2388, 0.0
    %v4886 = vsel %vm4822, %v2390, 0.0
    %v4887 = vsel %vm4823, %v3615, 0.0
    %v4888 = vsel %vm4824, %v3616, 0.0
    %v4889 = vsel %vm4825, %v2264, 0.0
    %v4890 = vsel %vm4826, %v2264, 0.0
    %4953 = vrot.lane.b32.xlu0 0.0, 3
    %v4954 = vpop.permute.xlu0 %4953
    %4955 = vrot.lane.b32.xlu0 %v1751, 3
    %v4956 = vpop.permute.xlu0 %4955
    %4957 = vrot.lane.b32.xlu0 %v1752, 3
    %v4958 = vpop.permute.xlu0 %4957
    %4959 = vrot.lane.b32.xlu0 %v1753, 3
    %v4960 = vpop.permute.xlu0 %4959
    %4961 = vrot.lane.b32.xlu0 %v1754, 3
    %v4962 = vpop.permute.xlu0 %4961
    %4963 = vrot.lane.b32.xlu0 %v1755, 3
    %v4964 = vpop.permute.xlu0 %4963
    %4965 = vrot.lane.b32.xlu0 %v1756, 3
    %v4966 = vpop.permute.xlu0 %4965
    %4967 = vrot.lane.b32.xlu0 %v1757, 3
    %v4968 = vpop.permute.xlu0 %4967
    %4969 = vrot.lane.b32.xlu0 %v1758, 3
    %v4970 = vpop.permute.xlu0 %4969
    %4971 = vrot.lane.b32.xlu0 %v1759, 3
    %v4972 = vpop.permute.xlu0 %4971
    %4973 = vrot.lane.b32.xlu0 %v1760, 3
    %v4974 = vpop.permute.xlu0 %4973
    %4975 = vrot.lane.b32.xlu0 %v1761, 3
    %v4976 = vpop.permute.xlu0 %4975
    %4977 = vrot.lane.b32.xlu0 %v1762, 3
    %v4978 = vpop.permute.xlu0 %4977
    %4979 = vrot.lane.b32.xlu0 %v1763, 3
    %v4980 = vpop.permute.xlu0 %4979
    %4981 = vrot.lane.b32.xlu0 %v1764, 3
    %v4982 = vpop.permute.xlu0 %4981
    %4983 = vrot.lane.b32.xlu0 %v1765, 3
    %v4984 = vpop.permute.xlu0 %4983
    %4985 = vrot.lane.b32.xlu0 %v1766, 3
    %v4986 = vpop.permute.xlu0 %4985
    %4987 = vrot.lane.b32.xlu0 %v1767, 3
    %v4988 = vpop.permute.xlu0 %4987
    %4989 = vrot.lane.b32.xlu0 %v1768, 3
    %v4990 = vpop.permute.xlu0 %4989
    %4991 = vrot.lane.b32.xlu0 %v1769, 3
    %v4992 = vpop.permute.xlu0 %4991
    %4993 = vrot.lane.b32.xlu0 %v1770, 3
    %v4994 = vpop.permute.xlu0 %4993
    %4995 = vrot.lane.b32.xlu0 %v1771, 3
    %v4996 = vpop.permute.xlu0 %4995
    %4997 = vrot.lane.b32.xlu0 %v1772, 3
    %v4998 = vpop.permute.xlu0 %4997
    %4999 = vrot.lane.b32.xlu0 %v1773, 3
    %v5000 = vpop.permute.xlu0 %4999
    %5001 = vrot.lane.b32.xlu0 %v1774, 3
    %v5002 = vpop.permute.xlu0 %5001
    %5003 = vrot.lane.b32.xlu0 %v1775, 3
    %v5004 = vpop.permute.xlu0 %5003
    %5005 = vrot.lane.b32.xlu0 %v1776, 3
    %v5006 = vpop.permute.xlu0 %5005
    %5007 = vrot.lane.b32.xlu0 %v1777, 3
    %v5008 = vpop.permute.xlu0 %5007
    %5009 = vrot.lane.b32.xlu0 %v1778, 3
    %v5010 = vpop.permute.xlu0 %5009
    %5011 = vrot.lane.b32.xlu0 %v1779, 3
    %v5012 = vpop.permute.xlu0 %5011
    %5013 = vrot.lane.b32.xlu0 %v1780, 3
    %v5014 = vpop.permute.xlu0 %5013
    %5015 = vrot.lane.b32.xlu0 %v1781, 3
    %v5016 = vpop.permute.xlu0 %5015
    %5017 = vrot.lane.b32.xlu0 %v1782, 3
    %v5018 = vpop.permute.xlu0 %5017
    %5019 = vrot.lane.b32.xlu0 %v1783, 3
    %v5020 = vpop.permute.xlu0 %5019
    %5021 = vrot.lane.b32.xlu0 %v1784, 3
    %v5022 = vpop.permute.xlu0 %5021
    %5023 = vrot.lane.b32.xlu0 %v1785, 3
    %v5024 = vpop.permute.xlu0 %5023
    %5025 = vrot.lane.b32.xlu0 %v1786, 3
    %v5026 = vpop.permute.xlu0 %5025
    %5027 = vrot.lane.b32.xlu0 %v1787, 3
    %v5028 = vpop.permute.xlu0 %5027
    %5029 = vrot.lane.b32.xlu0 %v1788, 3
    %v5030 = vpop.permute.xlu0 %5029
    %5031 = vrot.lane.b32.xlu0 %v1789, 3
    %v5032 = vpop.permute.xlu0 %5031
    %5033 = vrot.lane.b32.xlu0 %v1790, 3
    %v5034 = vpop.permute.xlu0 %5033
    %5035 = vrot.lane.b32.xlu0 %v1791, 3
    %v5036 = vpop.permute.xlu0 %5035
    %5037 = vrot.lane.b32.xlu0 %v1792, 3
    %v5038 = vpop.permute.xlu0 %5037
    %5039 = vrot.lane.b32.xlu0 %v1793, 3
    %v5040 = vpop.permute.xlu0 %5039
    %5041 = vrot.lane.b32.xlu0 %v1794, 3
    %v5042 = vpop.permute.xlu0 %5041
    %5043 = vrot.lane.b32.xlu0 %v1795, 3
    %v5044 = vpop.permute.xlu0 %5043
    %5045 = vrot.lane.b32.xlu0 %v1796, 3
    %v5046 = vpop.permute.xlu0 %5045
    %5047 = vrot.lane.b32.xlu0 %v1797, 3
    %v5048 = vpop.permute.xlu0 %5047
    %5049 = vrot.lane.b32.xlu0 %v1798, 3
    %v5050 = vpop.permute.xlu0 %5049
    %5051 = vrot.lane.b32.xlu0 %v1799, 3
    %v5052 = vpop.permute.xlu0 %5051
    %5053 = vrot.lane.b32.xlu0 %v1800, 3
    %v5054 = vpop.permute.xlu0 %5053
    %5055 = vrot.lane.b32.xlu0 %v1801, 3
    %v5056 = vpop.permute.xlu0 %5055
    %5057 = vrot.lane.b32.xlu0 %v1802, 3
    %v5058 = vpop.permute.xlu0 %5057
    %5059 = vrot.lane.b32.xlu0 %v1803, 3
    %v5060 = vpop.permute.xlu0 %5059
    %5061 = vrot.lane.b32.xlu0 %v1804, 3
    %v5062 = vpop.permute.xlu0 %5061
    %5063 = vrot.lane.b32.xlu0 %v1805, 3
    %v5064 = vpop.permute.xlu0 %5063
    %5065 = vrot.lane.b32.xlu0 %v1806, 3
    %v5066 = vpop.permute.xlu0 %5065
    %5067 = vrot.lane.b32.xlu0 %v1807, 3
    %v5068 = vpop.permute.xlu0 %5067
    %5069 = vrot.lane.b32.xlu0 %v1808, 3
    %v5070 = vpop.permute.xlu0 %5069
    %5071 = vrot.lane.b32.xlu0 %v1809, 3
    %v5072 = vpop.permute.xlu0 %5071
    %5073 = vrot.lane.b32.xlu0 %v1810, 3
    %v5074 = vpop.permute.xlu0 %5073
    %5075 = vrot.lane.b32.xlu0 %v1811, 3
    %v5076 = vpop.permute.xlu0 %5075
    %5077 = vrot.lane.b32.xlu0 %v1812, 3
    %v5078 = vpop.permute.xlu0 %5077
    %5206 = vrot.lane.b32.xlu0 %v2455, 6
    %v5207 = vpop.permute.xlu0 %5206
    %5208 = vrot.lane.b32.xlu0 %v2456, 6
    %v5209 = vpop.permute.xlu0 %5208
    %5210 = vrot.lane.b32.xlu0 %v2457, 6
    %v5211 = vpop.permute.xlu0 %5210
    %5212 = vrot.lane.b32.xlu0 %v2458, 6
    %v5213 = vpop.permute.xlu0 %5212
    %5214 = vrot.lane.b32.xlu0 %v2459, 6
    %v5215 = vpop.permute.xlu0 %5214
    %5216 = vrot.lane.b32.xlu0 %v2460, 6
    %v5217 = vpop.permute.xlu0 %5216
    %5218 = vrot.lane.b32.xlu0 %v2461, 6
    %v5219 = vpop.permute.xlu0 %5218
    %5220 = vrot.lane.b32.xlu0 %v2462, 6
    %v5221 = vpop.permute.xlu0 %5220
    %5222 = vrot.lane.b32.xlu0 %v2463, 6
    %v5223 = vpop.permute.xlu0 %5222
    %5224 = vrot.lane.b32.xlu0 %v2464, 6
    %v5225 = vpop.permute.xlu0 %5224
    %5226 = vrot.lane.b32.xlu0 %v2465, 6
    %v5227 = vpop.permute.xlu0 %5226
    %5228 = vrot.lane.b32.xlu0 %v2466, 6
    %v5229 = vpop.permute.xlu0 %5228
    %5230 = vrot.lane.b32.xlu0 %v2467, 6
    %v5231 = vpop.permute.xlu0 %5230
    %5232 = vrot.lane.b32.xlu0 %v2468, 6
    %v5233 = vpop.permute.xlu0 %5232
    %5234 = vrot.lane.b32.xlu0 %v2469, 6
    %v5235 = vpop.permute.xlu0 %5234
    %5236 = vrot.lane.b32.xlu0 %v2470, 6
    %v5237 = vpop.permute.xlu0 %5236
    %5238 = vrot.lane.b32.xlu0 %v2471, 6
    %v5239 = vpop.permute.xlu0 %5238
    %5240 = vrot.lane.b32.xlu0 %v2472, 6
    %v5241 = vpop.permute.xlu0 %5240
    %5242 = vrot.lane.b32.xlu0 %v2473, 6
    %v5243 = vpop.permute.xlu0 %5242
    %5244 = vrot.lane.b32.xlu0 %v2474, 6
    %v5245 = vpop.permute.xlu0 %5244
    %5246 = vrot.lane.b32.xlu0 %v2475, 6
    %v5247 = vpop.permute.xlu0 %5246
    %5248 = vrot.lane.b32.xlu0 %v2476, 6
    %v5249 = vpop.permute.xlu0 %5248
    %5250 = vrot.lane.b32.xlu0 %v2477, 6
    %v5251 = vpop.permute.xlu0 %5250
    %5252 = vrot.lane.b32.xlu0 %v2478, 6
    %v5253 = vpop.permute.xlu0 %5252
    %5254 = vrot.lane.b32.xlu0 %v2479, 6
    %v5255 = vpop.permute.xlu0 %5254
    %5256 = vrot.lane.b32.xlu0 %v2480, 6
    %v5257 = vpop.permute.xlu0 %5256
    %5258 = vrot.lane.b32.xlu0 %v2481, 6
    %v5259 = vpop.permute.xlu0 %5258
    %5260 = vrot.lane.b32.xlu0 %v2482, 6
    %v5261 = vpop.permute.xlu0 %5260
    %5262 = vrot.lane.b32.xlu0 %v2483, 6
    %v5263 = vpop.permute.xlu0 %5262
    %5264 = vrot.lane.b32.xlu0 %v2484, 6
    %v5265 = vpop.permute.xlu0 %5264
    %5266 = vrot.lane.b32.xlu0 %v2485, 6
    %v5267 = vpop.permute.xlu0 %5266
    %5268 = vrot.lane.b32.xlu0 %v2486, 6
    %v5269 = vpop.permute.xlu0 %5268
    %5270 = vrot.lane.b32.xlu0 %v2487, 6
    %v5271 = vpop.permute.xlu0 %5270
    %5272 = vrot.lane.b32.xlu0 %v2488, 6
    %v5273 = vpop.permute.xlu0 %5272
    %5274 = vrot.lane.b32.xlu0 %v2489, 6
    %v5275 = vpop.permute.xlu0 %5274
    %5276 = vrot.lane.b32.xlu0 %v2490, 6
    %v5277 = vpop.permute.xlu0 %5276
    %5278 = vrot.lane.b32.xlu0 %v2491, 6
    %v5279 = vpop.permute.xlu0 %5278
    %5280 = vrot.lane.b32.xlu0 %v2492, 6
    %v5281 = vpop.permute.xlu0 %5280
    %5282 = vrot.lane.b32.xlu0 %v2493, 6
    %v5283 = vpop.permute.xlu0 %5282
    %5284 = vrot.lane.b32.xlu0 %v2494, 6
    %v5285 = vpop.permute.xlu0 %5284
    %5286 = vrot.lane.b32.xlu0 %v2495, 6
    %v5287 = vpop.permute.xlu0 %5286
    %5288 = vrot.lane.b32.xlu0 %v2496, 6
    %v5289 = vpop.permute.xlu0 %5288
    %5290 = vrot.lane.b32.xlu0 %v2497, 6
    %v5291 = vpop.permute.xlu0 %5290
    %5292 = vrot.lane.b32.xlu0 %v2498, 6
    %v5293 = vpop.permute.xlu0 %5292
    %5294 = vrot.lane.b32.xlu0 %v2499, 6
    %v5295 = vpop.permute.xlu0 %5294
    %5296 = vrot.lane.b32.xlu0 %v2500, 6
    %v5297 = vpop.permute.xlu0 %5296
    %5298 = vrot.lane.b32.xlu0 %v2501, 6
    %v5299 = vpop.permute.xlu0 %5298
    %5300 = vrot.lane.b32.xlu0 %v2502, 6
    %v5301 = vpop.permute.xlu0 %5300
    %5302 = vrot.lane.b32.xlu0 %v2503, 6
    %v5303 = vpop.permute.xlu0 %5302
    %5304 = vrot.lane.b32.xlu0 %v2504, 6
    %v5305 = vpop.permute.xlu0 %5304
    %5306 = vrot.lane.b32.xlu0 %v2505, 6
    %v5307 = vpop.permute.xlu0 %5306
    %5308 = vrot.lane.b32.xlu0 %v2506, 6
    %v5309 = vpop.permute.xlu0 %5308
    %5310 = vrot.lane.b32.xlu0 %v2507, 6
    %v5311 = vpop.permute.xlu0 %5310
    %5312 = vrot.lane.b32.xlu0 %v2508, 6
    %v5313 = vpop.permute.xlu0 %5312
    %5314 = vrot.lane.b32.xlu0 %v2509, 6
    %v5315 = vpop.permute.xlu0 %5314
    %5316 = vrot.lane.b32.xlu0 %v2510, 6
    %v5317 = vpop.permute.xlu0 %5316
    %5318 = vrot.lane.b32.xlu0 %v2511, 6
    %v5319 = vpop.permute.xlu0 %5318
    %5320 = vrot.lane.b32.xlu0 %v2512, 6
    %v5321 = vpop.permute.xlu0 %5320
    %5322 = vrot.lane.b32.xlu0 %v2513, 6
    %v5323 = vpop.permute.xlu0 %5322
    %5324 = vrot.lane.b32.xlu0 %v2514, 6
    %v5325 = vpop.permute.xlu0 %5324
    %5326 = vrot.lane.b32.xlu0 %v2515, 6
    %v5327 = vpop.permute.xlu0 %5326
    %5328 = vrot.lane.b32.xlu0 %v2516, 6
    %v5329 = vpop.permute.xlu0 %5328
    %5330 = vrot.lane.b32.xlu0 %v2517, 6
    %v5331 = vpop.permute.xlu0 %5330
    %5332 = vrot.lane.b32.xlu0 %v2518, 6
    %v5333 = vpop.permute.xlu0 %5332
    %5462 = vrot.lane.b32.xlu0 %v2974, 9
    %v5463 = vpop.permute.xlu0 %5462
    %5464 = vrot.lane.b32.xlu0 %v2975, 9
    %v5465 = vpop.permute.xlu0 %5464
    %5466 = vrot.lane.b32.xlu0 %v2976, 9
    %v5467 = vpop.permute.xlu0 %5466
    %5468 = vrot.lane.b32.xlu0 %v2977, 9
    %v5469 = vpop.permute.xlu0 %5468
    %5470 = vrot.lane.b32.xlu0 %v2978, 9
    %v5471 = vpop.permute.xlu0 %5470
    %5472 = vrot.lane.b32.xlu0 %v2979, 9
    %v5473 = vpop.permute.xlu0 %5472
    %5474 = vrot.lane.b32.xlu0 %v2980, 9
    %v5475 = vpop.permute.xlu0 %5474
    %5476 = vrot.lane.b32.xlu0 %v2981, 9
    %v5477 = vpop.permute.xlu0 %5476
    %5478 = vrot.lane.b32.xlu0 %v2982, 9
    %v5479 = vpop.permute.xlu0 %5478
    %5480 = vrot.lane.b32.xlu0 %v2983, 9
    %v5481 = vpop.permute.xlu0 %5480
    %5482 = vrot.lane.b32.xlu0 %v2984, 9
    %v5483 = vpop.permute.xlu0 %5482
    %5484 = vrot.lane.b32.xlu0 %v2985, 9
    %v5485 = vpop.permute.xlu0 %5484
    %5486 = vrot.lane.b32.xlu0 %v2986, 9
    %v5487 = vpop.permute.xlu0 %5486
    %5488 = vrot.lane.b32.xlu0 %v2987, 9
    %v5489 = vpop.permute.xlu0 %5488
    %5490 = vrot.lane.b32.xlu0 %v2988, 9
    %v5491 = vpop.permute.xlu0 %5490
    %5492 = vrot.lane.b32.xlu0 %v2989, 9
    %v5493 = vpop.permute.xlu0 %5492
    %5494 = vrot.lane.b32.xlu0 %v2990, 9
    %v5495 = vpop.permute.xlu0 %5494
    %5496 = vrot.lane.b32.xlu0 %v2991, 9
    %v5497 = vpop.permute.xlu0 %5496
    %5498 = vrot.lane.b32.xlu0 %v2992, 9
    %v5499 = vpop.permute.xlu0 %5498
    %5500 = vrot.lane.b32.xlu0 %v2993, 9
    %v5501 = vpop.permute.xlu0 %5500
    %5502 = vrot.lane.b32.xlu0 %v2994, 9
    %v5503 = vpop.permute.xlu0 %5502
    %5504 = vrot.lane.b32.xlu0 %v2995, 9
    %v5505 = vpop.permute.xlu0 %5504
    %5506 = vrot.lane.b32.xlu0 %v2996, 9
    %v5507 = vpop.permute.xlu0 %5506
    %5508 = vrot.lane.b32.xlu0 %v2997, 9
    %v5509 = vpop.permute.xlu0 %5508
    %5510 = vrot.lane.b32.xlu0 %v2998, 9
    %v5511 = vpop.permute.xlu0 %5510
    %5512 = vrot.lane.b32.xlu0 %v2999, 9
    %v5513 = vpop.permute.xlu0 %5512
    %5514 = vrot.lane.b32.xlu0 %v3000, 9
    %v5515 = vpop.permute.xlu0 %5514
    %5516 = vrot.lane.b32.xlu0 %v3001, 9
    %v5517 = vpop.permute.xlu0 %5516
    %5518 = vrot.lane.b32.xlu0 %v3002, 9
    %v5519 = vpop.permute.xlu0 %5518
    %5520 = vrot.lane.b32.xlu0 %v3003, 9
    %v5521 = vpop.permute.xlu0 %5520
    %5522 = vrot.lane.b32.xlu0 %v3004, 9
    %v5523 = vpop.permute.xlu0 %5522
    %5524 = vrot.lane.b32.xlu0 %v3005, 9
    %v5525 = vpop.permute.xlu0 %5524
    %5526 = vrot.lane.b32.xlu0 %v3006, 9
    %v5527 = vpop.permute.xlu0 %5526
    %5528 = vrot.lane.b32.xlu0 %v3007, 9
    %v5529 = vpop.permute.xlu0 %5528
    %5530 = vrot.lane.b32.xlu0 %v3008, 9
    %v5531 = vpop.permute.xlu0 %5530
    %5532 = vrot.lane.b32.xlu0 %v3009, 9
    %v5533 = vpop.permute.xlu0 %5532
    %5534 = vrot.lane.b32.xlu0 %v3010, 9
    %v5535 = vpop.permute.xlu0 %5534
    %5536 = vrot.lane.b32.xlu0 %v3011, 9
    %v5537 = vpop.permute.xlu0 %5536
    %5538 = vrot.lane.b32.xlu0 %v3012, 9
    %v5539 = vpop.permute.xlu0 %5538
    %5540 = vrot.lane.b32.xlu0 %v3013, 9
    %v5541 = vpop.permute.xlu0 %5540
    %5542 = vrot.lane.b32.xlu0 %v3014, 9
    %v5543 = vpop.permute.xlu0 %5542
    %5544 = vrot.lane.b32.xlu0 %v3015, 9
    %v5545 = vpop.permute.xlu0 %5544
    %5546 = vrot.lane.b32.xlu0 %v3016, 9
    %v5547 = vpop.permute.xlu0 %5546
    %5548 = vrot.lane.b32.xlu0 %v3017, 9
    %v5549 = vpop.permute.xlu0 %5548
    %5550 = vrot.lane.b32.xlu0 %v3018, 9
    %v5551 = vpop.permute.xlu0 %5550
    %5552 = vrot.lane.b32.xlu0 %v3019, 9
    %v5553 = vpop.permute.xlu0 %5552
    %5554 = vrot.lane.b32.xlu0 %v3020, 9
    %v5555 = vpop.permute.xlu0 %5554
    %5556 = vrot.lane.b32.xlu0 %v3021, 9
    %v5557 = vpop.permute.xlu0 %5556
    %5558 = vrot.lane.b32.xlu0 %v3022, 9
    %v5559 = vpop.permute.xlu0 %5558
    %5560 = vrot.lane.b32.xlu0 %v3023, 9
    %v5561 = vpop.permute.xlu0 %5560
    %5562 = vrot.lane.b32.xlu0 %v3024, 9
    %v5563 = vpop.permute.xlu0 %5562
    %5564 = vrot.lane.b32.xlu0 %v3025, 9
    %v5565 = vpop.permute.xlu0 %5564
    %5566 = vrot.lane.b32.xlu0 %v3026, 9
    %v5567 = vpop.permute.xlu0 %5566
    %5568 = vrot.lane.b32.xlu0 %v3027, 9
    %v5569 = vpop.permute.xlu0 %5568
    %5570 = vrot.lane.b32.xlu0 %v3028, 9
    %v5571 = vpop.permute.xlu0 %5570
    %5572 = vrot.lane.b32.xlu0 %v3029, 9
    %v5573 = vpop.permute.xlu0 %5572
    %5574 = vrot.lane.b32.xlu0 %v3030, 9
    %v5575 = vpop.permute.xlu0 %5574
    %5576 = vrot.lane.b32.xlu0 %v3031, 9
    %v5577 = vpop.permute.xlu0 %5576
    %5578 = vrot.lane.b32.xlu0 %v3032, 9
    %v5579 = vpop.permute.xlu0 %5578
    %5580 = vrot.lane.b32.xlu0 %v3033, 9
    %v5581 = vpop.permute.xlu0 %5580
    %5582 = vrot.lane.b32.xlu0 %v3034, 9
    %v5583 = vpop.permute.xlu0 %5582
    %5584 = vrot.lane.b32.xlu0 %v3035, 9
    %v5585 = vpop.permute.xlu0 %5584
    %5586 = vrot.lane.b32.xlu0 %v3036, 9
    %v5587 = vpop.permute.xlu0 %5586
    %5588 = vrot.lane.b32.xlu0 %v3037, 9
    %v5589 = vpop.permute.xlu0 %5588
    %5718 = vrot.lane.b32.xlu0 %v3294, 12
    %v5719 = vpop.permute.xlu0 %5718
    %5720 = vrot.lane.b32.xlu0 %v3295, 12
    %v5721 = vpop.permute.xlu0 %5720
    %5722 = vrot.lane.b32.xlu0 %v3296, 12
    %v5723 = vpop.permute.xlu0 %5722
    %5724 = vrot.lane.b32.xlu0 %v3297, 12
    %v5725 = vpop.permute.xlu0 %5724
    %5726 = vrot.lane.b32.xlu0 %v3298, 12
    %v5727 = vpop.permute.xlu0 %5726
    %5728 = vrot.lane.b32.xlu0 %v3299, 12
    %v5729 = vpop.permute.xlu0 %5728
    %5730 = vrot.lane.b32.xlu0 %v3300, 12
    %v5731 = vpop.permute.xlu0 %5730
    %5732 = vrot.lane.b32.xlu0 %v3301, 12
    %v5733 = vpop.permute.xlu0 %5732
    %5734 = vrot.lane.b32.xlu0 %v3302, 12
    %v5735 = vpop.permute.xlu0 %5734
    %5736 = vrot.lane.b32.xlu0 %v3303, 12
    %v5737 = vpop.permute.xlu0 %5736
    %5738 = vrot.lane.b32.xlu0 %v3304, 12
    %v5739 = vpop.permute.xlu0 %5738
    %5740 = vrot.lane.b32.xlu0 %v3305, 12
    %v5741 = vpop.permute.xlu0 %5740
    %5742 = vrot.lane.b32.xlu0 %v3306, 12
    %v5743 = vpop.permute.xlu0 %5742
    %5744 = vrot.lane.b32.xlu0 %v3307, 12
    %v5745 = vpop.permute.xlu0 %5744
    %5746 = vrot.lane.b32.xlu0 %v3308, 12
    %v5747 = vpop.permute.xlu0 %5746
    %5748 = vrot.lane.b32.xlu0 %v3309, 12
    %v5749 = vpop.permute.xlu0 %5748
    %5750 = vrot.lane.b32.xlu0 %v3310, 12
    %v5751 = vpop.permute.xlu0 %5750
    %5752 = vrot.lane.b32.xlu0 %v3311, 12
    %v5753 = vpop.permute.xlu0 %5752
    %5754 = vrot.lane.b32.xlu0 %v3312, 12
    %v5755 = vpop.permute.xlu0 %5754
    %5756 = vrot.lane.b32.xlu0 %v3313, 12
    %v5757 = vpop.permute.xlu0 %5756
    %5758 = vrot.lane.b32.xlu0 %v3314, 12
    %v5759 = vpop.permute.xlu0 %5758
    %5760 = vrot.lane.b32.xlu0 %v3315, 12
    %v5761 = vpop.permute.xlu0 %5760
    %5762 = vrot.lane.b32.xlu0 %v3316, 12
    %v5763 = vpop.permute.xlu0 %5762
    %5764 = vrot.lane.b32.xlu0 %v3317, 12
    %v5765 = vpop.permute.xlu0 %5764
    %5766 = vrot.lane.b32.xlu0 %v3318, 12
    %v5767 = vpop.permute.xlu0 %5766
    %5768 = vrot.lane.b32.xlu0 %v3319, 12
    %v5769 = vpop.permute.xlu0 %5768
    %5770 = vrot.lane.b32.xlu0 %v3320, 12
    %v5771 = vpop.permute.xlu0 %5770
    %5772 = vrot.lane.b32.xlu0 %v3321, 12
    %v5773 = vpop.permute.xlu0 %5772
    %5774 = vrot.lane.b32.xlu0 %v3322, 12
    %v5775 = vpop.permute.xlu0 %5774
    %5776 = vrot.lane.b32.xlu0 %v3323, 12
    %v5777 = vpop.permute.xlu0 %5776
    %5778 = vrot.lane.b32.xlu0 %v3324, 12
    %v5779 = vpop.permute.xlu0 %5778
    %5780 = vrot.lane.b32.xlu0 %v3325, 12
    %v5781 = vpop.permute.xlu0 %5780
    %5782 = vrot.lane.b32.xlu0 %v3326, 12
    %v5783 = vpop.permute.xlu0 %5782
    %5784 = vrot.lane.b32.xlu0 %v3327, 12
    %v5785 = vpop.permute.xlu0 %5784
    %5786 = vrot.lane.b32.xlu0 %v3328, 12
    %v5787 = vpop.permute.xlu0 %5786
    %5788 = vrot.lane.b32.xlu0 %v3329, 12
    %v5789 = vpop.permute.xlu0 %5788
    %5790 = vrot.lane.b32.xlu0 %v3330, 12
    %v5791 = vpop.permute.xlu0 %5790
    %5792 = vrot.lane.b32.xlu0 %v3331, 12
    %v5793 = vpop.permute.xlu0 %5792
    %5794 = vrot.lane.b32.xlu0 %v3332, 12
    %v5795 = vpop.permute.xlu0 %5794
    %5796 = vrot.lane.b32.xlu0 %v3333, 12
    %v5797 = vpop.permute.xlu0 %5796
    %5798 = vrot.lane.b32.xlu0 %v3334, 12
    %v5799 = vpop.permute.xlu0 %5798
    %5800 = vrot.lane.b32.xlu0 %v3335, 12
    %v5801 = vpop.permute.xlu0 %5800
    %5802 = vrot.lane.b32.xlu0 %v3336, 12
    %v5803 = vpop.permute.xlu0 %5802
    %5804 = vrot.lane.b32.xlu0 %v3337, 12
    %v5805 = vpop.permute.xlu0 %5804
    %5806 = vrot.lane.b32.xlu0 %v3338, 12
    %v5807 = vpop.permute.xlu0 %5806
    %5808 = vrot.lane.b32.xlu0 %v3339, 12
    %v5809 = vpop.permute.xlu0 %5808
    %5810 = vrot.lane.b32.xlu0 %v3340, 12
    %v5811 = vpop.permute.xlu0 %5810
    %5812 = vrot.lane.b32.xlu0 %v3341, 12
    %v5813 = vpop.permute.xlu0 %5812
    %5814 = vrot.lane.b32.xlu0 %v3342, 12
    %v5815 = vpop.permute.xlu0 %5814
    %5816 = vrot.lane.b32.xlu0 %v3343, 12
    %v5817 = vpop.permute.xlu0 %5816
    %5818 = vrot.lane.b32.xlu0 %v3344, 12
    %v5819 = vpop.permute.xlu0 %5818
    %5820 = vrot.lane.b32.xlu0 %v3345, 12
    %v5821 = vpop.permute.xlu0 %5820
    %5822 = vrot.lane.b32.xlu0 %v3346, 12
    %v5823 = vpop.permute.xlu0 %5822
    %5824 = vrot.lane.b32.xlu0 %v3347, 12
    %v5825 = vpop.permute.xlu0 %5824
    %5826 = vrot.lane.b32.xlu0 %v3348, 12
    %v5827 = vpop.permute.xlu0 %5826
    %5828 = vrot.lane.b32.xlu0 %v3349, 12
    %v5829 = vpop.permute.xlu0 %5828
    %5830 = vrot.lane.b32.xlu0 %v3350, 12
    %v5831 = vpop.permute.xlu0 %5830
    %5832 = vrot.lane.b32.xlu0 %v3351, 12
    %v5833 = vpop.permute.xlu0 %5832
    %5834 = vrot.lane.b32.xlu0 %v3352, 12
    %v5835 = vpop.permute.xlu0 %5834
    %5836 = vrot.lane.b32.xlu0 %v3353, 12
    %v5837 = vpop.permute.xlu0 %5836
    %5838 = vrot.lane.b32.xlu0 %v3354, 12
    %v5839 = vpop.permute.xlu0 %5838
    %5840 = vrot.lane.b32.xlu0 %v3355, 12
    %v5841 = vpop.permute.xlu0 %5840
    %5842 = vrot.lane.b32.xlu0 %v3356, 12
    %v5843 = vpop.permute.xlu0 %5842
    %5844 = vrot.lane.b32.xlu0 %v3357, 12
    %v5845 = vpop.permute.xlu0 %5844
    %5974 = vrot.lane.b32.xlu0 %v3619, 15
    %v5975 = vpop.permute.xlu0 %5974
    %5976 = vrot.lane.b32.xlu0 %v3620, 15
    %v5977 = vpop.permute.xlu0 %5976
    %5978 = vrot.lane.b32.xlu0 %v3621, 15
    %v5979 = vpop.permute.xlu0 %5978
    %5980 = vrot.lane.b32.xlu0 %v3622, 15
    %v5981 = vpop.permute.xlu0 %5980
    %5982 = vrot.lane.b32.xlu0 %v3623, 15
    %v5983 = vpop.permute.xlu0 %5982
    %5984 = vrot.lane.b32.xlu0 %v3624, 15
    %v5985 = vpop.permute.xlu0 %5984
    %5986 = vrot.lane.b32.xlu0 %v3625, 15
    %v5987 = vpop.permute.xlu0 %5986
    %5988 = vrot.lane.b32.xlu0 %v3626, 15
    %v5989 = vpop.permute.xlu0 %5988
    %5990 = vrot.lane.b32.xlu0 %v3627, 15
    %v5991 = vpop.permute.xlu0 %5990
    %5992 = vrot.lane.b32.xlu0 %v3628, 15
    %v5993 = vpop.permute.xlu0 %5992
    %5994 = vrot.lane.b32.xlu0 %v3629, 15
    %v5995 = vpop.permute.xlu0 %5994
    %5996 = vrot.lane.b32.xlu0 %v3630, 15
    %v5997 = vpop.permute.xlu0 %5996
    %5998 = vrot.lane.b32.xlu0 %v3631, 15
    %v5999 = vpop.permute.xlu0 %5998
    %6000 = vrot.lane.b32.xlu0 %v3632, 15
    %v6001 = vpop.permute.xlu0 %6000
    %6002 = vrot.lane.b32.xlu0 %v3633, 15
    %v6003 = vpop.permute.xlu0 %6002
    %6004 = vrot.lane.b32.xlu0 %v3634, 15
    %v6005 = vpop.permute.xlu0 %6004
    %6006 = vrot.lane.b32.xlu0 %v3635, 15
    %v6007 = vpop.permute.xlu0 %6006
    %6008 = vrot.lane.b32.xlu0 %v3636, 15
    %v6009 = vpop.permute.xlu0 %6008
    %6010 = vrot.lane.b32.xlu0 %v3637, 15
    %v6011 = vpop.permute.xlu0 %6010
    %6012 = vrot.lane.b32.xlu0 %v3638, 15
    %v6013 = vpop.permute.xlu0 %6012
    %6014 = vrot.lane.b32.xlu0 %v3639, 15
    %v6015 = vpop.permute.xlu0 %6014
    %6016 = vrot.lane.b32.xlu0 %v3640, 15
    %v6017 = vpop.permute.xlu0 %6016
    %6018 = vrot.lane.b32.xlu0 %v3641, 15
    %v6019 = vpop.permute.xlu0 %6018
    %6020 = vrot.lane.b32.xlu0 %v3642, 15
    %v6021 = vpop.permute.xlu0 %6020
    %6022 = vrot.lane.b32.xlu0 %v3643, 15
    %v6023 = vpop.permute.xlu0 %6022
    %6024 = vrot.lane.b32.xlu0 %v3644, 15
    %v6025 = vpop.permute.xlu0 %6024
    %6026 = vrot.lane.b32.xlu0 %v3645, 15
    %v6027 = vpop.permute.xlu0 %6026
    %6028 = vrot.lane.b32.xlu0 %v3646, 15
    %v6029 = vpop.permute.xlu0 %6028
    %6030 = vrot.lane.b32.xlu0 %v3647, 15
    %v6031 = vpop.permute.xlu0 %6030
    %6032 = vrot.lane.b32.xlu0 %v3648, 15
    %v6033 = vpop.permute.xlu0 %6032
    %6034 = vrot.lane.b32.xlu0 %v3649, 15
    %v6035 = vpop.permute.xlu0 %6034
    %6036 = vrot.lane.b32.xlu0 %v3650, 15
    %v6037 = vpop.permute.xlu0 %6036
    %6038 = vrot.lane.b32.xlu0 %v3651, 15
    %v6039 = vpop.permute.xlu0 %6038
    %6040 = vrot.lane.b32.xlu0 %v3652, 15
    %v6041 = vpop.permute.xlu0 %6040
    %6042 = vrot.lane.b32.xlu0 %v3653, 15
    %v6043 = vpop.permute.xlu0 %6042
    %6044 = vrot.lane.b32.xlu0 %v3654, 15
    %v6045 = vpop.permute.xlu0 %6044
    %6046 = vrot.lane.b32.xlu0 %v3655, 15
    %v6047 = vpop.permute.xlu0 %6046
    %6048 = vrot.lane.b32.xlu0 %v3656, 15
    %v6049 = vpop.permute.xlu0 %6048
    %6050 = vrot.lane.b32.xlu0 %v3657, 15
    %v6051 = vpop.permute.xlu0 %6050
    %6052 = vrot.lane.b32.xlu0 %v3658, 15
    %v6053 = vpop.permute.xlu0 %6052
    %6054 = vrot.lane.b32.xlu0 %v3659, 15
    %v6055 = vpop.permute.xlu0 %6054
    %6056 = vrot.lane.b32.xlu0 %v3660, 15
    %v6057 = vpop.permute.xlu0 %6056
    %6058 = vrot.lane.b32.xlu0 %v3661, 15
    %v6059 = vpop.permute.xlu0 %6058
    %6060 = vrot.lane.b32.xlu0 %v3662, 15
    %v6061 = vpop.permute.xlu0 %6060
    %6062 = vrot.lane.b32.xlu0 %v3663, 15
    %v6063 = vpop.permute.xlu0 %6062
    %6064 = vrot.lane.b32.xlu0 %v3664, 15
    %v6065 = vpop.permute.xlu0 %6064
    %6066 = vrot.lane.b32.xlu0 %v3665, 15
    %v6067 = vpop.permute.xlu0 %6066
    %6068 = vrot.lane.b32.xlu0 %v3666, 15
    %v6069 = vpop.permute.xlu0 %6068
    %6070 = vrot.lane.b32.xlu0 %v3667, 15
    %v6071 = vpop.permute.xlu0 %6070
    %6072 = vrot.lane.b32.xlu0 %v3668, 15
    %v6073 = vpop.permute.xlu0 %6072
    %6074 = vrot.lane.b32.xlu0 %v3669, 15
    %v6075 = vpop.permute.xlu0 %6074
    %6076 = vrot.lane.b32.xlu0 %v3670, 15
    %v6077 = vpop.permute.xlu0 %6076
    %6078 = vrot.lane.b32.xlu0 %v3671, 15
    %v6079 = vpop.permute.xlu0 %6078
    %6080 = vrot.lane.b32.xlu0 %v3672, 15
    %v6081 = vpop.permute.xlu0 %6080
    %6082 = vrot.lane.b32.xlu0 %v3673, 15
    %v6083 = vpop.permute.xlu0 %6082
    %6084 = vrot.lane.b32.xlu0 %v3674, 15
    %v6085 = vpop.permute.xlu0 %6084
    %6086 = vrot.lane.b32.xlu0 %v3675, 15
    %v6087 = vpop.permute.xlu0 %6086
    %6088 = vrot.lane.b32.xlu0 %v3676, 15
    %v6089 = vpop.permute.xlu0 %6088
    %6090 = vrot.lane.b32.xlu0 %v3677, 15
    %v6091 = vpop.permute.xlu0 %6090
    %6092 = vrot.lane.b32.xlu0 %v3678, 15
    %v6093 = vpop.permute.xlu0 %6092
    %6094 = vrot.lane.b32.xlu0 %v3679, 15
    %v6095 = vpop.permute.xlu0 %6094
    %6096 = vrot.lane.b32.xlu0 %v3680, 15
    %v6097 = vpop.permute.xlu0 %6096
    %6098 = vrot.lane.b32.xlu0 %v3681, 15
    %v6099 = vpop.permute.xlu0 %6098
    %6100 = vrot.lane.b32.xlu0 %v3682, 15
    %v6101 = vpop.permute.xlu0 %6100
    %6230 = vrot.lane.b32.xlu0 %v4197, 18
    %v6231 = vpop.permute.xlu0 %6230
    %6232 = vrot.lane.b32.xlu0 %v4198, 18
    %v6233 = vpop.permute.xlu0 %6232
    %6234 = vrot.lane.b32.xlu0 %v4199, 18
    %v6235 = vpop.permute.xlu0 %6234
    %6236 = vrot.lane.b32.xlu0 %v4200, 18
    %v6237 = vpop.permute.xlu0 %6236
    %6238 = vrot.lane.b32.xlu0 %v4201, 18
    %v6239 = vpop.permute.xlu0 %6238
    %6240 = vrot.lane.b32.xlu0 %v4202, 18
    %v6241 = vpop.permute.xlu0 %6240
    %6242 = vrot.lane.b32.xlu0 %v4203, 18
    %v6243 = vpop.permute.xlu0 %6242
    %6244 = vrot.lane.b32.xlu0 %v4204, 18
    %v6245 = vpop.permute.xlu0 %6244
    %6246 = vrot.lane.b32.xlu0 %v4205, 18
    %v6247 = vpop.permute.xlu0 %6246
    %6248 = vrot.lane.b32.xlu0 %v4206, 18
    %v6249 = vpop.permute.xlu0 %6248
    %6250 = vrot.lane.b32.xlu0 %v4207, 18
    %v6251 = vpop.permute.xlu0 %6250
    %6252 = vrot.lane.b32.xlu0 %v4208, 18
    %v6253 = vpop.permute.xlu0 %6252
    %6254 = vrot.lane.b32.xlu0 %v4209, 18
    %v6255 = vpop.permute.xlu0 %6254
    %6256 = vrot.lane.b32.xlu0 %v4210, 18
    %v6257 = vpop.permute.xlu0 %6256
    %6258 = vrot.lane.b32.xlu0 %v4211, 18
    %v6259 = vpop.permute.xlu0 %6258
    %6260 = vrot.lane.b32.xlu0 %v4212, 18
    %v6261 = vpop.permute.xlu0 %6260
    %6262 = vrot.lane.b32.xlu0 %v4213, 18
    %v6263 = vpop.permute.xlu0 %6262
    %6264 = vrot.lane.b32.xlu0 %v4214, 18
    %v6265 = vpop.permute.xlu0 %6264
    %6266 = vrot.lane.b32.xlu0 %v4215, 18
    %v6267 = vpop.permute.xlu0 %6266
    %6268 = vrot.lane.b32.xlu0 %v4216, 18
    %v6269 = vpop.permute.xlu0 %6268
    %6270 = vrot.lane.b32.xlu0 %v4217, 18
    %v6271 = vpop.permute.xlu0 %6270
    %6272 = vrot.lane.b32.xlu0 %v4218, 18
    %v6273 = vpop.permute.xlu0 %6272
    %6274 = vrot.lane.b32.xlu0 %v4219, 18
    %v6275 = vpop.permute.xlu0 %6274
    %6276 = vrot.lane.b32.xlu0 %v4220, 18
    %v6277 = vpop.permute.xlu0 %6276
    %6278 = vrot.lane.b32.xlu0 %v4221, 18
    %v6279 = vpop.permute.xlu0 %6278
    %6280 = vrot.lane.b32.xlu0 %v4222, 18
    %v6281 = vpop.permute.xlu0 %6280
    %6282 = vrot.lane.b32.xlu0 %v4223, 18
    %v6283 = vpop.permute.xlu0 %6282
    %6284 = vrot.lane.b32.xlu0 %v4224, 18
    %v6285 = vpop.permute.xlu0 %6284
    %6286 = vrot.lane.b32.xlu0 %v4225, 18
    %v6287 = vpop.permute.xlu0 %6286
    %6288 = vrot.lane.b32.xlu0 %v4226, 18
    %v6289 = vpop.permute.xlu0 %6288
    %6290 = vrot.lane.b32.xlu0 %v4227, 18
    %v6291 = vpop.permute.xlu0 %6290
    %6292 = vrot.lane.b32.xlu0 %v4228, 18
    %v6293 = vpop.permute.xlu0 %6292
    %6294 = vrot.lane.b32.xlu0 %v4229, 18
    %v6295 = vpop.permute.xlu0 %6294
    %6296 = vrot.lane.b32.xlu0 %v4230, 18
    %v6297 = vpop.permute.xlu0 %6296
    %6298 = vrot.lane.b32.xlu0 %v4231, 18
    %v6299 = vpop.permute.xlu0 %6298
    %6300 = vrot.lane.b32.xlu0 %v4232, 18
    %v6301 = vpop.permute.xlu0 %6300
    %6302 = vrot.lane.b32.xlu0 %v4233, 18
    %v6303 = vpop.permute.xlu0 %6302
    %6304 = vrot.lane.b32.xlu0 %v4234, 18
    %v6305 = vpop.permute.xlu0 %6304
    %6306 = vrot.lane.b32.xlu0 %v4235, 18
    %v6307 = vpop.permute.xlu0 %6306
    %6308 = vrot.lane.b32.xlu0 %v4236, 18
    %v6309 = vpop.permute.xlu0 %6308
    %6310 = vrot.lane.b32.xlu0 %v4237, 18
    %v6311 = vpop.permute.xlu0 %6310
    %6312 = vrot.lane.b32.xlu0 %v4238, 18
    %v6313 = vpop.permute.xlu0 %6312
    %6314 = vrot.lane.b32.xlu0 %v4239, 18
    %v6315 = vpop.permute.xlu0 %6314
    %6316 = vrot.lane.b32.xlu0 %v4240, 18
    %v6317 = vpop.permute.xlu0 %6316
    %6318 = vrot.lane.b32.xlu0 %v4241, 18
    %v6319 = vpop.permute.xlu0 %6318
    %6320 = vrot.lane.b32.xlu0 %v4242, 18
    %v6321 = vpop.permute.xlu0 %6320
    %6322 = vrot.lane.b32.xlu0 %v4243, 18
    %v6323 = vpop.permute.xlu0 %6322
    %6324 = vrot.lane.b32.xlu0 %v4244, 18
    %v6325 = vpop.permute.xlu0 %6324
    %6326 = vrot.lane.b32.xlu0 %v4245, 18
    %v6327 = vpop.permute.xlu0 %6326
    %6328 = vrot.lane.b32.xlu0 %v4246, 18
    %v6329 = vpop.permute.xlu0 %6328
    %6330 = vrot.lane.b32.xlu0 %v4247, 18
    %v6331 = vpop.permute.xlu0 %6330
    %6332 = vrot.lane.b32.xlu0 %v4248, 18
    %v6333 = vpop.permute.xlu0 %6332
    %6334 = vrot.lane.b32.xlu0 %v4249, 18
    %v6335 = vpop.permute.xlu0 %6334
    %6336 = vrot.lane.b32.xlu0 %v4250, 18
    %v6337 = vpop.permute.xlu0 %6336
    %6338 = vrot.lane.b32.xlu0 %v4251, 18
    %v6339 = vpop.permute.xlu0 %6338
    %6340 = vrot.lane.b32.xlu0 %v4252, 18
    %v6341 = vpop.permute.xlu0 %6340
    %6342 = vrot.lane.b32.xlu0 %v4253, 18
    %v6343 = vpop.permute.xlu0 %6342
    %6344 = vrot.lane.b32.xlu0 %v4254, 18
    %v6345 = vpop.permute.xlu0 %6344
    %6346 = vrot.lane.b32.xlu0 %v4255, 18
    %v6347 = vpop.permute.xlu0 %6346
    %6348 = vrot.lane.b32.xlu0 %v4256, 18
    %v6349 = vpop.permute.xlu0 %6348
    %6350 = vrot.lane.b32.xlu0 %v4257, 18
    %v6351 = vpop.permute.xlu0 %6350
    %6352 = vrot.lane.b32.xlu0 %v4258, 18
    %v6353 = vpop.permute.xlu0 %6352
    %6354 = vrot.lane.b32.xlu0 %v4259, 18
    %v6355 = vpop.permute.xlu0 %6354
    %6356 = vrot.lane.b32.xlu0 %v4260, 18
    %v6357 = vpop.permute.xlu0 %6356
    %6484 = vrot.lane.b32.xlu0 %v4509, 21
    %v6485 = vpop.permute.xlu0 %6484
    %6486 = vrot.lane.b32.xlu0 %v4510, 21
    %v6487 = vpop.permute.xlu0 %6486
    %6488 = vrot.lane.b32.xlu0 %v4511, 21
    %v6489 = vpop.permute.xlu0 %6488
    %6490 = vrot.lane.b32.xlu0 %v4512, 21
    %v6491 = vpop.permute.xlu0 %6490
    %6492 = vrot.lane.b32.xlu0 %v4513, 21
    %v6493 = vpop.permute.xlu0 %6492
    %6494 = vrot.lane.b32.xlu0 %v4514, 21
    %v6495 = vpop.permute.xlu0 %6494
    %6496 = vrot.lane.b32.xlu0 %v4515, 21
    %v6497 = vpop.permute.xlu0 %6496
    %6498 = vrot.lane.b32.xlu0 %v4516, 21
    %v6499 = vpop.permute.xlu0 %6498
    %6500 = vrot.lane.b32.xlu0 %v4517, 21
    %v6501 = vpop.permute.xlu0 %6500
    %6502 = vrot.lane.b32.xlu0 %v4518, 21
    %v6503 = vpop.permute.xlu0 %6502
    %6504 = vrot.lane.b32.xlu0 %v4519, 21
    %v6505 = vpop.permute.xlu0 %6504
    %6506 = vrot.lane.b32.xlu0 %v4520, 21
    %v6507 = vpop.permute.xlu0 %6506
    %6508 = vrot.lane.b32.xlu0 %v4521, 21
    %v6509 = vpop.permute.xlu0 %6508
    %6510 = vrot.lane.b32.xlu0 %v4522, 21
    %v6511 = vpop.permute.xlu0 %6510
    %6512 = vrot.lane.b32.xlu0 %v4523, 21
    %v6513 = vpop.permute.xlu0 %6512
    %6514 = vrot.lane.b32.xlu0 %v4524, 21
    %v6515 = vpop.permute.xlu0 %6514
    %6516 = vrot.lane.b32.xlu0 %v4525, 21
    %v6517 = vpop.permute.xlu0 %6516
    %6518 = vrot.lane.b32.xlu0 %v4526, 21
    %v6519 = vpop.permute.xlu0 %6518
    %6520 = vrot.lane.b32.xlu0 %v4527, 21
    %v6521 = vpop.permute.xlu0 %6520
    %6522 = vrot.lane.b32.xlu0 %v4528, 21
    %v6523 = vpop.permute.xlu0 %6522
    %6524 = vrot.lane.b32.xlu0 %v4529, 21
    %v6525 = vpop.permute.xlu0 %6524
    %6526 = vrot.lane.b32.xlu0 %v4530, 21
    %v6527 = vpop.permute.xlu0 %6526
    %6528 = vrot.lane.b32.xlu0 %v4531, 21
    %v6529 = vpop.permute.xlu0 %6528
    %6530 = vrot.lane.b32.xlu0 %v4532, 21
    %v6531 = vpop.permute.xlu0 %6530
    %6532 = vrot.lane.b32.xlu0 %v4533, 21
    %v6533 = vpop.permute.xlu0 %6532
    %6534 = vrot.lane.b32.xlu0 %v4534, 21
    %v6535 = vpop.permute.xlu0 %6534
    %6536 = vrot.lane.b32.xlu0 %v4535, 21
    %v6537 = vpop.permute.xlu0 %6536
    %6538 = vrot.lane.b32.xlu0 %v4536, 21
    %v6539 = vpop.permute.xlu0 %6538
    %6540 = vrot.lane.b32.xlu0 %v4537, 21
    %v6541 = vpop.permute.xlu0 %6540
    %6542 = vrot.lane.b32.xlu0 %v4538, 21
    %v6543 = vpop.permute.xlu0 %6542
    %6544 = vrot.lane.b32.xlu0 %v4539, 21
    %v6545 = vpop.permute.xlu0 %6544
    %6546 = vrot.lane.b32.xlu0 %v4540, 21
    %v6547 = vpop.permute.xlu0 %6546
    %6548 = vrot.lane.b32.xlu0 %v4541, 21
    %v6549 = vpop.permute.xlu0 %6548
    %6550 = vrot.lane.b32.xlu0 %v4542, 21
    %v6551 = vpop.permute.xlu0 %6550
    %6552 = vrot.lane.b32.xlu0 %v4543, 21
    %v6553 = vpop.permute.xlu0 %6552
    %6554 = vrot.lane.b32.xlu0 %v4544, 21
    %v6555 = vpop.permute.xlu0 %6554
    %6556 = vrot.lane.b32.xlu0 %v4545, 21
    %v6557 = vpop.permute.xlu0 %6556
    %6558 = vrot.lane.b32.xlu0 %v4546, 21
    %v6559 = vpop.permute.xlu0 %6558
    %6560 = vrot.lane.b32.xlu0 %v4547, 21
    %v6561 = vpop.permute.xlu0 %6560
    %6562 = vrot.lane.b32.xlu0 %v4548, 21
    %v6563 = vpop.permute.xlu0 %6562
    %6564 = vrot.lane.b32.xlu0 %v4549, 21
    %v6565 = vpop.permute.xlu0 %6564
    %6566 = vrot.lane.b32.xlu0 %v4550, 21
    %v6567 = vpop.permute.xlu0 %6566
    %6568 = vrot.lane.b32.xlu0 %v4551, 21
    %v6569 = vpop.permute.xlu0 %6568
    %6570 = vrot.lane.b32.xlu0 %v4552, 21
    %v6571 = vpop.permute.xlu0 %6570
    %6572 = vrot.lane.b32.xlu0 %v4553, 21
    %v6573 = vpop.permute.xlu0 %6572
    %6574 = vrot.lane.b32.xlu0 %v4554, 21
    %v6575 = vpop.permute.xlu0 %6574
    %6576 = vrot.lane.b32.xlu0 %v4555, 21
    %v6577 = vpop.permute.xlu0 %6576
    %6578 = vrot.lane.b32.xlu0 %v4556, 21
    %v6579 = vpop.permute.xlu0 %6578
    %6580 = vrot.lane.b32.xlu0 %v4557, 21
    %v6581 = vpop.permute.xlu0 %6580
    %6582 = vrot.lane.b32.xlu0 %v4558, 21
    %v6583 = vpop.permute.xlu0 %6582
    %6584 = vrot.lane.b32.xlu0 %v4559, 21
    %v6585 = vpop.permute.xlu0 %6584
    %6586 = vrot.lane.b32.xlu0 %v4560, 21
    %v6587 = vpop.permute.xlu0 %6586
    %6588 = vrot.lane.b32.xlu0 %v4561, 21
    %v6589 = vpop.permute.xlu0 %6588
    %6590 = vrot.lane.b32.xlu0 %v4562, 21
    %v6591 = vpop.permute.xlu0 %6590
    %6592 = vrot.lane.b32.xlu0 %v4563, 21
    %v6593 = vpop.permute.xlu0 %6592
    %6594 = vrot.lane.b32.xlu0 %v4564, 21
    %v6595 = vpop.permute.xlu0 %6594
    %6596 = vrot.lane.b32.xlu0 %v4565, 21
    %v6597 = vpop.permute.xlu0 %6596
    %6598 = vrot.lane.b32.xlu0 %v4566, 21
    %v6599 = vpop.permute.xlu0 %6598
    %6600 = vrot.lane.b32.xlu0 %v4567, 21
    %v6601 = vpop.permute.xlu0 %6600
    %6602 = vrot.lane.b32.xlu0 %v4568, 21
    %v6603 = vpop.permute.xlu0 %6602
    %6604 = vrot.lane.b32.xlu0 %v4569, 21
    %v6605 = vpop.permute.xlu0 %6604
    %6606 = vrot.lane.b32.xlu0 %v4570, 21
    %v6607 = vpop.permute.xlu0 %6606
    %6608 = vrot.lane.b32.xlu0 0.0, 21
    %v6609 = vpop.permute.xlu0 %6608
    %6737 = vrot.lane.b32.xlu0 %v4827, 24
    %v6738 = vpop.permute.xlu0 %6737
    %6739 = vrot.lane.b32.xlu0 %v4828, 24
    %v6740 = vpop.permute.xlu0 %6739
    %6741 = vrot.lane.b32.xlu0 %v4829, 24
    %v6742 = vpop.permute.xlu0 %6741
    %6743 = vrot.lane.b32.xlu0 %v4830, 24
    %v6744 = vpop.permute.xlu0 %6743
    %6745 = vrot.lane.b32.xlu0 %v4831, 24
    %v6746 = vpop.permute.xlu0 %6745
    %6747 = vrot.lane.b32.xlu0 %v4832, 24
    %v6748 = vpop.permute.xlu0 %6747
    %6749 = vrot.lane.b32.xlu0 %v4833, 24
    %v6750 = vpop.permute.xlu0 %6749
    %6751 = vrot.lane.b32.xlu0 %v4834, 24
    %v6752 = vpop.permute.xlu0 %6751
    %6753 = vrot.lane.b32.xlu0 %v4835, 24
    %v6754 = vpop.permute.xlu0 %6753
    %6755 = vrot.lane.b32.xlu0 %v4836, 24
    %v6756 = vpop.permute.xlu0 %6755
    %6757 = vrot.lane.b32.xlu0 %v4837, 24
    %v6758 = vpop.permute.xlu0 %6757
    %6759 = vrot.lane.b32.xlu0 %v4838, 24
    %v6760 = vpop.permute.xlu0 %6759
    %6761 = vrot.lane.b32.xlu0 %v4839, 24
    %v6762 = vpop.permute.xlu0 %6761
    %6763 = vrot.lane.b32.xlu0 %v4840, 24
    %v6764 = vpop.permute.xlu0 %6763
    %6765 = vrot.lane.b32.xlu0 %v4841, 24
    %v6766 = vpop.permute.xlu0 %6765
    %6767 = vrot.lane.b32.xlu0 %v4842, 24
    %v6768 = vpop.permute.xlu0 %6767
    %6769 = vrot.lane.b32.xlu0 %v4843, 24
    %v6770 = vpop.permute.xlu0 %6769
    %6771 = vrot.lane.b32.xlu0 %v4844, 24
    %v6772 = vpop.permute.xlu0 %6771
    %6773 = vrot.lane.b32.xlu0 %v4845, 24
    %v6774 = vpop.permute.xlu0 %6773
    %6775 = vrot.lane.b32.xlu0 %v4846, 24
    %v6776 = vpop.permute.xlu0 %6775
    %6777 = vrot.lane.b32.xlu0 %v4847, 24
    %v6778 = vpop.permute.xlu0 %6777
    %6779 = vrot.lane.b32.xlu0 %v4848, 24
    %v6780 = vpop.permute.xlu0 %6779
    %6781 = vrot.lane.b32.xlu0 %v4849, 24
    %v6782 = vpop.permute.xlu0 %6781
    %6783 = vrot.lane.b32.xlu0 %v4850, 24
    %v6784 = vpop.permute.xlu0 %6783
    %6785 = vrot.lane.b32.xlu0 %v4851, 24
    %v6786 = vpop.permute.xlu0 %6785
    %6787 = vrot.lane.b32.xlu0 %v4852, 24
    %v6788 = vpop.permute.xlu0 %6787
    %6789 = vrot.lane.b32.xlu0 %v4853, 24
    %v6790 = vpop.permute.xlu0 %6789
    %6791 = vrot.lane.b32.xlu0 %v4854, 24
    %v6792 = vpop.permute.xlu0 %6791
    %6793 = vrot.lane.b32.xlu0 %v4855, 24
    %v6794 = vpop.permute.xlu0 %6793
    %6795 = vrot.lane.b32.xlu0 %v4856, 24
    %v6796 = vpop.permute.xlu0 %6795
    %6797 = vrot.lane.b32.xlu0 %v4857, 24
    %v6798 = vpop.permute.xlu0 %6797
    %6799 = vrot.lane.b32.xlu0 %v4858, 24
    %v6800 = vpop.permute.xlu0 %6799
    %6801 = vrot.lane.b32.xlu0 %v4859, 24
    %v6802 = vpop.permute.xlu0 %6801
    %6803 = vrot.lane.b32.xlu0 %v4860, 24
    %v6804 = vpop.permute.xlu0 %6803
    %6805 = vrot.lane.b32.xlu0 %v4861, 24
    %v6806 = vpop.permute.xlu0 %6805
    %6807 = vrot.lane.b32.xlu0 %v4862, 24
    %v6808 = vpop.permute.xlu0 %6807
    %6809 = vrot.lane.b32.xlu0 %v4863, 24
    %v6810 = vpop.permute.xlu0 %6809
    %6811 = vrot.lane.b32.xlu0 %v4864, 24
    %v6812 = vpop.permute.xlu0 %6811
    %6813 = vrot.lane.b32.xlu0 %v4865, 24
    %v6814 = vpop.permute.xlu0 %6813
    %6815 = vrot.lane.b32.xlu0 %v4866, 24
    %v6816 = vpop.permute.xlu0 %6815
    %6817 = vrot.lane.b32.xlu0 %v4867, 24
    %v6818 = vpop.permute.xlu0 %6817
    %6819 = vrot.lane.b32.xlu0 %v4868, 24
    %v6820 = vpop.permute.xlu0 %6819
    %6821 = vrot.lane.b32.xlu0 %v4869, 24
    %v6822 = vpop.permute.xlu0 %6821
    %6823 = vrot.lane.b32.xlu0 %v4870, 24
    %v6824 = vpop.permute.xlu0 %6823
    %6825 = vrot.lane.b32.xlu0 %v4871, 24
    %v6826 = vpop.permute.xlu0 %6825
    %6827 = vrot.lane.b32.xlu0 %v4872, 24
    %v6828 = vpop.permute.xlu0 %6827
    %6829 = vrot.lane.b32.xlu0 %v4873, 24
    %v6830 = vpop.permute.xlu0 %6829
    %6831 = vrot.lane.b32.xlu0 %v4874, 24
    %v6832 = vpop.permute.xlu0 %6831
    %6833 = vrot.lane.b32.xlu0 %v4875, 24
    %v6834 = vpop.permute.xlu0 %6833
    %6835 = vrot.lane.b32.xlu0 %v4876, 24
    %v6836 = vpop.permute.xlu0 %6835
    %6837 = vrot.lane.b32.xlu0 %v4877, 24
    %v6838 = vpop.permute.xlu0 %6837
    %6839 = vrot.lane.b32.xlu0 %v4878, 24
    %v6840 = vpop.permute.xlu0 %6839
    %6841 = vrot.lane.b32.xlu0 %v4879, 24
    %v6842 = vpop.permute.xlu0 %6841
    %6843 = vrot.lane.b32.xlu0 %v4880, 24
    %v6844 = vpop.permute.xlu0 %6843
    %6845 = vrot.lane.b32.xlu0 %v4881, 24
    %v6846 = vpop.permute.xlu0 %6845
    %6847 = vrot.lane.b32.xlu0 %v4882, 24
    %v6848 = vpop.permute.xlu0 %6847
    %6849 = vrot.lane.b32.xlu0 %v4883, 24
    %v6850 = vpop.permute.xlu0 %6849
    %6851 = vrot.lane.b32.xlu0 %v4884, 24
    %v6852 = vpop.permute.xlu0 %6851
    %6853 = vrot.lane.b32.xlu0 %v4885, 24
    %v6854 = vpop.permute.xlu0 %6853
    %6855 = vrot.lane.b32.xlu0 %v4886, 24
    %v6856 = vpop.permute.xlu0 %6855
    %6857 = vrot.lane.b32.xlu0 %v4887, 24
    %v6858 = vpop.permute.xlu0 %6857
    %6859 = vrot.lane.b32.xlu0 %v4888, 24
    %v6860 = vpop.permute.xlu0 %6859
    %6861 = vrot.lane.b32.xlu0 %v4889, 24
    %v6862 = vpop.permute.xlu0 %6861
    %6863 = vrot.lane.b32.xlu0 %v4890, 24
    %v6864 = vpop.permute.xlu0 %6863
    %vm6929 = vcmask 23552
    %v6930 = vsel %vm6929, %v1311, %v4954
    %v6931 = vsel %vm6929, %v1312, %v4954
    %v6932 = vsel %vm6929, %v1313, %v4956
    %v6933 = vsel %vm6929, %v1314, %v4958
    %v6934 = vsel %vm6929, %v1315, %v4960
    %v6935 = vsel %vm6929, %v1316, %v4962
    %v6936 = vsel %vm6929, %v1317, %v4964
    %v6937 = vsel %vm6929, %v1318, %v4966
    %v6938 = vsel %vm6929, %v1319, %v4968
    %v6939 = vsel %vm6929, %v1320, %v4970
    %v6940 = vsel %vm6929, %v1321, %v4972
    %v6941 = vsel %vm6929, %v1322, %v4974
    %v6942 = vsel %vm6929, %v1323, %v4976
    %v6943 = vsel %vm6929, %v1324, %v4978
    %v6944 = vsel %vm6929, %v1325, %v4980
    %v6945 = vsel %vm6929, %v1326, %v4982
    %v6946 = vsel %vm6929, %v1327, %v4984
    %v6947 = vsel %vm6929, %v1328, %v4986
    %v6948 = vsel %vm6929, %v1329, %v4988
    %v6949 = vsel %vm6929, %v1330, %v4990
    %v6950 = vsel %vm6929, %v1331, %v4992
    %v6951 = vsel %vm6929, %v1332, %v4994
    %v6952 = vsel %vm6929, %v1333, %v4996
    %v6953 = vsel %vm6929, %v1334, %v4998
    %v6954 = vsel %vm6929, %v1335, %v5000
    %v6955 = vsel %vm6929, %v1336, %v5002
    %v6956 = vsel %vm6929, %v1337, %v5004
    %v6957 = vsel %vm6929, %v1338, %v5006
    %v6958 = vsel %vm6929, %v1339, %v5008
    %v6959 = vsel %vm6929, %v1340, %v5010
    %v6960 = vsel %vm6929, %v1341, %v5012
    %v6961 = vsel %vm6929, %v1342, %v5014
    %v6962 = vsel %vm6929, %v1343, %v5016
    %v6963 = vsel %vm6929, %v1344, %v5018
    %v6964 = vsel %vm6929, %v1345, %v5020
    %v6965 = vsel %vm6929, %v1346, %v5022
    %v6966 = vsel %vm6929, %v1347, %v5024
    %v6967 = vsel %vm6929, %v1348, %v5026
    %v6968 = vsel %vm6929, %v1349, %v5028
    %v6969 = vsel %vm6929, %v1350, %v5030
    %v6970 = vsel %vm6929, %v1351, %v5032
    %v6971 = vsel %vm6929, %v1352, %v5034
    %v6972 = vsel %vm6929, %v1353, %v5036
    %v6973 = vsel %vm6929, %v1354, %v5038
    %v6974 = vsel %vm6929, %v1355, %v5040
    %v6975 = vsel %vm6929, %v1356, %v5042
    %v6976 = vsel %vm6929, %v1357, %v5044
    %v6977 = vsel %vm6929, %v1358, %v5046
    %v6978 = vsel %vm6929, %v1359, %v5048
    %v6979 = vsel %vm6929, %v1360, %v5050
    %v6980 = vsel %vm6929, %v1361, %v5052
    %v6981 = vsel %vm6929, %v1362, %v5054
    %v6982 = vsel %vm6929, %v1363, %v5056
    %v6983 = vsel %vm6929, %v1364, %v5058
    %v6984 = vsel %vm6929, %v1365, %v5060
    %v6985 = vsel %vm6929, %v1366, %v5062
    %v6986 = vsel %vm6929, %v1367, %v5064
    %v6987 = vsel %vm6929, %v1368, %v5066
    %v6988 = vsel %vm6929, %v1369, %v5068
    %v6989 = vsel %vm6929, %v1370, %v5070
    %v6990 = vsel %vm6929, %v1371, %v5072
    %v6991 = vsel %vm6929, %v1372, %v5074
    %v6992 = vsel %vm6929, %v1373, %v5076
    %v6993 = vsel %vm6929, %v1374, %v5078
    %vm6994 = vcmask 48128
    %v6995 = vsel %vm6994, %v6930, %v5207
    %v6996 = vsel %vm6994, %v6931, %v5209
    %v6997 = vsel %vm6994, %v6932, %v5211
    %v6998 = vsel %vm6994, %v6933, %v5213
    %v6999 = vsel %vm6994, %v6934, %v5215
    %v7000 = vsel %vm6994, %v6935, %v5217
    %v7001 = vsel %vm6994, %v6936, %v5219
    %v7002 = vsel %vm6994, %v6937, %v5221
    %v7003 = vsel %vm6994, %v6938, %v5223
    %v7004 = vsel %vm6994, %v6939, %v5225
    %v7005 = vsel %vm6994, %v6940, %v5227
    %v7006 = vsel %vm6994, %v6941, %v5229
    %v7007 = vsel %vm6994, %v6942, %v5231
    %v7008 = vsel %vm6994, %v6943, %v5233
    %v7009 = vsel %vm6994, %v6944, %v5235
    %v7010 = vsel %vm6994, %v6945, %v5237
    %v7011 = vsel %vm6994, %v6946, %v5239
    %v7012 = vsel %vm6994, %v6947, %v5241
    %v7013 = vsel %vm6994, %v6948, %v5243
    %v7014 = vsel %vm6994, %v6949, %v5245
    %v7015 = vsel %vm6994, %v6950, %v5247
    %v7016 = vsel %vm6994, %v6951, %v5249
    %v7017 = vsel %vm6994, %v6952, %v5251
    %v7018 = vsel %vm6994, %v6953, %v5253
    %v7019 = vsel %vm6994, %v6954, %v5255
    %v7020 = vsel %vm6994, %v6955, %v5257
    %v7021 = vsel %vm6994, %v6956, %v5259
    %v7022 = vsel %vm6994, %v6957, %v5261
    %v7023 = vsel %vm6994, %v6958, %v5263
    %v7024 = vsel %vm6994, %v6959, %v5265
    %v7025 = vsel %vm6994, %v6960, %v5267
    %v7026 = vsel %vm6994, %v6961, %v5269
    %v7027 = vsel %vm6994, %v6962, %v5271
    %v7028 = vsel %vm6994, %v6963, %v5273
    %v7029 = vsel %vm6994, %v6964, %v5275
    %v7030 = vsel %vm6994, %v6965, %v5277
    %v7031 = vsel %vm6994, %v6966, %v5279
    %v7032 = vsel %vm6994, %v6967, %v5281
    %v7033 = vsel %vm6994, %v6968, %v5283
    %v7034 = vsel %vm6994, %v6969, %v5285
    %v7035 = vsel %vm6994, %v6970, %v5287
    %v7036 = vsel %vm6994, %v6971, %v5289
    %v7037 = vsel %vm6994, %v6972, %v5291
    %v7038 = vsel %vm6994, %v6973, %v5293
    %v7039 = vsel %vm6994, %v6974, %v5295
    %v7040 = vsel %vm6994, %v6975, %v5297
    %v7041 = vsel %vm6994, %v6976, %v5299
    %v7042 = vsel %vm6994, %v6977, %v5301
    %v7043 = vsel %vm6994, %v6978, %v5303
    %v7044 = vsel %vm6994, %v6979, %v5305
    %v7045 = vsel %vm6994, %v6980, %v5307
    %v7046 = vsel %vm6994, %v6981, %v5309
    %v7047 = vsel %vm6994, %v6982, %v5311
    %v7048 = vsel %vm6994, %v6983, %v5313
    %v7049 = vsel %vm6994, %v6984, %v5315
    %v7050 = vsel %vm6994, %v6985, %v5317
    %v7051 = vsel %vm6994, %v6986, %v5319
    %v7052 = vsel %vm6994, %v6987, %v5321
    %v7053 = vsel %vm6994, %v6988, %v5323
    %v7054 = vsel %vm6994, %v6989, %v5325
    %v7055 = vsel %vm6994, %v6990, %v5327
    %v7056 = vsel %vm6994, %v6991, %v5329
    %v7057 = vsel %vm6994, %v6992, %v5331
    %v7058 = vsel %vm6994, %v6993, %v5333
    %vm7059 = vcmask 72704
    %v7060 = vsel %vm7059, %v6995, %v5463
    %v7061 = vsel %vm7059, %v6996, %v5465
    %v7062 = vsel %vm7059, %v6997, %v5467
    %v7063 = vsel %vm7059, %v6998, %v5469
    %v7064 = vsel %vm7059, %v6999, %v5471
    %v7065 = vsel %vm7059, %v7000, %v5473
    %v7066 = vsel %vm7059, %v7001, %v5475
    %v7067 = vsel %vm7059, %v7002, %v5477
    %v7068 = vsel %vm7059, %v7003, %v5479
    %v7069 = vsel %vm7059, %v7004, %v5481
    %v7070 = vsel %vm7059, %v7005, %v5483
    %v7071 = vsel %vm7059, %v7006, %v5485
    %v7072 = vsel %vm7059, %v7007, %v5487
    %v7073 = vsel %vm7059, %v7008, %v5489
    %v7074 = vsel %vm7059, %v7009, %v5491
    %v7075 = vsel %vm7059, %v7010, %v5493
    %v7076 = vsel %vm7059, %v7011, %v5495
    %v7077 = vsel %vm7059, %v7012, %v5497
    %v7078 = vsel %vm7059, %v7013, %v5499
    %v7079 = vsel %vm7059, %v7014, %v5501
    %v7080 = vsel %vm7059, %v7015, %v5503
    %v7081 = vsel %vm7059, %v7016, %v5505
    %v7082 = vsel %vm7059, %v7017, %v5507
    %v7083 = vsel %vm7059, %v7018, %v5509
    %v7084 = vsel %vm7059, %v7019, %v5511
    %v7085 = vsel %vm7059, %v7020, %v5513
    %v7086 = vsel %vm7059, %v7021, %v5515
    %v7087 = vsel %vm7059, %v7022, %v5517
    %v7088 = vsel %vm7059, %v7023, %v5519
    %v7089 = vsel %vm7059, %v7024, %v5521
    %v7090 = vsel %vm7059, %v7025, %v5523
    %v7091 = vsel %vm7059, %v7026, %v5525
    %v7092 = vsel %vm7059, %v7027, %v5527
    %v7093 = vsel %vm7059, %v7028, %v5529
    %v7094 = vsel %vm7059, %v7029, %v5531
    %v7095 = vsel %vm7059, %v7030, %v5533
    %v7096 = vsel %vm7059, %v7031, %v5535
    %v7097 = vsel %vm7059, %v7032, %v5537
    %v7098 = vsel %vm7059, %v7033, %v5539
    %v7099 = vsel %vm7059, %v7034, %v5541
    %v7100 = vsel %vm7059, %v7035, %v5543
    %v7101 = vsel %vm7059, %v7036, %v5545
    %v7102 = vsel %vm7059, %v7037, %v5547
    %v7103 = vsel %vm7059, %v7038, %v5549
    %v7104 = vsel %vm7059, %v7039, %v5551
    %v7105 = vsel %vm7059, %v7040, %v5553
    %v7106 = vsel %vm7059, %v7041, %v5555
    %v7107 = vsel %vm7059, %v7042, %v5557
    %v7108 = vsel %vm7059, %v7043, %v5559
    %v7109 = vsel %vm7059, %v7044, %v5561
    %v7110 = vsel %vm7059, %v7045, %v5563
    %v7111 = vsel %vm7059, %v7046, %v5565
    %v7112 = vsel %vm7059, %v7047, %v5567
    %v7113 = vsel %vm7059, %v7048, %v5569
    %v7114 = vsel %vm7059, %v7049, %v5571
    %v7115 = vsel %vm7059, %v7050, %v5573
    %v7116 = vsel %vm7059, %v7051, %v5575
    %v7117 = vsel %vm7059, %v7052, %v5577
    %v7118 = vsel %vm7059, %v7053, %v5579
    %v7119 = vsel %vm7059, %v7054, %v5581
    %v7120 = vsel %vm7059, %v7055, %v5583
    %v7121 = vsel %vm7059, %v7056, %v5585
    %v7122 = vsel %vm7059, %v7057, %v5587
    %v7123 = vsel %vm7059, %v7058, %v5589
    %vm7124 = vcmask 97280
    %v7125 = vsel %vm7124, %v7060, %v5719
    %v7126 = vsel %vm7124, %v7061, %v5721
    %v7127 = vsel %vm7124, %v7062, %v5723
    %v7128 = vsel %vm7124, %v7063, %v5725
    %v7129 = vsel %vm7124, %v7064, %v5727
    %v7130 = vsel %vm7124, %v7065, %v5729
    %v7131 = vsel %vm7124, %v7066, %v5731
    %v7132 = vsel %vm7124, %v7067, %v5733
    %v7133 = vsel %vm7124, %v7068, %v5735
    %v7134 = vsel %vm7124, %v7069, %v5737
    %v7135 = vsel %vm7124, %v7070, %v5739
    %v7136 = vsel %vm7124, %v7071, %v5741
    %v7137 = vsel %vm7124, %v7072, %v5743
    %v7138 = vsel %vm7124, %v7073, %v5745
    %v7139 = vsel %vm7124, %v7074, %v5747
    %v7140 = vsel %vm7124, %v7075, %v5749
    %v7141 = vsel %vm7124, %v7076, %v5751
    %v7142 = vsel %vm7124, %v7077, %v5753
    %v7143 = vsel %vm7124, %v7078, %v5755
    %v7144 = vsel %vm7124, %v7079, %v5757
    %v7145 = vsel %vm7124, %v7080, %v5759
    %v7146 = vsel %vm7124, %v7081, %v5761
    %v7147 = vsel %vm7124, %v7082, %v5763
    %v7148 = vsel %vm7124, %v7083, %v5765
    %v7149 = vsel %vm7124, %v7084, %v5767
    %v7150 = vsel %vm7124, %v7085, %v5769
    %v7151 = vsel %vm7124, %v7086, %v5771
    %v7152 = vsel %vm7124, %v7087, %v5773
    %v7153 = vsel %vm7124, %v7088, %v5775
    %v7154 = vsel %vm7124, %v7089, %v5777
    %v7155 = vsel %vm7124, %v7090, %v5779
    %v7156 = vsel %vm7124, %v7091, %v5781
    %v7157 = vsel %vm7124, %v7092, %v5783
    %v7158 = vsel %vm7124, %v7093, %v5785
    %v7159 = vsel %vm7124, %v7094, %v5787
    %v7160 = vsel %vm7124, %v7095, %v5789
    %v7161 = vsel %vm7124, %v7096, %v5791
    %v7162 = vsel %vm7124, %v7097, %v5793
    %v7163 = vsel %vm7124, %v7098, %v5795
    %v7164 = vsel %vm7124, %v7099, %v5797
    %v7165 = vsel %vm7124, %v7100, %v5799
    %v7166 = vsel %vm7124, %v7101, %v5801
    %v7167 = vsel %vm7124, %v7102, %v5803
    %v7168 = vsel %vm7124, %v7103, %v5805
    %v7169 = vsel %vm7124, %v7104, %v5807
    %v7170 = vsel %vm7124, %v7105, %v5809
    %v7171 = vsel %vm7124, %v7106, %v5811
    %v7172 = vsel %vm7124, %v7107, %v5813
    %v7173 = vsel %vm7124, %v7108, %v5815
    %v7174 = vsel %vm7124, %v7109, %v5817
    %v7175 = vsel %vm7124, %v7110, %v5819
    %v7176 = vsel %vm7124, %v7111, %v5821
    %v7177 = vsel %vm7124, %v7112, %v5823
    %v7178 = vsel %vm7124, %v7113, %v5825
    %v7179 = vsel %vm7124, %v7114, %v5827
    %v7180 = vsel %vm7124, %v7115, %v5829
    %v7181 = vsel %vm7124, %v7116, %v5831
    %v7182 = vsel %vm7124, %v7117, %v5833
    %v7183 = vsel %vm7124, %v7118, %v5835
    %v7184 = vsel %vm7124, %v7119, %v5837
    %v7185 = vsel %vm7124, %v7120, %v5839
    %v7186 = vsel %vm7124, %v7121, %v5841
    %v7187 = vsel %vm7124, %v7122, %v5843
    %v7188 = vsel %vm7124, %v7123, %v5845
    %vm7189 = vcmask 121856
    %v7190 = vsel %vm7189, %v7125, %v5975
    %v7191 = vsel %vm7189, %v7126, %v5977
    %v7192 = vsel %vm7189, %v7127, %v5979
    %v7193 = vsel %vm7189, %v7128, %v5981
    %v7194 = vsel %vm7189, %v7129, %v5983
    %v7195 = vsel %vm7189, %v7130, %v5985
    %v7196 = vsel %vm7189, %v7131, %v5987
    %v7197 = vsel %vm7189, %v7132, %v5989
    %v7198 = vsel %vm7189, %v7133, %v5991
    %v7199 = vsel %vm7189, %v7134, %v5993
    %v7200 = vsel %vm7189, %v7135, %v5995
    %v7201 = vsel %vm7189, %v7136, %v5997
    %v7202 = vsel %vm7189, %v7137, %v5999
    %v7203 = vsel %vm7189, %v7138, %v6001
    %v7204 = vsel %vm7189, %v7139, %v6003
    %v7205 = vsel %vm7189, %v7140, %v6005
    %v7206 = vsel %vm7189, %v7141, %v6007
    %v7207 = vsel %vm7189, %v7142, %v6009
    %v7208 = vsel %vm7189, %v7143, %v6011
    %v7209 = vsel %vm7189, %v7144, %v6013
    %v7210 = vsel %vm7189, %v7145, %v6015
    %v7211 = vsel %vm7189, %v7146, %v6017
    %v7212 = vsel %vm7189, %v7147, %v6019
    %v7213 = vsel %vm7189, %v7148, %v6021
    %v7214 = vsel %vm7189, %v7149, %v6023
    %v7215 = vsel %vm7189, %v7150, %v6025
    %v7216 = vsel %vm7189, %v7151, %v6027
    %v7217 = vsel %vm7189, %v7152, %v6029
    %v7218 = vsel %vm7189, %v7153, %v6031
    %v7219 = vsel %vm7189, %v7154, %v6033
    %v7220 = vsel %vm7189, %v7155, %v6035
    %v7221 = vsel %vm7189, %v7156, %v6037
    %v7222 = vsel %vm7189, %v7157, %v6039
    %v7223 = vsel %vm7189, %v7158, %v6041
    %v7224 = vsel %vm7189, %v7159, %v6043
    %v7225 = vsel %vm7189, %v7160, %v6045
    %v7226 = vsel %vm7189, %v7161, %v6047
    %v7227 = vsel %vm7189, %v7162, %v6049
    %v7228 = vsel %vm7189, %v7163, %v6051
    %v7229 = vsel %vm7189, %v7164, %v6053
    %v7230 = vsel %vm7189, %v7165, %v6055
    %v7231 = vsel %vm7189, %v7166, %v6057
    %v7232 = vsel %vm7189, %v7167, %v6059
    %v7233 = vsel %vm7189, %v7168, %v6061
    %v7234 = vsel %vm7189, %v7169, %v6063
    %v7235 = vsel %vm7189, %v7170, %v6065
    %v7236 = vsel %vm7189, %v7171, %v6067
    %v7237 = vsel %vm7189, %v7172, %v6069
    %v7238 = vsel %vm7189, %v7173, %v6071
    %v7239 = vsel %vm7189, %v7174, %v6073
    %v7240 = vsel %vm7189, %v7175, %v6075
    %v7241 = vsel %vm7189, %v7176, %v6077
    %v7242 = vsel %vm7189, %v7177, %v6079
    %v7243 = vsel %vm7189, %v7178, %v6081
    %v7244 = vsel %vm7189, %v7179, %v6083
    %v7245 = vsel %vm7189, %v7180, %v6085
    %v7246 = vsel %vm7189, %v7181, %v6087
    %v7247 = vsel %vm7189, %v7182, %v6089
    %v7248 = vsel %vm7189, %v7183, %v6091
    %v7249 = vsel %vm7189, %v7184, %v6093
    %v7250 = vsel %vm7189, %v7185, %v6095
    %v7251 = vsel %vm7189, %v7186, %v6097
    %v7252 = vsel %vm7189, %v7187, %v6099
    %v7253 = vsel %vm7189, %v7188, %v6101
    %vm7254 = vcmask 146432
    %v7255 = vsel %vm7254, %v7190, %v6231
    %v7256 = vsel %vm7254, %v7191, %v6233
    %v7257 = vsel %vm7254, %v7192, %v6235
    %v7258 = vsel %vm7254, %v7193, %v6237
    %v7259 = vsel %vm7254, %v7194, %v6239
    %v7260 = vsel %vm7254, %v7195, %v6241
    %v7261 = vsel %vm7254, %v7196, %v6243
    %v7262 = vsel %vm7254, %v7197, %v6245
    %v7263 = vsel %vm7254, %v7198, %v6247
    %v7264 = vsel %vm7254, %v7199, %v6249
    %v7265 = vsel %vm7254, %v7200, %v6251
    %v7266 = vsel %vm7254, %v7201, %v6253
    %v7267 = vsel %vm7254, %v7202, %v6255
    %v7268 = vsel %vm7254, %v7203, %v6257
    %v7269 = vsel %vm7254, %v7204, %v6259
    %v7270 = vsel %vm7254, %v7205, %v6261
    %v7271 = vsel %vm7254, %v7206, %v6263
    %v7272 = vsel %vm7254, %v7207, %v6265
    %v7273 = vsel %vm7254, %v7208, %v6267
    %v7274 = vsel %vm7254, %v7209, %v6269
    %v7275 = vsel %vm7254, %v7210, %v6271
    %v7276 = vsel %vm7254, %v7211, %v6273
    %v7277 = vsel %vm7254, %v7212, %v6275
    %v7278 = vsel %vm7254, %v7213, %v6277
    %v7279 = vsel %vm7254, %v7214, %v6279
    %v7280 = vsel %vm7254, %v7215, %v6281
    %v7281 = vsel %vm7254, %v7216, %v6283
    %v7282 = vsel %vm7254, %v7217, %v6285
    %v7283 = vsel %vm7254, %v7218, %v6287
    %v7284 = vsel %vm7254, %v7219, %v6289
    %v7285 = vsel %vm7254, %v7220, %v6291
    %v7286 = vsel %vm7254, %v7221, %v6293
    %v7287 = vsel %vm7254, %v7222, %v6295
    %v7288 = vsel %vm7254, %v7223, %v6297
    %v7289 = vsel %vm7254, %v7224, %v6299
    %v7290 = vsel %vm7254, %v7225, %v6301
    %v7291 = vsel %vm7254, %v7226, %v6303
    %v7292 = vsel %vm7254, %v7227, %v6305
    %v7293 = vsel %vm7254, %v7228, %v6307
    %v7294 = vsel %vm7254, %v7229, %v6309
    %v7295 = vsel %vm7254, %v7230, %v6311
    %v7296 = vsel %vm7254, %v7231, %v6313
    %v7297 = vsel %vm7254, %v7232, %v6315
    %v7298 = vsel %vm7254, %v7233, %v6317
    %v7299 = vsel %vm7254, %v7234, %v6319
    %v7300 = vsel %vm7254, %v7235, %v6321
    %v7301 = vsel %vm7254, %v7236, %v6323
    %v7302 = vsel %vm7254, %v7237, %v6325
    %v7303 = vsel %vm7254, %v7238, %v6327
    %v7304 = vsel %vm7254, %v7239, %v6329
    %v7305 = vsel %vm7254, %v7240, %v6331
    %v7306 = vsel %vm7254, %v7241, %v6333
    %v7307 = vsel %vm7254, %v7242, %v6335
    %v7308 = vsel %vm7254, %v7243, %v6337
    %v7309 = vsel %vm7254, %v7244, %v6339
    %v7310 = vsel %vm7254, %v7245, %v6341
    %v7311 = vsel %vm7254, %v7246, %v6343
    %v7312 = vsel %vm7254, %v7247, %v6345
    %v7313 = vsel %vm7254, %v7248, %v6347
    %v7314 = vsel %vm7254, %v7249, %v6349
    %v7315 = vsel %vm7254, %v7250, %v6351
    %v7316 = vsel %vm7254, %v7251, %v6353
    %v7317 = vsel %vm7254, %v7252, %v6355
    %v7318 = vsel %vm7254, %v7253, %v6357
    %vm7319 = vcmask 171008
    %v7320 = vsel %vm7319, %v7255, %v6485
    %v7321 = vsel %vm7319, %v7256, %v6487
    %v7322 = vsel %vm7319, %v7257, %v6489
    %v7323 = vsel %vm7319, %v7258, %v6491
    %v7324 = vsel %vm7319, %v7259, %v6493
    %v7325 = vsel %vm7319, %v7260, %v6495
    %v7326 = vsel %vm7319, %v7261, %v6497
    %v7327 = vsel %vm7319, %v7262, %v6499
    %v7328 = vsel %vm7319, %v7263, %v6501
    %v7329 = vsel %vm7319, %v7264, %v6503
    %v7330 = vsel %vm7319, %v7265, %v6505
    %v7331 = vsel %vm7319, %v7266, %v6507
    %v7332 = vsel %vm7319, %v7267, %v6509
    %v7333 = vsel %vm7319, %v7268, %v6511
    %v7334 = vsel %vm7319, %v7269, %v6513
    %v7335 = vsel %vm7319, %v7270, %v6515
    %v7336 = vsel %vm7319, %v7271, %v6517
    %v7337 = vsel %vm7319, %v7272, %v6519
    %v7338 = vsel %vm7319, %v7273, %v6521
    %v7339 = vsel %vm7319, %v7274, %v6523
    %v7340 = vsel %vm7319, %v7275, %v6525
    %v7341 = vsel %vm7319, %v7276, %v6527
    %v7342 = vsel %vm7319, %v7277, %v6529
    %v7343 = vsel %vm7319, %v7278, %v6531
    %v7344 = vsel %vm7319, %v7279, %v6533
    %v7345 = vsel %vm7319, %v7280, %v6535
    %v7346 = vsel %vm7319, %v7281, %v6537
    %v7347 = vsel %vm7319, %v7282, %v6539
    %v7348 = vsel %vm7319, %v7283, %v6541
    %v7349 = vsel %vm7319, %v7284, %v6543
    %v7350 = vsel %vm7319, %v7285, %v6545
    %v7351 = vsel %vm7319, %v7286, %v6547
    %v7352 = vsel %vm7319, %v7287, %v6549
    %v7353 = vsel %vm7319, %v7288, %v6551
    %v7354 = vsel %vm7319, %v7289, %v6553
    %v7355 = vsel %vm7319, %v7290, %v6555
    %v7356 = vsel %vm7319, %v7291, %v6557
    %v7357 = vsel %vm7319, %v7292, %v6559
    %v7358 = vsel %vm7319, %v7293, %v6561
    %v7359 = vsel %vm7319, %v7294, %v6563
    %v7360 = vsel %vm7319, %v7295, %v6565
    %v7361 = vsel %vm7319, %v7296, %v6567
    %v7362 = vsel %vm7319, %v7297, %v6569
    %v7363 = vsel %vm7319, %v7298, %v6571
    %v7364 = vsel %vm7319, %v7299, %v6573
    %v7365 = vsel %vm7319, %v7300, %v6575
    %v7366 = vsel %vm7319, %v7301, %v6577
    %v7367 = vsel %vm7319, %v7302, %v6579
    %v7368 = vsel %vm7319, %v7303, %v6581
    %v7369 = vsel %vm7319, %v7304, %v6583
    %v7370 = vsel %vm7319, %v7305, %v6585
    %v7371 = vsel %vm7319, %v7306, %v6587
    %v7372 = vsel %vm7319, %v7307, %v6589
    %v7373 = vsel %vm7319, %v7308, %v6591
    %v7374 = vsel %vm7319, %v7309, %v6593
    %v7375 = vsel %vm7319, %v7310, %v6595
    %v7376 = vsel %vm7319, %v7311, %v6597
    %v7377 = vsel %vm7319, %v7312, %v6599
    %v7378 = vsel %vm7319, %v7313, %v6601
    %v7379 = vsel %vm7319, %v7314, %v6603
    %v7380 = vsel %vm7319, %v7315, %v6605
    %v7381 = vsel %vm7319, %v7316, %v6607
    %v7382 = vsel %vm7319, %v7317, %v6609
    %v7383 = vsel %vm7319, %v7318, %v6609
    %vm7384 = vcmask 195584
    %v7385 = vsel %vm7384, %v7320, %v6738
    %v7386 = vsel %vm7384, %v7321, %v6740
    %v7387 = vsel %vm7384, %v7322, %v6742
    %v7388 = vsel %vm7384, %v7323, %v6744
    %v7389 = vsel %vm7384, %v7324, %v6746
    %v7390 = vsel %vm7384, %v7325, %v6748
    %v7391 = vsel %vm7384, %v7326, %v6750
    %v7392 = vsel %vm7384, %v7327, %v6752
    %v7393 = vsel %vm7384, %v7328, %v6754
    %v7394 = vsel %vm7384, %v7329, %v6756
    %v7395 = vsel %vm7384, %v7330, %v6758
    %v7396 = vsel %vm7384, %v7331, %v6760
    %v7397 = vsel %vm7384, %v7332, %v6762
    %v7398 = vsel %vm7384, %v7333, %v6764
    %v7399 = vsel %vm7384, %v7334, %v6766
    %v7400 = vsel %vm7384, %v7335, %v6768
    %v7401 = vsel %vm7384, %v7336, %v6770
    %v7402 = vsel %vm7384, %v7337, %v6772
    %v7403 = vsel %vm7384, %v7338, %v6774
    %v7404 = vsel %vm7384, %v7339, %v6776
    %v7405 = vsel %vm7384, %v7340, %v6778
    %v7406 = vsel %vm7384, %v7341, %v6780
    %v7407 = vsel %vm7384, %v7342, %v6782
    %v7408 = vsel %vm7384, %v7343, %v6784
    %v7409 = vsel %vm7384, %v7344, %v6786
    %v7410 = vsel %vm7384, %v7345, %v6788
    %v7411 = vsel %vm7384, %v7346, %v6790
    %v7412 = vsel %vm7384, %v7347, %v6792
    %v7413 = vsel %vm7384, %v7348, %v6794
    %v7414 = vsel %vm7384, %v7349, %v6796
    %v7415 = vsel %vm7384, %v7350, %v6798
    %v7416 = vsel %vm7384, %v7351, %v6800
    %v7417 = vsel %vm7384, %v7352, %v6802
    %v7418 = vsel %vm7384, %v7353, %v6804
    %v7419 = vsel %vm7384, %v7354, %v6806
    %v7420 = vsel %vm7384, %v7355, %v6808
    %v7421 = vsel %vm7384, %v7356, %v6810
    %v7422 = vsel %vm7384, %v7357, %v6812
    %v7423 = vsel %vm7384, %v7358, %v6814
    %v7424 = vsel %vm7384, %v7359, %v6816
    %v7425 = vsel %vm7384, %v7360, %v6818
    %v7426 = vsel %vm7384, %v7361, %v6820
    %v7427 = vsel %vm7384, %v7362, %v6822
    %v7428 = vsel %vm7384, %v7363, %v6824
    %v7429 = vsel %vm7384, %v7364, %v6826
    %v7430 = vsel %vm7384, %v7365, %v6828
    %v7431 = vsel %vm7384, %v7366, %v6830
    %v7432 = vsel %vm7384, %v7367, %v6832
    %v7433 = vsel %vm7384, %v7368, %v6834
    %v7434 = vsel %vm7384, %v7369, %v6836
    %v7435 = vsel %vm7384, %v7370, %v6838
    %v7436 = vsel %vm7384, %v7371, %v6840
    %v7437 = vsel %vm7384, %v7372, %v6842
    %v7438 = vsel %vm7384, %v7373, %v6844
    %v7439 = vsel %vm7384, %v7374, %v6846
    %v7440 = vsel %vm7384, %v7375, %v6848
    %v7441 = vsel %vm7384, %v7376, %v6850
    %v7442 = vsel %vm7384, %v7377, %v6852
    %v7443 = vsel %vm7384, %v7378, %v6854
    %v7444 = vsel %vm7384, %v7379, %v6856
    %v7445 = vsel %vm7384, %v7380, %v6858
    %v7446 = vsel %vm7384, %v7381, %v6860
    %v7447 = vsel %vm7384, %v7382, %v6862
    %v7448 = vsel %vm7384, %v7383, %v6864
    %v7449 = vld [vmem:[%s1] sm:$0xff]
    %v7450 = vld [vmem:[%s1 + $0x8] sm:$0xff]
    %v7451 = vld [vmem:[%s1 + $0x10] sm:$0xff]
    %v7452 = vld [vmem:[%s1 + $0x18] sm:$0x7]
    %v7453 = vld [vmem:[%s2] sm:$0x1]
    %v7455 = vperm.slane %v7453, 0
    %vm7457 = vcmask 220160
    %v7459 = vsel %vm7457, %v7385, 0
    %v7462 = vsel %vm7457, %v7386, 0
    %v7465 = vsel %vm7457, %v7387, 0
    %v7468 = vsel %vm7457, %v7388, 0
    %v7471 = vsel %vm7457, %v7389, 0
    %v7474 = vsel %vm7457, %v7390, 0
    %v7477 = vsel %vm7457, %v7391, 0
    %v7480 = vsel %vm7457, %v7392, 0
    %v7483 = vsel %vm7457, %v7393, 0
    %v7486 = vsel %vm7457, %v7394, 0
    %v7489 = vsel %vm7457, %v7395, 0
    %v7492 = vsel %vm7457, %v7396, 0
    %v7495 = vsel %vm7457, %v7397, 0
    %v7498 = vsel %vm7457, %v7398, 0
    %v7501 = vsel %vm7457, %v7399, 0
    %v7504 = vsel %vm7457, %v7400, 0
    %v7507 = vsel %vm7457, %v7401, 0
    %v7510 = vsel %vm7457, %v7402, 0
    %v7513 = vsel %vm7457, %v7403, 0
    %v7516 = vsel %vm7457, %v7404, 0
    %v7519 = vsel %vm7457, %v7405, 0
    %v7522 = vsel %vm7457, %v7406, 0
    %v7525 = vsel %vm7457, %v7407, 0
    %v7528 = vsel %vm7457, %v7408, 0
    %v7531 = vsel %vm7457, %v7409, 0
    %v7534 = vsel %vm7457, %v7410, 0
    %v7537 = vsel %vm7457, %v7411, 0
    %v7540 = vsel %vm7457, %v7412, 0
    %v7543 = vsel %vm7457, %v7413, 0
    %v7546 = vsel %vm7457, %v7414, 0
    %v7549 = vsel %vm7457, %v7415, 0
    %v7552 = vsel %vm7457, %v7416, 0
    %v7555 = vsel %vm7457, %v7417, 0
    %v7558 = vsel %vm7457, %v7418, 0
    %v7561 = vsel %vm7457, %v7419, 0
    %v7564 = vsel %vm7457, %v7420, 0
    %v7567 = vsel %vm7457, %v7421, 0
    %v7570 = vsel %vm7457, %v7422, 0
    %v7573 = vsel %vm7457, %v7423, 0
    %v7576 = vsel %vm7457, %v7424, 0
    %v7579 = vsel %vm7457, %v7425, 0
    %v7582 = vsel %vm7457, %v7426, 0
    %v7585 = vsel %vm7457, %v7427, 0
    %v7588 = vsel %vm7457, %v7428, 0
    %v7591 = vsel %vm7457, %v7429, 0
    %v7594 = vsel %vm7457, %v7430, 0
    %v7597 = vsel %vm7457, %v7431, 0
    %v7600 = vsel %vm7457, %v7432, 0
    %v7603 = vsel %vm7457, %v7433, 0
    %v7606 = vsel %vm7457, %v7434, 0
    %v7609 = vsel %vm7457, %v7435, 0
    %v7612 = vsel %vm7457, %v7436, 0
    %v7615 = vsel %vm7457, %v7437, 0
    %v7618 = vsel %vm7457, %v7438, 0
    %v7621 = vsel %vm7457, %v7439, 0
    %v7624 = vsel %vm7457, %v7440, 0
    %v7627 = vsel %vm7457, %v7441, 0
    %v7630 = vsel %vm7457, %v7442, 0
    %v7633 = vsel %vm7457, %v7443, 0
    %v7636 = vsel %vm7457, %v7444, 0
    %v7639 = vsel %vm7457, %v7445, 0
    %v7642 = vsel %vm7457, %v7446, 0
    %v7645 = vsel %vm7457, %v7447, 0
    %v7648 = vsel %vm7457, %v7448, 0
    %vm7650 = vcmask 1042432
    %v7652 = vsel %vm7650, %v7452, 0
    %7654 = vmatpush.msra.mxu0 0.0
    %7655 = vmatpush.msra.mxu0 0.0
    %7656 = vmatpush.msra.mxu0 0.0
    %7657 = vmatpush.msra.mxu0 0.0
    %7658 = vmatpush.msra.mxu0 0.0
    %7659 = vmatpush.msra.mxu0 0.0
    %7660 = vmatpush.msra.mxu0 0.0
    %7661 = vmatpush.msra.mxu0 0.0
    %7662 = vmatpush.msra.mxu0 0.0
    %7663 = vmatpush.msra.mxu0 0.0
    %7664 = vmatpush.msra.mxu0 0.0
    %7665 = vmatpush.msra.mxu0 0.0
    %7666 = vmatpush.msra.mxu0 %v7652
    %7667 = vmatpush.msra.mxu0 %v7451
    %7668 = vmatpush.msra.mxu0 %v7450
    %7669 = vmatpush.msra.mxu0 %v7449
    %7670 = vmatmul.f32.gmra.mxu0 %v7459
    %v7671 = vpop.f32.mrf.mxu0
    %v7672 = vadd.f32 %v7455, %v7671
    %7673 = vmatmul.f32.gmra.mxu0 %v7462
    %v7674 = vpop.f32.mrf.mxu0
    %v7675 = vadd.f32 %v7455, %v7674
    %7676 = vmatmul.f32.gmra.mxu0 %v7465
    %v7677 = vpop.f32.mrf.mxu0
    %v7678 = vadd.f32 %v7455, %v7677
    %7679 = vmatmul.f32.gmra.mxu0 %v7468
    %v7680 = vpop.f32.mrf.mxu0
    %v7681 = vadd.f32 %v7455, %v7680
    %7682 = vmatmul.f32.gmra.mxu0 %v7471
    %v7683 = vpop.f32.mrf.mxu0
    %v7684 = vadd.f32 %v7455, %v7683
    %7685 = vmatmul.f32.gmra.mxu0 %v7474
    %v7686 = vpop.f32.mrf.mxu0
    %v7687 = vadd.f32 %v7455, %v7686
    %7688 = vmatmul.f32.gmra.mxu0 %v7477
    %v7689 = vpop.f32.mrf.mxu0
    %v7690 = vadd.f32 %v7455, %v7689
    %7691 = vmatmul.f32.gmra.mxu0 %v7480
    %v7692 = vpop.f32.mrf.mxu0
    %v7693 = vadd.f32 %v7455, %v7692
    %7694 = vmatmul.f32.gmra.mxu0 %v7483
    %v7695 = vpop.f32.mrf.mxu0
    %v7696 = vadd.f32 %v7455, %v7695
    %7697 = vmatmul.f32.gmra.mxu0 %v7486
    %v7698 = vpop.f32.mrf.mxu0
    %v7699 = vadd.f32 %v7455, %v7698
    %7700 = vmatmul.f32.gmra.mxu0 %v7489
    %v7701 = vpop.f32.mrf.mxu0
    %v7702 = vadd.f32 %v7455, %v7701
    %7703 = vmatmul.f32.gmra.mxu0 %v7492
    %v7704 = vpop.f32.mrf.mxu0
    %v7705 = vadd.f32 %v7455, %v7704
    %7706 = vmatmul.f32.gmra.mxu0 %v7495
    %v7707 = vpop.f32.mrf.mxu0
    %v7708 = vadd.f32 %v7455, %v7707
    %7709 = vmatmul.f32.gmra.mxu0 %v7498
    %v7710 = vpop.f32.mrf.mxu0
    %v7711 = vadd.f32 %v7455, %v7710
    %7712 = vmatmul.f32.gmra.mxu0 %v7501
    %v7713 = vpop.f32.mrf.mxu0
    %v7714 = vadd.f32 %v7455, %v7713
    %7715 = vmatmul.f32.gmra.mxu0 %v7504
    %v7716 = vpop.f32.mrf.mxu0
    %v7717 = vadd.f32 %v7455, %v7716
    %7718 = vmatmul.f32.gmra.mxu0 %v7507
    %v7719 = vpop.f32.mrf.mxu0
    %v7720 = vadd.f32 %v7455, %v7719
    %7721 = vmatmul.f32.gmra.mxu0 %v7510
    %v7722 = vpop.f32.mrf.mxu0
    %v7723 = vadd.f32 %v7455, %v7722
    %7724 = vmatmul.f32.gmra.mxu0 %v7513
    %v7725 = vpop.f32.mrf.mxu0
    %v7726 = vadd.f32 %v7455, %v7725
    %7727 = vmatmul.f32.gmra.mxu0 %v7516
    %v7728 = vpop.f32.mrf.mxu0
    %v7729 = vadd.f32 %v7455, %v7728
    %7730 = vmatmul.f32.gmra.mxu0 %v7519
    %v7731 = vpop.f32.mrf.mxu0
    %v7732 = vadd.f32 %v7455, %v7731
    %7733 = vmatmul.f32.gmra.mxu0 %v7522
    %v7734 = vpop.f32.mrf.mxu0
    %v7735 = vadd.f32 %v7455, %v7734
    %7736 = vmatmul.f32.gmra.mxu0 %v7525
    %v7737 = vpop.f32.mrf.mxu0
    %v7738 = vadd.f32 %v7455, %v7737
    %7739 = vmatmul.f32.gmra.mxu0 %v7528
    %v7740 = vpop.f32.mrf.mxu0
    %v7741 = vadd.f32 %v7455, %v7740
    %7742 = vmatmul.f32.gmra.mxu0 %v7531
    %v7743 = vpop.f32.mrf.mxu0
    %v7744 = vadd.f32 %v7455, %v7743
    %7745 = vmatmul.f32.gmra.mxu0 %v7534
    %v7746 = vpop.f32.mrf.mxu0
    %v7747 = vadd.f32 %v7455, %v7746
    %7748 = vmatmul.f32.gmra.mxu0 %v7537
    %v7749 = vpop.f32.mrf.mxu0
    %v7750 = vadd.f32 %v7455, %v7749
    %7751 = vmatmul.f32.gmra.mxu0 %v7540
    %v7752 = vpop.f32.mrf.mxu0
    %v7753 = vadd.f32 %v7455, %v7752
    %7754 = vmatmul.f32.gmra.mxu0 %v7543
    %v7755 = vpop.f32.mrf.mxu0
    %v7756 = vadd.f32 %v7455, %v7755
    %7757 = vmatmul.f32.gmra.mxu0 %v7546
    %v7758 = vpop.f32.mrf.mxu0
    %v7759 = vadd.f32 %v7455, %v7758
    %7760 = vmatmul.f32.gmra.mxu0 %v7549
    %v7761 = vpop.f32.mrf.mxu0
    %v7762 = vadd.f32 %v7455, %v7761
    %7763 = vmatmul.f32.gmra.mxu0 %v7552
    %v7764 = vpop.f32.mrf.mxu0
    %v7765 = vadd.f32 %v7455, %v7764
    %7766 = vmatmul.f32.gmra.mxu0 %v7555
    %v7767 = vpop.f32.mrf.mxu0
    %v7768 = vadd.f32 %v7455, %v7767
    %7769 = vmatmul.f32.gmra.mxu0 %v7558
    %v7770 = vpop.f32.mrf.mxu0
    %v7771 = vadd.f32 %v7455, %v7770
    %7772 = vmatmul.f32.gmra.mxu0 %v7561
    %v7773 = vpop.f32.mrf.mxu0
    %v7774 = vadd.f32 %v7455, %v7773
    %7775 = vmatmul.f32.gmra.mxu0 %v7564
    %v7776 = vpop.f32.mrf.mxu0
    %v7777 = vadd.f32 %v7455, %v7776
    %7778 = vmatmul.f32.gmra.mxu0 %v7567
    %v7779 = vpop.f32.mrf.mxu0
    %v7780 = vadd.f32 %v7455, %v7779
    %7781 = vmatmul.f32.gmra.mxu0 %v7570
    %v7782 = vpop.f32.mrf.mxu0
    %v7783 = vadd.f32 %v7455, %v7782
    %7784 = vmatmul.f32.gmra.mxu0 %v7573
    %v7785 = vpop.f32.mrf.mxu0
    %v7786 = vadd.f32 %v7455, %v7785
    %7787 = vmatmul.f32.gmra.mxu0 %v7576
    %v7788 = vpop.f32.mrf.mxu0
    %v7789 = vadd.f32 %v7455, %v7788
    %7790 = vmatmul.f32.gmra.mxu0 %v7579
    %v7791 = vpop.f32.mrf.mxu0
    %v7792 = vadd.f32 %v7455, %v7791
    %7793 = vmatmul.f32.gmra.mxu0 %v7582
    %v7794 = vpop.f32.mrf.mxu0
    %v7795 = vadd.f32 %v7455, %v7794
    %7796 = vmatmul.f32.gmra.mxu0 %v7585
    %v7797 = vpop.f32.mrf.mxu0
    %v7798 = vadd.f32 %v7455, %v7797
    %7799 = vmatmul.f32.gmra.mxu0 %v7588
    %v7800 = vpop.f32.mrf.mxu0
    %v7801 = vadd.f32 %v7455, %v7800
    %7802 = vmatmul.f32.gmra.mxu0 %v7591
    %v7803 = vpop.f32.mrf.mxu0
    %v7804 = vadd.f32 %v7455, %v7803
    %7805 = vmatmul.f32.gmra.mxu0 %v7594
    %v7806 = vpop.f32.mrf.mxu0
    %v7807 = vadd.f32 %v7455, %v7806
    %7808 = vmatmul.f32.gmra.mxu0 %v7597
    %v7809 = vpop.f32.mrf.mxu0
    %v7810 = vadd.f32 %v7455, %v7809
    %7811 = vmatmul.f32.gmra.mxu0 %v7600
    %v7812 = vpop.f32.mrf.mxu0
    %v7813 = vadd.f32 %v7455, %v7812
    %7814 = vmatmul.f32.gmra.mxu0 %v7603
    %v7815 = vpop.f32.mrf.mxu0
    %v7816 = vadd.f32 %v7455, %v7815
    %7817 = vmatmul.f32.gmra.mxu0 %v7606
    %v7818 = vpop.f32.mrf.mxu0
    %v7819 = vadd.f32 %v7455, %v7818
    %7820 = vmatmul.f32.gmra.mxu0 %v7609
    %v7821 = vpop.f32.mrf.mxu0
    %v7822 = vadd.f32 %v7455, %v7821
    %7823 = vmatmul.f32.gmra.mxu0 %v7612
    %v7824 = vpop.f32.mrf.mxu0
    %v7825 = vadd.f32 %v7455, %v7824
    %7826 = vmatmul.f32.gmra.mxu0 %v7615
    %v7827 = vpop.f32.mrf.mxu0
    %v7828 = vadd.f32 %v7455, %v7827
    %7829 = vmatmul.f32.gmra.mxu0 %v7618
    %v7830 = vpop.f32.mrf.mxu0
    %v7831 = vadd.f32 %v7455, %v7830
    %7832 = vmatmul.f32.gmra.mxu0 %v7621
    %v7833 = vpop.f32.mrf.mxu0
    %v7834 = vadd.f32 %v7455, %v7833
    %7835 = vmatmul.f32.gmra.mxu0 %v7624
    %v7836 = vpop.f32.mrf.mxu0
    %v7837 = vadd.f32 %v7455, %v7836
    %7838 = vmatmul.f32.gmra.mxu0 %v7627
    %v7839 = vpop.f32.mrf.mxu0
    %v7840 = vadd.f32 %v7455, %v7839
    %7841 = vmatmul.f32.gmra.mxu0 %v7630
    %v7842 = vpop.f32.mrf.mxu0
    %v7843 = vadd.f32 %v7455, %v7842
    %7844 = vmatmul.f32.gmra.mxu0 %v7633
    %v7845 = vpop.f32.mrf.mxu0
    %v7846 = vadd.f32 %v7455, %v7845
    %7847 = vmatmul.f32.gmra.mxu0 %v7636
    %v7848 = vpop.f32.mrf.mxu0
    %v7849 = vadd.f32 %v7455, %v7848
    %7850 = vmatmul.f32.gmra.mxu0 %v7639
    %v7851 = vpop.f32.mrf.mxu0
    %v7852 = vadd.f32 %v7455, %v7851
    %7853 = vmatmul.f32.gmra.mxu0 %v7642
    %v7854 = vpop.f32.mrf.mxu0
    %v7855 = vadd.f32 %v7455, %v7854
    %7856 = vmatmul.f32.gmra.mxu0 %v7645
    %v7857 = vpop.f32.mrf.mxu0
    %v7858 = vadd.f32 %v7455, %v7857
    %7859 = vmatmul.f32.gmra.mxu0 %v7648
    %v7860 = vpop.f32.mrf.mxu0
    %v7861 = vadd.f32 %v7455, %v7860
    %7862 = vdwg.mxu0
    %v7863 = vld [vmem:[%s3] sm:$0xff]
    %v7864 = vld [vmem:[%s3 + $0x8] sm:$0xff]
    %v7865 = vld [vmem:[%s3 + $0x10] sm:$0xff]
    %v7866 = vld [vmem:[%s3 + $0x18] sm:$0xff]
    %v7867 = vld [vmem:[%s3 + $0x20] sm:$0xff]
    %v7868 = vld [vmem:[%s3 + $0x28] sm:$0xff]
    %v7869 = vld [vmem:[%s3 + $0x30] sm:$0xff]
    %v7870 = vld [vmem:[%s3 + $0x38] sm:$0xff]
    %v7871 = vld [vmem:[%s3 + $0x40] sm:$0xff]
    %v7872 = vld [vmem:[%s3 + $0x48] sm:$0xff]
    %v7873 = vld [vmem:[%s3 + $0x50] sm:$0xff]
    %v7874 = vld [vmem:[%s3 + $0x58] sm:$0xff]
    %v7875 = vld [vmem:[%s3 + $0x60] sm:$0xff]
    %v7876 = vld [vmem:[%s3 + $0x68] sm:$0xff]
    %v7877 = vld [vmem:[%s3 + $0x70] sm:$0xff]
    %v7878 = vld [vmem:[%s3 + $0x78] sm:$0xff]
    %7879 = vmatpush.msra.mxu0 %v7717
    %7880 = vmatpush.msra.mxu0 %v7714
    %7881 = vmatpush.msra.mxu0 %v7711
    %7882 = vmatpush.msra.mxu0 %v7708
    %7883 = vmatpush.msra.mxu0 %v7705
    %7884 = vmatpush.msra.mxu0 %v7702
    %7885 = vmatpush.msra.mxu0 %v7699
    %7886 = vmatpush.msra.mxu0 %v7696
    %7887 = vmatpush.msra.mxu0 %v7693
    %7888 = vmatpush.msra.mxu0 %v7690
    %7889 = vmatpush.msra.mxu0 %v7687
    %7890 = vmatpush.msra.mxu0 %v7684
    %7891 = vmatpush.msra.mxu0 %v7681
    %7892 = vmatpush.msra.mxu0 %v7678
    %7893 = vmatpush.msra.mxu0 %v7675
    %7894 = vmatpush.msra.mxu0 %v7672
    %7895 = vmatmul.f32.gmra.mxu0 %v7863
    %v7896 = vpop.f32.mrf.mxu0
    %v7897 = vadd.f32 0.0, %v7896
    %7898 = vmatmul.f32.gmra.mxu0 %v7865
    %v7899 = vpop.f32.mrf.mxu0
    %v7900 = vadd.f32 0.0, %v7899
    %7901 = vmatmul.f32.gmra.mxu0 %v7867
    %v7902 = vpop.f32.mrf.mxu0
    %v7903 = vadd.f32 0.0, %v7902
    %7904 = vmatmul.f32.gmra.mxu0 %v7869
    %v7905 = vpop.f32.mrf.mxu0
    %v7906 = vadd.f32 0.0, %v7905
    %7907 = vmatmul.f32.gmra.mxu0 %v7871
    %v7908 = vpop.f32.mrf.mxu0
    %v7909 = vadd.f32 0.0, %v7908
    %7910 = vmatmul.f32.gmra.mxu0 %v7873
    %v7911 = vpop.f32.mrf.mxu0
    %v7912 = vadd.f32 0.0, %v7911
    %7913 = vmatmul.f32.gmra.mxu0 %v7875
    %v7914 = vpop.f32.mrf.mxu0
    %v7915 = vadd.f32 0.0, %v7914
    %7916 = vmatmul.f32.gmra.mxu0 %v7877
    %v7917 = vpop.f32.mrf.mxu0
    %v7918 = vadd.f32 0.0, %v7917
    %7919 = vdwg.mxu0
    %7920 = vmatpush.msra.mxu0 %v7765
    %7921 = vmatpush.msra.mxu0 %v7762
    %7922 = vmatpush.msra.mxu0 %v7759
    %7923 = vmatpush.msra.mxu0 %v7756
    %7924 = vmatpush.msra.mxu0 %v7753
    %7925 = vmatpush.msra.mxu0 %v7750
    %7926 = vmatpush.msra.mxu0 %v7747
    %7927 = vmatpush.msra.mxu0 %v7744
    %7928 = vmatpush.msra.mxu0 %v7741
    %7929 = vmatpush.msra.mxu0 %v7738
    %7930 = vmatpush.msra.mxu0 %v7735
    %7931 = vmatpush.msra.mxu0 %v7732
    %7932 = vmatpush.msra.mxu0 %v7729
    %7933 = vmatpush.msra.mxu0 %v7726
    %7934 = vmatpush.msra.mxu0 %v7723
    %7935 = vmatpush.msra.mxu0 %v7720
    %7936 = vmatmul.f32.gmra.mxu0 %v7864
    %v7937 = vpop.f32.mrf.mxu0
    %v7938 = vadd.f32 %v7897, %v7937
    %7939 = vmatmul.f32.gmra.mxu0 %v7866
    %v7940 = vpop.f32.mrf.mxu0
    %v7941 = vadd.f32 %v7900, %v7940
    %7942 = vmatmul.f32.gmra.mxu0 %v7868
    %v7943 = vpop.f32.mrf.mxu0
    %v7944 = vadd.f32 %v7903, %v7943
    %7945 = vmatmul.f32.gmra.mxu0 %v7870
    %v7946 = vpop.f32.mrf.mxu0
    %v7947 = vadd.f32 %v7906, %v7946
    %7948 = vmatmul.f32.gmra.mxu0 %v7872
    %v7949 = vpop.f32.mrf.mxu0
    %v7950 = vadd.f32 %v7909, %v7949
    %7951 = vmatmul.f32.gmra.mxu0 %v7874
    %v7952 = vpop.f32.mrf.mxu0
    %v7953 = vadd.f32 %v7912, %v7952
    %7954 = vmatmul.f32.gmra.mxu0 %v7876
    %v7955 = vpop.f32.mrf.mxu0
    %v7956 = vadd.f32 %v7915, %v7955
    %7957 = vmatmul.f32.gmra.mxu0 %v7878
    %v7958 = vpop.f32.mrf.mxu0
    %v7959 = vadd.f32 %v7918, %v7958
    %7960 = vdwg.mxu0
    %7961 = vmatpush.msra.mxu0 %v7813
    %7962 = vmatpush.msra.mxu0 %v7810
    %7963 = vmatpush.msra.mxu0 %v7807
    %7964 = vmatpush.msra.mxu0 %v7804
    %7965 = vmatpush.msra.mxu0 %v7801
    %7966 = vmatpush.msra.mxu0 %v7798
    %7967 = vmatpush.msra.mxu0 %v7795
    %7968 = vmatpush.msra.mxu0 %v7792
    %7969 = vmatpush.msra.mxu0 %v7789
    %7970 = vmatpush.msra.mxu0 %v7786
    %7971 = vmatpush.msra.mxu0 %v7783
    %7972 = vmatpush.msra.mxu0 %v7780
    %7973 = vmatpush.msra.mxu0 %v7777
    %7974 = vmatpush.msra.mxu0 %v7774
    %7975 = vmatpush.msra.mxu0 %v7771
    %7976 = vmatpush.msra.mxu0 %v7768
    %7977 = vmatmul.f32.gmra.mxu0 %v7863
    %v7978 = vpop.f32.mrf.mxu0
    %v7979 = vadd.f32 0.0, %v7978
    %7980 = vmatmul.f32.gmra.mxu0 %v7865
    %v7981 = vpop.f32.mrf.mxu0
    %v7982 = vadd.f32 0.0, %v7981
    %7983 = vmatmul.f32.gmra.mxu0 %v7867
    %v7984 = vpop.f32.mrf.mxu0
    %v7985 = vadd.f32 0.0, %v7984
    %7986 = vmatmul.f32.gmra.mxu0 %v7869
    %v7987 = vpop.f32.mrf.mxu0
    %v7988 = vadd.f32 0.0, %v7987
    %7989 = vmatmul.f32.gmra.mxu0 %v7871
    %v7990 = vpop.f32.mrf.mxu0
    %v7991 = vadd.f32 0.0, %v7990
    %7992 = vmatmul.f32.gmra.mxu0 %v7873
    %v7993 = vpop.f32.mrf.mxu0
    %v7994 = vadd.f32 0.0, %v7993
    %7995 = vmatmul.f32.gmra.mxu0 %v7875
    %v7996 = vpop.f32.mrf.mxu0
    %v7997 = vadd.f32 0.0, %v7996
    %7998 = vmatmul.f32.gmra.mxu0 %v7877
    %v7999 = vpop.f32.mrf.mxu0
    %v8000 = vadd.f32 0.0, %v7999
    %8001 = vdwg.mxu0
    %8002 = vmatpush.msra.mxu0 %v7861
    %8003 = vmatpush.msra.mxu0 %v7858
    %8004 = vmatpush.msra.mxu0 %v7855
    %8005 = vmatpush.msra.mxu0 %v7852
    %8006 = vmatpush.msra.mxu0 %v7849
    %8007 = vmatpush.msra.mxu0 %v7846
    %8008 = vmatpush.msra.mxu0 %v7843
    %8009 = vmatpush.msra.mxu0 %v7840
    %8010 = vmatpush.msra.mxu0 %v7837
    %8011 = vmatpush.msra.mxu0 %v7834
    %8012 = vmatpush.msra.mxu0 %v7831
    %8013 = vmatpush.msra.mxu0 %v7828
    %8014 = vmatpush.msra.mxu0 %v7825
    %8015 = vmatpush.msra.mxu0 %v7822
    %8016 = vmatpush.msra.mxu0 %v7819
    %8017 = vmatpush.msra.mxu0 %v7816
    %8018 = vmatmul.f32.gmra.mxu0 %v7864
    %v8019 = vpop.f32.mrf.mxu0
    %v8020 = vadd.f32 %v7979, %v8019
    %8021 = vmatmul.f32.gmra.mxu0 %v7866
    %v8022 = vpop.f32.mrf.mxu0
    %v8023 = vadd.f32 %v7982, %v8022
    %8024 = vmatmul.f32.gmra.mxu0 %v7868
    %v8025 = vpop.f32.mrf.mxu0
    %v8026 = vadd.f32 %v7985, %v8025
    %8027 = vmatmul.f32.gmra.mxu0 %v7870
    %v8028 = vpop.f32.mrf.mxu0
    %v8029 = vadd.f32 %v7988, %v8028
    %8030 = vmatmul.f32.gmra.mxu0 %v7872
    %v8031 = vpop.f32.mrf.mxu0
    %v8032 = vadd.f32 %v7991, %v8031
    %8033 = vmatmul.f32.gmra.mxu0 %v7874
    %v8034 = vpop.f32.mrf.mxu0
    %v8035 = vadd.f32 %v7994, %v8034
    %8036 = vmatmul.f32.gmra.mxu0 %v7876
    %v8037 = vpop.f32.mrf.mxu0
    %v8038 = vadd.f32 %v7997, %v8037
    %8039 = vmatmul.f32.gmra.mxu0 %v7878
    %v8040 = vpop.f32.mrf.mxu0
    %v8041 = vadd.f32 %v8000, %v8040
    %8042 = vdwg.mxu0
    %v8043 = vand.u32 %v98, 7
    %v8044 = vand.u32 %v99, 7
    %v8045 = vand.u32 %v100, 7
    %v8046 = vand.u32 %v101, 7
    %v8047 = vand.u32 %v102, 7
    %v8048 = vand.u32 %v103, 7
    %v8049 = vand.u32 %v104, 7
    %v8050 = vand.u32 %v105, 7
    %v8051 = vand.u32 %v106, 7
    %v8052 = vand.u32 %v107, 7
    %v8053 = vand.u32 %v108, 7
    %v8054 = vand.u32 %v109, 7
    %v8055 = vand.u32 %v110, 7
    %v8056 = vand.u32 %v111, 7
    %v8057 = vand.u32 %v112, 7
    %v8058 = vand.u32 %v113, 7
    %v8059 = vshra.s32 %v98, 3
    %v8060 = vshra.s32 %v99, 3
    %v8061 = vshra.s32 %v100, 3
    %v8062 = vshra.s32 %v101, 3
    %v8063 = vshra.s32 %v102, 3
    %v8064 = vshra.s32 %v103, 3
    %v8065 = vshra.s32 %v104, 3
    %v8066 = vshra.s32 %v105, 3
    %v8067 = vshra.s32 %v106, 3
    %v8068 = vshra.s32 %v107, 3
    %v8069 = vshra.s32 %v108, 3
    %v8070 = vshra.s32 %v109, 3
    %v8071 = vshra.s32 %v110, 3
    %v8072 = vshra.s32 %v111, 3
    %v8073 = vshra.s32 %v112, 3
    %v8074 = vshra.s32 %v113, 3
    %v8075 = vand.u32 %v8059, 7
    %v8076 = vand.u32 %v8060, 7
    %v8077 = vand.u32 %v8061, 7
    %v8078 = vand.u32 %v8062, 7
    %v8079 = vand.u32 %v8063, 7
    %v8080 = vand.u32 %v8064, 7
    %v8081 = vand.u32 %v8065, 7
    %v8082 = vand.u32 %v8066, 7
    %v8083 = vand.u32 %v8067, 7
    %v8084 = vand.u32 %v8068, 7
    %v8085 = vand.u32 %v8069, 7
    %v8086 = vand.u32 %v8070, 7
    %v8087 = vand.u32 %v8071, 7
    %v8088 = vand.u32 %v8072, 7
    %v8089 = vand.u32 %v8073, 7
    %v8090 = vand.u32 %v8074, 7
    %v8091 = vadd.s32 %v8075, 4294967295
    %v8092 = vadd.s32 %v8076, 4294967295
    %v8093 = vadd.s32 %v8077, 4294967295
    %v8094 = vadd.s32 %v8078, 4294967295
    %v8095 = vadd.s32 %v8079, 4294967295
    %v8096 = vadd.s32 %v8080, 4294967295
    %v8097 = vadd.s32 %v8081, 4294967295
    %v8098 = vadd.s32 %v8082, 4294967295
    %v8099 = vadd.s32 %v8083, 4294967295
    %v8100 = vadd.s32 %v8084, 4294967295
    %v8101 = vadd.s32 %v8085, 4294967295
    %v8102 = vadd.s32 %v8086, 4294967295
    %v8103 = vadd.s32 %v8087, 4294967295
    %v8104 = vadd.s32 %v8088, 4294967295
    %v8105 = vadd.s32 %v8089, 4294967295
    %v8106 = vadd.s32 %v8090, 4294967295
    %vm8107 = vcmp.ge.s32.totalorder %v8091, 0
    %vm8108 = vcmp.ge.s32.totalorder %v8092, 0
    %vm8109 = vcmp.ge.s32.totalorder %v8093, 0
    %vm8110 = vcmp.ge.s32.totalorder %v8094, 0
    %vm8111 = vcmp.ge.s32.totalorder %v8095, 0
    %vm8112 = vcmp.ge.s32.totalorder %v8096, 0
    %vm8113 = vcmp.ge.s32.totalorder %v8097, 0
    %vm8114 = vcmp.ge.s32.totalorder %v8098, 0
    %vm8115 = vcmp.ge.s32.totalorder %v8099, 0
    %vm8116 = vcmp.ge.s32.totalorder %v8100, 0
    %vm8117 = vcmp.ge.s32.totalorder %v8101, 0
    %vm8118 = vcmp.ge.s32.totalorder %v8102, 0
    %vm8119 = vcmp.ge.s32.totalorder %v8103, 0
    %vm8120 = vcmp.ge.s32.totalorder %v8104, 0
    %vm8121 = vcmp.ge.s32.totalorder %v8105, 0
    %vm8122 = vcmp.ge.s32.totalorder %v8106, 0
    %vm8123 = vcmp.lt.s32.totalorder %v8091, 8
    %vm8124 = vcmp.lt.s32.totalorder %v8092, 8
    %vm8125 = vcmp.lt.s32.totalorder %v8093, 8
    %vm8126 = vcmp.lt.s32.totalorder %v8094, 8
    %vm8127 = vcmp.lt.s32.totalorder %v8095, 8
    %vm8128 = vcmp.lt.s32.totalorder %v8096, 8
    %vm8129 = vcmp.lt.s32.totalorder %v8097, 8
    %vm8130 = vcmp.lt.s32.totalorder %v8098, 8
    %vm8131 = vcmp.lt.s32.totalorder %v8099, 8
    %vm8132 = vcmp.lt.s32.totalorder %v8100, 8
    %vm8133 = vcmp.lt.s32.totalorder %v8101, 8
    %vm8134 = vcmp.lt.s32.totalorder %v8102, 8
    %vm8135 = vcmp.lt.s32.totalorder %v8103, 8
    %vm8136 = vcmp.lt.s32.totalorder %v8104, 8
    %vm8137 = vcmp.lt.s32.totalorder %v8105, 8
    %vm8138 = vcmp.lt.s32.totalorder %v8106, 8
    %vm8139 = vmand %vm8107, %vm8123
    %vm8140 = vmand %vm8108, %vm8124
    %vm8141 = vmand %vm8109, %vm8125
    %vm8142 = vmand %vm8110, %vm8126
    %vm8143 = vmand %vm8111, %vm8127
    %vm8144 = vmand %vm8112, %vm8128
    %vm8145 = vmand %vm8113, %vm8129
    %vm8146 = vmand %vm8114, %vm8130
    %vm8147 = vmand %vm8115, %vm8131
    %vm8148 = vmand %vm8116, %vm8132
    %vm8149 = vmand %vm8117, %vm8133
    %vm8150 = vmand %vm8118, %vm8134
    %vm8151 = vmand %vm8119, %vm8135
    %vm8152 = vmand %vm8120, %vm8136
    %vm8153 = vmand %vm8121, %vm8137
    %vm8154 = vmand %vm8122, %vm8138
    %v8155 = vadd.s32 %v8043, 4294967295
    %v8156 = vadd.s32 %v8044, 4294967295
    %v8157 = vadd.s32 %v8045, 4294967295
    %v8158 = vadd.s32 %v8046, 4294967295
    %v8159 = vadd.s32 %v8047, 4294967295
    %v8160 = vadd.s32 %v8048, 4294967295
    %v8161 = vadd.s32 %v8049, 4294967295
    %v8162 = vadd.s32 %v8050, 4294967295
    %v8163 = vadd.s32 %v8051, 4294967295
    %v8164 = vadd.s32 %v8052, 4294967295
    %v8165 = vadd.s32 %v8053, 4294967295
    %v8166 = vadd.s32 %v8054, 4294967295
    %v8167 = vadd.s32 %v8055, 4294967295
    %v8168 = vadd.s32 %v8056, 4294967295
    %v8169 = vadd.s32 %v8057, 4294967295
    %v8170 = vadd.s32 %v8058, 4294967295
    %vm8171 = vcmp.ge.s32.totalorder %v8155, 0
    %vm8172 = vcmp.ge.s32.totalorder %v8156, 0
    %vm8173 = vcmp.ge.s32.totalorder %v8157, 0
    %vm8174 = vcmp.ge.s32.totalorder %v8158, 0
    %vm8175 = vcmp.ge.s32.totalorder %v8159, 0
    %vm8176 = vcmp.ge.s32.totalorder %v8160, 0
    %vm8177 = vcmp.ge.s32.totalorder %v8161, 0
    %vm8178 = vcmp.ge.s32.totalorder %v8162, 0
    %vm8179 = vcmp.ge.s32.totalorder %v8163, 0
    %vm8180 = vcmp.ge.s32.totalorder %v8164, 0
    %vm8181 = vcmp.ge.s32.totalorder %v8165, 0
    %vm8182 = vcmp.ge.s32.totalorder %v8166, 0
    %vm8183 = vcmp.ge.s32.totalorder %v8167, 0
    %vm8184 = vcmp.ge.s32.totalorder %v8168, 0
    %vm8185 = vcmp.ge.s32.totalorder %v8169, 0
    %vm8186 = vcmp.ge.s32.totalorder %v8170, 0
    %vm8187 = vmand %vm8139, %vm8171
    %vm8188 = vmand %vm8140, %vm8172
    %vm8189 = vmand %vm8141, %vm8173
    %vm8190 = vmand %vm8142, %vm8174
    %vm8191 = vmand %vm8143, %vm8175
    %vm8192 = vmand %vm8144, %vm8176
    %vm8193 = vmand %vm8145, %vm8177
    %vm8194 = vmand %vm8146, %vm8178
    %vm8195 = vmand %vm8147, %vm8179
    %vm8196 = vmand %vm8148, %vm8180
    %vm8197 = vmand %vm8149, %vm8181
    %vm8198 = vmand %vm8150, %vm8182
    %vm8199 = vmand %vm8151, %vm8183
    %vm8200 = vmand %vm8152, %vm8184
    %vm8201 = vmand %vm8153, %vm8185
    %vm8202 = vmand %vm8154, %vm8186
    %vm8203 = vcmp.lt.s32.totalorder %v8155, 8
    %vm8204 = vcmp.lt.s32.totalorder %v8156, 8
    %vm8205 = vcmp.lt.s32.totalorder %v8157, 8
    %vm8206 = vcmp.lt.s32.totalorder %v8158, 8
    %vm8207 = vcmp.lt.s32.totalorder %v8159, 8
    %vm8208 = vcmp.lt.s32.totalorder %v8160, 8
    %vm8209 = vcmp.lt.s32.totalorder %v8161, 8
    %vm8210 = vcmp.lt.s32.totalorder %v8162, 8
    %vm8211 = vcmp.lt.s32.totalorder %v8163, 8
    %vm8212 = vcmp.lt.s32.totalorder %v8164, 8
    %vm8213 = vcmp.lt.s32.totalorder %v8165, 8
    %vm8214 = vcmp.lt.s32.totalorder %v8166, 8
    %vm8215 = vcmp.lt.s32.totalorder %v8167, 8
    %vm8216 = vcmp.lt.s32.totalorder %v8168, 8
    %vm8217 = vcmp.lt.s32.totalorder %v8169, 8
    %vm8218 = vcmp.lt.s32.totalorder %v8170, 8
    %vm8219 = vmand %vm8187, %vm8203
    %vm8220 = vmand %vm8188, %vm8204
    %vm8221 = vmand %vm8189, %vm8205
    %vm8222 = vmand %vm8190, %vm8206
    %vm8223 = vmand %vm8191, %vm8207
    %vm8224 = vmand %vm8192, %vm8208
    %vm8225 = vmand %vm8193, %vm8209
    %vm8226 = vmand %vm8194, %vm8210
    %vm8227 = vmand %vm8195, %vm8211
    %vm8228 = vmand %vm8196, %vm8212
    %vm8229 = vmand %vm8197, %vm8213
    %vm8230 = vmand %vm8198, %vm8214
    %vm8231 = vmand %vm8199, %vm8215
    %vm8232 = vmand %vm8200, %vm8216
    %vm8233 = vmand %vm8201, %vm8217
    %vm8234 = vmand %vm8202, %vm8218
    %v8235 = vsel %vm8219, 1, 0
    %v8236 = vsel %vm8220, 1, 0
    %v8237 = vsel %vm8221, 1, 0
    %v8238 = vsel %vm8222, 1, 0
    %v8239 = vsel %vm8223, 1, 0
    %v8240 = vsel %vm8224, 1, 0
    %v8241 = vsel %vm8225, 1, 0
    %v8242 = vsel %vm8226, 1, 0
    %v8243 = vsel %vm8227, 1, 0
    %v8244 = vsel %vm8228, 1, 0
    %v8245 = vsel %vm8229, 1, 0
    %v8246 = vsel %vm8230, 1, 0
    %v8247 = vsel %vm8231, 1, 0
    %v8248 = vsel %vm8232, 1, 0
    %v8249 = vsel %vm8233, 1, 0
    %v8250 = vsel %vm8234, 1, 0
    %vm8251 = vcmp.eq.s32.totalorder %v8235, 1
    %vm8252 = vcmp.eq.s32.totalorder %v8236, 1
    %vm8253 = vcmp.eq.s32.totalorder %v8237, 1
    %vm8254 = vcmp.eq.s32.totalorder %v8238, 1
    %vm8255 = vcmp.eq.s32.totalorder %v8239, 1
    %vm8256 = vcmp.eq.s32.totalorder %v8240, 1
    %vm8257 = vcmp.eq.s32.totalorder %v8241, 1
    %vm8258 = vcmp.eq.s32.totalorder %v8242, 1
    %vm8259 = vcmp.eq.s32.totalorder %v8243, 1
    %vm8260 = vcmp.eq.s32.totalorder %v8244, 1
    %vm8261 = vcmp.eq.s32.totalorder %v8245, 1
    %vm8262 = vcmp.eq.s32.totalorder %v8246, 1
    %vm8263 = vcmp.eq.s32.totalorder %v8247, 1
    %vm8264 = vcmp.eq.s32.totalorder %v8248, 1
    %vm8265 = vcmp.eq.s32.totalorder %v8249, 1
    %vm8266 = vcmp.eq.s32.totalorder %v8250, 1
    %v8282 = vrot.slane %v7938, 7
    %v8283 = vsel %vm1121, %v1122, %v8282
    %v8284 = vrot.slane %v7941, 7
    %v8285 = vsel %vm1121, %v8282, %v8284
    %v8286 = vrot.slane %v7944, 7
    %v8287 = vsel %vm1121, %v8284, %v8286
    %v8288 = vrot.slane %v7947, 7
    %v8289 = vsel %vm1121, %v8286, %v8288
    %v8290 = vrot.slane %v7950, 7
    %v8291 = vsel %vm1121, %v8288, %v8290
    %v8292 = vrot.slane %v7953, 7
    %v8293 = vsel %vm1121, %v8290, %v8292
    %v8294 = vrot.slane %v7956, 7
    %v8295 = vsel %vm1121, %v8292, %v8294
    %v8296 = vrot.slane %v7959, 7
    %v8297 = vsel %vm1121, %v8294, %v8296
    %v8298 = vrot.slane %v8020, 7
    %v8299 = vsel %vm1121, %v8296, %v8298
    %v8300 = vrot.slane %v8023, 7
    %v8301 = vsel %vm1121, %v8298, %v8300
    %v8302 = vrot.slane %v8026, 7
    %v8303 = vsel %vm1121, %v8300, %v8302
    %v8304 = vrot.slane %v8029, 7
    %v8305 = vsel %vm1121, %v8302, %v8304
    %v8306 = vrot.slane %v8032, 7
    %v8307 = vsel %vm1121, %v8304, %v8306
    %v8308 = vrot.slane %v8035, 7
    %v8309 = vsel %vm1121, %v8306, %v8308
    %v8310 = vrot.slane %v8038, 7
    %v8311 = vsel %vm1121, %v8308, %v8310
    %v8327 = vsel %vm8251, %v1123, 0.0
    %v8328 = vsel %vm8252, %v8283, 0.0
    %v8329 = vsel %vm8253, %v8285, 0.0
    %v8330 = vsel %vm8254, %v8287, 0.0
    %v8331 = vsel %vm8255, %v8289, 0.0
    %v8332 = vsel %vm8256, %v8291, 0.0
    %v8333 = vsel %vm8257, %v8293, 0.0
    %v8334 = vsel %vm8258, %v8295, 0.0
    %v8335 = vsel %vm8259, %v8297, 0.0
    %v8336 = vsel %vm8260, %v8299, 0.0
    %v8337 = vsel %vm8261, %v8301, 0.0
    %v8338 = vsel %vm8262, %v8303, 0.0
    %v8339 = vsel %vm8263, %v8305, 0.0
    %v8340 = vsel %vm8264, %v8307, 0.0
    %v8341 = vsel %vm8265, %v8309, 0.0
    %v8342 = vsel %vm8266, %v8311, 0.0
    %vm8343 = vcmp.ge.s32.totalorder %v8043, 0
    %vm8344 = vcmp.ge.s32.totalorder %v8044, 0
    %vm8345 = vcmp.ge.s32.totalorder %v8045, 0
    %vm8346 = vcmp.ge.s32.totalorder %v8046, 0
    %vm8347 = vcmp.ge.s32.totalorder %v8047, 0
    %vm8348 = vcmp.ge.s32.totalorder %v8048, 0
    %vm8349 = vcmp.ge.s32.totalorder %v8049, 0
    %vm8350 = vcmp.ge.s32.totalorder %v8050, 0
    %vm8351 = vcmp.ge.s32.totalorder %v8051, 0
    %vm8352 = vcmp.ge.s32.totalorder %v8052, 0
    %vm8353 = vcmp.ge.s32.totalorder %v8053, 0
    %vm8354 = vcmp.ge.s32.totalorder %v8054, 0
    %vm8355 = vcmp.ge.s32.totalorder %v8055, 0
    %vm8356 = vcmp.ge.s32.totalorder %v8056, 0
    %vm8357 = vcmp.ge.s32.totalorder %v8057, 0
    %vm8358 = vcmp.ge.s32.totalorder %v8058, 0
    %vm8359 = vmand %vm8140, %vm8344
    %vm8360 = vmand %vm8141, %vm8345
    %vm8361 = vmand %vm8142, %vm8346
    %vm8362 = vmand %vm8143, %vm8347
    %vm8363 = vmand %vm8144, %vm8348
    %vm8364 = vmand %vm8145, %vm8349
    %vm8365 = vmand %vm8146, %vm8350
    %vm8366 = vmand %vm8147, %vm8351
    %vm8367 = vmand %vm8148, %vm8352
    %vm8368 = vmand %vm8149, %vm8353
    %vm8369 = vmand %vm8150, %vm8354
    %vm8370 = vmand %vm8151, %vm8355
    %vm8371 = vmand %vm8152, %vm8356
    %vm8372 = vmand %vm8153, %vm8357
    %vm8373 = vmand %vm8154, %vm8358
    %vm8374 = vcmp.lt.s32.totalorder %v8043, 8
    %vm8375 = vcmp.lt.s32.totalorder %v8044, 8
    %vm8376 = vcmp.lt.s32.totalorder %v8045, 8
    %vm8377 = vcmp.lt.s32.totalorder %v8046, 8
    %vm8378 = vcmp.lt.s32.totalorder %v8047, 8
    %vm8379 = vcmp.lt.s32.totalorder %v8048, 8
    %vm8380 = vcmp.lt.s32.totalorder %v8049, 8
    %vm8381 = vcmp.lt.s32.totalorder %v8050, 8
    %vm8382 = vcmp.lt.s32.totalorder %v8051, 8
    %vm8383 = vcmp.lt.s32.totalorder %v8052, 8
    %vm8384 = vcmp.lt.s32.totalorder %v8053, 8
    %vm8385 = vcmp.lt.s32.totalorder %v8054, 8
    %vm8386 = vcmp.lt.s32.totalorder %v8055, 8
    %vm8387 = vcmp.lt.s32.totalorder %v8056, 8
    %vm8388 = vcmp.lt.s32.totalorder %v8057, 8
    %vm8389 = vcmp.lt.s32.totalorder %v8058, 8
    %vm8390 = vmand %vm8359, %vm8375
    %vm8391 = vmand %vm8360, %vm8376
    %vm8392 = vmand %vm8361, %vm8377
    %vm8393 = vmand %vm8362, %vm8378
    %vm8394 = vmand %vm8363, %vm8379
    %vm8395 = vmand %vm8364, %vm8380
    %vm8396 = vmand %vm8365, %vm8381
    %vm8397 = vmand %vm8366, %vm8382
    %vm8398 = vmand %vm8367, %vm8383
    %vm8399 = vmand %vm8368, %vm8384
    %vm8400 = vmand %vm8369, %vm8385
    %vm8401 = vmand %vm8370, %vm8386
    %vm8402 = vmand %vm8371, %vm8387
    %vm8403 = vmand %vm8372, %vm8388
    %vm8404 = vmand %vm8373, %vm8389
    %v8405 = vsel %vm8390, 1, 0
    %v8406 = vsel %vm8391, 1, 0
    %v8407 = vsel %vm8392, 1, 0
    %v8408 = vsel %vm8393, 1, 0
    %v8409 = vsel %vm8394, 1, 0
    %v8410 = vsel %vm8395, 1, 0
    %v8411 = vsel %vm8396, 1, 0
    %v8412 = vsel %vm8397, 1, 0
    %v8413 = vsel %vm8398, 1, 0
    %v8414 = vsel %vm8399, 1, 0
    %v8415 = vsel %vm8400, 1, 0
    %v8416 = vsel %vm8401, 1, 0
    %v8417 = vsel %vm8402, 1, 0
    %v8418 = vsel %vm8403, 1, 0
    %v8419 = vsel %vm8404, 1, 0
    %vm8420 = vcmp.eq.s32.totalorder %v8405, 1
    %vm8421 = vcmp.eq.s32.totalorder %v8406, 1
    %vm8422 = vcmp.eq.s32.totalorder %v8407, 1
    %vm8423 = vcmp.eq.s32.totalorder %v8408, 1
    %vm8424 = vcmp.eq.s32.totalorder %v8409, 1
    %vm8425 = vcmp.eq.s32.totalorder %v8410, 1
    %vm8426 = vcmp.eq.s32.totalorder %v8411, 1
    %vm8427 = vcmp.eq.s32.totalorder %v8412, 1
    %vm8428 = vcmp.eq.s32.totalorder %v8413, 1
    %vm8429 = vcmp.eq.s32.totalorder %v8414, 1
    %vm8430 = vcmp.eq.s32.totalorder %v8415, 1
    %vm8431 = vcmp.eq.s32.totalorder %v8416, 1
    %vm8432 = vcmp.eq.s32.totalorder %v8417, 1
    %vm8433 = vcmp.eq.s32.totalorder %v8418, 1
    %vm8434 = vcmp.eq.s32.totalorder %v8419, 1
    %v8435 = vsel %vm8420, %v7938, 0.0
    %v8436 = vsel %vm8421, %v7941, 0.0
    %v8437 = vsel %vm8422, %v7944, 0.0
    %v8438 = vsel %vm8423, %v7947, 0.0
    %v8439 = vsel %vm8424, %v7950, 0.0
    %v8440 = vsel %vm8425, %v7953, 0.0
    %v8441 = vsel %vm8426, %v7956, 0.0
    %v8442 = vsel %vm8427, %v7959, 0.0
    %v8443 = vsel %vm8428, %v8020, 0.0
    %v8444 = vsel %vm8429, %v8023, 0.0
    %v8445 = vsel %vm8430, %v8026, 0.0
    %v8446 = vsel %vm8431, %v8029, 0.0
    %v8447 = vsel %vm8432, %v8032, 0.0
    %v8448 = vsel %vm8433, %v8035, 0.0
    %v8449 = vsel %vm8434, %v8038, 0.0
    %v8450 = vadd.s32 %v8043, 1
    %v8451 = vadd.s32 %v8044, 1
    %v8452 = vadd.s32 %v8045, 1
    %v8453 = vadd.s32 %v8046, 1
    %v8454 = vadd.s32 %v8047, 1
    %v8455 = vadd.s32 %v8048, 1
    %v8456 = vadd.s32 %v8049, 1
    %v8457 = vadd.s32 %v8050, 1
    %v8458 = vadd.s32 %v8051, 1
    %v8459 = vadd.s32 %v8052, 1
    %v8460 = vadd.s32 %v8053, 1
    %v8461 = vadd.s32 %v8054, 1
    %v8462 = vadd.s32 %v8055, 1
    %v8463 = vadd.s32 %v8056, 1
    %v8464 = vadd.s32 %v8057, 1
    %v8465 = vadd.s32 %v8058, 1
    %vm8466 = vcmp.ge.s32.totalorder %v8450, 0
    %vm8467 = vcmp.ge.s32.totalorder %v8451, 0
    %vm8468 = vcmp.ge.s32.totalorder %v8452, 0
    %vm8469 = vcmp.ge.s32.totalorder %v8453, 0
    %vm8470 = vcmp.ge.s32.totalorder %v8454, 0
    %vm8471 = vcmp.ge.s32.totalorder %v8455, 0
    %vm8472 = vcmp.ge.s32.totalorder %v8456, 0
    %vm8473 = vcmp.ge.s32.totalorder %v8457, 0
    %vm8474 = vcmp.ge.s32.totalorder %v8458, 0
    %vm8475 = vcmp.ge.s32.totalorder %v8459, 0
    %vm8476 = vcmp.ge.s32.totalorder %v8460, 0
    %vm8477 = vcmp.ge.s32.totalorder %v8461, 0
    %vm8478 = vcmp.ge.s32.totalorder %v8462, 0
    %vm8479 = vcmp.ge.s32.totalorder %v8463, 0
    %vm8480 = vcmp.ge.s32.totalorder %v8464, 0
    %vm8481 = vcmp.ge.s32.totalorder %v8465, 0
    %vm8482 = vmand %vm8139, %vm8466
    %vm8483 = vmand %vm8140, %vm8467
    %vm8484 = vmand %vm8141, %vm8468
    %vm8485 = vmand %vm8142, %vm8469
    %vm8486 = vmand %vm8143, %vm8470
    %vm8487 = vmand %vm8144, %vm8471
    %vm8488 = vmand %vm8145, %vm8472
    %vm8489 = vmand %vm8146, %vm8473
    %vm8490 = vmand %vm8147, %vm8474
    %vm8491 = vmand %vm8148, %vm8475
    %vm8492 = vmand %vm8149, %vm8476
    %vm8493 = vmand %vm8150, %vm8477
    %vm8494 = vmand %vm8151, %vm8478
    %vm8495 = vmand %vm8152, %vm8479
    %vm8496 = vmand %vm8153, %vm8480
    %vm8497 = vmand %vm8154, %vm8481
    %vm8498 = vcmp.lt.s32.totalorder %v8450, 8
    %vm8499 = vcmp.lt.s32.totalorder %v8451, 8
    %vm8500 = vcmp.lt.s32.totalorder %v8452, 8
    %vm8501 = vcmp.lt.s32.totalorder %v8453, 8
    %vm8502 = vcmp.lt.s32.totalorder %v8454, 8
    %vm8503 = vcmp.lt.s32.totalorder %v8455, 8
    %vm8504 = vcmp.lt.s32.totalorder %v8456, 8
    %vm8505 = vcmp.lt.s32.totalorder %v8457, 8
    %vm8506 = vcmp.lt.s32.totalorder %v8458, 8
    %vm8507 = vcmp.lt.s32.totalorder %v8459, 8
    %vm8508 = vcmp.lt.s32.totalorder %v8460, 8
    %vm8509 = vcmp.lt.s32.totalorder %v8461, 8
    %vm8510 = vcmp.lt.s32.totalorder %v8462, 8
    %vm8511 = vcmp.lt.s32.totalorder %v8463, 8
    %vm8512 = vcmp.lt.s32.totalorder %v8464, 8
    %vm8513 = vcmp.lt.s32.totalorder %v8465, 8
    %vm8514 = vmand %vm8482, %vm8498
    %vm8515 = vmand %vm8483, %vm8499
    %vm8516 = vmand %vm8484, %vm8500
    %vm8517 = vmand %vm8485, %vm8501
    %vm8518 = vmand %vm8486, %vm8502
    %vm8519 = vmand %vm8487, %vm8503
    %vm8520 = vmand %vm8488, %vm8504
    %vm8521 = vmand %vm8489, %vm8505
    %vm8522 = vmand %vm8490, %vm8506
    %vm8523 = vmand %vm8491, %vm8507
    %vm8524 = vmand %vm8492, %vm8508
    %vm8525 = vmand %vm8493, %vm8509
    %vm8526 = vmand %vm8494, %vm8510
    %vm8527 = vmand %vm8495, %vm8511
    %vm8528 = vmand %vm8496, %vm8512
    %vm8529 = vmand %vm8497, %vm8513
    %v8530 = vsel %vm8514, 1, 0
    %v8531 = vsel %vm8515, 1, 0
    %v8532 = vsel %vm8516, 1, 0
    %v8533 = vsel %vm8517, 1, 0
    %v8534 = vsel %vm8518, 1, 0
    %v8535 = vsel %vm8519, 1, 0
    %v8536 = vsel %vm8520, 1, 0
    %v8537 = vsel %vm8521, 1, 0
    %v8538 = vsel %vm8522, 1, 0
    %v8539 = vsel %vm8523, 1, 0
    %v8540 = vsel %vm8524, 1, 0
    %v8541 = vsel %vm8525, 1, 0
    %v8542 = vsel %vm8526, 1, 0
    %v8543 = vsel %vm8527, 1, 0
    %v8544 = vsel %vm8528, 1, 0
    %v8545 = vsel %vm8529, 1, 0
    %vm8546 = vcmp.eq.s32.totalorder %v8530, 1
    %vm8547 = vcmp.eq.s32.totalorder %v8531, 1
    %vm8548 = vcmp.eq.s32.totalorder %v8532, 1
    %vm8549 = vcmp.eq.s32.totalorder %v8533, 1
    %vm8550 = vcmp.eq.s32.totalorder %v8534, 1
    %vm8551 = vcmp.eq.s32.totalorder %v8535, 1
    %vm8552 = vcmp.eq.s32.totalorder %v8536, 1
    %vm8553 = vcmp.eq.s32.totalorder %v8537, 1
    %vm8554 = vcmp.eq.s32.totalorder %v8538, 1
    %vm8555 = vcmp.eq.s32.totalorder %v8539, 1
    %vm8556 = vcmp.eq.s32.totalorder %v8540, 1
    %vm8557 = vcmp.eq.s32.totalorder %v8541, 1
    %vm8558 = vcmp.eq.s32.totalorder %v8542, 1
    %vm8559 = vcmp.eq.s32.totalorder %v8543, 1
    %vm8560 = vcmp.eq.s32.totalorder %v8544, 1
    %vm8561 = vcmp.eq.s32.totalorder %v8545, 1
    %v8563 = vrot.slane %v7938, 1
    %v8564 = vsel %vm2262, %v2263, %v8563
    %v8565 = vrot.slane %v7941, 1
    %v8566 = vsel %vm2262, %v8563, %v8565
    %v8567 = vrot.slane %v7944, 1
    %v8568 = vsel %vm2262, %v8565, %v8567
    %v8569 = vrot.slane %v7947, 1
    %v8570 = vsel %vm2262, %v8567, %v8569
    %v8571 = vrot.slane %v7950, 1
    %v8572 = vsel %vm2262, %v8569, %v8571
    %v8573 = vrot.slane %v7953, 1
    %v8574 = vsel %vm2262, %v8571, %v8573
    %v8575 = vrot.slane %v7956, 1
    %v8576 = vsel %vm2262, %v8573, %v8575
    %v8577 = vrot.slane %v7959, 1
    %v8578 = vsel %vm2262, %v8575, %v8577
    %v8579 = vrot.slane %v8020, 1
    %v8580 = vsel %vm2262, %v8577, %v8579
    %v8581 = vrot.slane %v8023, 1
    %v8582 = vsel %vm2262, %v8579, %v8581
    %v8583 = vrot.slane %v8026, 1
    %v8584 = vsel %vm2262, %v8581, %v8583
    %v8585 = vrot.slane %v8029, 1
    %v8586 = vsel %vm2262, %v8583, %v8585
    %v8587 = vrot.slane %v8032, 1
    %v8588 = vsel %vm2262, %v8585, %v8587
    %v8589 = vrot.slane %v8035, 1
    %v8590 = vsel %vm2262, %v8587, %v8589
    %v8591 = vrot.slane %v8038, 1
    %v8592 = vsel %vm2262, %v8589, %v8591
    %v8593 = vrot.slane %v8041, 1
    %v8594 = vsel %vm2262, %v8591, %v8593
    %v8611 = vsel %vm8546, %v8564, 0.0
    %v8612 = vsel %vm8547, %v8566, 0.0
    %v8613 = vsel %vm8548, %v8568, 0.0
    %v8614 = vsel %vm8549, %v8570, 0.0
    %v8615 = vsel %vm8550, %v8572, 0.0
    %v8616 = vsel %vm8551, %v8574, 0.0
    %v8617 = vsel %vm8552, %v8576, 0.0
    %v8618 = vsel %vm8553, %v8578, 0.0
    %v8619 = vsel %vm8554, %v8580, 0.0
    %v8620 = vsel %vm8555, %v8582, 0.0
    %v8621 = vsel %vm8556, %v8584, 0.0
    %v8622 = vsel %vm8557, %v8586, 0.0
    %v8623 = vsel %vm8558, %v8588, 0.0
    %v8624 = vsel %vm8559, %v8590, 0.0
    %v8625 = vsel %vm8560, %v8592, 0.0
    %v8626 = vsel %vm8561, %v8594, 0.0
    %vm8627 = vcmp.ge.s32.totalorder %v8075, 0
    %vm8628 = vcmp.ge.s32.totalorder %v8076, 0
    %vm8629 = vcmp.ge.s32.totalorder %v8077, 0
    %vm8630 = vcmp.ge.s32.totalorder %v8078, 0
    %vm8631 = vcmp.ge.s32.totalorder %v8079, 0
    %vm8632 = vcmp.ge.s32.totalorder %v8080, 0
    %vm8633 = vcmp.ge.s32.totalorder %v8081, 0
    %vm8634 = vcmp.ge.s32.totalorder %v8082, 0
    %vm8635 = vcmp.ge.s32.totalorder %v8083, 0
    %vm8636 = vcmp.ge.s32.totalorder %v8084, 0
    %vm8637 = vcmp.ge.s32.totalorder %v8085, 0
    %vm8638 = vcmp.ge.s32.totalorder %v8086, 0
    %vm8639 = vcmp.ge.s32.totalorder %v8087, 0
    %vm8640 = vcmp.ge.s32.totalorder %v8088, 0
    %vm8641 = vcmp.ge.s32.totalorder %v8089, 0
    %vm8642 = vcmp.ge.s32.totalorder %v8090, 0
    %vm8643 = vcmp.lt.s32.totalorder %v8075, 8
    %vm8644 = vcmp.lt.s32.totalorder %v8076, 8
    %vm8645 = vcmp.lt.s32.totalorder %v8077, 8
    %vm8646 = vcmp.lt.s32.totalorder %v8078, 8
    %vm8647 = vcmp.lt.s32.totalorder %v8079, 8
    %vm8648 = vcmp.lt.s32.totalorder %v8080, 8
    %vm8649 = vcmp.lt.s32.totalorder %v8081, 8
    %vm8650 = vcmp.lt.s32.totalorder %v8082, 8
    %vm8651 = vcmp.lt.s32.totalorder %v8083, 8
    %vm8652 = vcmp.lt.s32.totalorder %v8084, 8
    %vm8653 = vcmp.lt.s32.totalorder %v8085, 8
    %vm8654 = vcmp.lt.s32.totalorder %v8086, 8
    %vm8655 = vcmp.lt.s32.totalorder %v8087, 8
    %vm8656 = vcmp.lt.s32.totalorder %v8088, 8
    %vm8657 = vcmp.lt.s32.totalorder %v8089, 8
    %vm8658 = vcmp.lt.s32.totalorder %v8090, 8
    %vm8659 = vmand %vm8627, %vm8643
    %vm8660 = vmand %vm8628, %vm8644
    %vm8661 = vmand %vm8629, %vm8645
    %vm8662 = vmand %vm8630, %vm8646
    %vm8663 = vmand %vm8631, %vm8647
    %vm8664 = vmand %vm8632, %vm8648
    %vm8665 = vmand %vm8633, %vm8649
    %vm8666 = vmand %vm8634, %vm8650
    %vm8667 = vmand %vm8635, %vm8651
    %vm8668 = vmand %vm8636, %vm8652
    %vm8669 = vmand %vm8637, %vm8653
    %vm8670 = vmand %vm8638, %vm8654
    %vm8671 = vmand %vm8639, %vm8655
    %vm8672 = vmand %vm8640, %vm8656
    %vm8673 = vmand %vm8641, %vm8657
    %vm8674 = vmand %vm8642, %vm8658
    %vm8675 = vmand %vm8659, %vm8171
    %vm8676 = vmand %vm8660, %vm8172
    %vm8677 = vmand %vm8661, %vm8173
    %vm8678 = vmand %vm8662, %vm8174
    %vm8679 = vmand %vm8663, %vm8175
    %vm8680 = vmand %vm8664, %vm8176
    %vm8681 = vmand %vm8665, %vm8177
    %vm8682 = vmand %vm8666, %vm8178
    %vm8683 = vmand %vm8667, %vm8179
    %vm8684 = vmand %vm8668, %vm8180
    %vm8685 = vmand %vm8669, %vm8181
    %vm8686 = vmand %vm8670, %vm8182
    %vm8687 = vmand %vm8671, %vm8183
    %vm8688 = vmand %vm8672, %vm8184
    %vm8689 = vmand %vm8673, %vm8185
    %vm8690 = vmand %vm8674, %vm8186
    %vm8691 = vmand %vm8675, %vm8203
    %vm8692 = vmand %vm8676, %vm8204
    %vm8693 = vmand %vm8677, %vm8205
    %vm8694 = vmand %vm8678, %vm8206
    %vm8695 = vmand %vm8679, %vm8207
    %vm8696 = vmand %vm8680, %vm8208
    %vm8697 = vmand %vm8681, %vm8209
    %vm8698 = vmand %vm8682, %vm8210
    %vm8699 = vmand %vm8683, %vm8211
    %vm8700 = vmand %vm8684, %vm8212
    %vm8701 = vmand %vm8685, %vm8213
    %vm8702 = vmand %vm8686, %vm8214
    %vm8703 = vmand %vm8687, %vm8215
    %vm8704 = vmand %vm8688, %vm8216
    %vm8705 = vmand %vm8689, %vm8217
    %vm8706 = vmand %vm8690, %vm8218
    %v8707 = vsel %vm8691, 1, 0
    %v8708 = vsel %vm8692, 1, 0
    %v8709 = vsel %vm8693, 1, 0
    %v8710 = vsel %vm8694, 1, 0
    %v8711 = vsel %vm8695, 1, 0
    %v8712 = vsel %vm8696, 1, 0
    %v8713 = vsel %vm8697, 1, 0
    %v8714 = vsel %vm8698, 1, 0
    %v8715 = vsel %vm8699, 1, 0
    %v8716 = vsel %vm8700, 1, 0
    %v8717 = vsel %vm8701, 1, 0
    %v8718 = vsel %vm8702, 1, 0
    %v8719 = vsel %vm8703, 1, 0
    %v8720 = vsel %vm8704, 1, 0
    %v8721 = vsel %vm8705, 1, 0
    %v8722 = vsel %vm8706, 1, 0
    %vm8723 = vcmp.eq.s32.totalorder %v8707, 1
    %vm8724 = vcmp.eq.s32.totalorder %v8708, 1
    %vm8725 = vcmp.eq.s32.totalorder %v8709, 1
    %vm8726 = vcmp.eq.s32.totalorder %v8710, 1
    %vm8727 = vcmp.eq.s32.totalorder %v8711, 1
    %vm8728 = vcmp.eq.s32.totalorder %v8712, 1
    %vm8729 = vcmp.eq.s32.totalorder %v8713, 1
    %vm8730 = vcmp.eq.s32.totalorder %v8714, 1
    %vm8731 = vcmp.eq.s32.totalorder %v8715, 1
    %vm8732 = vcmp.eq.s32.totalorder %v8716, 1
    %vm8733 = vcmp.eq.s32.totalorder %v8717, 1
    %vm8734 = vcmp.eq.s32.totalorder %v8718, 1
    %vm8735 = vcmp.eq.s32.totalorder %v8719, 1
    %vm8736 = vcmp.eq.s32.totalorder %v8720, 1
    %vm8737 = vcmp.eq.s32.totalorder %v8721, 1
    %vm8738 = vcmp.eq.s32.totalorder %v8722, 1
    %v8739 = vrot.slane %v8041, 7
    %v8740 = vsel %vm1121, %v8310, %v8739
    %v8742 = vsel %vm8723, %v8283, 0.0
    %v8743 = vsel %vm8724, %v8285, 0.0
    %v8744 = vsel %vm8725, %v8287, 0.0
    %v8745 = vsel %vm8726, %v8289, 0.0
    %v8746 = vsel %vm8727, %v8291, 0.0
    %v8747 = vsel %vm8728, %v8293, 0.0
    %v8748 = vsel %vm8729, %v8295, 0.0
    %v8749 = vsel %vm8730, %v8297, 0.0
    %v8750 = vsel %vm8731, %v8299, 0.0
    %v8751 = vsel %vm8732, %v8301, 0.0
    %v8752 = vsel %vm8733, %v8303, 0.0
    %v8753 = vsel %vm8734, %v8305, 0.0
    %v8754 = vsel %vm8735, %v8307, 0.0
    %v8755 = vsel %vm8736, %v8309, 0.0
    %v8756 = vsel %vm8737, %v8311, 0.0
    %v8757 = vsel %vm8738, %v8740, 0.0
    %vm8758 = vmand %vm8659, %vm8343
    %vm8759 = vmand %vm8660, %vm8344
    %vm8760 = vmand %vm8661, %vm8345
    %vm8761 = vmand %vm8662, %vm8346
    %vm8762 = vmand %vm8663, %vm8347
    %vm8763 = vmand %vm8664, %vm8348
    %vm8764 = vmand %vm8665, %vm8349
    %vm8765 = vmand %vm8666, %vm8350
    %vm8766 = vmand %vm8667, %vm8351
    %vm8767 = vmand %vm8668, %vm8352
    %vm8768 = vmand %vm8669, %vm8353
    %vm8769 = vmand %vm8670, %vm8354
    %vm8770 = vmand %vm8671, %vm8355
    %vm8771 = vmand %vm8672, %vm8356
    %vm8772 = vmand %vm8673, %vm8357
    %vm8773 = vmand %vm8674, %vm8358
    %vm8774 = vmand %vm8758, %vm8374
    %vm8775 = vmand %vm8759, %vm8375
    %vm8776 = vmand %vm8760, %vm8376
    %vm8777 = vmand %vm8761, %vm8377
    %vm8778 = vmand %vm8762, %vm8378
    %vm8779 = vmand %vm8763, %vm8379
    %vm8780 = vmand %vm8764, %vm8380
    %vm8781 = vmand %vm8765, %vm8381
    %vm8782 = vmand %vm8766, %vm8382
    %vm8783 = vmand %vm8767, %vm8383
    %vm8784 = vmand %vm8768, %vm8384
    %vm8785 = vmand %vm8769, %vm8385
    %vm8786 = vmand %vm8770, %vm8386
    %vm8787 = vmand %vm8771, %vm8387
    %vm8788 = vmand %vm8772, %vm8388
    %vm8789 = vmand %vm8773, %vm8389
    %v8790 = vsel %vm8774, 1, 0
    %v8791 = vsel %vm8775, 1, 0
    %v8792 = vsel %vm8776, 1, 0
    %v8793 = vsel %vm8777, 1, 0
    %v8794 = vsel %vm8778, 1, 0
    %v8795 = vsel %vm8779, 1, 0
    %v8796 = vsel %vm8780, 1, 0
    %v8797 = vsel %vm8781, 1, 0
    %v8798 = vsel %vm8782, 1, 0
    %v8799 = vsel %vm8783, 1, 0
    %v8800 = vsel %vm8784, 1, 0
    %v8801 = vsel %vm8785, 1, 0
    %v8802 = vsel %vm8786, 1, 0
    %v8803 = vsel %vm8787, 1, 0
    %v8804 = vsel %vm8788, 1, 0
    %v8805 = vsel %vm8789, 1, 0
    %vm8806 = vcmp.eq.s32.totalorder %v8790, 1
    %vm8807 = vcmp.eq.s32.totalorder %v8791, 1
    %vm8808 = vcmp.eq.s32.totalorder %v8792, 1
    %vm8809 = vcmp.eq.s32.totalorder %v8793, 1
    %vm8810 = vcmp.eq.s32.totalorder %v8794, 1
    %vm8811 = vcmp.eq.s32.totalorder %v8795, 1
    %vm8812 = vcmp.eq.s32.totalorder %v8796, 1
    %vm8813 = vcmp.eq.s32.totalorder %v8797, 1
    %vm8814 = vcmp.eq.s32.totalorder %v8798, 1
    %vm8815 = vcmp.eq.s32.totalorder %v8799, 1
    %vm8816 = vcmp.eq.s32.totalorder %v8800, 1
    %vm8817 = vcmp.eq.s32.totalorder %v8801, 1
    %vm8818 = vcmp.eq.s32.totalorder %v8802, 1
    %vm8819 = vcmp.eq.s32.totalorder %v8803, 1
    %vm8820 = vcmp.eq.s32.totalorder %v8804, 1
    %vm8821 = vcmp.eq.s32.totalorder %v8805, 1
    %v8822 = vsel %vm8806, %v7938, 0.0
    %v8823 = vsel %vm8807, %v7941, 0.0
    %v8824 = vsel %vm8808, %v7944, 0.0
    %v8825 = vsel %vm8809, %v7947, 0.0
    %v8826 = vsel %vm8810, %v7950, 0.0
    %v8827 = vsel %vm8811, %v7953, 0.0
    %v8828 = vsel %vm8812, %v7956, 0.0
    %v8829 = vsel %vm8813, %v7959, 0.0
    %v8830 = vsel %vm8814, %v8020, 0.0
    %v8831 = vsel %vm8815, %v8023, 0.0
    %v8832 = vsel %vm8816, %v8026, 0.0
    %v8833 = vsel %vm8817, %v8029, 0.0
    %v8834 = vsel %vm8818, %v8032, 0.0
    %v8835 = vsel %vm8819, %v8035, 0.0
    %v8836 = vsel %vm8820, %v8038, 0.0
    %v8837 = vsel %vm8821, %v8041, 0.0
    %vm8838 = vmand %vm8659, %vm8466
    %vm8839 = vmand %vm8660, %vm8467
    %vm8840 = vmand %vm8661, %vm8468
    %vm8841 = vmand %vm8662, %vm8469
    %vm8842 = vmand %vm8663, %vm8470
    %vm8843 = vmand %vm8664, %vm8471
    %vm8844 = vmand %vm8665, %vm8472
    %vm8845 = vmand %vm8666, %vm8473
    %vm8846 = vmand %vm8667, %vm8474
    %vm8847 = vmand %vm8668, %vm8475
    %vm8848 = vmand %vm8669, %vm8476
    %vm8849 = vmand %vm8670, %vm8477
    %vm8850 = vmand %vm8671, %vm8478
    %vm8851 = vmand %vm8672, %vm8479
    %vm8852 = vmand %vm8673, %vm8480
    %vm8853 = vmand %vm8674, %vm8481
    %vm8854 = vmand %vm8838, %vm8498
    %vm8855 = vmand %vm8839, %vm8499
    %vm8856 = vmand %vm8840, %vm8500
    %vm8857 = vmand %vm8841, %vm8501
    %vm8858 = vmand %vm8842, %vm8502
    %vm8859 = vmand %vm8843, %vm8503
    %vm8860 = vmand %vm8844, %vm8504
    %vm8861 = vmand %vm8845, %vm8505
    %vm8862 = vmand %vm8846, %vm8506
    %vm8863 = vmand %vm8847, %vm8507
    %vm8864 = vmand %vm8848, %vm8508
    %vm8865 = vmand %vm8849, %vm8509
    %vm8866 = vmand %vm8850, %vm8510
    %vm8867 = vmand %vm8851, %vm8511
    %vm8868 = vmand %vm8852, %vm8512
    %vm8869 = vmand %vm8853, %vm8513
    %v8870 = vsel %vm8854, 1, 0
    %v8871 = vsel %vm8855, 1, 0
    %v8872 = vsel %vm8856, 1, 0
    %v8873 = vsel %vm8857, 1, 0
    %v8874 = vsel %vm8858, 1, 0
    %v8875 = vsel %vm8859, 1, 0
    %v8876 = vsel %vm8860, 1, 0
    %v8877 = vsel %vm8861, 1, 0
    %v8878 = vsel %vm8862, 1, 0
    %v8879 = vsel %vm8863, 1, 0
    %v8880 = vsel %vm8864, 1, 0
    %v8881 = vsel %vm8865, 1, 0
    %v8882 = vsel %vm8866, 1, 0
    %v8883 = vsel %vm8867, 1, 0
    %v8884 = vsel %vm8868, 1, 0
    %v8885 = vsel %vm8869, 1, 0
    %vm8886 = vcmp.eq.s32.totalorder %v8870, 1
    %vm8887 = vcmp.eq.s32.totalorder %v8871, 1
    %vm8888 = vcmp.eq.s32.totalorder %v8872, 1
    %vm8889 = vcmp.eq.s32.totalorder %v8873, 1
    %vm8890 = vcmp.eq.s32.totalorder %v8874, 1
    %vm8891 = vcmp.eq.s32.totalorder %v8875, 1
    %vm8892 = vcmp.eq.s32.totalorder %v8876, 1
    %vm8893 = vcmp.eq.s32.totalorder %v8877, 1
    %vm8894 = vcmp.eq.s32.totalorder %v8878, 1
    %vm8895 = vcmp.eq.s32.totalorder %v8879, 1
    %vm8896 = vcmp.eq.s32.totalorder %v8880, 1
    %vm8897 = vcmp.eq.s32.totalorder %v8881, 1
    %vm8898 = vcmp.eq.s32.totalorder %v8882, 1
    %vm8899 = vcmp.eq.s32.totalorder %v8883, 1
    %vm8900 = vcmp.eq.s32.totalorder %v8884, 1
    %vm8901 = vcmp.eq.s32.totalorder %v8885, 1
    %v8902 = vsel %vm2262, %v8593, %v2263
    %v8904 = vsel %vm8886, %v8566, 0.0
    %v8905 = vsel %vm8887, %v8568, 0.0
    %v8906 = vsel %vm8888, %v8570, 0.0
    %v8907 = vsel %vm8889, %v8572, 0.0
    %v8908 = vsel %vm8890, %v8574, 0.0
    %v8909 = vsel %vm8891, %v8576, 0.0
    %v8910 = vsel %vm8892, %v8578, 0.0
    %v8911 = vsel %vm8893, %v8580, 0.0
    %v8912 = vsel %vm8894, %v8582, 0.0
    %v8913 = vsel %vm8895, %v8584, 0.0
    %v8914 = vsel %vm8896, %v8586, 0.0
    %v8915 = vsel %vm8897, %v8588, 0.0
    %v8916 = vsel %vm8898, %v8590, 0.0
    %v8917 = vsel %vm8899, %v8592, 0.0
    %v8918 = vsel %vm8900, %v8594, 0.0
    %v8919 = vsel %vm8901, %v8902, 0.0
    %v8920 = vadd.s32 %v8075, 1
    %v8921 = vadd.s32 %v8076, 1
    %v8922 = vadd.s32 %v8077, 1
    %v8923 = vadd.s32 %v8078, 1
    %v8924 = vadd.s32 %v8079, 1
    %v8925 = vadd.s32 %v8080, 1
    %v8926 = vadd.s32 %v8081, 1
    %v8927 = vadd.s32 %v8082, 1
    %v8928 = vadd.s32 %v8083, 1
    %v8929 = vadd.s32 %v8084, 1
    %v8930 = vadd.s32 %v8085, 1
    %v8931 = vadd.s32 %v8086, 1
    %v8932 = vadd.s32 %v8087, 1
    %v8933 = vadd.s32 %v8088, 1
    %v8934 = vadd.s32 %v8089, 1
    %v8935 = vadd.s32 %v8090, 1
    %vm8936 = vcmp.ge.s32.totalorder %v8920, 0
    %vm8937 = vcmp.ge.s32.totalorder %v8921, 0
    %vm8938 = vcmp.ge.s32.totalorder %v8922, 0
    %vm8939 = vcmp.ge.s32.totalorder %v8923, 0
    %vm8940 = vcmp.ge.s32.totalorder %v8924, 0
    %vm8941 = vcmp.ge.s32.totalorder %v8925, 0
    %vm8942 = vcmp.ge.s32.totalorder %v8926, 0
    %vm8943 = vcmp.ge.s32.totalorder %v8927, 0
    %vm8944 = vcmp.ge.s32.totalorder %v8928, 0
    %vm8945 = vcmp.ge.s32.totalorder %v8929, 0
    %vm8946 = vcmp.ge.s32.totalorder %v8930, 0
    %vm8947 = vcmp.ge.s32.totalorder %v8931, 0
    %vm8948 = vcmp.ge.s32.totalorder %v8932, 0
    %vm8949 = vcmp.ge.s32.totalorder %v8933, 0
    %vm8950 = vcmp.ge.s32.totalorder %v8934, 0
    %vm8951 = vcmp.ge.s32.totalorder %v8935, 0
    %vm8952 = vcmp.lt.s32.totalorder %v8920, 8
    %vm8953 = vcmp.lt.s32.totalorder %v8921, 8
    %vm8954 = vcmp.lt.s32.totalorder %v8922, 8
    %vm8955 = vcmp.lt.s32.totalorder %v8923, 8
    %vm8956 = vcmp.lt.s32.totalorder %v8924, 8
    %vm8957 = vcmp.lt.s32.totalorder %v8925, 8
    %vm8958 = vcmp.lt.s32.totalorder %v8926, 8
    %vm8959 = vcmp.lt.s32.totalorder %v8927, 8
    %vm8960 = vcmp.lt.s32.totalorder %v8928, 8
    %vm8961 = vcmp.lt.s32.totalorder %v8929, 8
    %vm8962 = vcmp.lt.s32.totalorder %v8930, 8
    %vm8963 = vcmp.lt.s32.totalorder %v8931, 8
    %vm8964 = vcmp.lt.s32.totalorder %v8932, 8
    %vm8965 = vcmp.lt.s32.totalorder %v8933, 8
    %vm8966 = vcmp.lt.s32.totalorder %v8934, 8
    %vm8967 = vcmp.lt.s32.totalorder %v8935, 8
    %vm8968 = vmand %vm8936, %vm8952
    %vm8969 = vmand %vm8937, %vm8953
    %vm8970 = vmand %vm8938, %vm8954
    %vm8971 = vmand %vm8939, %vm8955
    %vm8972 = vmand %vm8940, %vm8956
    %vm8973 = vmand %vm8941, %vm8957
    %vm8974 = vmand %vm8942, %vm8958
    %vm8975 = vmand %vm8943, %vm8959
    %vm8976 = vmand %vm8944, %vm8960
    %vm8977 = vmand %vm8945, %vm8961
    %vm8978 = vmand %vm8946, %vm8962
    %vm8979 = vmand %vm8947, %vm8963
    %vm8980 = vmand %vm8948, %vm8964
    %vm8981 = vmand %vm8949, %vm8965
    %vm8982 = vmand %vm8950, %vm8966
    %vm8983 = vmand %vm8951, %vm8967
    %vm8984 = vmand %vm8968, %vm8171
    %vm8985 = vmand %vm8969, %vm8172
    %vm8986 = vmand %vm8970, %vm8173
    %vm8987 = vmand %vm8971, %vm8174
    %vm8988 = vmand %vm8972, %vm8175
    %vm8989 = vmand %vm8973, %vm8176
    %vm8990 = vmand %vm8974, %vm8177
    %vm8991 = vmand %vm8975, %vm8178
    %vm8992 = vmand %vm8976, %vm8179
    %vm8993 = vmand %vm8977, %vm8180
    %vm8994 = vmand %vm8978, %vm8181
    %vm8995 = vmand %vm8979, %vm8182
    %vm8996 = vmand %vm8980, %vm8183
    %vm8997 = vmand %vm8981, %vm8184
    %vm8998 = vmand %vm8982, %vm8185
    %vm8999 = vmand %vm8983, %vm8186
    %vm9000 = vmand %vm8984, %vm8203
    %vm9001 = vmand %vm8985, %vm8204
    %vm9002 = vmand %vm8986, %vm8205
    %vm9003 = vmand %vm8987, %vm8206
    %vm9004 = vmand %vm8988, %vm8207
    %vm9005 = vmand %vm8989, %vm8208
    %vm9006 = vmand %vm8990, %vm8209
    %vm9007 = vmand %vm8991, %vm8210
    %vm9008 = vmand %vm8992, %vm8211
    %vm9009 = vmand %vm8993, %vm8212
    %vm9010 = vmand %vm8994, %vm8213
    %vm9011 = vmand %vm8995, %vm8214
    %vm9012 = vmand %vm8996, %vm8215
    %vm9013 = vmand %vm8997, %vm8216
    %vm9014 = vmand %vm8998, %vm8217
    %vm9015 = vmand %vm8999, %vm8218
    %v9016 = vsel %vm9000, 1, 0
    %v9017 = vsel %vm9001, 1, 0
    %v9018 = vsel %vm9002, 1, 0
    %v9019 = vsel %vm9003, 1, 0
    %v9020 = vsel %vm9004, 1, 0
    %v9021 = vsel %vm9005, 1, 0
    %v9022 = vsel %vm9006, 1, 0
    %v9023 = vsel %vm9007, 1, 0
    %v9024 = vsel %vm9008, 1, 0
    %v9025 = vsel %vm9009, 1, 0
    %v9026 = vsel %vm9010, 1, 0
    %v9027 = vsel %vm9011, 1, 0
    %v9028 = vsel %vm9012, 1, 0
    %v9029 = vsel %vm9013, 1, 0
    %v9030 = vsel %vm9014, 1, 0
    %v9031 = vsel %vm9015, 1, 0
    %vm9032 = vcmp.eq.s32.totalorder %v9016, 1
    %vm9033 = vcmp.eq.s32.totalorder %v9017, 1
    %vm9034 = vcmp.eq.s32.totalorder %v9018, 1
    %vm9035 = vcmp.eq.s32.totalorder %v9019, 1
    %vm9036 = vcmp.eq.s32.totalorder %v9020, 1
    %vm9037 = vcmp.eq.s32.totalorder %v9021, 1
    %vm9038 = vcmp.eq.s32.totalorder %v9022, 1
    %vm9039 = vcmp.eq.s32.totalorder %v9023, 1
    %vm9040 = vcmp.eq.s32.totalorder %v9024, 1
    %vm9041 = vcmp.eq.s32.totalorder %v9025, 1
    %vm9042 = vcmp.eq.s32.totalorder %v9026, 1
    %vm9043 = vcmp.eq.s32.totalorder %v9027, 1
    %vm9044 = vcmp.eq.s32.totalorder %v9028, 1
    %vm9045 = vcmp.eq.s32.totalorder %v9029, 1
    %vm9046 = vcmp.eq.s32.totalorder %v9030, 1
    %vm9047 = vcmp.eq.s32.totalorder %v9031, 1
    %v9048 = vsel %vm1121, %v8739, %v1122
    %v9050 = vsel %vm9032, %v8285, 0.0
    %v9051 = vsel %vm9033, %v8287, 0.0
    %v9052 = vsel %vm9034, %v8289, 0.0
    %v9053 = vsel %vm9035, %v8291, 0.0
    %v9054 = vsel %vm9036, %v8293, 0.0
    %v9055 = vsel %vm9037, %v8295, 0.0
    %v9056 = vsel %vm9038, %v8297, 0.0
    %v9057 = vsel %vm9039, %v8299, 0.0
    %v9058 = vsel %vm9040, %v8301, 0.0
    %v9059 = vsel %vm9041, %v8303, 0.0
    %v9060 = vsel %vm9042, %v8305, 0.0
    %v9061 = vsel %vm9043, %v8307, 0.0
    %v9062 = vsel %vm9044, %v8309, 0.0
    %v9063 = vsel %vm9045, %v8311, 0.0
    %v9064 = vsel %vm9046, %v8740, 0.0
    %v9065 = vsel %vm9047, %v9048, 0.0
    %vm9066 = vmand %vm8968, %vm8343
    %vm9067 = vmand %vm8969, %vm8344
    %vm9068 = vmand %vm8970, %vm8345
    %vm9069 = vmand %vm8971, %vm8346
    %vm9070 = vmand %vm8972, %vm8347
    %vm9071 = vmand %vm8973, %vm8348
    %vm9072 = vmand %vm8974, %vm8349
    %vm9073 = vmand %vm8975, %vm8350
    %vm9074 = vmand %vm8976, %vm8351
    %vm9075 = vmand %vm8977, %vm8352
    %vm9076 = vmand %vm8978, %vm8353
    %vm9077 = vmand %vm8979, %vm8354
    %vm9078 = vmand %vm8980, %vm8355
    %vm9079 = vmand %vm8981, %vm8356
    %vm9080 = vmand %vm8982, %vm8357
    %vm9081 = vmand %vm9066, %vm8374
    %vm9082 = vmand %vm9067, %vm8375
    %vm9083 = vmand %vm9068, %vm8376
    %vm9084 = vmand %vm9069, %vm8377
    %vm9085 = vmand %vm9070, %vm8378
    %vm9086 = vmand %vm9071, %vm8379
    %vm9087 = vmand %vm9072, %vm8380
    %vm9088 = vmand %vm9073, %vm8381
    %vm9089 = vmand %vm9074, %vm8382
    %vm9090 = vmand %vm9075, %vm8383
    %vm9091 = vmand %vm9076, %vm8384
    %vm9092 = vmand %vm9077, %vm8385
    %vm9093 = vmand %vm9078, %vm8386
    %vm9094 = vmand %vm9079, %vm8387
    %vm9095 = vmand %vm9080, %vm8388
    %v9096 = vsel %vm9081, 1, 0
    %v9097 = vsel %vm9082, 1, 0
    %v9098 = vsel %vm9083, 1, 0
    %v9099 = vsel %vm9084, 1, 0
    %v9100 = vsel %vm9085, 1, 0
    %v9101 = vsel %vm9086, 1, 0
    %v9102 = vsel %vm9087, 1, 0
    %v9103 = vsel %vm9088, 1, 0
    %v9104 = vsel %vm9089, 1, 0
    %v9105 = vsel %vm9090, 1, 0
    %v9106 = vsel %vm9091, 1, 0
    %v9107 = vsel %vm9092, 1, 0
    %v9108 = vsel %vm9093, 1, 0
    %v9109 = vsel %vm9094, 1, 0
    %v9110 = vsel %vm9095, 1, 0
    %vm9111 = vcmp.eq.s32.totalorder %v9096, 1
    %vm9112 = vcmp.eq.s32.totalorder %v9097, 1
    %vm9113 = vcmp.eq.s32.totalorder %v9098, 1
    %vm9114 = vcmp.eq.s32.totalorder %v9099, 1
    %vm9115 = vcmp.eq.s32.totalorder %v9100, 1
    %vm9116 = vcmp.eq.s32.totalorder %v9101, 1
    %vm9117 = vcmp.eq.s32.totalorder %v9102, 1
    %vm9118 = vcmp.eq.s32.totalorder %v9103, 1
    %vm9119 = vcmp.eq.s32.totalorder %v9104, 1
    %vm9120 = vcmp.eq.s32.totalorder %v9105, 1
    %vm9121 = vcmp.eq.s32.totalorder %v9106, 1
    %vm9122 = vcmp.eq.s32.totalorder %v9107, 1
    %vm9123 = vcmp.eq.s32.totalorder %v9108, 1
    %vm9124 = vcmp.eq.s32.totalorder %v9109, 1
    %vm9125 = vcmp.eq.s32.totalorder %v9110, 1
    %v9126 = vsel %vm9111, %v7941, 0.0
    %v9127 = vsel %vm9112, %v7944, 0.0
    %v9128 = vsel %vm9113, %v7947, 0.0
    %v9129 = vsel %vm9114, %v7950, 0.0
    %v9130 = vsel %vm9115, %v7953, 0.0
    %v9131 = vsel %vm9116, %v7956, 0.0
    %v9132 = vsel %vm9117, %v7959, 0.0
    %v9133 = vsel %vm9118, %v8020, 0.0
    %v9134 = vsel %vm9119, %v8023, 0.0
    %v9135 = vsel %vm9120, %v8026, 0.0
    %v9136 = vsel %vm9121, %v8029, 0.0
    %v9137 = vsel %vm9122, %v8032, 0.0
    %v9138 = vsel %vm9123, %v8035, 0.0
    %v9139 = vsel %vm9124, %v8038, 0.0
    %v9140 = vsel %vm9125, %v8041, 0.0
    %vm9141 = vmand %vm8968, %vm8466
    %vm9142 = vmand %vm8969, %vm8467
    %vm9143 = vmand %vm8970, %vm8468
    %vm9144 = vmand %vm8971, %vm8469
    %vm9145 = vmand %vm8972, %vm8470
    %vm9146 = vmand %vm8973, %vm8471
    %vm9147 = vmand %vm8974, %vm8472
    %vm9148 = vmand %vm8975, %vm8473
    %vm9149 = vmand %vm8976, %vm8474
    %vm9150 = vmand %vm8977, %vm8475
    %vm9151 = vmand %vm8978, %vm8476
    %vm9152 = vmand %vm8979, %vm8477
    %vm9153 = vmand %vm8980, %vm8478
    %vm9154 = vmand %vm8981, %vm8479
    %vm9155 = vmand %vm8982, %vm8480
    %vm9156 = vmand %vm8983, %vm8481
    %vm9157 = vmand %vm9141, %vm8498
    %vm9158 = vmand %vm9142, %vm8499
    %vm9159 = vmand %vm9143, %vm8500
    %vm9160 = vmand %vm9144, %vm8501
    %vm9161 = vmand %vm9145, %vm8502
    %vm9162 = vmand %vm9146, %vm8503
    %vm9163 = vmand %vm9147, %vm8504
    %vm9164 = vmand %vm9148, %vm8505
    %vm9165 = vmand %vm9149, %vm8506
    %vm9166 = vmand %vm9150, %vm8507
    %vm9167 = vmand %vm9151, %vm8508
    %vm9168 = vmand %vm9152, %vm8509
    %vm9169 = vmand %vm9153, %vm8510
    %vm9170 = vmand %vm9154, %vm8511
    %vm9171 = vmand %vm9155, %vm8512
    %vm9172 = vmand %vm9156, %vm8513
    %v9173 = vsel %vm9157, 1, 0
    %v9174 = vsel %vm9158, 1, 0
    %v9175 = vsel %vm9159, 1, 0
    %v9176 = vsel %vm9160, 1, 0
    %v9177 = vsel %vm9161, 1, 0
    %v9178 = vsel %vm9162, 1, 0
    %v9179 = vsel %vm9163, 1, 0
    %v9180 = vsel %vm9164, 1, 0
    %v9181 = vsel %vm9165, 1, 0
    %v9182 = vsel %vm9166, 1, 0
    %v9183 = vsel %vm9167, 1, 0
    %v9184 = vsel %vm9168, 1, 0
    %v9185 = vsel %vm9169, 1, 0
    %v9186 = vsel %vm9170, 1, 0
    %v9187 = vsel %vm9171, 1, 0
    %v9188 = vsel %vm9172, 1, 0
    %vm9189 = vcmp.eq.s32.totalorder %v9173, 1
    %vm9190 = vcmp.eq.s32.totalorder %v9174, 1
    %vm9191 = vcmp.eq.s32.totalorder %v9175, 1
    %vm9192 = vcmp.eq.s32.totalorder %v9176, 1
    %vm9193 = vcmp.eq.s32.totalorder %v9177, 1
    %vm9194 = vcmp.eq.s32.totalorder %v9178, 1
    %vm9195 = vcmp.eq.s32.totalorder %v9179, 1
    %vm9196 = vcmp.eq.s32.totalorder %v9180, 1
    %vm9197 = vcmp.eq.s32.totalorder %v9181, 1
    %vm9198 = vcmp.eq.s32.totalorder %v9182, 1
    %vm9199 = vcmp.eq.s32.totalorder %v9183, 1
    %vm9200 = vcmp.eq.s32.totalorder %v9184, 1
    %vm9201 = vcmp.eq.s32.totalorder %v9185, 1
    %vm9202 = vcmp.eq.s32.totalorder %v9186, 1
    %vm9203 = vcmp.eq.s32.totalorder %v9187, 1
    %vm9204 = vcmp.eq.s32.totalorder %v9188, 1
    %v9205 = vsel %vm9189, %v8568, 0.0
    %v9206 = vsel %vm9190, %v8570, 0.0
    %v9207 = vsel %vm9191, %v8572, 0.0
    %v9208 = vsel %vm9192, %v8574, 0.0
    %v9209 = vsel %vm9193, %v8576, 0.0
    %v9210 = vsel %vm9194, %v8578, 0.0
    %v9211 = vsel %vm9195, %v8580, 0.0
    %v9212 = vsel %vm9196, %v8582, 0.0
    %v9213 = vsel %vm9197, %v8584, 0.0
    %v9214 = vsel %vm9198, %v8586, 0.0
    %v9215 = vsel %vm9199, %v8588, 0.0
    %v9216 = vsel %vm9200, %v8590, 0.0
    %v9217 = vsel %vm9201, %v8592, 0.0
    %v9218 = vsel %vm9202, %v8594, 0.0
    %v9219 = vsel %vm9203, %v8902, 0.0
    %v9220 = vsel %vm9204, %v2264, 0.0
    %9236 = vrot.lane.b32.xlu0 0.0, 16
    %v9237 = vpop.permute.xlu0 %9236
    %9238 = vrot.lane.b32.xlu0 %v8435, 16
    %v9239 = vpop.permute.xlu0 %9238
    %9240 = vrot.lane.b32.xlu0 %v8436, 16
    %v9241 = vpop.permute.xlu0 %9240
    %9242 = vrot.lane.b32.xlu0 %v8437, 16
    %v9243 = vpop.permute.xlu0 %9242
    %9244 = vrot.lane.b32.xlu0 %v8438, 16
    %v9245 = vpop.permute.xlu0 %9244
    %9246 = vrot.lane.b32.xlu0 %v8439, 16
    %v9247 = vpop.permute.xlu0 %9246
    %9248 = vrot.lane.b32.xlu0 %v8440, 16
    %v9249 = vpop.permute.xlu0 %9248
    %9250 = vrot.lane.b32.xlu0 %v8441, 16
    %v9251 = vpop.permute.xlu0 %9250
    %9252 = vrot.lane.b32.xlu0 %v8442, 16
    %v9253 = vpop.permute.xlu0 %9252
    %9254 = vrot.lane.b32.xlu0 %v8443, 16
    %v9255 = vpop.permute.xlu0 %9254
    %9256 = vrot.lane.b32.xlu0 %v8444, 16
    %v9257 = vpop.permute.xlu0 %9256
    %9258 = vrot.lane.b32.xlu0 %v8445, 16
    %v9259 = vpop.permute.xlu0 %9258
    %9260 = vrot.lane.b32.xlu0 %v8446, 16
    %v9261 = vpop.permute.xlu0 %9260
    %9262 = vrot.lane.b32.xlu0 %v8447, 16
    %v9263 = vpop.permute.xlu0 %9262
    %9264 = vrot.lane.b32.xlu0 %v8448, 16
    %v9265 = vpop.permute.xlu0 %9264
    %9266 = vrot.lane.b32.xlu0 %v8449, 16
    %v9267 = vpop.permute.xlu0 %9266
    %9300 = vrot.lane.b32.xlu0 %v8611, 32
    %v9301 = vpop.permute.xlu0 %9300
    %9302 = vrot.lane.b32.xlu0 %v8612, 32
    %v9303 = vpop.permute.xlu0 %9302
    %9304 = vrot.lane.b32.xlu0 %v8613, 32
    %v9305 = vpop.permute.xlu0 %9304
    %9306 = vrot.lane.b32.xlu0 %v8614, 32
    %v9307 = vpop.permute.xlu0 %9306
    %9308 = vrot.lane.b32.xlu0 %v8615, 32
    %v9309 = vpop.permute.xlu0 %9308
    %9310 = vrot.lane.b32.xlu0 %v8616, 32
    %v9311 = vpop.permute.xlu0 %9310
    %9312 = vrot.lane.b32.xlu0 %v8617, 32
    %v9313 = vpop.permute.xlu0 %9312
    %9314 = vrot.lane.b32.xlu0 %v8618, 32
    %v9315 = vpop.permute.xlu0 %9314
    %9316 = vrot.lane.b32.xlu0 %v8619, 32
    %v9317 = vpop.permute.xlu0 %9316
    %9318 = vrot.lane.b32.xlu0 %v8620, 32
    %v9319 = vpop.permute.xlu0 %9318
    %9320 = vrot.lane.b32.xlu0 %v8621, 32
    %v9321 = vpop.permute.xlu0 %9320
    %9322 = vrot.lane.b32.xlu0 %v8622, 32
    %v9323 = vpop.permute.xlu0 %9322
    %9324 = vrot.lane.b32.xlu0 %v8623, 32
    %v9325 = vpop.permute.xlu0 %9324
    %9326 = vrot.lane.b32.xlu0 %v8624, 32
    %v9327 = vpop.permute.xlu0 %9326
    %9328 = vrot.lane.b32.xlu0 %v8625, 32
    %v9329 = vpop.permute.xlu0 %9328
    %9330 = vrot.lane.b32.xlu0 %v8626, 32
    %v9331 = vpop.permute.xlu0 %9330
    %9364 = vrot.lane.b32.xlu0 %v8742, 48
    %v9365 = vpop.permute.xlu0 %9364
    %9366 = vrot.lane.b32.xlu0 %v8743, 48
    %v9367 = vpop.permute.xlu0 %9366
    %9368 = vrot.lane.b32.xlu0 %v8744, 48
    %v9369 = vpop.permute.xlu0 %9368
    %9370 = vrot.lane.b32.xlu0 %v8745, 48
    %v9371 = vpop.permute.xlu0 %9370
    %9372 = vrot.lane.b32.xlu0 %v8746, 48
    %v9373 = vpop.permute.xlu0 %9372
    %9374 = vrot.lane.b32.xlu0 %v8747, 48
    %v9375 = vpop.permute.xlu0 %9374
    %9376 = vrot.lane.b32.xlu0 %v8748, 48
    %v9377 = vpop.permute.xlu0 %9376
    %9378 = vrot.lane.b32.xlu0 %v8749, 48
    %v9379 = vpop.permute.xlu0 %9378
    %9380 = vrot.lane.b32.xlu0 %v8750, 48
    %v9381 = vpop.permute.xlu0 %9380
    %9382 = vrot.lane.b32.xlu0 %v8751, 48
    %v9383 = vpop.permute.xlu0 %9382
    %9384 = vrot.lane.b32.xlu0 %v8752, 48
    %v9385 = vpop.permute.xlu0 %9384
    %9386 = vrot.lane.b32.xlu0 %v8753, 48
    %v9387 = vpop.permute.xlu0 %9386
    %9388 = vrot.lane.b32.xlu0 %v8754, 48
    %v9389 = vpop.permute.xlu0 %9388
    %9390 = vrot.lane.b32.xlu0 %v8755, 48
    %v9391 = vpop.permute.xlu0 %9390
    %9392 = vrot.lane.b32.xlu0 %v8756, 48
    %v9393 = vpop.permute.xlu0 %9392
    %9394 = vrot.lane.b32.xlu0 %v8757, 48
    %v9395 = vpop.permute.xlu0 %9394
    %9428 = vrot.lane.b32.xlu0 %v8822, 64
    %v9429 = vpop.permute.xlu0 %9428
    %9430 = vrot.lane.b32.xlu0 %v8823, 64
    %v9431 = vpop.permute.xlu0 %9430
    %9432 = vrot.lane.b32.xlu0 %v8824, 64
    %v9433 = vpop.permute.xlu0 %9432
    %9434 = vrot.lane.b32.xlu0 %v8825, 64
    %v9435 = vpop.permute.xlu0 %9434
    %9436 = vrot.lane.b32.xlu0 %v8826, 64
    %v9437 = vpop.permute.xlu0 %9436
    %9438 = vrot.lane.b32.xlu0 %v8827, 64
    %v9439 = vpop.permute.xlu0 %9438
    %9440 = vrot.lane.b32.xlu0 %v8828, 64
    %v9441 = vpop.permute.xlu0 %9440
    %9442 = vrot.lane.b32.xlu0 %v8829, 64
    %v9443 = vpop.permute.xlu0 %9442
    %9444 = vrot.lane.b32.xlu0 %v8830, 64
    %v9445 = vpop.permute.xlu0 %9444
    %9446 = vrot.lane.b32.xlu0 %v8831, 64
    %v9447 = vpop.permute.xlu0 %9446
    %9448 = vrot.lane.b32.xlu0 %v8832, 64
    %v9449 = vpop.permute.xlu0 %9448
    %9450 = vrot.lane.b32.xlu0 %v8833, 64
    %v9451 = vpop.permute.xlu0 %9450
    %9452 = vrot.lane.b32.xlu0 %v8834, 64
    %v9453 = vpop.permute.xlu0 %9452
    %9454 = vrot.lane.b32.xlu0 %v8835, 64
    %v9455 = vpop.permute.xlu0 %9454
    %9456 = vrot.lane.b32.xlu0 %v8836, 64
    %v9457 = vpop.permute.xlu0 %9456
    %9458 = vrot.lane.b32.xlu0 %v8837, 64
    %v9459 = vpop.permute.xlu0 %9458
    %9492 = vrot.lane.b32.xlu0 %v8904, 80
    %v9493 = vpop.permute.xlu0 %9492
    %9494 = vrot.lane.b32.xlu0 %v8905, 80
    %v9495 = vpop.permute.xlu0 %9494
    %9496 = vrot.lane.b32.xlu0 %v8906, 80
    %v9497 = vpop.permute.xlu0 %9496
    %9498 = vrot.lane.b32.xlu0 %v8907, 80
    %v9499 = vpop.permute.xlu0 %9498
    %9500 = vrot.lane.b32.xlu0 %v8908, 80
    %v9501 = vpop.permute.xlu0 %9500
    %9502 = vrot.lane.b32.xlu0 %v8909, 80
    %v9503 = vpop.permute.xlu0 %9502
    %9504 = vrot.lane.b32.xlu0 %v8910, 80
    %v9505 = vpop.permute.xlu0 %9504
    %9506 = vrot.lane.b32.xlu0 %v8911, 80
    %v9507 = vpop.permute.xlu0 %9506
    %9508 = vrot.lane.b32.xlu0 %v8912, 80
    %v9509 = vpop.permute.xlu0 %9508
    %9510 = vrot.lane.b32.xlu0 %v8913, 80
    %v9511 = vpop.permute.xlu0 %9510
    %9512 = vrot.lane.b32.xlu0 %v8914, 80
    %v9513 = vpop.permute.xlu0 %9512
    %9514 = vrot.lane.b32.xlu0 %v8915, 80
    %v9515 = vpop.permute.xlu0 %9514
    %9516 = vrot.lane.b32.xlu0 %v8916, 80
    %v9517 = vpop.permute.xlu0 %9516
    %9518 = vrot.lane.b32.xlu0 %v8917, 80
    %v9519 = vpop.permute.xlu0 %9518
    %9520 = vrot.lane.b32.xlu0 %v8918, 80
    %v9521 = vpop.permute.xlu0 %9520
    %9522 = vrot.lane.b32.xlu0 %v8919, 80
    %v9523 = vpop.permute.xlu0 %9522
    %9556 = vrot.lane.b32.xlu0 %v9050, 96
    %v9557 = vpop.permute.xlu0 %9556
    %9558 = vrot.lane.b32.xlu0 %v9051, 96
    %v9559 = vpop.permute.xlu0 %9558
    %9560 = vrot.lane.b32.xlu0 %v9052, 96
    %v9561 = vpop.permute.xlu0 %9560
    %9562 = vrot.lane.b32.xlu0 %v9053, 96
    %v9563 = vpop.permute.xlu0 %9562
    %9564 = vrot.lane.b32.xlu0 %v9054, 96
    %v9565 = vpop.permute.xlu0 %9564
    %9566 = vrot.lane.b32.xlu0 %v9055, 96
    %v9567 = vpop.permute.xlu0 %9566
    %9568 = vrot.lane.b32.xlu0 %v9056, 96
    %v9569 = vpop.permute.xlu0 %9568
    %9570 = vrot.lane.b32.xlu0 %v9057, 96
    %v9571 = vpop.permute.xlu0 %9570
    %9572 = vrot.lane.b32.xlu0 %v9058, 96
    %v9573 = vpop.permute.xlu0 %9572
    %9574 = vrot.lane.b32.xlu0 %v9059, 96
    %v9575 = vpop.permute.xlu0 %9574
    %9576 = vrot.lane.b32.xlu0 %v9060, 96
    %v9577 = vpop.permute.xlu0 %9576
    %9578 = vrot.lane.b32.xlu0 %v9061, 96
    %v9579 = vpop.permute.xlu0 %9578
    %9580 = vrot.lane.b32.xlu0 %v9062, 96
    %v9581 = vpop.permute.xlu0 %9580
    %9582 = vrot.lane.b32.xlu0 %v9063, 96
    %v9583 = vpop.permute.xlu0 %9582
    %9584 = vrot.lane.b32.xlu0 %v9064, 96
    %v9585 = vpop.permute.xlu0 %9584
    %9586 = vrot.lane.b32.xlu0 %v9065, 96
    %v9587 = vpop.permute.xlu0 %9586
    %9619 = vrot.lane.b32.xlu0 %v9126, 112
    %v9620 = vpop.permute.xlu0 %9619
    %9621 = vrot.lane.b32.xlu0 %v9127, 112
    %v9622 = vpop.permute.xlu0 %9621
    %9623 = vrot.lane.b32.xlu0 %v9128, 112
    %v9624 = vpop.permute.xlu0 %9623
    %9625 = vrot.lane.b32.xlu0 %v9129, 112
    %v9626 = vpop.permute.xlu0 %9625
    %9627 = vrot.lane.b32.xlu0 %v9130, 112
    %v9628 = vpop.permute.xlu0 %9627
    %9629 = vrot.lane.b32.xlu0 %v9131, 112
    %v9630 = vpop.permute.xlu0 %9629
    %9631 = vrot.lane.b32.xlu0 %v9132, 112
    %v9632 = vpop.permute.xlu0 %9631
    %9633 = vrot.lane.b32.xlu0 %v9133, 112
    %v9634 = vpop.permute.xlu0 %9633
    %9635 = vrot.lane.b32.xlu0 %v9134, 112
    %v9636 = vpop.permute.xlu0 %9635
    %9637 = vrot.lane.b32.xlu0 %v9135, 112
    %v9638 = vpop.permute.xlu0 %9637
    %9639 = vrot.lane.b32.xlu0 %v9136, 112
    %v9640 = vpop.permute.xlu0 %9639
    %9641 = vrot.lane.b32.xlu0 %v9137, 112
    %v9642 = vpop.permute.xlu0 %9641
    %9643 = vrot.lane.b32.xlu0 %v9138, 112
    %v9644 = vpop.permute.xlu0 %9643
    %9645 = vrot.lane.b32.xlu0 %v9139, 112
    %v9646 = vpop.permute.xlu0 %9645
    %9647 = vrot.lane.b32.xlu0 %v9140, 112
    %v9648 = vpop.permute.xlu0 %9647
    %9649 = vrot.lane.b32.xlu0 0.0, 112
    %v9650 = vpop.permute.xlu0 %9649
    %vm9667 = vcmask 130048
    %v9668 = vsel %vm9667, %v8327, %v9237
    %v9669 = vsel %vm9667, %v8328, %v9239
    %v9670 = vsel %vm9667, %v8329, %v9241
    %v9671 = vsel %vm9667, %v8330, %v9243
    %v9672 = vsel %vm9667, %v8331, %v9245
    %v9673 = vsel %vm9667, %v8332, %v9247
    %v9674 = vsel %vm9667, %v8333, %v9249
    %v9675 = vsel %vm9667, %v8334, %v9251
    %v9676 = vsel %vm9667, %v8335, %v9253
    %v9677 = vsel %vm9667, %v8336, %v9255
    %v9678 = vsel %vm9667, %v8337, %v9257
    %v9679 = vsel %vm9667, %v8338, %v9259
    %v9680 = vsel %vm9667, %v8339, %v9261
    %v9681 = vsel %vm9667, %v8340, %v9263
    %v9682 = vsel %vm9667, %v8341, %v9265
    %v9683 = vsel %vm9667, %v8342, %v9267
    %vm9684 = vcmask 261120
    %v9685 = vsel %vm9684, %v9668, %v9301
    %v9686 = vsel %vm9684, %v9669, %v9303
    %v9687 = vsel %vm9684, %v9670, %v9305
    %v9688 = vsel %vm9684, %v9671, %v9307
    %v9689 = vsel %vm9684, %v9672, %v9309
    %v9690 = vsel %vm9684, %v9673, %v9311
    %v9691 = vsel %vm9684, %v9674, %v9313
    %v9692 = vsel %vm9684, %v9675, %v9315
    %v9693 = vsel %vm9684, %v9676, %v9317
    %v9694 = vsel %vm9684, %v9677, %v9319
    %v9695 = vsel %vm9684, %v9678, %v9321
    %v9696 = vsel %vm9684, %v9679, %v9323
    %v9697 = vsel %vm9684, %v9680, %v9325
    %v9698 = vsel %vm9684, %v9681, %v9327
    %v9699 = vsel %vm9684, %v9682, %v9329
    %v9700 = vsel %vm9684, %v9683, %v9331
    %vm9701 = vcmask 392192
    %v9702 = vsel %vm9701, %v9685, %v9365
    %v9703 = vsel %vm9701, %v9686, %v9367
    %v9704 = vsel %vm9701, %v9687, %v9369
    %v9705 = vsel %vm9701, %v9688, %v9371
    %v9706 = vsel %vm9701, %v9689, %v9373
    %v9707 = vsel %vm9701, %v9690, %v9375
    %v9708 = vsel %vm9701, %v9691, %v9377
    %v9709 = vsel %vm9701, %v9692, %v9379
    %v9710 = vsel %vm9701, %v9693, %v9381
    %v9711 = vsel %vm9701, %v9694, %v9383
    %v9712 = vsel %vm9701, %v9695, %v9385
    %v9713 = vsel %vm9701, %v9696, %v9387
    %v9714 = vsel %vm9701, %v9697, %v9389
    %v9715 = vsel %vm9701, %v9698, %v9391
    %v9716 = vsel %vm9701, %v9699, %v9393
    %v9717 = vsel %vm9701, %v9700, %v9395
    %vm9718 = vcmask 523264
    %v9719 = vsel %vm9718, %v9702, %v9429
    %v9720 = vsel %vm9718, %v9703, %v9431
    %v9721 = vsel %vm9718, %v9704, %v9433
    %v9722 = vsel %vm9718, %v9705, %v9435
    %v9723 = vsel %vm9718, %v9706, %v9437
    %v9724 = vsel %vm9718, %v9707, %v9439
    %v9725 = vsel %vm9718, %v9708, %v9441
    %v9726 = vsel %vm9718, %v9709, %v9443
    %v9727 = vsel %vm9718, %v9710, %v9445
    %v9728 = vsel %vm9718, %v9711, %v9447
    %v9729 = vsel %vm9718, %v9712, %v9449
    %v9730 = vsel %vm9718, %v9713, %v9451
    %v9731 = vsel %vm9718, %v9714, %v9453
    %v9732 = vsel %vm9718, %v9715, %v9455
    %v9733 = vsel %vm9718, %v9716, %v9457
    %v9734 = vsel %vm9718, %v9717, %v9459
    %vm9735 = vcmask 654336
    %v9736 = vsel %vm9735, %v9719, %v9493
    %v9737 = vsel %vm9735, %v9720, %v9495
    %v9738 = vsel %vm9735, %v9721, %v9497
    %v9739 = vsel %vm9735, %v9722, %v9499
    %v9740 = vsel %vm9735, %v9723, %v9501
    %v9741 = vsel %vm9735, %v9724, %v9503
    %v9742 = vsel %vm9735, %v9725, %v9505
    %v9743 = vsel %vm9735, %v9726, %v9507
    %v9744 = vsel %vm9735, %v9727, %v9509
    %v9745 = vsel %vm9735, %v9728, %v9511
    %v9746 = vsel %vm9735, %v9729, %v9513
    %v9747 = vsel %vm9735, %v9730, %v9515
    %v9748 = vsel %vm9735, %v9731, %v9517
    %v9749 = vsel %vm9735, %v9732, %v9519
    %v9750 = vsel %vm9735, %v9733, %v9521
    %v9751 = vsel %vm9735, %v9734, %v9523
    %vm9752 = vcmask 785408
    %v9753 = vsel %vm9752, %v9736, %v9557
    %v9754 = vsel %vm9752, %v9737, %v9559
    %v9755 = vsel %vm9752, %v9738, %v9561
    %v9756 = vsel %vm9752, %v9739, %v9563
    %v9757 = vsel %vm9752, %v9740, %v9565
    %v9758 = vsel %vm9752, %v9741, %v9567
    %v9759 = vsel %vm9752, %v9742, %v9569
    %v9760 = vsel %vm9752, %v9743, %v9571
    %v9761 = vsel %vm9752, %v9744, %v9573
    %v9762 = vsel %vm9752, %v9745, %v9575
    %v9763 = vsel %vm9752, %v9746, %v9577
    %v9764 = vsel %vm9752, %v9747, %v9579
    %v9765 = vsel %vm9752, %v9748, %v9581
    %v9766 = vsel %vm9752, %v9749, %v9583
    %v9767 = vsel %vm9752, %v9750, %v9585
    %v9768 = vsel %vm9752, %v9751, %v9587
    %vm9769 = vcmask 916480
    %v9770 = vsel %vm9769, %v9753, %v9620
    %v9771 = vsel %vm9769, %v9754, %v9622
    %v9772 = vsel %vm9769, %v9755, %v9624
    %v9773 = vsel %vm9769, %v9756, %v9626
    %v9774 = vsel %vm9769, %v9757, %v9628
    %v9775 = vsel %vm9769, %v9758, %v9630
    %v9776 = vsel %vm9769, %v9759, %v9632
    %v9777 = vsel %vm9769, %v9760, %v9634
    %v9778 = vsel %vm9769, %v9761, %v9636
    %v9779 = vsel %vm9769, %v9762, %v9638
    %v9780 = vsel %vm9769, %v9763, %v9640
    %v9781 = vsel %vm9769, %v9764, %v9642
    %v9782 = vsel %vm9769, %v9765, %v9644
    %v9783 = vsel %vm9769, %v9766, %v9646
    %v9784 = vsel %vm9769, %v9767, %v9648
    %v9785 = vsel %vm9769, %v9768, %v9650
    %v9786 = vld [vmem:[%s4] sm:$0xff]
    %v9787 = vld [vmem:[%s4 + $0x8] sm:$0xff]
    %v9788 = vld [vmem:[%s4 + $0x10] sm:$0xff]
    %v9789 = vld [vmem:[%s4 + $0x18] sm:$0xff]
    %v9790 = vld [vmem:[%s4 + $0x20] sm:$0xff]
    %v9791 = vld [vmem:[%s4 + $0x28] sm:$0xff]
    %v9792 = vld [vmem:[%s4 + $0x30] sm:$0xff]
    %v9793 = vld [vmem:[%s4 + $0x38] sm:$0xff]
    %v9794 = vld [vmem:[%s4 + $0x40] sm:$0xff]
    %v9795 = vld [vmem:[%s4 + $0x48] sm:$0xff]
    %v9796 = vld [vmem:[%s4 + $0x50] sm:$0xff]
    %v9797 = vld [vmem:[%s4 + $0x58] sm:$0xff]
    %v9798 = vld [vmem:[%s4 + $0x60] sm:$0xff]
    %v9799 = vld [vmem:[%s4 + $0x68] sm:$0xff]
    %v9800 = vld [vmem:[%s4 + $0x70] sm:$0xff]
    %v9801 = vld [vmem:[%s4 + $0x78] sm:$0xff]
    %v9802 = vld [vmem:[%s4 + $0x80] sm:$0xff]
    %v9803 = vld [vmem:[%s4 + $0x88] sm:$0xff]
    %v9804 = vld [vmem:[%s5] sm:$0x1]
    %v9806 = vperm.slane %v9804, 0
    %v9809 = vsel %vm9667, %v9205, 0
    %v9812 = vsel %vm9667, %v9206, 0
    %v9815 = vsel %vm9667, %v9207, 0
    %v9818 = vsel %vm9667, %v9208, 0
    %v9821 = vsel %vm9667, %v9209, 0
    %v9824 = vsel %vm9667, %v9210, 0
    %v9827 = vsel %vm9667, %v9211, 0
    %v9830 = vsel %vm9667, %v9212, 0
    %v9833 = vsel %vm9667, %v9213, 0
    %v9836 = vsel %vm9667, %v9214, 0
    %v9839 = vsel %vm9667, %v9215, 0
    %v9842 = vsel %vm9667, %v9216, 0
    %v9845 = vsel %vm9667, %v9217, 0
    %v9848 = vsel %vm9667, %v9218, 0
    %v9851 = vsel %vm9667, %v9219, 0
    %v9854 = vsel %vm9667, %v9220, 0
    %9856 = vmatpush.msra.mxu0 %v9801
    %9857 = vmatpush.msra.mxu0 %v9800
    %9858 = vmatpush.msra.mxu0 %v9799
    %9859 = vmatpush.msra.mxu0 %v9798
    %9860 = vmatpush.msra.mxu0 %v9797
    %9861 = vmatpush.msra.mxu0 %v9796
    %9862 = vmatpush.msra.mxu0 %v9795
    %9863 = vmatpush.msra.mxu0 %v9794
    %9864 = vmatpush.msra.mxu0 %v9793
    %9865 = vmatpush.msra.mxu0 %v9792
    %9866 = vmatpush.msra.mxu0 %v9791
    %9867 = vmatpush.msra.mxu0 %v9790
    %9868 = vmatpush.msra.mxu0 %v9789
    %9869 = vmatpush.msra.mxu0 %v9788
    %9870 = vmatpush.msra.mxu0 %v9787
    %9871 = vmatpush.msra.mxu0 %v9786
    %9872 = vmatmul.f32.gmra.mxu0 %v9770
    %v9873 = vpop.f32.mrf.mxu0
    %v9874 = vadd.f32 %v9806, %v9873
    %9875 = vmatmul.f32.gmra.mxu0 %v9771
    %v9876 = vpop.f32.mrf.mxu0
    %v9877 = vadd.f32 %v9806, %v9876
    %9878 = vmatmul.f32.gmra.mxu0 %v9772
    %v9879 = vpop.f32.mrf.mxu0
    %v9880 = vadd.f32 %v9806, %v9879
    %9881 = vmatmul.f32.gmra.mxu0 %v9773
    %v9882 = vpop.f32.mrf.mxu0
    %v9883 = vadd.f32 %v9806, %v9882
    %9884 = vmatmul.f32.gmra.mxu0 %v9774
    %v9885 = vpop.f32.mrf.mxu0
    %v9886 = vadd.f32 %v9806, %v9885
    %9887 = vmatmul.f32.gmra.mxu0 %v9775
    %v9888 = vpop.f32.mrf.mxu0
    %v9889 = vadd.f32 %v9806, %v9888
    %9890 = vmatmul.f32.gmra.mxu0 %v9776
    %v9891 = vpop.f32.mrf.mxu0
    %v9892 = vadd.f32 %v9806, %v9891
    %9893 = vmatmul.f32.gmra.mxu0 %v9777
    %v9894 = vpop.f32.mrf.mxu0
    %v9895 = vadd.f32 %v9806, %v9894
    %9896 = vmatmul.f32.gmra.mxu0 %v9778
    %v9897 = vpop.f32.mrf.mxu0
    %v9898 = vadd.f32 %v9806, %v9897
    %9899 = vmatmul.f32.gmra.mxu0 %v9779
    %v9900 = vpop.f32.mrf.mxu0
    %v9901 = vadd.f32 %v9806, %v9900
    %9902 = vmatmul.f32.gmra.mxu0 %v9780
    %v9903 = vpop.f32.mrf.mxu0
    %v9904 = vadd.f32 %v9806, %v9903
    %9905 = vmatmul.f32.gmra.mxu0 %v9781
    %v9906 = vpop.f32.mrf.mxu0
    %v9907 = vadd.f32 %v9806, %v9906
    %9908 = vmatmul.f32.gmra.mxu0 %v9782
    %v9909 = vpop.f32.mrf.mxu0
    %v9910 = vadd.f32 %v9806, %v9909
    %9911 = vmatmul.f32.gmra.mxu0 %v9783
    %v9912 = vpop.f32.mrf.mxu0
    %v9913 = vadd.f32 %v9806, %v9912
    %9914 = vmatmul.f32.gmra.mxu0 %v9784
    %v9915 = vpop.f32.mrf.mxu0
    %v9916 = vadd.f32 %v9806, %v9915
    %9917 = vmatmul.f32.gmra.mxu0 %v9785
    %v9918 = vpop.f32.mrf.mxu0
    %v9919 = vadd.f32 %v9806, %v9918
    %9920 = vdwg.mxu0
    %9921 = vmatpush.msra.mxu0 0.0
    %9922 = vmatpush.msra.mxu0 0.0
    %9923 = vmatpush.msra.mxu0 0.0
    %9924 = vmatpush.msra.mxu0 0.0
    %9925 = vmatpush.msra.mxu0 0.0
    %9926 = vmatpush.msra.mxu0 0.0
    %9927 = vmatpush.msra.mxu0 0.0
    %9928 = vmatpush.msra.mxu0 0.0
    %9929 = vmatpush.msra.mxu0 0.0
    %9930 = vmatpush.msra.mxu0 0.0
    %9931 = vmatpush.msra.mxu0 0.0
    %9932 = vmatpush.msra.mxu0 0.0
    %9933 = vmatpush.msra.mxu0 0.0
    %9934 = vmatpush.msra.mxu0 0.0
    %9935 = vmatpush.msra.mxu0 %v9803
    %9936 = vmatpush.msra.mxu0 %v9802
    %9937 = vmatmul.f32.gmra.mxu0 %v9809
    %v9938 = vpop.f32.mrf.mxu0
    %v9939 = vadd.f32 %v9874, %v9938
    %9940 = vmatmul.f32.gmra.mxu0 %v9812
    %v9941 = vpop.f32.mrf.mxu0
    %v9942 = vadd.f32 %v9877, %v9941
    %9943 = vmatmul.f32.gmra.mxu0 %v9815
    %v9944 = vpop.f32.mrf.mxu0
    %v9945 = vadd.f32 %v9880, %v9944
    %9946 = vmatmul.f32.gmra.mxu0 %v9818
    %v9947 = vpop.f32.mrf.mxu0
    %v9948 = vadd.f32 %v9883, %v9947
    %9949 = vmatmul.f32.gmra.mxu0 %v9821
    %v9950 = vpop.f32.mrf.mxu0
    %v9951 = vadd.f32 %v9886, %v9950
    %9952 = vmatmul.f32.gmra.mxu0 %v9824
    %v9953 = vpop.f32.mrf.mxu0
    %v9954 = vadd.f32 %v9889, %v9953
    %9955 = vmatmul.f32.gmra.mxu0 %v9827
    %v9956 = vpop.f32.mrf.mxu0
    %v9957 = vadd.f32 %v9892, %v9956
    %9958 = vmatmul.f32.gmra.mxu0 %v9830
    %v9959 = vpop.f32.mrf.mxu0
    %v9960 = vadd.f32 %v9895, %v9959
    %9961 = vmatmul.f32.gmra.mxu0 %v9833
    %v9962 = vpop.f32.mrf.mxu0
    %v9963 = vadd.f32 %v9898, %v9962
    %9964 = vmatmul.f32.gmra.mxu0 %v9836
    %v9965 = vpop.f32.mrf.mxu0
    %v9966 = vadd.f32 %v9901, %v9965
    %9967 = vmatmul.f32.gmra.mxu0 %v9839
    %v9968 = vpop.f32.mrf.mxu0
    %v9969 = vadd.f32 %v9904, %v9968
    %9970 = vmatmul.f32.gmra.mxu0 %v9842
    %v9971 = vpop.f32.mrf.mxu0
    %v9972 = vadd.f32 %v9907, %v9971
    %9973 = vmatmul.f32.gmra.mxu0 %v9845
    %v9974 = vpop.f32.mrf.mxu0
    %v9975 = vadd.f32 %v9910, %v9974
    %9976 = vmatmul.f32.gmra.mxu0 %v9848
    %v9977 = vpop.f32.mrf.mxu0
    %v9978 = vadd.f32 %v9913, %v9977
    %9979 = vmatmul.f32.gmra.mxu0 %v9851
    %v9980 = vpop.f32.mrf.mxu0
    %v9981 = vadd.f32 %v9916, %v9980
    %9982 = vmatmul.f32.gmra.mxu0 %v9854
    %v9983 = vpop.f32.mrf.mxu0
    %v9984 = vadd.f32 %v9919, %v9983
    %9985 = vdwg.mxu0
    %v9986 = vld [vmem:[%s6] sm:$0xff]
    %v9987 = vld [vmem:[%s6 + $0x8] sm:$0xff]
    %v9989 = vsel %vm9718, %v9986, 0
    %v9992 = vsel %vm9718, %v9987, 0
    %9994 = vmatpush.msra.mxu0 0.0
    %9995 = vmatpush.msra.mxu0 0.0
    %9996 = vmatpush.msra.mxu0 0.0
    %9997 = vmatpush.msra.mxu0 0.0
    %9998 = vmatpush.msra.mxu0 0.0
    %9999 = vmatpush.msra.mxu0 0.0
    %10000 = vmatpush.msra.mxu0 0.0
    %10001 = vmatpush.msra.mxu0 0.0
    %10002 = vmatpush.msra.mxu0 %v9960
    %10003 = vmatpush.msra.mxu0 %v9957
    %10004 = vmatpush.msra.mxu0 %v9954
    %10005 = vmatpush.msra.mxu0 %v9951
    %10006 = vmatpush.msra.mxu0 %v9948
    %10007 = vmatpush.msra.mxu0 %v9945
    %10008 = vmatpush.msra.mxu0 %v9942
    %10009 = vmatpush.msra.mxu0 %v9939
    %10010 = vmatmul.f32.gmra.mxu0 %v9989
    %v10011 = vpop.f32.mrf.mxu0
    %v10012 = vadd.f32 0.0, %v10011
    %10013 = vmatmul.f32.gmra.mxu0 %v9992
    %v10014 = vpop.f32.mrf.mxu0
    %v10015 = vadd.f32 0.0, %v10014
    %10016 = vdwg.mxu0
    %v10018 = vrot.slane %v10012, 1
    %10019 = vrot.lane.b32.xlu0 %v10018, 32
    %v10020 = vpop.permute.xlu0 %10019
    %v10022 = vrot.slane %v10012, 2
    %10023 = vrot.lane.b32.xlu0 %v10022, 64
    %v10024 = vpop.permute.xlu0 %10023
    %v10026 = vrot.slane %v10012, 3
    %10027 = vrot.lane.b32.xlu0 %v10026, 96
    %v10028 = vpop.permute.xlu0 %10027
    %v10030 = vrot.slane %v10012, 4
    %v10032 = vrot.slane %v10012, 5
    %10033 = vrot.lane.b32.xlu0 %v10032, 32
    %v10034 = vpop.permute.xlu0 %10033
    %v10036 = vrot.slane %v10012, 6
    %10037 = vrot.lane.b32.xlu0 %v10036, 64
    %v10038 = vpop.permute.xlu0 %10037
    %v10040 = vrot.slane %v10012, 7
    %10041 = vrot.lane.b32.xlu0 %v10040, 96
    %v10042 = vpop.permute.xlu0 %10041
    %v10045 = vrot.slane %v10015, 1
    %10046 = vrot.lane.b32.xlu0 %v10045, 32
    %v10047 = vpop.permute.xlu0 %10046
    %v10049 = vrot.slane %v10015, 2
    %10050 = vrot.lane.b32.xlu0 %v10049, 64
    %v10051 = vpop.permute.xlu0 %10050
    %v10053 = vrot.slane %v10015, 3
    %10054 = vrot.lane.b32.xlu0 %v10053, 96
    %v10055 = vpop.permute.xlu0 %10054
    %v10057 = vrot.slane %v10015, 4
    %v10059 = vrot.slane %v10015, 5
    %10060 = vrot.lane.b32.xlu0 %v10059, 32
    %v10061 = vpop.permute.xlu0 %10060
    %v10063 = vrot.slane %v10015, 6
    %10064 = vrot.lane.b32.xlu0 %v10063, 64
    %v10065 = vpop.permute.xlu0 %10064
    %v10067 = vrot.slane %v10015, 7
    %10068 = vrot.lane.b32.xlu0 %v10067, 96
    %v10069 = vpop.permute.xlu0 %10068
    %v10071 = vsel %vm9684, %v10012, %v10020
    %v10072 = vsel %vm9718, %v10071, %v10024
    %v10073 = vsel %vm9752, %v10072, %v10028
    %v10074 = vsel %vm9684, %v10030, %v10034
    %v10075 = vsel %vm9718, %v10074, %v10038
    %v10076 = vsel %vm9752, %v10075, %v10042
    %v10077 = vsel %vm9684, %v10015, %v10047
    %v10078 = vsel %vm9718, %v10077, %v10051
    %v10079 = vsel %vm9752, %v10078, %v10055
    %v10080 = vsel %vm9684, %v10057, %v10061
    %v10081 = vsel %vm9718, %v10080, %v10065
    %v10082 = vsel %vm9752, %v10081, %v10069
    %10083 = vmatpush.msra.mxu0 0.0
    %10084 = vmatpush.msra.mxu0 0.0
    %10085 = vmatpush.msra.mxu0 0.0
    %10086 = vmatpush.msra.mxu0 0.0
    %10087 = vmatpush.msra.mxu0 0.0
    %10088 = vmatpush.msra.mxu0 0.0
    %10089 = vmatpush.msra.mxu0 0.0
    %10090 = vmatpush.msra.mxu0 0.0
    %10091 = vmatpush.msra.mxu0 %v9984
    %10092 = vmatpush.msra.mxu0 %v9981
    %10093 = vmatpush.msra.mxu0 %v9978
    %10094 = vmatpush.msra.mxu0 %v9975
    %10095 = vmatpush.msra.mxu0 %v9972
    %10096 = vmatpush.msra.mxu0 %v9969
    %10097 = vmatpush.msra.mxu0 %v9966
    %10098 = vmatpush.msra.mxu0 %v9963
    %10099 = vmatmul.f32.gmra.mxu0 %v9989
    %v10100 = vpop.f32.mrf.mxu0
    %v10101 = vadd.f32 0.0, %v10100
    %10102 = vmatmul.f32.gmra.mxu0 %v9992
    %v10103 = vpop.f32.mrf.mxu0
    %v10104 = vadd.f32 0.0, %v10103
    %10105 = vdwg.mxu0
    %v10107 = vrot.slane %v10101, 1
    %10108 = vrot.lane.b32.xlu0 %v10107, 32
    %v10109 = vpop.permute.xlu0 %10108
    %v10111 = vrot.slane %v10101, 2
    %10112 = vrot.lane.b32.xlu0 %v10111, 64
    %v10113 = vpop.permute.xlu0 %10112
    %v10115 = vrot.slane %v10101, 3
    %10116 = vrot.lane.b32.xlu0 %v10115, 96
    %v10117 = vpop.permute.xlu0 %10116
    %v10119 = vrot.slane %v10101, 4
    %v10121 = vrot.slane %v10101, 5
    %10122 = vrot.lane.b32.xlu0 %v10121, 32
    %v10123 = vpop.permute.xlu0 %10122
    %v10125 = vrot.slane %v10101, 6
    %10126 = vrot.lane.b32.xlu0 %v10125, 64
    %v10127 = vpop.permute.xlu0 %10126
    %v10129 = vrot.slane %v10101, 7
    %10130 = vrot.lane.b32.xlu0 %v10129, 96
    %v10131 = vpop.permute.xlu0 %10130
    %v10134 = vrot.slane %v10104, 1
    %10135 = vrot.lane.b32.xlu0 %v10134, 32
    %v10136 = vpop.permute.xlu0 %10135
    %v10138 = vrot.slane %v10104, 2
    %10139 = vrot.lane.b32.xlu0 %v10138, 64
    %v10140 = vpop.permute.xlu0 %10139
    %v10142 = vrot.slane %v10104, 3
    %10143 = vrot.lane.b32.xlu0 %v10142, 96
    %v10144 = vpop.permute.xlu0 %10143
    %v10146 = vrot.slane %v10104, 4
    %v10148 = vrot.slane %v10104, 5
    %10149 = vrot.lane.b32.xlu0 %v10148, 32
    %v10150 = vpop.permute.xlu0 %10149
    %v10152 = vrot.slane %v10104, 6
    %10153 = vrot.lane.b32.xlu0 %v10152, 64
    %v10154 = vpop.permute.xlu0 %10153
    %v10156 = vrot.slane %v10104, 7
    %10157 = vrot.lane.b32.xlu0 %v10156, 96
    %v10158 = vpop.permute.xlu0 %10157
    %v10160 = vsel %vm9684, %v10101, %v10109
    %v10161 = vsel %vm9718, %v10160, %v10113
    %v10162 = vsel %vm9752, %v10161, %v10117
    %v10163 = vsel %vm9684, %v10119, %v10123
    %v10164 = vsel %vm9718, %v10163, %v10127
    %v10165 = vsel %vm9752, %v10164, %v10131
    %v10166 = vsel %vm9684, %v10104, %v10136
    %v10167 = vsel %vm9718, %v10166, %v10140
    %v10168 = vsel %vm9752, %v10167, %v10144
    %v10169 = vsel %vm9684, %v10146, %v10150
    %v10170 = vsel %vm9718, %v10169, %v10154
    %v10171 = vsel %vm9752, %v10170, %v10158
    %v10176 = vrot.slane %v10162, 7
    %v10177 = vrot.slane %v10165, 7
    %v10178 = vrot.slane %v10168, 7
    %v10179 = vrot.slane %v10171, 7
    %v10184 = vsel %vm1121, %v10073, %v10176
    %v10185 = vsel %vm1121, %v10076, %v10177
    %v10186 = vsel %vm1121, %v10079, %v10178
    %v10187 = vsel %vm1121, %v10082, %v10179
    %v10188 = vld [vmem:[%s7] sm:$0xff]
    %v10189 = vld [vmem:[%s7 + $0x8] sm:$0xff]
    %v10190 = vld [vmem:[%s7 + $0x10] sm:$0xff]
    %v10191 = vld [vmem:[%s7 + $0x18] sm:$0xff]
    %v10192 = vld [vmem:[%s7 + $0x20] sm:$0xff]
    %v10193 = vld [vmem:[%s7 + $0x28] sm:$0xff]
    %v10194 = vld [vmem:[%s7 + $0x30] sm:$0xff]
    %v10195 = vld [vmem:[%s7 + $0x38] sm:$0xff]
    %v10196 = vld [vmem:[%s7 + $0x40] sm:$0xff]
    %v10197 = vld [vmem:[%s7 + $0x48] sm:$0xff]
    %v10198 = vld [vmem:[%s7 + $0x50] sm:$0xff]
    %v10199 = vld [vmem:[%s7 + $0x58] sm:$0xff]
    %v10200 = vld [vmem:[%s7 + $0x60] sm:$0xff]
    %v10201 = vld [vmem:[%s7 + $0x68] sm:$0xff]
    %v10202 = vld [vmem:[%s7 + $0x70] sm:$0xff]
    %v10203 = vld [vmem:[%s7 + $0x78] sm:$0xff]
    %v10204 = vld [vmem:[%s7 + $0x80] sm:$0xff]
    %v10205 = vld [vmem:[%s7 + $0x88] sm:$0xff]
    %v10206 = vld [vmem:[%s7 + $0x90] sm:$0xff]
    %v10207 = vld [vmem:[%s7 + $0x98] sm:$0xff]
    %v10208 = vld [vmem:[%s7 + $0xa0] sm:$0xff]
    %v10209 = vld [vmem:[%s7 + $0xa8] sm:$0xff]
    %v10210 = vld [vmem:[%s7 + $0xb0] sm:$0xff]
    %v10211 = vld [vmem:[%s7 + $0xb8] sm:$0xff]
    %v10212 = vld [vmem:[%s7 + $0xc0] sm:$0xff]
    %v10213 = vld [vmem:[%s7 + $0xc8] sm:$0xff]
    %v10214 = vld [vmem:[%s7 + $0xd0] sm:$0xff]
    %v10215 = vld [vmem:[%s7 + $0xd8] sm:$0xff]
    %v10216 = vld [vmem:[%s7 + $0xe0] sm:$0xff]
    %v10217 = vld [vmem:[%s7 + $0xe8] sm:$0xff]
    %v10218 = vld [vmem:[%s7 + $0xf0] sm:$0xff]
    %v10219 = vld [vmem:[%s7 + $0xf8] sm:$0xff]
    %v10220 = vld [vmem:[%s7 + $0x100] sm:$0xff]
    %v10221 = vld [vmem:[%s7 + $0x108] sm:$0xff]
    %v10222 = vld [vmem:[%s7 + $0x110] sm:$0xff]
    %v10223 = vld [vmem:[%s7 + $0x118] sm:$0xff]
    %v10224 = vld [vmem:[%s7 + $0x120] sm:$0xff]
    %v10225 = vld [vmem:[%s7 + $0x128] sm:$0xff]
    %v10226 = vld [vmem:[%s7 + $0x130] sm:$0xff]
    %v10227 = vld [vmem:[%s7 + $0x138] sm:$0xff]
    %v10228 = vld [vmem:[%s7 + $0x140] sm:$0xff]
    %v10229 = vld [vmem:[%s7 + $0x148] sm:$0xff]
    %v10230 = vld [vmem:[%s7 + $0x150] sm:$0xff]
    %v10231 = vld [vmem:[%s7 + $0x158] sm:$0xff]
    %v10232 = vld [vmem:[%s7 + $0x160] sm:$0xff]
    %v10233 = vld [vmem:[%s7 + $0x168] sm:$0xff]
    %v10234 = vld [vmem:[%s7 + $0x170] sm:$0xff]
    %v10235 = vld [vmem:[%s7 + $0x178] sm:$0xff]
    %v10236 = vld [vmem:[%s7 + $0x180] sm:$0xff]
    %v10237 = vld [vmem:[%s7 + $0x188] sm:$0xff]
    %v10238 = vld [vmem:[%s7 + $0x190] sm:$0xff]
    %v10239 = vld [vmem:[%s7 + $0x198] sm:$0xff]
    %v10240 = vld [vmem:[%s7 + $0x1a0] sm:$0xff]
    %v10241 = vld [vmem:[%s7 + $0x1a8] sm:$0xff]
    %v10242 = vld [vmem:[%s7 + $0x1b0] sm:$0xff]
    %v10243 = vld [vmem:[%s7 + $0x1b8] sm:$0xff]
    %v10244 = vld [vmem:[%s7 + $0x1c0] sm:$0xff]
    %v10245 = vld [vmem:[%s7 + $0x1c8] sm:$0xff]
    %v10246 = vld [vmem:[%s7 + $0x1d0] sm:$0xff]
    %v10247 = vld [vmem:[%s7 + $0x1d8] sm:$0xff]
    %v10248 = vld [vmem:[%s7 + $0x1e0] sm:$0xff]
    %v10249 = vld [vmem:[%s7 + $0x1e8] sm:$0xff]
    %v10250 = vld [vmem:[%s7 + $0x1f0] sm:$0xff]
    %v10251 = vld [vmem:[%s7 + $0x1f8] sm:$0xff]
    %v10252 = vld [vmem:[%s8] sm:$0x1]
    %v10254 = vperm.slane %v10252, 0
    %10256 = vmatpush.msra.mxu0 %v10203
    %10257 = vmatpush.msra.mxu0 %v10202
    %10258 = vmatpush.msra.mxu0 %v10201
    %10259 = vmatpush.msra.mxu0 %v10200
    %10260 = vmatpush.msra.mxu0 %v10199
    %10261 = vmatpush.msra.mxu0 %v10198
    %10262 = vmatpush.msra.mxu0 %v10197
    %10263 = vmatpush.msra.mxu0 %v10196
    %10264 = vmatpush.msra.mxu0 %v10195
    %10265 = vmatpush.msra.mxu0 %v10194
    %10266 = vmatpush.msra.mxu0 %v10193
    %10267 = vmatpush.msra.mxu0 %v10192
    %10268 = vmatpush.msra.mxu0 %v10191
    %10269 = vmatpush.msra.mxu0 %v10190
    %10270 = vmatpush.msra.mxu0 %v10189
    %10271 = vmatpush.msra.mxu0 %v10188
    %10272 = vmatmul.f32.gmra.mxu0 %v10184
    %v10273 = vpop.f32.mrf.mxu0
    %v10274 = vadd.f32 %v10254, %v10273
    %10275 = vdwg.mxu0
    %10276 = vmatpush.msra.mxu0 %v10219
    %10277 = vmatpush.msra.mxu0 %v10218
    %10278 = vmatpush.msra.mxu0 %v10217
    %10279 = vmatpush.msra.mxu0 %v10216
    %10280 = vmatpush.msra.mxu0 %v10215
    %10281 = vmatpush.msra.mxu0 %v10214
    %10282 = vmatpush.msra.mxu0 %v10213
    %10283 = vmatpush.msra.mxu0 %v10212
    %10284 = vmatpush.msra.mxu0 %v10211
    %10285 = vmatpush.msra.mxu0 %v10210
    %10286 = vmatpush.msra.mxu0 %v10209
    %10287 = vmatpush.msra.mxu0 %v10208
    %10288 = vmatpush.msra.mxu0 %v10207
    %10289 = vmatpush.msra.mxu0 %v10206
    %10290 = vmatpush.msra.mxu0 %v10205
    %10291 = vmatpush.msra.mxu0 %v10204
    %10292 = vmatmul.f32.gmra.mxu0 %v10185
    %v10293 = vpop.f32.mrf.mxu0
    %v10294 = vadd.f32 %v10274, %v10293
    %10295 = vdwg.mxu0
    %10296 = vmatpush.msra.mxu0 %v10235
    %10297 = vmatpush.msra.mxu0 %v10234
    %10298 = vmatpush.msra.mxu0 %v10233
    %10299 = vmatpush.msra.mxu0 %v10232
    %10300 = vmatpush.msra.mxu0 %v10231
    %10301 = vmatpush.msra.mxu0 %v10230
    %10302 = vmatpush.msra.mxu0 %v10229
    %10303 = vmatpush.msra.mxu0 %v10228
    %10304 = vmatpush.msra.mxu0 %v10227
    %10305 = vmatpush.msra.mxu0 %v10226
    %10306 = vmatpush.msra.mxu0 %v10225
    %10307 = vmatpush.msra.mxu0 %v10224
    %10308 = vmatpush.msra.mxu0 %v10223
    %10309 = vmatpush.msra.mxu0 %v10222
    %10310 = vmatpush.msra.mxu0 %v10221
    %10311 = vmatpush.msra.mxu0 %v10220
    %10312 = vmatmul.f32.gmra.mxu0 %v10186
    %v10313 = vpop.f32.mrf.mxu0
    %v10314 = vadd.f32 %v10294, %v10313
    %10315 = vdwg.mxu0
    %10316 = vmatpush.msra.mxu0 %v10251
    %10317 = vmatpush.msra.mxu0 %v10250
    %10318 = vmatpush.msra.mxu0 %v10249
    %10319 = vmatpush.msra.mxu0 %v10248
    %10320 = vmatpush.msra.mxu0 %v10247
    %10321 = vmatpush.msra.mxu0 %v10246
    %10322 = vmatpush.msra.mxu0 %v10245
    %10323 = vmatpush.msra.mxu0 %v10244
    %10324 = vmatpush.msra.mxu0 %v10243
    %10325 = vmatpush.msra.mxu0 %v10242
    %10326 = vmatpush.msra.mxu0 %v10241
    %10327 = vmatpush.msra.mxu0 %v10240
    %10328 = vmatpush.msra.mxu0 %v10239
    %10329 = vmatpush.msra.mxu0 %v10238
    %10330 = vmatpush.msra.mxu0 %v10237
    %10331 = vmatpush.msra.mxu0 %v10236
    %10332 = vmatmul.f32.gmra.mxu0 %v10187
    %v10333 = vpop.f32.mrf.mxu0
    %v10334 = vadd.f32 %v10314, %v10333
    %10335 = vdwg.mxu0
    %vm10336 = vcmask 680960
    %10337 = vst.msk [vmem:[#allocation2] sm:$0x3] %vm10336, %v10334
    // Predicated region
    $region38: #{_forward_impl.1} parent=1 // pred_check
      _
    $region39: #{_forward_impl.1} parent=1 // pred_check_branch
      %10339 = sbr.rel (0) target = $region41
    $region40: #{_forward_impl.1} parent=1 // pred_region
      %10341 = vsyncadd [#allocation3], 0
      %s10343 = sshll.u32 [#allocation2], 4
      %s10344 = int_to_ptr.vmem [resolvable:$true] %s10343
      %s10345 = sshll.u32 %s9, 4
      %s10346 = int_to_ptr.hbm [resolvable:$true] %s10345
      %10348 = dma.vmem_to_hbm [thread:$0]  %s10344, 32, %s10346, [#allocation3]
    $region41: #{_forward_impl.1} parent=1 // pred_fallthru
      _
    // Predicated region
    $region42: #{_forward_impl.1} parent=1 // pred_check
      _
    $region43: #{_forward_impl.1} parent=1 // pred_check_branch
      %10350 = sbr.rel (0) target = $region45
    $region44: #{_forward_impl.1} parent=1 // pred_region
      %10352 = dma.done [#allocation3], 32
    $region45: #{_forward_impl.1} parent=1 // pred_fallthru
      _
    %10353 = vsyncpa [#allocation3], 1

</llo_original>
